<compile_context>
chip_gen: v6e
topology: v6e:2x2x1
jax: 0.10.0
libtpu: 0.0.40
codegen_flags: <defaults>
</compile_context>

<pallas_src>
import jax
import jax.numpy as jnp
from jax import lax
from jax.experimental import pallas as pl
from jax.experimental.pallas import tpu as pltpu

EPS = 1e-15

# --------------------------- in-kernel building blocks ---------------------------
_CONTRACT_0_0 = (((0,), (0,)), ((), ()))   # contract node axis of both operands (s^T x, s^T adj)
_CONTRACT_1_1 = (((1,), (1,)), ((), ()))   # contract cluster axis of both operands (s s^T)


def _with_self_loops(adj):
    """adj with diag forced to 1 (computed once per stage, shared by pool+embed GNNs)."""
    n = adj.shape[0]
    row = lax.broadcasted_iota(jnp.int32, (n, n), 0)
    col = lax.broadcasted_iota(jnp.int32, (n, n), 1)
    return jnp.where(row == col, jnp.float32(1.0), adj)


def _gcn2(x, adj_sl, w1, b1, w2, b2):
    """Two stacked dense GCN layers, each followed by ReLU: relu(adj @ (x @ W) + b)."""
    h = jnp.dot(x, w1, preferred_element_type=jnp.float32)
    h = jnp.dot(adj_sl, h, preferred_element_type=jnp.float32) + b1
    h = jnp.maximum(h, 0.0)
    h = jnp.dot(h, w2, preferred_element_type=jnp.float32)
    h = jnp.dot(adj_sl, h, preferred_element_type=jnp.float32) + b2
    return jnp.maximum(h, 0.0)


def _softmax_lastdim(logits):
    """Row softmax: one reciprocal per row + multiply (no K-wide broadcast divide)."""
    m = jnp.max(logits, axis=-1, keepdims=True)
    e = jnp.exp(logits - m)
    inv = 1.0 / jnp.sum(e, axis=-1, keepdims=True)
    return e * inv


def _pool_losses(s, adj):
    """Per-batch loss partials of dense_diff_pool: sum of squared link errors, entropy sum."""
    sst = lax.dot_general(s, s, _CONTRACT_1_1, preferred_element_type=jnp.float32)  # s s^T (N,N)
    diff = adj - sst
    link_sq = jnp.sum(diff * diff, keepdims=True)                                   # (1, 1)
    ent = jnp.sum(-s * jnp.log(s + EPS), keepdims=True)                             # (1, 1)
    return link_sq, ent


def _pool_x_adj(s, x_e, adj):
    """Pooled features/adjacency without materializing s^T."""
    ox = lax.dot_general(s, x_e, _CONTRACT_0_0, preferred_element_type=jnp.float32)  # s^T x   (K,C)
    sa = lax.dot_general(s, adj, _CONTRACT_0_0, preferred_element_type=jnp.float32)  # s^T adj (K,N)
    oadj = jnp.dot(sa, s, preferred_element_type=jnp.float32)                        # s^T adj s (K,K)
    return ox, oadj


# ------------------------------- fused forward kernel ------------------------------
def _diffpool_fused_kernel(
    x_ref, adj_ref,
    w64_ref, b64_ref,                       # stacked (8,64,64) weights / (8,1,64) biases
    p1w2_ref, p1b2_ref,                     # gnn1_pool layer-2   (64,2)/(1,2)
    p2w2_ref, p2b2_ref,                     # gnn2_pool layer-2   (64,5)/(1,5)
    p3w2_ref, p3b2_ref,                     # gnn3_pool layer-2   (64,500)/(1,500)
    e3w2_ref, e3b2_ref,                     # gnn3_embed layer-2  (64,20)/(1,20)
    oxT_ref, oadj_ref, loss_ref,
):
    """Full DiffPoolDec forward for ONE batch element (grid axis 0 = batch, 'parallel').

    Stacked-weight index order: 0=p1.w1, 1=e1.w1, 2=e1.w2, 3=p2.w1, 4=e2.w1, 5=e2.w2,
    6=p3.w1, 7=e3.w1 (same order for the stacked 64-wide biases)."""
    x = x_ref[0]        # (N, C)
    adj = adj_ref[0]    # (N, N)

    # ---------------- stage 1 ----------------
    adj_sl = _with_self_loops(adj)                                        # shared by 4 GCN layers
    s = _softmax_lastdim(_gcn2(x, adj_sl, w64_ref[0], b64_ref[0], p1w2_ref[...], p1b2_ref[...]))
    x_e = _gcn2(x, adj_sl, w64_ref[1], b64_ref[1], w64_ref[2], b64_ref[2])
    l1, e1 = _pool_losses(s, adj)
    x, adj = _pool_x_adj(s, x_e, adj)                                     # (2,64), (2,2)

    # ---------------- stage 2 ----------------
    adj_sl = _with_self_loops(adj)
    s = _softmax_lastdim(_gcn2(x, adj_sl, w64_ref[3], b64_ref[3], p2w2_ref[...], p2b2_ref[...]))
    x_e = _gcn2(x, adj_sl, w64_ref[4], b64_ref[4], w64_ref[5], b64_ref[5])
    l2, e2 = _pool_losses(s, adj)
    x, adj = _pool_x_adj(s, x_e, adj)                                     # (5,64), (5,5)

    # ------------- stage 3: results written directly to output refs -------------
    adj_sl = _with_self_loops(adj)
    s = _softmax_lastdim(_gcn2(x, adj_sl, w64_ref[6], b64_ref[6], p3w2_ref[...], p3b2_ref[...]))
    x_e = _gcn2(x, adj_sl, w64_ref[7], b64_ref[7], e3w2_ref[...], e3b2_ref[...])  # (5, 20)
    l3, e3 = _pool_losses(s, adj)

    # pooled x, transposed so the 500-wide cluster axis is on lanes: (Cout, K3) = (20, 500)
    oxT_ref[0] = lax.dot_general(x_e, s, _CONTRACT_0_0, preferred_element_type=jnp.float32)
    sa = lax.dot_general(s, adj, _CONTRACT_0_0, preferred_element_type=jnp.float32)   # (500, 5)
    oadj_ref[0] = jnp.dot(sa, s, preferred_element_type=jnp.float32)                  # (500, 500)

    # single small per-batch loss write: [l1, l2, l3, e1, e2, e3, 0, 0]
    col = lax.broadcasted_iota(jnp.int32, (1, 8), 1)
    zero = jnp.zeros((1, 8), jnp.float32)
    loss_vec = (jnp.where(col == 0, l1, zero) + jnp.where(col == 1, l2, zero)
                + jnp.where(col == 2, l3, zero) + jnp.where(col == 3, e1, zero)
                + jnp.where(col == 4, e2, zero) + jnp.where(col == 5, e3, zero))
    loss_ref[0] = loss_vec


def diffpool_dec_forward(params, x, adj):
    # TODO(synk): optional `mask` path of GCNConv / dense_diff_pool omitted (mask=None).
    B, N, C = x.shape

    w1p1, b1p1, w2p1, b2p1 = params["gnn1_pool"]
    w1e1, b1e1, w2e1, b2e1 = params["gnn1_embed"]
    w1p2, b1p2, w2p2, b2p2 = params["gnn2_pool"]
    w1e2, b1e2, w2e2, b2e2 = params["gnn2_embed"]
    w1p3, b1p3, w2p3, b2p3 = params["gnn3_pool"]
    w1e3, b1e3, w2e3, b2e3 = params["gnn3_embed"]

    # Stack all eight 64x64 weights / 64-wide biases into single constant-index blocks.
    w64 = jnp.stack([w1p1, w1e1, w2e1, w1p2, w1e2, w2e2, w1p3, w1e3], axis=0)            # (8,64,64)
    b64 = jnp.stack([b1p1, b1e1, b2e1, b1p2, b1e2, b2e2, b1p3, b1e3], axis=0)[:, None, :]  # (8,1,64)

    small = [w2p1, b2p1.reshape(1, -1), w2p2, b2p2.reshape(1, -1),
             w2p3, b2p3.reshape(1, -1), w2e3, b2e3.reshape(1, -1)]

    K1, K2, K3 = w2p1.shape[1], w2p2.shape[1], w2p3.shape[1]     # 2, 5, 500
    Cout = w2e3.shape[1]                                          # 20

    in_specs = [
        pl.BlockSpec((1, N, C), lambda b: (b, 0, 0)),
        pl.BlockSpec((1, N, N), lambda b: (b, 0, 0)),
        pl.BlockSpec(w64.shape, lambda b: (0, 0, 0)),
        pl.BlockSpec(b64.shape, lambda b: (0, 0, 0)),
    ] + [pl.BlockSpec(p.shape, lambda b: (0, 0)) for p in small]

    out_shape = (
        jax.ShapeDtypeStruct((B, Cout, K3), jnp.float32),   # pooled x, transposed (lane-dense)
        jax.ShapeDtypeStruct((B, K3, K3), jnp.float32),     # pooled adjacency
        jax.ShapeDtypeStruct((B, 1, 8), jnp.float32),       # [link1..3, ent1..3, pad, pad]
    )
    out_specs = (
        pl.BlockSpec((1, Cout, K3), lambda b: (b, 0, 0)),
        pl.BlockSpec((1, K3, K3), lambda b: (b, 0, 0)),
        pl.BlockSpec((1, 1, 8), lambda b: (b, 0, 0)),
    )

    xT_out, adj_out, loss_parts = pl.pallas_call(
        _diffpool_fused_kernel,
        out_shape=out_shape,
        grid=(B,),
        in_specs=in_specs,
        out_specs=out_specs,
        compiler_params=pltpu.CompilerParams(
            dimension_semantics=("parallel",),      # batch elems independent -> v7x 2 TCs
            vmem_limit_bytes=32 * 1024 * 1024,
        ),
    )(x, adj, w64, b64, *small)

    x_out = jnp.swapaxes(xT_out, 1, 2)               # undo the lane-dense transpose: (B, 500, 20)

    # Reduce per-batch partials to match PyTorch dense_diff_pool semantics:
    #   link_loss_i = sqrt(sum_b ||adj_b - s_b s_b^T||^2) / (B * N_i * N_i)
    #   ent_loss_i  = (sum_b sum_n entropy) / (B * N_i)
    n_stage = jnp.array([N, K1, K2], dtype=jnp.float32)          # node count entering each pool
    link_sums = jnp.sum(loss_parts[:, 0, 0:3], axis=0)           # (3,)
    ent_sums = jnp.sum(loss_parts[:, 0, 3:6], axis=0)            # (3,)
    link_loss = jnp.sum(jnp.sqrt(link_sums) / (B * n_stage * n_stage))
    ent_loss = jnp.sum(ent_sums / (B * n_stage))
    return x_out, adj_out, link_loss, ent_loss


# ------------------------------ parameters --------------------------------
def init_gcn(key, cin, cout):
    kw, kb = jax.random.split(key)
    w = jax.random.normal(kw, (cin, cout), jnp.float32) / jnp.sqrt(float(cin))
    b = jax.random.normal(kb, (cout,), jnp.float32) * 0.01
    return w, b


def init_gnn(key, cin, chid, cout):
    k1, k2 = jax.random.split(key)
    w1, b1 = init_gcn(k1, cin, chid)
    w2, b2 = init_gcn(k2, chid, cout)
    return (w1, b1, w2, b2)


def init_params(key):
    ks = jax.random.split(key, 6)
    return {
        "gnn1_pool": init_gnn(ks[0], 64, 64, 2),
        "gnn1_embed": init_gnn(ks[1], 64, 64, 64),
        "gnn2_pool": init_gnn(ks[2], 64, 64, 5),
        "gnn2_embed": init_gnn(ks[3], 64, 64, 64),
        "gnn3_pool": init_gnn(ks[4], 64, 64, 500),
        "gnn3_embed": init_gnn(ks[5], 64, 64, 20),
    }


# ------------------------------ pure-JAX reference --------------------------------
def _ref_forward(params, x, adj):
    def gcn(x, adj, w, b):
        n = adj.shape[-1]
        eye = jnp.eye(n, dtype=adj.dtype)
        adj_sl = jnp.where(eye > 0, 1.0, adj)
        return jnp.einsum("bij,bjc->bic", adj_sl, x @ w) + b

    def gnn(x, adj, p):
        w1, b1, w2, b2 = p
        x = jax.nn.relu(gcn(x, adj, w1, b1))
        return jax.nn.relu(gcn(x, adj, w2, b2))

    def diff_pool(x, adj, s):
        s = jax.nn.softmax(s, axis=-1)
        ox = jnp.einsum("bnk,bnc->bkc", s, x)
        oadj = jnp.einsum("bnk,bnm,bml->bkl", s, adj, s)
        link = jnp.sqrt(jnp.sum((adj - jnp.einsum("bnk,bmk->bnm", s, s)) ** 2)) / adj.size
        ent = jnp.mean(jnp.sum(-s * jnp.log(s + EPS), axis=-1))
        return ox, oadj, link, ent

    s = gnn(x, adj, params["gnn1_pool"]); xe = gnn(x, adj, params["gnn1_embed"])
    x, adj, l1, e1 = diff_pool(xe, adj, s)
    s = gnn(x, adj, params["gnn2_pool"]); xe = gnn(x, adj, params["gnn2_embed"])
    x, adj, l2, e2 = diff_pool(xe, adj, s)
    s = gnn(x, adj, params["gnn3_pool"]); xe = gnn(x, adj, params["gnn3_embed"])
    x, adj, l3, e3 = diff_pool(xe, adj, s)
    return x, adj, l1 + l2 + l3, e1 + e2 + e3


if __name__ == "__main__":
    key = jax.random.PRNGKey(0)
    kx, ka, kp = jax.random.split(key, 3)

    B, N, C = 2, 16, 64
    x = jax.random.normal(kx, (B, N, C), jnp.float32)
    a = jax.random.uniform(ka, (B, N, N), jnp.float32)
    adj = ((a + a.swapaxes(1, 2)) * 0.5 > 0.5).astype(jnp.float32)  # symmetric 0/1 adjacency

    params = init_params(kp)
    fwd = jax.jit(diffpool_dec_forward)
    x_out, adj_out, link_loss, ent_loss = fwd(params, x, adj)
    jax.block_until_ready((x_out, adj_out, link_loss, ent_loss))

    assert x_out.shape == (B, 500, 20)
    assert adj_out.shape == (B, 500, 500)
    assert link_loss.shape == () and ent_loss.shape == ()
    assert bool(jnp.all(jnp.isfinite(x_out))) and bool(jnp.all(jnp.isfinite(adj_out)))
    assert bool(jnp.isfinite(link_loss)) and bool(jnp.isfinite(ent_loss))

    # correctness vs. pure-JAX reference (loose tolerance: fp32 MXU vs XLA accumulation order)
    rx, radj, rlink, rent = _ref_forward(params, x, adj)
    assert bool(jnp.allclose(x_out, rx, rtol=2e-2, atol=2e-3))
    assert bool(jnp.allclose(adj_out, radj, rtol=2e-2, atol=2e-3))
    assert bool(jnp.allclose(link_loss, rlink, rtol=2e-2, atol=2e-3))
    assert bool(jnp.allclose(ent_loss, rent, rtol=2e-2, atol=2e-3))

    print("KERNEL_OK")
</pallas_src>

<mosaic_0001>
module attributes {stable_mosaic.version = 11 : i64} {
  func.func @_diffpool_fused_kernel(%arg0: i32, %arg1: memref<1x16x64xf32, #tpu.memory_space<vmem>>, %arg2: memref<1x16x16xf32, #tpu.memory_space<vmem>>, %arg3: memref<8x64x64xf32, #tpu.memory_space<vmem>>, %arg4: memref<8x1x64xf32, #tpu.memory_space<vmem>>, %arg5: memref<64x2xf32, #tpu.memory_space<vmem>>, %arg6: memref<1x2xf32, #tpu.memory_space<vmem>>, %arg7: memref<64x5xf32, #tpu.memory_space<vmem>>, %arg8: memref<1x5xf32, #tpu.memory_space<vmem>>, %arg9: memref<64x500xf32, #tpu.memory_space<vmem>>, %arg10: memref<1x500xf32, #tpu.memory_space<vmem>>, %arg11: memref<64x20xf32, #tpu.memory_space<vmem>>, %arg12: memref<1x20xf32, #tpu.memory_space<vmem>>, %arg13: memref<1x20x500xf32, #tpu.memory_space<vmem>>, %arg14: memref<1x500x500xf32, #tpu.memory_space<vmem>>, %arg15: memref<1x1x8xf32, #tpu.memory_space<vmem>>) attributes {dimension_semantics = [#tpu.dimension_semantics<parallel>], iteration_bounds = array<i64: 2>, scalar_prefetch = 0 : i64, scratch_operands = 0 : i64, tpu.core_type = #tpu.core_type<tc>, window_params = [{transform_indices = @transform_0, window_bounds = array<i64: 1, 16, 64>}, {transform_indices = @transform_1, window_bounds = array<i64: 1, 16, 16>}, {pipeline_mode = #tpu.pipeline_mode<synchronous>, transform_indices = @transform_2, window_bounds = array<i64: 8, 64, 64>}, {pipeline_mode = #tpu.pipeline_mode<synchronous>, transform_indices = @transform_3, window_bounds = array<i64: 8, 1, 64>}, {pipeline_mode = #tpu.pipeline_mode<synchronous>, transform_indices = @transform_4, window_bounds = array<i64: 64, 2>}, {pipeline_mode = #tpu.pipeline_mode<synchronous>, transform_indices = @transform_5, window_bounds = array<i64: 1, 2>}, {pipeline_mode = #tpu.pipeline_mode<synchronous>, transform_indices = @transform_6, window_bounds = array<i64: 64, 5>}, {pipeline_mode = #tpu.pipeline_mode<synchronous>, transform_indices = @transform_7, window_bounds = array<i64: 1, 5>}, {pipeline_mode = #tpu.pipeline_mode<synchronous>, transform_indices = @transform_8, window_bounds = array<i64: 64, 500>}, {pipeline_mode = #tpu.pipeline_mode<synchronous>, transform_indices = @transform_9, window_bounds = array<i64: 1, 500>}, {pipeline_mode = #tpu.pipeline_mode<synchronous>, transform_indices = @transform_10, window_bounds = array<i64: 64, 20>}, {pipeline_mode = #tpu.pipeline_mode<synchronous>, transform_indices = @transform_11, window_bounds = array<i64: 1, 20>}, {transform_indices = @transform_12, window_bounds = array<i64: 1, 20, 500>}, {transform_indices = @transform_13, window_bounds = array<i64: 1, 500, 500>}, {transform_indices = @transform_14, window_bounds = array<i64: 1, 1, 8>}]} {
    %c0 = arith.constant 0 : index
    %c0_0 = arith.constant 0 : index
    %c0_1 = arith.constant 0 : index
    %0 = vector.load %arg1[%c0, %c0_0, %c0_1] : memref<1x16x64xf32, #tpu.memory_space<vmem>>, vector<1x16x64xf32>
    %1 = vector.shape_cast %0 : vector<1x16x64xf32> to vector<16x64xf32>
    %c0_2 = arith.constant 0 : index
    %c0_3 = arith.constant 0 : index
    %c0_4 = arith.constant 0 : index
    %2 = vector.load %arg2[%c0_2, %c0_3, %c0_4] : memref<1x16x16xf32, #tpu.memory_space<vmem>>, vector<1x16x16xf32>
    %3 = vector.shape_cast %2 : vector<1x16x16xf32> to vector<16x16xf32>
    %4 = tpu.iota {dimensions = array<i32: 0>} : vector<16x16xi32>
    %5 = tpu.iota {dimensions = array<i32: 1>} : vector<16x16xi32>
    %6 = arith.cmpi eq, %4, %5 : vector<16x16xi32>
    %cst = arith.constant 1.000000e+00 : f32
    %7 = vector.broadcast %cst : f32 to vector<16x16xf32>
    %8 = arith.select %6, %7, %3 : vector<16x16xi1>, vector<16x16xf32>
    %c0_5 = arith.constant 0 : index
    %c0_6 = arith.constant 0 : index
    %c0_7 = arith.constant 0 : index
    %9 = vector.load %arg3[%c0_5, %c0_6, %c0_7] : memref<8x64x64xf32, #tpu.memory_space<vmem>>, vector<1x64x64xf32>
    %10 = vector.shape_cast %9 : vector<1x64x64xf32> to vector<64x64xf32>
    %c0_8 = arith.constant 0 : index
    %c0_9 = arith.constant 0 : index
    %c0_10 = arith.constant 0 : index
    %11 = vector.load %arg4[%c0_8, %c0_9, %c0_10] : memref<8x1x64xf32, #tpu.memory_space<vmem>>, vector<1x1x64xf32>
    %12 = vector.shape_cast %11 : vector<1x1x64xf32> to vector<1x64xf32>
    %c0_11 = arith.constant 0 : index
    %c0_12 = arith.constant 0 : index
    %13 = vector.load %arg5[%c0_11, %c0_12] : memref<64x2xf32, #tpu.memory_space<vmem>>, vector<64x2xf32>
    %c0_13 = arith.constant 0 : index
    %c0_14 = arith.constant 0 : index
    %14 = vector.load %arg6[%c0_13, %c0_14] : memref<1x2xf32, #tpu.memory_space<vmem>>, vector<1x2xf32>
    %cst_15 = arith.constant dense<0.000000e+00> : vector<16x64xf32>
    %15 = tpu.matmul %1, %10, %cst_15 {dimension_numbers = #tpu.dot_dimension_numbers<[1], [0], [0], [1], [0, 0, 1, 1], [], []>} : vector<16x64xf32>, vector<64x64xf32>, vector<16x64xf32> -> vector<16x64xf32>
    %cst_16 = arith.constant dense<0.000000e+00> : vector<16x64xf32>
    %16 = tpu.matmul %8, %15, %cst_16 {dimension_numbers = #tpu.dot_dimension_numbers<[1], [0], [0], [1], [0, 0, 1, 1], [], []>} : vector<16x16xf32>, vector<16x64xf32>, vector<16x64xf32> -> vector<16x64xf32>
    %17 = vector.broadcast %12 : vector<1x64xf32> to vector<16x64xf32>
    %18 = arith.addf %16, %17 : vector<16x64xf32>
    %cst_17 = arith.constant 0.000000e+00 : f32
    %19 = vector.broadcast %cst_17 : f32 to vector<16x64xf32>
    %20 = arith.maximumf %18, %19 : vector<16x64xf32>
    %cst_18 = arith.constant dense<0.000000e+00> : vector<16x2xf32>
    %21 = tpu.matmul %20, %13, %cst_18 {dimension_numbers = #tpu.dot_dimension_numbers<[1], [0], [0], [1], [0, 0, 1, 1], [], []>} : vector<16x64xf32>, vector<64x2xf32>, vector<16x2xf32> -> vector<16x2xf32>
    %cst_19 = arith.constant dense<0.000000e+00> : vector<16x2xf32>
    %22 = tpu.matmul %8, %21, %cst_19 {dimension_numbers = #tpu.dot_dimension_numbers<[1], [0], [0], [1], [0, 0, 1, 1], [], []>} : vector<16x16xf32>, vector<16x2xf32>, vector<16x2xf32> -> vector<16x2xf32>
    %23 = vector.broadcast %14 : vector<1x2xf32> to vector<16x2xf32>
    %24 = arith.addf %22, %23 : vector<16x2xf32>
    %cst_20 = arith.constant 0.000000e+00 : f32
    %25 = vector.broadcast %cst_20 : f32 to vector<16x2xf32>
    %26 = arith.maximumf %24, %25 : vector<16x2xf32>
    %cst_21 = arith.constant dense<0xFF800000> : vector<16xf32>
    %27 = vector.multi_reduction <maximumf>, %26, %cst_21 [1] : vector<16x2xf32> to vector<16xf32>
    %28 = vector.shape_cast %27 : vector<16xf32> to vector<16x1xf32>
    %29 = vector.broadcast %28 : vector<16x1xf32> to vector<16x2xf32>
    %30 = arith.subf %26, %29 : vector<16x2xf32>
    %31 = math.exp %30 : vector<16x2xf32>
    %cst_22 = arith.constant dense<0.000000e+00> : vector<16xf32>
    %32 = vector.multi_reduction <add>, %31, %cst_22 [1] : vector<16x2xf32> to vector<16xf32>
    %33 = vector.shape_cast %32 : vector<16xf32> to vector<16x1xf32>
    %cst_23 = arith.constant 1.000000e+00 : f32
    %34 = vector.broadcast %cst_23 : f32 to vector<16x1xf32>
    %35 = arith.divf %34, %33 : vector<16x1xf32>
    %36 = vector.broadcast %35 : vector<16x1xf32> to vector<16x2xf32>
    %37 = arith.mulf %31, %36 : vector<16x2xf32>
    %c1 = arith.constant 1 : index
    %c0_24 = arith.constant 0 : index
    %c0_25 = arith.constant 0 : index
    %38 = vector.load %arg3[%c1, %c0_24, %c0_25] : memref<8x64x64xf32, #tpu.memory_space<vmem>>, vector<1x64x64xf32>
    %39 = vector.shape_cast %38 : vector<1x64x64xf32> to vector<64x64xf32>
    %c1_26 = arith.constant 1 : index
    %c0_27 = arith.constant 0 : index
    %c0_28 = arith.constant 0 : index
    %40 = vector.load %arg4[%c1_26, %c0_27, %c0_28] : memref<8x1x64xf32, #tpu.memory_space<vmem>>, vector<1x1x64xf32>
    %41 = vector.shape_cast %40 : vector<1x1x64xf32> to vector<1x64xf32>
    %c2 = arith.constant 2 : index
    %c0_29 = arith.constant 0 : index
    %c0_30 = arith.constant 0 : index
    %42 = vector.load %arg3[%c2, %c0_29, %c0_30] : memref<8x64x64xf32, #tpu.memory_space<vmem>>, vector<1x64x64xf32>
    %43 = vector.shape_cast %42 : vector<1x64x64xf32> to vector<64x64xf32>
    %c2_31 = arith.constant 2 : index
    %c0_32 = arith.constant 0 : index
    %c0_33 = arith.constant 0 : index
    %44 = vector.load %arg4[%c2_31, %c0_32, %c0_33] : memref<8x1x64xf32, #tpu.memory_space<vmem>>, vector<1x1x64xf32>
    %45 = vector.shape_cast %44 : vector<1x1x64xf32> to vector<1x64xf32>
    %cst_34 = arith.constant dense<0.000000e+00> : vector<16x64xf32>
    %46 = tpu.matmul %1, %39, %cst_34 {dimension_numbers = #tpu.dot_dimension_numbers<[1], [0], [0], [1], [0, 0, 1, 1], [], []>} : vector<16x64xf32>, vector<64x64xf32>, vector<16x64xf32> -> vector<16x64xf32>
    %cst_35 = arith.constant dense<0.000000e+00> : vector<16x64xf32>
    %47 = tpu.matmul %8, %46, %cst_35 {dimension_numbers = #tpu.dot_dimension_numbers<[1], [0], [0], [1], [0, 0, 1, 1], [], []>} : vector<16x16xf32>, vector<16x64xf32>, vector<16x64xf32> -> vector<16x64xf32>
    %48 = vector.broadcast %41 : vector<1x64xf32> to vector<16x64xf32>
    %49 = arith.addf %47, %48 : vector<16x64xf32>
    %cst_36 = arith.constant 0.000000e+00 : f32
    %50 = vector.broadcast %cst_36 : f32 to vector<16x64xf32>
    %51 = arith.maximumf %49, %50 : vector<16x64xf32>
    %cst_37 = arith.constant dense<0.000000e+00> : vector<16x64xf32>
    %52 = tpu.matmul %51, %43, %cst_37 {dimension_numbers = #tpu.dot_dimension_numbers<[1], [0], [0], [1], [0, 0, 1, 1], [], []>} : vector<16x64xf32>, vector<64x64xf32>, vector<16x64xf32> -> vector<16x64xf32>
    %cst_38 = arith.constant dense<0.000000e+00> : vector<16x64xf32>
    %53 = tpu.matmul %8, %52, %cst_38 {dimension_numbers = #tpu.dot_dimension_numbers<[1], [0], [0], [1], [0, 0, 1, 1], [], []>} : vector<16x16xf32>, vector<16x64xf32>, vector<16x64xf32> -> vector<16x64xf32>
    %54 = vector.broadcast %45 : vector<1x64xf32> to vector<16x64xf32>
    %55 = arith.addf %53, %54 : vector<16x64xf32>
    %cst_39 = arith.constant 0.000000e+00 : f32
    %56 = vector.broadcast %cst_39 : f32 to vector<16x64xf32>
    %57 = arith.maximumf %55, %56 : vector<16x64xf32>
    %cst_40 = arith.constant dense<0.000000e+00> : vector<16x16xf32>
    %58 = tpu.matmul %37, %37, %cst_40 {dimension_numbers = #tpu.dot_dimension_numbers<[1], [1], [0], [0], [0, 0, 1, 0], [], []>} : vector<16x2xf32>, vector<16x2xf32>, vector<16x16xf32> -> vector<16x16xf32>
    %59 = arith.subf %3, %58 : vector<16x16xf32>
    %60 = arith.mulf %59, %59 : vector<16x16xf32>
    %61 = vector.shape_cast %60 : vector<16x16xf32> to vector<1x16x16xf32>
    %cst_41 = arith.constant dense<0.000000e+00> : vector<1xf32>
    %62 = vector.multi_reduction <add>, %61, %cst_41 [1, 2] : vector<1x16x16xf32> to vector<1xf32>
    %63 = vector.shape_cast %62 : vector<1xf32> to vector<1x1x1xf32>
    %64 = vector.extract %63[0, 0, 0] : f32 from vector<1x1x1xf32>
    %65 = vector.broadcast %64 : f32 to vector<1x1xf32>
    %cst_42 = arith.constant 0.000000e+00 : f32
    %66 = vector.broadcast %cst_42 : f32 to vector<16x2xf32>
    %67 = arith.subf %66, %37 : vector<16x2xf32>
    %cst_43 = arith.constant 1.000000e-15 : f32
    %68 = vector.broadcast %cst_43 : f32 to vector<16x2xf32>
    %69 = arith.addf %37, %68 : vector<16x2xf32>
    %70 = math.log %69 : vector<16x2xf32>
    %71 = arith.mulf %67, %70 : vector<16x2xf32>
    %72 = vector.shape_cast %71 : vector<16x2xf32> to vector<1x16x2xf32>
    %cst_44 = arith.constant dense<0.000000e+00> : vector<1xf32>
    %73 = vector.multi_reduction <add>, %72, %cst_44 [1, 2] : vector<1x16x2xf32> to vector<1xf32>
    %74 = vector.shape_cast %73 : vector<1xf32> to vector<1x1x1xf32>
    %75 = vector.extract %74[0, 0, 0] : f32 from vector<1x1x1xf32>
    %76 = vector.broadcast %75 : f32 to vector<1x1xf32>
    %cst_45 = arith.constant dense<0.000000e+00> : vector<2x64xf32>
    %77 = tpu.matmul %37, %57, %cst_45 {dimension_numbers = #tpu.dot_dimension_numbers<[0], [0], [1], [1], [0, 1, 1, 1], [], []>} : vector<16x2xf32>, vector<16x64xf32>, vector<2x64xf32> -> vector<2x64xf32>
    %cst_46 = arith.constant dense<0.000000e+00> : vector<2x16xf32>
    %78 = tpu.matmul %37, %3, %cst_46 {dimension_numbers = #tpu.dot_dimension_numbers<[0], [0], [1], [1], [0, 1, 1, 1], [], []>} : vector<16x2xf32>, vector<16x16xf32>, vector<2x16xf32> -> vector<2x16xf32>
    %cst_47 = arith.constant dense<0.000000e+00> : vector<2x2xf32>
    %79 = tpu.matmul %78, %37, %cst_47 {dimension_numbers = #tpu.dot_dimension_numbers<[1], [0], [0], [1], [0, 0, 1, 1], [], []>} : vector<2x16xf32>, vector<16x2xf32>, vector<2x2xf32> -> vector<2x2xf32>
    %80 = tpu.iota {dimensions = array<i32: 0>} : vector<2x2xi32>
    %81 = tpu.iota {dimensions = array<i32: 1>} : vector<2x2xi32>
    %82 = arith.cmpi eq, %80, %81 : vector<2x2xi32>
    %cst_48 = arith.constant 1.000000e+00 : f32
    %83 = vector.broadcast %cst_48 : f32 to vector<2x2xf32>
    %84 = arith.select %82, %83, %79 : vector<2x2xi1>, vector<2x2xf32>
    %c3 = arith.constant 3 : index
    %c0_49 = arith.constant 0 : index
    %c0_50 = arith.constant 0 : index
    %85 = vector.load %arg3[%c3, %c0_49, %c0_50] : memref<8x64x64xf32, #tpu.memory_space<vmem>>, vector<1x64x64xf32>
    %86 = vector.shape_cast %85 : vector<1x64x64xf32> to vector<64x64xf32>
    %c3_51 = arith.constant 3 : index
    %c0_52 = arith.constant 0 : index
    %c0_53 = arith.constant 0 : index
    %87 = vector.load %arg4[%c3_51, %c0_52, %c0_53] : memref<8x1x64xf32, #tpu.memory_space<vmem>>, vector<1x1x64xf32>
    %88 = vector.shape_cast %87 : vector<1x1x64xf32> to vector<1x64xf32>
    %c0_54 = arith.constant 0 : index
    %c0_55 = arith.constant 0 : index
    %89 = vector.load %arg7[%c0_54, %c0_55] : memref<64x5xf32, #tpu.memory_space<vmem>>, vector<64x5xf32>
    %c0_56 = arith.constant 0 : index
    %c0_57 = arith.constant 0 : index
    %90 = vector.load %arg8[%c0_56, %c0_57] : memref<1x5xf32, #tpu.memory_space<vmem>>, vector<1x5xf32>
    %cst_58 = arith.constant dense<0.000000e+00> : vector<2x64xf32>
    %91 = tpu.matmul %77, %86, %cst_58 {dimension_numbers = #tpu.dot_dimension_numbers<[1], [0], [0], [1], [0, 0, 1, 1], [], []>} : vector<2x64xf32>, vector<64x64xf32>, vector<2x64xf32> -> vector<2x64xf32>
    %cst_59 = arith.constant dense<0.000000e+00> : vector<2x64xf32>
    %92 = tpu.matmul %84, %91, %cst_59 {dimension_numbers = #tpu.dot_dimension_numbers<[1], [0], [0], [1], [0, 0, 1, 1], [], []>} : vector<2x2xf32>, vector<2x64xf32>, vector<2x64xf32> -> vector<2x64xf32>
    %93 = vector.broadcast %88 : vector<1x64xf32> to vector<2x64xf32>
    %94 = arith.addf %92, %93 : vector<2x64xf32>
    %cst_60 = arith.constant 0.000000e+00 : f32
    %95 = vector.broadcast %cst_60 : f32 to vector<2x64xf32>
    %96 = arith.maximumf %94, %95 : vector<2x64xf32>
    %cst_61 = arith.constant dense<0.000000e+00> : vector<2x5xf32>
    %97 = tpu.matmul %96, %89, %cst_61 {dimension_numbers = #tpu.dot_dimension_numbers<[1], [0], [0], [1], [0, 0, 1, 1], [], []>} : vector<2x64xf32>, vector<64x5xf32>, vector<2x5xf32> -> vector<2x5xf32>
    %cst_62 = arith.constant dense<0.000000e+00> : vector<2x5xf32>
    %98 = tpu.matmul %84, %97, %cst_62 {dimension_numbers = #tpu.dot_dimension_numbers<[1], [0], [0], [1], [0, 0, 1, 1], [], []>} : vector<2x2xf32>, vector<2x5xf32>, vector<2x5xf32> -> vector<2x5xf32>
    %99 = vector.broadcast %90 : vector<1x5xf32> to vector<2x5xf32>
    %100 = arith.addf %98, %99 : vector<2x5xf32>
    %cst_63 = arith.constant 0.000000e+00 : f32
    %101 = vector.broadcast %cst_63 : f32 to vector<2x5xf32>
    %102 = arith.maximumf %100, %101 : vector<2x5xf32>
    %cst_64 = arith.constant dense<0xFF800000> : vector<2xf32>
    %103 = vector.multi_reduction <maximumf>, %102, %cst_64 [1] : vector<2x5xf32> to vector<2xf32>
    %104 = vector.shape_cast %103 : vector<2xf32> to vector<2x1xf32>
    %105 = vector.broadcast %104 : vector<2x1xf32> to vector<2x5xf32>
    %106 = arith.subf %102, %105 : vector<2x5xf32>
    %107 = math.exp %106 : vector<2x5xf32>
    %cst_65 = arith.constant dense<0.000000e+00> : vector<2xf32>
    %108 = vector.multi_reduction <add>, %107, %cst_65 [1] : vector<2x5xf32> to vector<2xf32>
    %109 = vector.shape_cast %108 : vector<2xf32> to vector<2x1xf32>
    %cst_66 = arith.constant 1.000000e+00 : f32
    %110 = vector.broadcast %cst_66 : f32 to vector<2x1xf32>
    %111 = arith.divf %110, %109 : vector<2x1xf32>
    %112 = vector.broadcast %111 : vector<2x1xf32> to vector<2x5xf32>
    %113 = arith.mulf %107, %112 : vector<2x5xf32>
    %c4 = arith.constant 4 : index
    %c0_67 = arith.constant 0 : index
    %c0_68 = arith.constant 0 : index
    %114 = vector.load %arg3[%c4, %c0_67, %c0_68] : memref<8x64x64xf32, #tpu.memory_space<vmem>>, vector<1x64x64xf32>
    %115 = vector.shape_cast %114 : vector<1x64x64xf32> to vector<64x64xf32>
    %c4_69 = arith.constant 4 : index
    %c0_70 = arith.constant 0 : index
    %c0_71 = arith.constant 0 : index
    %116 = vector.load %arg4[%c4_69, %c0_70, %c0_71] : memref<8x1x64xf32, #tpu.memory_space<vmem>>, vector<1x1x64xf32>
    %117 = vector.shape_cast %116 : vector<1x1x64xf32> to vector<1x64xf32>
    %c5 = arith.constant 5 : index
    %c0_72 = arith.constant 0 : index
    %c0_73 = arith.constant 0 : index
    %118 = vector.load %arg3[%c5, %c0_72, %c0_73] : memref<8x64x64xf32, #tpu.memory_space<vmem>>, vector<1x64x64xf32>
    %119 = vector.shape_cast %118 : vector<1x64x64xf32> to vector<64x64xf32>
    %c5_74 = arith.constant 5 : index
    %c0_75 = arith.constant 0 : index
    %c0_76 = arith.constant 0 : index
    %120 = vector.load %arg4[%c5_74, %c0_75, %c0_76] : memref<8x1x64xf32, #tpu.memory_space<vmem>>, vector<1x1x64xf32>
    %121 = vector.shape_cast %120 : vector<1x1x64xf32> to vector<1x64xf32>
    %cst_77 = arith.constant dense<0.000000e+00> : vector<2x64xf32>
    %122 = tpu.matmul %77, %115, %cst_77 {dimension_numbers = #tpu.dot_dimension_numbers<[1], [0], [0], [1], [0, 0, 1, 1], [], []>} : vector<2x64xf32>, vector<64x64xf32>, vector<2x64xf32> -> vector<2x64xf32>
    %cst_78 = arith.constant dense<0.000000e+00> : vector<2x64xf32>
    %123 = tpu.matmul %84, %122, %cst_78 {dimension_numbers = #tpu.dot_dimension_numbers<[1], [0], [0], [1], [0, 0, 1, 1], [], []>} : vector<2x2xf32>, vector<2x64xf32>, vector<2x64xf32> -> vector<2x64xf32>
    %124 = vector.broadcast %117 : vector<1x64xf32> to vector<2x64xf32>
    %125 = arith.addf %123, %124 : vector<2x64xf32>
    %cst_79 = arith.constant 0.000000e+00 : f32
    %126 = vector.broadcast %cst_79 : f32 to vector<2x64xf32>
    %127 = arith.maximumf %125, %126 : vector<2x64xf32>
    %cst_80 = arith.constant dense<0.000000e+00> : vector<2x64xf32>
    %128 = tpu.matmul %127, %119, %cst_80 {dimension_numbers = #tpu.dot_dimension_numbers<[1], [0], [0], [1], [0, 0, 1, 1], [], []>} : vector<2x64xf32>, vector<64x64xf32>, vector<2x64xf32> -> vector<2x64xf32>
    %cst_81 = arith.constant dense<0.000000e+00> : vector<2x64xf32>
    %129 = tpu.matmul %84, %128, %cst_81 {dimension_numbers = #tpu.dot_dimension_numbers<[1], [0], [0], [1], [0, 0, 1, 1], [], []>} : vector<2x2xf32>, vector<2x64xf32>, vector<2x64xf32> -> vector<2x64xf32>
    %130 = vector.broadcast %121 : vector<1x64xf32> to vector<2x64xf32>
    %131 = arith.addf %129, %130 : vector<2x64xf32>
    %cst_82 = arith.constant 0.000000e+00 : f32
    %132 = vector.broadcast %cst_82 : f32 to vector<2x64xf32>
    %133 = arith.maximumf %131, %132 : vector<2x64xf32>
    %cst_83 = arith.constant dense<0.000000e+00> : vector<2x2xf32>
    %134 = tpu.matmul %113, %113, %cst_83 {dimension_numbers = #tpu.dot_dimension_numbers<[1], [1], [0], [0], [0, 0, 1, 0], [], []>} : vector<2x5xf32>, vector<2x5xf32>, vector<2x2xf32> -> vector<2x2xf32>
    %135 = arith.subf %79, %134 : vector<2x2xf32>
    %136 = arith.mulf %135, %135 : vector<2x2xf32>
    %137 = vector.shape_cast %136 : vector<2x2xf32> to vector<1x2x2xf32>
    %cst_84 = arith.constant dense<0.000000e+00> : vector<1xf32>
    %138 = vector.multi_reduction <add>, %137, %cst_84 [1, 2] : vector<1x2x2xf32> to vector<1xf32>
    %139 = vector.shape_cast %138 : vector<1xf32> to vector<1x1x1xf32>
    %140 = vector.extract %139[0, 0, 0] : f32 from vector<1x1x1xf32>
    %141 = vector.broadcast %140 : f32 to vector<1x1xf32>
    %cst_85 = arith.constant 0.000000e+00 : f32
    %142 = vector.broadcast %cst_85 : f32 to vector<2x5xf32>
    %143 = arith.subf %142, %113 : vector<2x5xf32>
    %cst_86 = arith.constant 1.000000e-15 : f32
    %144 = vector.broadcast %cst_86 : f32 to vector<2x5xf32>
    %145 = arith.addf %113, %144 : vector<2x5xf32>
    %146 = math.log %145 : vector<2x5xf32>
    %147 = arith.mulf %143, %146 : vector<2x5xf32>
    %148 = vector.shape_cast %147 : vector<2x5xf32> to vector<1x2x5xf32>
    %cst_87 = arith.constant dense<0.000000e+00> : vector<1xf32>
    %149 = vector.multi_reduction <add>, %148, %cst_87 [1, 2] : vector<1x2x5xf32> to vector<1xf32>
    %150 = vector.shape_cast %149 : vector<1xf32> to vector<1x1x1xf32>
    %151 = vector.extract %150[0, 0, 0] : f32 from vector<1x1x1xf32>
    %152 = vector.broadcast %151 : f32 to vector<1x1xf32>
    %cst_88 = arith.constant dense<0.000000e+00> : vector<5x64xf32>
    %153 = tpu.matmul %113, %133, %cst_88 {dimension_numbers = #tpu.dot_dimension_numbers<[0], [0], [1], [1], [0, 1, 1, 1], [], []>} : vector<2x5xf32>, vector<2x64xf32>, vector<5x64xf32> -> vector<5x64xf32>
    %cst_89 = arith.constant dense<0.000000e+00> : vector<5x2xf32>
    %154 = tpu.matmul %113, %79, %cst_89 {dimension_numbers = #tpu.dot_dimension_numbers<[0], [0], [1], [1], [0, 1, 1, 1], [], []>} : vector<2x5xf32>, vector<2x2xf32>, vector<5x2xf32> -> vector<5x2xf32>
    %cst_90 = arith.constant dense<0.000000e+00> : vector<5x5xf32>
    %155 = tpu.matmul %154, %113, %cst_90 {dimension_numbers = #tpu.dot_dimension_numbers<[1], [0], [0], [1], [0, 0, 1, 1], [], []>} : vector<5x2xf32>, vector<2x5xf32>, vector<5x5xf32> -> vector<5x5xf32>
    %156 = tpu.iota {dimensions = array<i32: 0>} : vector<5x5xi32>
    %157 = tpu.iota {dimensions = array<i32: 1>} : vector<5x5xi32>
    %158 = arith.cmpi eq, %156, %157 : vector<5x5xi32>
    %cst_91 = arith.constant 1.000000e+00 : f32
    %159 = vector.broadcast %cst_91 : f32 to vector<5x5xf32>
    %160 = arith.select %158, %159, %155 : vector<5x5xi1>, vector<5x5xf32>
    %c6 = arith.constant 6 : index
    %c0_92 = arith.constant 0 : index
    %c0_93 = arith.constant 0 : index
    %161 = vector.load %arg3[%c6, %c0_92, %c0_93] : memref<8x64x64xf32, #tpu.memory_space<vmem>>, vector<1x64x64xf32>
    %162 = vector.shape_cast %161 : vector<1x64x64xf32> to vector<64x64xf32>
    %c6_94 = arith.constant 6 : index
    %c0_95 = arith.constant 0 : index
    %c0_96 = arith.constant 0 : index
    %163 = vector.load %arg4[%c6_94, %c0_95, %c0_96] : memref<8x1x64xf32, #tpu.memory_space<vmem>>, vector<1x1x64xf32>
    %164 = vector.shape_cast %163 : vector<1x1x64xf32> to vector<1x64xf32>
    %c0_97 = arith.constant 0 : index
    %c0_98 = arith.constant 0 : index
    %165 = vector.load %arg9[%c0_97, %c0_98] : memref<64x500xf32, #tpu.memory_space<vmem>>, vector<64x500xf32>
    %c0_99 = arith.constant 0 : index
    %c0_100 = arith.constant 0 : index
    %166 = vector.load %arg10[%c0_99, %c0_100] : memref<1x500xf32, #tpu.memory_space<vmem>>, vector<1x500xf32>
    %cst_101 = arith.constant dense<0.000000e+00> : vector<5x64xf32>
    %167 = tpu.matmul %153, %162, %cst_101 {dimension_numbers = #tpu.dot_dimension_numbers<[1], [0], [0], [1], [0, 0, 1, 1], [], []>} : vector<5x64xf32>, vector<64x64xf32>, vector<5x64xf32> -> vector<5x64xf32>
    %cst_102 = arith.constant dense<0.000000e+00> : vector<5x64xf32>
    %168 = tpu.matmul %160, %167, %cst_102 {dimension_numbers = #tpu.dot_dimension_numbers<[1], [0], [0], [1], [0, 0, 1, 1], [], []>} : vector<5x5xf32>, vector<5x64xf32>, vector<5x64xf32> -> vector<5x64xf32>
    %169 = vector.broadcast %164 : vector<1x64xf32> to vector<5x64xf32>
    %170 = arith.addf %168, %169 : vector<5x64xf32>
    %cst_103 = arith.constant 0.000000e+00 : f32
    %171 = vector.broadcast %cst_103 : f32 to vector<5x64xf32>
    %172 = arith.maximumf %170, %171 : vector<5x64xf32>
    %cst_104 = arith.constant dense<0.000000e+00> : vector<5x500xf32>
    %173 = tpu.matmul %172, %165, %cst_104 {dimension_numbers = #tpu.dot_dimension_numbers<[1], [0], [0], [1], [0, 0, 1, 1], [], []>} : vector<5x64xf32>, vector<64x500xf32>, vector<5x500xf32> -> vector<5x500xf32>
    %cst_105 = arith.constant dense<0.000000e+00> : vector<5x500xf32>
    %174 = tpu.matmul %160, %173, %cst_105 {dimension_numbers = #tpu.dot_dimension_numbers<[1], [0], [0], [1], [0, 0, 1, 1], [], []>} : vector<5x5xf32>, vector<5x500xf32>, vector<5x500xf32> -> vector<5x500xf32>
    %175 = vector.broadcast %166 : vector<1x500xf32> to vector<5x500xf32>
    %176 = arith.addf %174, %175 : vector<5x500xf32>
    %cst_106 = arith.constant 0.000000e+00 : f32
    %177 = vector.broadcast %cst_106 : f32 to vector<5x500xf32>
    %178 = arith.maximumf %176, %177 : vector<5x500xf32>
    %cst_107 = arith.constant dense<0xFF800000> : vector<5xf32>
    %179 = vector.multi_reduction <maximumf>, %178, %cst_107 [1] : vector<5x500xf32> to vector<5xf32>
    %180 = vector.shape_cast %179 : vector<5xf32> to vector<5x1xf32>
    %181 = vector.broadcast %180 : vector<5x1xf32> to vector<5x500xf32>
    %182 = arith.subf %178, %181 : vector<5x500xf32>
    %183 = math.exp %182 : vector<5x500xf32>
    %cst_108 = arith.constant dense<0.000000e+00> : vector<5xf32>
    %184 = vector.multi_reduction <add>, %183, %cst_108 [1] : vector<5x500xf32> to vector<5xf32>
    %185 = vector.shape_cast %184 : vector<5xf32> to vector<5x1xf32>
    %cst_109 = arith.constant 1.000000e+00 : f32
    %186 = vector.broadcast %cst_109 : f32 to vector<5x1xf32>
    %187 = arith.divf %186, %185 : vector<5x1xf32>
    %188 = vector.broadcast %187 : vector<5x1xf32> to vector<5x500xf32>
    %189 = arith.mulf %183, %188 : vector<5x500xf32>
    %c7 = arith.constant 7 : index
    %c0_110 = arith.constant 0 : index
    %c0_111 = arith.constant 0 : index
    %190 = vector.load %arg3[%c7, %c0_110, %c0_111] : memref<8x64x64xf32, #tpu.memory_space<vmem>>, vector<1x64x64xf32>
    %191 = vector.shape_cast %190 : vector<1x64x64xf32> to vector<64x64xf32>
    %c7_112 = arith.constant 7 : index
    %c0_113 = arith.constant 0 : index
    %c0_114 = arith.constant 0 : index
    %192 = vector.load %arg4[%c7_112, %c0_113, %c0_114] : memref<8x1x64xf32, #tpu.memory_space<vmem>>, vector<1x1x64xf32>
    %193 = vector.shape_cast %192 : vector<1x1x64xf32> to vector<1x64xf32>
    %c0_115 = arith.constant 0 : index
    %c0_116 = arith.constant 0 : index
    %194 = vector.load %arg11[%c0_115, %c0_116] : memref<64x20xf32, #tpu.memory_space<vmem>>, vector<64x20xf32>
    %c0_117 = arith.constant 0 : index
    %c0_118 = arith.constant 0 : index
    %195 = vector.load %arg12[%c0_117, %c0_118] : memref<1x20xf32, #tpu.memory_space<vmem>>, vector<1x20xf32>
    %cst_119 = arith.constant dense<0.000000e+00> : vector<5x64xf32>
    %196 = tpu.matmul %153, %191, %cst_119 {dimension_numbers = #tpu.dot_dimension_numbers<[1], [0], [0], [1], [0, 0, 1, 1], [], []>} : vector<5x64xf32>, vector<64x64xf32>, vector<5x64xf32> -> vector<5x64xf32>
    %cst_120 = arith.constant dense<0.000000e+00> : vector<5x64xf32>
    %197 = tpu.matmul %160, %196, %cst_120 {dimension_numbers = #tpu.dot_dimension_numbers<[1], [0], [0], [1], [0, 0, 1, 1], [], []>} : vector<5x5xf32>, vector<5x64xf32>, vector<5x64xf32> -> vector<5x64xf32>
    %198 = vector.broadcast %193 : vector<1x64xf32> to vector<5x64xf32>
    %199 = arith.addf %197, %198 : vector<5x64xf32>
    %cst_121 = arith.constant 0.000000e+00 : f32
    %200 = vector.broadcast %cst_121 : f32 to vector<5x64xf32>
    %201 = arith.maximumf %199, %200 : vector<5x64xf32>
    %cst_122 = arith.constant dense<0.000000e+00> : vector<5x20xf32>
    %202 = tpu.matmul %201, %194, %cst_122 {dimension_numbers = #tpu.dot_dimension_numbers<[1], [0], [0], [1], [0, 0, 1, 1], [], []>} : vector<5x64xf32>, vector<64x20xf32>, vector<5x20xf32> -> vector<5x20xf32>
    %cst_123 = arith.constant dense<0.000000e+00> : vector<5x20xf32>
    %203 = tpu.matmul %160, %202, %cst_123 {dimension_numbers = #tpu.dot_dimension_numbers<[1], [0], [0], [1], [0, 0, 1, 1], [], []>} : vector<5x5xf32>, vector<5x20xf32>, vector<5x20xf32> -> vector<5x20xf32>
    %204 = vector.broadcast %195 : vector<1x20xf32> to vector<5x20xf32>
    %205 = arith.addf %203, %204 : vector<5x20xf32>
    %cst_124 = arith.constant 0.000000e+00 : f32
    %206 = vector.broadcast %cst_124 : f32 to vector<5x20xf32>
    %207 = arith.maximumf %205, %206 : vector<5x20xf32>
    %cst_125 = arith.constant dense<0.000000e+00> : vector<5x5xf32>
    %208 = tpu.matmul %189, %189, %cst_125 {dimension_numbers = #tpu.dot_dimension_numbers<[1], [1], [0], [0], [0, 0, 1, 0], [], []>} : vector<5x500xf32>, vector<5x500xf32>, vector<5x5xf32> -> vector<5x5xf32>
    %209 = arith.subf %155, %208 : vector<5x5xf32>
    %210 = arith.mulf %209, %209 : vector<5x5xf32>
    %211 = vector.shape_cast %210 : vector<5x5xf32> to vector<1x5x5xf32>
    %cst_126 = arith.constant dense<0.000000e+00> : vector<1xf32>
    %212 = vector.multi_reduction <add>, %211, %cst_126 [1, 2] : vector<1x5x5xf32> to vector<1xf32>
    %213 = vector.shape_cast %212 : vector<1xf32> to vector<1x1x1xf32>
    %214 = vector.extract %213[0, 0, 0] : f32 from vector<1x1x1xf32>
    %215 = vector.broadcast %214 : f32 to vector<1x1xf32>
    %cst_127 = arith.constant 0.000000e+00 : f32
    %216 = vector.broadcast %cst_127 : f32 to vector<5x500xf32>
    %217 = arith.subf %216, %189 : vector<5x500xf32>
    %cst_128 = arith.constant 1.000000e-15 : f32
    %218 = vector.broadcast %cst_128 : f32 to vector<5x500xf32>
    %219 = arith.addf %189, %218 : vector<5x500xf32>
    %220 = math.log %219 : vector<5x500xf32>
    %221 = arith.mulf %217, %220 : vector<5x500xf32>
    %222 = vector.shape_cast %221 : vector<5x500xf32> to vector<1x5x500xf32>
    %cst_129 = arith.constant dense<0.000000e+00> : vector<1xf32>
    %223 = vector.multi_reduction <add>, %222, %cst_129 [1, 2] : vector<1x5x500xf32> to vector<1xf32>
    %224 = vector.shape_cast %223 : vector<1xf32> to vector<1x1x1xf32>
    %225 = vector.extract %224[0, 0, 0] : f32 from vector<1x1x1xf32>
    %226 = vector.broadcast %225 : f32 to vector<1x1xf32>
    %cst_130 = arith.constant dense<0.000000e+00> : vector<20x500xf32>
    %227 = tpu.matmul %207, %189, %cst_130 {dimension_numbers = #tpu.dot_dimension_numbers<[0], [0], [1], [1], [0, 1, 1, 1], [], []>} : vector<5x20xf32>, vector<5x500xf32>, vector<20x500xf32> -> vector<20x500xf32>
    %c0_131 = arith.constant 0 : index
    %c0_132 = arith.constant 0 : index
    %c0_133 = arith.constant 0 : index
    %228 = vector.load %arg13[%c0_131, %c0_132, %c0_133] : memref<1x20x500xf32, #tpu.memory_space<vmem>>, vector<1x20x500xf32>
    %229 = vector.shape_cast %228 : vector<1x20x500xf32> to vector<20x500xf32>
    %230 = vector.shape_cast %227 : vector<20x500xf32> to vector<1x20x500xf32>
    tpu.vector_store %arg13[%c0_131, %c0_132, %c0_133], %230 {strides = array<i32>} : memref<1x20x500xf32, #tpu.memory_space<vmem>>, vector<1x20x500xf32>,
    %cst_134 = arith.constant dense<0.000000e+00> : vector<500x5xf32>
    %231 = tpu.matmul %189, %155, %cst_134 {dimension_numbers = #tpu.dot_dimension_numbers<[0], [0], [1], [1], [0, 1, 1, 1], [], []>} : vector<5x500xf32>, vector<5x5xf32>, vector<500x5xf32> -> vector<500x5xf32>
    %cst_135 = arith.constant dense<0.000000e+00> : vector<500x500xf32>
    %232 = tpu.matmul %231, %189, %cst_135 {dimension_numbers = #tpu.dot_dimension_numbers<[1], [0], [0], [1], [0, 0, 1, 1], [], []>} : vector<500x5xf32>, vector<5x500xf32>, vector<500x500xf32> -> vector<500x500xf32>
    %c0_136 = arith.constant 0 : index
    %c0_137 = arith.constant 0 : index
    %c0_138 = arith.constant 0 : index
    %233 = vector.load %arg14[%c0_136, %c0_137, %c0_138] : memref<1x500x500xf32, #tpu.memory_space<vmem>>, vector<1x500x500xf32>
    %234 = vector.shape_cast %233 : vector<1x500x500xf32> to vector<500x500xf32>
    %235 = vector.shape_cast %232 : vector<500x500xf32> to vector<1x500x500xf32>
    tpu.vector_store %arg14[%c0_136, %c0_137, %c0_138], %235 {strides = array<i32>} : memref<1x500x500xf32, #tpu.memory_space<vmem>>, vector<1x500x500xf32>,
    %236 = tpu.iota {dimensions = array<i32: 1>} : vector<1x8xi32>
    %cst_139 = arith.constant 0.000000e+00 : f32
    %237 = vector.broadcast %cst_139 : f32 to vector<1x8xf32>
    %c0_i32 = arith.constant 0 : i32
    %238 = vector.broadcast %c0_i32 : i32 to vector<1x8xi32>
    %239 = arith.cmpi eq, %236, %238 : vector<1x8xi32>
    %240 = vector.shape_cast %65 : vector<1x1xf32> to vector<1x1xf32>
    %241 = vector.broadcast %240 : vector<1x1xf32> to vector<1x8xf32>
    %242 = arith.select %239, %241, %237 : vector<1x8xi1>, vector<1x8xf32>
    %c1_i32 = arith.constant 1 : i32
    %243 = vector.broadcast %c1_i32 : i32 to vector<1x8xi32>
    %244 = arith.cmpi eq, %236, %243 : vector<1x8xi32>
    %245 = vector.shape_cast %141 : vector<1x1xf32> to vector<1x1xf32>
    %246 = vector.broadcast %245 : vector<1x1xf32> to vector<1x8xf32>
    %247 = arith.select %244, %246, %237 : vector<1x8xi1>, vector<1x8xf32>
    %248 = arith.addf %242, %247 : vector<1x8xf32>
    %c2_i32 = arith.constant 2 : i32
    %249 = vector.broadcast %c2_i32 : i32 to vector<1x8xi32>
    %250 = arith.cmpi eq, %236, %249 : vector<1x8xi32>
    %251 = vector.shape_cast %215 : vector<1x1xf32> to vector<1x1xf32>
    %252 = vector.broadcast %251 : vector<1x1xf32> to vector<1x8xf32>
    %253 = arith.select %250, %252, %237 : vector<1x8xi1>, vector<1x8xf32>
    %254 = arith.addf %248, %253 : vector<1x8xf32>
    %c3_i32 = arith.constant 3 : i32
    %255 = vector.broadcast %c3_i32 : i32 to vector<1x8xi32>
    %256 = arith.cmpi eq, %236, %255 : vector<1x8xi32>
    %257 = vector.shape_cast %76 : vector<1x1xf32> to vector<1x1xf32>
    %258 = vector.broadcast %257 : vector<1x1xf32> to vector<1x8xf32>
    %259 = arith.select %256, %258, %237 : vector<1x8xi1>, vector<1x8xf32>
    %260 = arith.addf %254, %259 : vector<1x8xf32>
    %c4_i32 = arith.constant 4 : i32
    %261 = vector.broadcast %c4_i32 : i32 to vector<1x8xi32>
    %262 = arith.cmpi eq, %236, %261 : vector<1x8xi32>
    %263 = vector.shape_cast %152 : vector<1x1xf32> to vector<1x1xf32>
    %264 = vector.broadcast %263 : vector<1x1xf32> to vector<1x8xf32>
    %265 = arith.select %262, %264, %237 : vector<1x8xi1>, vector<1x8xf32>
    %266 = arith.addf %260, %265 : vector<1x8xf32>
    %c5_i32 = arith.constant 5 : i32
    %267 = vector.broadcast %c5_i32 : i32 to vector<1x8xi32>
    %268 = arith.cmpi eq, %236, %267 : vector<1x8xi32>
    %269 = vector.shape_cast %226 : vector<1x1xf32> to vector<1x1xf32>
    %270 = vector.broadcast %269 : vector<1x1xf32> to vector<1x8xf32>
    %271 = arith.select %268, %270, %237 : vector<1x8xi1>, vector<1x8xf32>
    %272 = arith.addf %266, %271 : vector<1x8xf32>
    %c0_140 = arith.constant 0 : index
    %c0_141 = arith.constant 0 : index
    %c0_142 = arith.constant 0 : index
    %273 = vector.load %arg15[%c0_140, %c0_141, %c0_142] : memref<1x1x8xf32, #tpu.memory_space<vmem>>, vector<1x1x8xf32>
    %274 = vector.shape_cast %273 : vector<1x1x8xf32> to vector<1x8xf32>
    %275 = vector.shape_cast %272 : vector<1x8xf32> to vector<1x1x8xf32>
    tpu.vector_store %arg15[%c0_140, %c0_141, %c0_142], %275 {strides = array<i32>} : memref<1x1x8xf32, #tpu.memory_space<vmem>>, vector<1x1x8xf32>,
    return
  }
  func.func @transform_0(%arg0: i32) -> (i32, i32, i32) {
    %c0_i32 = arith.constant 0 : i32
    %c0_i32_0 = arith.constant 0 : i32
    %c0_i32_1 = arith.constant 0 : i32
    return %arg0, %c0_i32, %c0_i32_0 : i32, i32, i32
  }
  func.func @transform_1(%arg0: i32) -> (i32, i32, i32) {
    %c0_i32 = arith.constant 0 : i32
    %c0_i32_0 = arith.constant 0 : i32
    %c0_i32_1 = arith.constant 0 : i32
    return %arg0, %c0_i32, %c0_i32_0 : i32, i32, i32
  }
  func.func @transform_2(%arg0: i32) -> (i32, i32, i32) {
    %c0_i32 = arith.constant 0 : i32
    %c0_i32_0 = arith.constant 0 : i32
    %c0_i32_1 = arith.constant 0 : i32
    %c0_i32_2 = arith.constant 0 : i32
    return %c0_i32, %c0_i32_0, %c0_i32_1 : i32, i32, i32
  }
  func.func @transform_3(%arg0: i32) -> (i32, i32, i32) {
    %c0_i32 = arith.constant 0 : i32
    %c0_i32_0 = arith.constant 0 : i32
    %c0_i32_1 = arith.constant 0 : i32
    %c0_i32_2 = arith.constant 0 : i32
    return %c0_i32, %c0_i32_0, %c0_i32_1 : i32, i32, i32
  }
  func.func @transform_4(%arg0: i32) -> (i32, i32) {
    %c0_i32 = arith.constant 0 : i32
    %c0_i32_0 = arith.constant 0 : i32
    %c0_i32_1 = arith.constant 0 : i32
    return %c0_i32, %c0_i32_0 : i32, i32
  }
  func.func @transform_5(%arg0: i32) -> (i32, i32) {
    %c0_i32 = arith.constant 0 : i32
    %c0_i32_0 = arith.constant 0 : i32
    %c0_i32_1 = arith.constant 0 : i32
    return %c0_i32, %c0_i32_0 : i32, i32
  }
  func.func @transform_6(%arg0: i32) -> (i32, i32) {
    %c0_i32 = arith.constant 0 : i32
    %c0_i32_0 = arith.constant 0 : i32
    %c0_i32_1 = arith.constant 0 : i32
    return %c0_i32, %c0_i32_0 : i32, i32
  }
  func.func @transform_7(%arg0: i32) -> (i32, i32) {
    %c0_i32 = arith.constant 0 : i32
    %c0_i32_0 = arith.constant 0 : i32
    %c0_i32_1 = arith.constant 0 : i32
    return %c0_i32, %c0_i32_0 : i32, i32
  }
  func.func @transform_8(%arg0: i32) -> (i32, i32) {
    %c0_i32 = arith.constant 0 : i32
    %c0_i32_0 = arith.constant 0 : i32
    %c0_i32_1 = arith.constant 0 : i32
    return %c0_i32, %c0_i32_0 : i32, i32
  }
  func.func @transform_9(%arg0: i32) -> (i32, i32) {
    %c0_i32 = arith.constant 0 : i32
    %c0_i32_0 = arith.constant 0 : i32
    %c0_i32_1 = arith.constant 0 : i32
    return %c0_i32, %c0_i32_0 : i32, i32
  }
  func.func @transform_10(%arg0: i32) -> (i32, i32) {
    %c0_i32 = arith.constant 0 : i32
    %c0_i32_0 = arith.constant 0 : i32
    %c0_i32_1 = arith.constant 0 : i32
    return %c0_i32, %c0_i32_0 : i32, i32
  }
  func.func @transform_11(%arg0: i32) -> (i32, i32) {
    %c0_i32 = arith.constant 0 : i32
    %c0_i32_0 = arith.constant 0 : i32
    %c0_i32_1 = arith.constant 0 : i32
    return %c0_i32, %c0_i32_0 : i32, i32
  }
  func.func @transform_12(%arg0: i32) -> (i32, i32, i32) {
    %c0_i32 = arith.constant 0 : i32
    %c0_i32_0 = arith.constant 0 : i32
    %c0_i32_1 = arith.constant 0 : i32
    return %arg0, %c0_i32, %c0_i32_0 : i32, i32, i32
  }
  func.func @transform_13(%arg0: i32) -> (i32, i32, i32) {
    %c0_i32 = arith.constant 0 : i32
    %c0_i32_0 = arith.constant 0 : i32
    %c0_i32_1 = arith.constant 0 : i32
    return %arg0, %c0_i32, %c0_i32_0 : i32, i32, i32
  }
  func.func @transform_14(%arg0: i32) -> (i32, i32, i32) {
    %c0_i32 = arith.constant 0 : i32
    %c0_i32_0 = arith.constant 0 : i32
    %c0_i32_1 = arith.constant 0 : i32
    return %arg0, %c0_i32, %c0_i32_0 : i32, i32, i32
  }
}

</mosaic_0001>

<llo_original>
// kernel: diffpool_dec_forward.1
$region0: #{diffpool_dec_forward.1}
  #allocation0 [shape = 'u32[]', space=smem, size = 0x4, offset = 0x4, fixed_abs, tag = 'smem constant byte address 0x4 - core index']
  #allocation1 [shape = 'u32[144,128]{1,0:T(1,128)}', space=vmem, size = 0x12000, scoped, tag = 'internal scratch']
  %s0 = inlined_call_operand.hbm [shape: f32[2,16,64], index: 0, kind: input, shape index: {}]
  %s1 = inlined_call_operand.hbm [shape: f32[2,16,16], index: 1, kind: input, shape index: {}]
  %s2 = inlined_call_operand.vmem [shape: f32[8,64,64], index: 2, kind: input, shape index: {}]
  %s3 = inlined_call_operand.vmem [shape: f32[8,1,64], index: 3, kind: input, shape index: {}]
  %s4 = inlined_call_operand.vmem [shape: f32[64,2], index: 4, kind: input, shape index: {}]
  %s5 = inlined_call_operand.hbm [shape: f32[1,2], index: 5, kind: input, shape index: {}]
  %s6 = inlined_call_operand.vmem [shape: f32[64,5], index: 6, kind: input, shape index: {}]
  %s7 = inlined_call_operand.hbm [shape: f32[1,5], index: 7, kind: input, shape index: {}]
  %s8 = inlined_call_operand.hbm [shape: f32[64,500], index: 8, kind: input, shape index: {}]
  %s9 = inlined_call_operand.hbm [shape: f32[1,500], index: 9, kind: input, shape index: {}]
  %s10 = inlined_call_operand.vmem [shape: f32[64,20], index: 10, kind: input, shape index: {}]
  %s11 = inlined_call_operand.hbm [shape: f32[1,20], index: 11, kind: input, shape index: {}]
  %s12 = inlined_call_operand.vmem [shape: f32[2,20,500], index: 12, kind: output, shape index: {0}]
  %s13 = inlined_call_operand.vmem [shape: f32[2,500,500], index: 13, kind: output, shape index: {1}]
  %s14 = inlined_call_operand.vmem [shape: f32[2,1,8], index: 14, kind: output, shape index: {2}]
  %15 = xla_tuple %s12, %s13, %s14
  %s16 = sld [smem:[#allocation0]]
  $region125: #{diffpool_dec_forward.1} parent=0
    _
  %s18 = ssub.s32 1, %s16
  %s19 = scalar_select 0, %s18, %s16
  $region1: #{diffpool_dec_forward.1} parent=0
    #allocation2 [shape = 'u8[16384]{0}', space=vmem, size = 0x4000, scoped, tag = 'input window, operand 0']
    #allocation3 [shape = 's32[2]{0}', space=sflag, size = 0x8, scoped, tag = 'scoped memory for diffpool_dec_forward.1']
    #allocation4 [shape = 'u8[16384]{0}', space=vmem, size = 0x4000, scoped, tag = 'input window, operand 1']
    #allocation5 [shape = 's32[2]{0}', space=sflag, size = 0x8, scoped, tag = 'scoped memory for diffpool_dec_forward.1']
    #allocation6 [shape = 'u8[512]{0}', space=vmem, size = 0x400, scoped, tag = 'input window, operand 5, single buffered']
    #allocation7 [shape = 'u8[512]{0}', space=vmem, size = 0x400, scoped, tag = 'input window, operand 7, single buffered']
    #allocation8 [shape = 's32[1]{0}', space=sflag, size = 0x4, scoped, tag = 'scoped memory for diffpool_dec_forward.1']
    #allocation9 [shape = 'u8[131072]{0}', space=vmem, size = 0x20000, scoped, tag = 'input window, operand 8, single buffered']
    #allocation10 [shape = 'u8[2048]{0}', space=vmem, size = 0x800, scoped, tag = 'input window, operand 9, single buffered']
    #allocation11 [shape = 's32[1]{0}', space=sflag, size = 0x4, scoped, tag = 'scoped memory for diffpool_dec_forward.1']
    #allocation12 [shape = 'u8[512]{0}', space=vmem, size = 0x400, scoped, tag = 'input window, operand 11, single buffered']
    %20 = vsyncpa [#allocation3], 0
    %s21 = scalar_lea.sflag [#allocation3], 1
    %22 = vsyncpa %s21, 0
    %23 = vsyncpa [#allocation5], 0
    %s24 = scalar_lea.sflag [#allocation5], 1
    %25 = vsyncpa %s24, 0
    %26 = vsyncpa [#allocation8], 0
    %27 = vsyncpa [#allocation11], 0
    loop: start=0, step=1, limit=4
    $region2: #{diffpool_dec_forward.1} parent=1 // loop_pre_header
      _
    $region3: #{diffpool_dec_forward.1} parent=1 // loop_header
      %s29 = sphi 0, %s33
      %p30 = scmp.ge.s32.totalorder %s29, 4
      %s39 = sphi 0, %s41
      %s42 = sphi 0, %s39
      %s43 = sphi 0, %s42
      %s59 = sphi 0, %s43
      %s65 = sphi 0, %s67
      %s68 = sphi 0, %s65
      %s69 = sphi 0, %s68
      %s85 = sphi 0, %s69
      %s89 = sphi 0, %s89
      %s91 = sphi 0, %s89
      %s92 = sphi 0, %s91
      %s106 = sphi 0, %s92
      %s110 = sphi 0, %s110
      %s112 = sphi 0, %s110
      %s113 = sphi 0, %s112
      %s127 = sphi 0, %s113
      %s131 = sphi 0, %s131
      %s133 = sphi 0, %s131
      %s134 = sphi 0, %s133
      %s148 = sphi 0, %s134
      %s152 = sphi 0, %s152
      %s154 = sphi 0, %s152
      %s155 = sphi 0, %s154
      %s169 = sphi 0, %s155
      %s173 = sphi 0, %s173
      %s175 = sphi 0, %s173
      %s176 = sphi 0, %s175
      %s190 = sphi 0, %s176
      %s194 = sphi 0, %s194
      %s196 = sphi 0, %s194
      %s197 = sphi 0, %s196
      %s211 = sphi 0, %s197
      %s215 = sphi 0, %s215
      %s217 = sphi 0, %s215
      %s218 = sphi 0, %s217
      %s232 = sphi 0, %s218
      %s236 = sphi 0, %s236
      %s238 = sphi 0, %s236
      %s239 = sphi 0, %s238
      %s253 = sphi 0, %s239
      %s257 = sphi 0, %s257
      %s259 = sphi 0, %s257
      %s260 = sphi 0, %s259
      %s274 = sphi 0, %s260
      %s278 = sphi 0, %s278
      %s280 = sphi 0, %s278
      %s281 = sphi 0, %s280
      %s295 = sphi 0, %s281
      %s301 = sphi 0, %s303
      %s304 = sphi 0, %s301
      %s305 = sphi 0, %s304
      %s321 = sphi 0, %s305
      %s327 = sphi 0, %s329
      %s330 = sphi 0, %s327
      %s331 = sphi 0, %s330
      %s347 = sphi 0, %s331
      %s353 = sphi 0, %s355
      %s356 = sphi 0, %s353
      %s357 = sphi 0, %s356
      %s373 = sphi 0, %s357
    $region4: #{diffpool_dec_forward.1} parent=1 // loop_header_branch
      %32 = sbr.rel (%p30) target = $region8
    $region5: #{diffpool_dec_forward.1} parent=1 // loop_body
      %s34 = ssub.s32 %s29, 1
      %s35 = ssub.s32 %s29, 2
      %s36 = sadd.s32 %s29, 1
      %s37 = ssub.s32 %s29, %s36
      %p38 = scmp.eq.s32.totalorder %s37, 0
      %s40 = sadd.s32 %s39, 1
      %s41 = scalar_select %p38, %s39, %s40
      %p44 = pneg %p38
      %p45 = scmp.eq.s32.totalorder %s29, 1
      %p46 = por %p44, %p45
      %p47 = scmp.ne.s32.totalorder %s39, %s42
      %p48 = scmp.eq.s32.totalorder %s29, 0
      %p49 = por %p47, %p48
      %p50 = scmp.ne.s32.totalorder %s39, %s42
      %p51 = scmp.eq.s32.totalorder %s34, 1
      %p52 = por %p50, %p51
      %p53 = scmp.ne.s32.totalorder %s42, %s43
      %p54 = scmp.eq.s32.totalorder %s34, 0
      %p55 = por %p53, %p54
      %p56 = scmp.ne.s32.totalorder %s42, %s43
      %p57 = scmp.eq.s32.totalorder %s35, 1
      %p58 = por %p56, %p57
      %p60 = scmp.ne.s32.totalorder %s43, %s59
      %p61 = scmp.eq.s32.totalorder %s35, 0
      %p62 = por %p60, %p61
      %s63 = ssub.s32 %s29, %s36
      %p64 = scmp.eq.s32.totalorder %s63, 0
      %s66 = sadd.s32 %s65, 1
      %s67 = scalar_select %p64, %s65, %s66
      %p70 = pneg %p64
      %p71 = scmp.eq.s32.totalorder %s29, 1
      %p72 = por %p70, %p71
      %p73 = scmp.ne.s32.totalorder %s65, %s68
      %p74 = scmp.eq.s32.totalorder %s29, 0
      %p75 = por %p73, %p74
      %p76 = scmp.ne.s32.totalorder %s65, %s68
      %p77 = scmp.eq.s32.totalorder %s34, 1
      %p78 = por %p76, %p77
      %p79 = scmp.ne.s32.totalorder %s68, %s69
      %p80 = scmp.eq.s32.totalorder %s34, 0
      %p81 = por %p79, %p80
      %p82 = scmp.ne.s32.totalorder %s68, %s69
      %p83 = scmp.eq.s32.totalorder %s35, 1
      %p84 = por %p82, %p83
      %p86 = scmp.ne.s32.totalorder %s69, %s85
      %p87 = scmp.eq.s32.totalorder %s35, 0
      %p88 = por %p86, %p87
      %s90 = sadd.s32 %s89, 1
      %p93 = scmp.eq.s32.totalorder %s29, 1
      %p94 = scmp.ne.s32.totalorder %s89, %s91
      %p95 = scmp.eq.s32.totalorder %s29, 0
      %p96 = por %p94, %p95
      %p97 = scmp.ne.s32.totalorder %s89, %s91
      %p98 = scmp.eq.s32.totalorder %s34, 1
      %p99 = por %p97, %p98
      %p100 = scmp.ne.s32.totalorder %s91, %s92
      %p101 = scmp.eq.s32.totalorder %s34, 0
      %p102 = por %p100, %p101
      %p103 = scmp.ne.s32.totalorder %s91, %s92
      %p104 = scmp.eq.s32.totalorder %s35, 1
      %p105 = por %p103, %p104
      %p107 = scmp.ne.s32.totalorder %s92, %s106
      %p108 = scmp.eq.s32.totalorder %s35, 0
      %p109 = por %p107, %p108
      %s111 = sadd.s32 %s110, 1
      %p114 = scmp.eq.s32.totalorder %s29, 1
      %p115 = scmp.ne.s32.totalorder %s110, %s112
      %p116 = scmp.eq.s32.totalorder %s29, 0
      %p117 = por %p115, %p116
      %p118 = scmp.ne.s32.totalorder %s110, %s112
      %p119 = scmp.eq.s32.totalorder %s34, 1
      %p120 = por %p118, %p119
      %p121 = scmp.ne.s32.totalorder %s112, %s113
      %p122 = scmp.eq.s32.totalorder %s34, 0
      %p123 = por %p121, %p122
      %p124 = scmp.ne.s32.totalorder %s112, %s113
      %p125 = scmp.eq.s32.totalorder %s35, 1
      %p126 = por %p124, %p125
      %p128 = scmp.ne.s32.totalorder %s113, %s127
      %p129 = scmp.eq.s32.totalorder %s35, 0
      %p130 = por %p128, %p129
      %s132 = sadd.s32 %s131, 1
      %p135 = scmp.eq.s32.totalorder %s29, 1
      %p136 = scmp.ne.s32.totalorder %s131, %s133
      %p137 = scmp.eq.s32.totalorder %s29, 0
      %p138 = por %p136, %p137
      %p139 = scmp.ne.s32.totalorder %s131, %s133
      %p140 = scmp.eq.s32.totalorder %s34, 1
      %p141 = por %p139, %p140
      %p142 = scmp.ne.s32.totalorder %s133, %s134
      %p143 = scmp.eq.s32.totalorder %s34, 0
      %p144 = por %p142, %p143
      %p145 = scmp.ne.s32.totalorder %s133, %s134
      %p146 = scmp.eq.s32.totalorder %s35, 1
      %p147 = por %p145, %p146
      %p149 = scmp.ne.s32.totalorder %s134, %s148
      %p150 = scmp.eq.s32.totalorder %s35, 0
      %p151 = por %p149, %p150
      %s153 = sadd.s32 %s152, 1
      %p156 = scmp.eq.s32.totalorder %s29, 1
      %p157 = scmp.ne.s32.totalorder %s152, %s154
      %p158 = scmp.eq.s32.totalorder %s29, 0
      %p159 = por %p157, %p158
      %p160 = scmp.ne.s32.totalorder %s152, %s154
      %p161 = scmp.eq.s32.totalorder %s34, 1
      %p162 = por %p160, %p161
      %p163 = scmp.ne.s32.totalorder %s154, %s155
      %p164 = scmp.eq.s32.totalorder %s34, 0
      %p165 = por %p163, %p164
      %p166 = scmp.ne.s32.totalorder %s154, %s155
      %p167 = scmp.eq.s32.totalorder %s35, 1
      %p168 = por %p166, %p167
      %p170 = scmp.ne.s32.totalorder %s155, %s169
      %p171 = scmp.eq.s32.totalorder %s35, 0
      %p172 = por %p170, %p171
      %s174 = sadd.s32 %s173, 1
      %p177 = scmp.eq.s32.totalorder %s29, 1
      %p178 = scmp.ne.s32.totalorder %s173, %s175
      %p179 = scmp.eq.s32.totalorder %s29, 0
      %p180 = por %p178, %p179
      %p181 = scmp.ne.s32.totalorder %s173, %s175
      %p182 = scmp.eq.s32.totalorder %s34, 1
      %p183 = por %p181, %p182
      %p184 = scmp.ne.s32.totalorder %s175, %s176
      %p185 = scmp.eq.s32.totalorder %s34, 0
      %p186 = por %p184, %p185
      %p187 = scmp.ne.s32.totalorder %s175, %s176
      %p188 = scmp.eq.s32.totalorder %s35, 1
      %p189 = por %p187, %p188
      %p191 = scmp.ne.s32.totalorder %s176, %s190
      %p192 = scmp.eq.s32.totalorder %s35, 0
      %p193 = por %p191, %p192
      %s195 = sadd.s32 %s194, 1
      %p198 = scmp.eq.s32.totalorder %s29, 1
      %p199 = scmp.ne.s32.totalorder %s194, %s196
      %p200 = scmp.eq.s32.totalorder %s29, 0
      %p201 = por %p199, %p200
      %p202 = scmp.ne.s32.totalorder %s194, %s196
      %p203 = scmp.eq.s32.totalorder %s34, 1
      %p204 = por %p202, %p203
      %p205 = scmp.ne.s32.totalorder %s196, %s197
      %p206 = scmp.eq.s32.totalorder %s34, 0
      %p207 = por %p205, %p206
      %p208 = scmp.ne.s32.totalorder %s196, %s197
      %p209 = scmp.eq.s32.totalorder %s35, 1
      %p210 = por %p208, %p209
      %p212 = scmp.ne.s32.totalorder %s197, %s211
      %p213 = scmp.eq.s32.totalorder %s35, 0
      %p214 = por %p212, %p213
      %s216 = sadd.s32 %s215, 1
      %p219 = scmp.eq.s32.totalorder %s29, 1
      %p220 = scmp.ne.s32.totalorder %s215, %s217
      %p221 = scmp.eq.s32.totalorder %s29, 0
      %p222 = por %p220, %p221
      %p223 = scmp.ne.s32.totalorder %s215, %s217
      %p224 = scmp.eq.s32.totalorder %s34, 1
      %p225 = por %p223, %p224
      %p226 = scmp.ne.s32.totalorder %s217, %s218
      %p227 = scmp.eq.s32.totalorder %s34, 0
      %p228 = por %p226, %p227
      %p229 = scmp.ne.s32.totalorder %s217, %s218
      %p230 = scmp.eq.s32.totalorder %s35, 1
      %p231 = por %p229, %p230
      %p233 = scmp.ne.s32.totalorder %s218, %s232
      %p234 = scmp.eq.s32.totalorder %s35, 0
      %p235 = por %p233, %p234
      %s237 = sadd.s32 %s236, 1
      %p240 = scmp.eq.s32.totalorder %s29, 1
      %p241 = scmp.ne.s32.totalorder %s236, %s238
      %p242 = scmp.eq.s32.totalorder %s29, 0
      %p243 = por %p241, %p242
      %p244 = scmp.ne.s32.totalorder %s236, %s238
      %p245 = scmp.eq.s32.totalorder %s34, 1
      %p246 = por %p244, %p245
      %p247 = scmp.ne.s32.totalorder %s238, %s239
      %p248 = scmp.eq.s32.totalorder %s34, 0
      %p249 = por %p247, %p248
      %p250 = scmp.ne.s32.totalorder %s238, %s239
      %p251 = scmp.eq.s32.totalorder %s35, 1
      %p252 = por %p250, %p251
      %p254 = scmp.ne.s32.totalorder %s239, %s253
      %p255 = scmp.eq.s32.totalorder %s35, 0
      %p256 = por %p254, %p255
      %s258 = sadd.s32 %s257, 1
      %p261 = scmp.eq.s32.totalorder %s29, 1
      %p262 = scmp.ne.s32.totalorder %s257, %s259
      %p263 = scmp.eq.s32.totalorder %s29, 0
      %p264 = por %p262, %p263
      %p265 = scmp.ne.s32.totalorder %s257, %s259
      %p266 = scmp.eq.s32.totalorder %s34, 1
      %p267 = por %p265, %p266
      %p268 = scmp.ne.s32.totalorder %s259, %s260
      %p269 = scmp.eq.s32.totalorder %s34, 0
      %p270 = por %p268, %p269
      %p271 = scmp.ne.s32.totalorder %s259, %s260
      %p272 = scmp.eq.s32.totalorder %s35, 1
      %p273 = por %p271, %p272
      %p275 = scmp.ne.s32.totalorder %s260, %s274
      %p276 = scmp.eq.s32.totalorder %s35, 0
      %p277 = por %p275, %p276
      %s279 = sadd.s32 %s278, 1
      %p282 = scmp.eq.s32.totalorder %s29, 1
      %p283 = scmp.ne.s32.totalorder %s278, %s280
      %p284 = scmp.eq.s32.totalorder %s29, 0
      %p285 = por %p283, %p284
      %p286 = scmp.ne.s32.totalorder %s278, %s280
      %p287 = scmp.eq.s32.totalorder %s34, 1
      %p288 = por %p286, %p287
      %p289 = scmp.ne.s32.totalorder %s280, %s281
      %p290 = scmp.eq.s32.totalorder %s34, 0
      %p291 = por %p289, %p290
      %p292 = scmp.ne.s32.totalorder %s280, %s281
      %p293 = scmp.eq.s32.totalorder %s35, 1
      %p294 = por %p292, %p293
      %p296 = scmp.ne.s32.totalorder %s281, %s295
      %p297 = scmp.eq.s32.totalorder %s35, 0
      %p298 = por %p296, %p297
      %s299 = ssub.s32 %s29, %s36
      %p300 = scmp.eq.s32.totalorder %s299, 0
      %s302 = sadd.s32 %s301, 1
      %s303 = scalar_select %p300, %s301, %s302
      %p306 = pneg %p300
      %p307 = scmp.eq.s32.totalorder %s29, 1
      %p308 = por %p306, %p307
      %p309 = scmp.ne.s32.totalorder %s301, %s304
      %p310 = scmp.eq.s32.totalorder %s29, 0
      %p311 = por %p309, %p310
      %p312 = scmp.ne.s32.totalorder %s301, %s304
      %p313 = scmp.eq.s32.totalorder %s34, 1
      %p314 = por %p312, %p313
      %p315 = scmp.ne.s32.totalorder %s304, %s305
      %p316 = scmp.eq.s32.totalorder %s34, 0
      %p317 = por %p315, %p316
      %p318 = scmp.ne.s32.totalorder %s304, %s305
      %p319 = scmp.eq.s32.totalorder %s35, 1
      %p320 = por %p318, %p319
      %p322 = scmp.ne.s32.totalorder %s305, %s321
      %p323 = scmp.eq.s32.totalorder %s35, 0
      %p324 = por %p322, %p323
      %s325 = ssub.s32 %s29, %s36
      %p326 = scmp.eq.s32.totalorder %s325, 0
      %s328 = sadd.s32 %s327, 1
      %s329 = scalar_select %p326, %s327, %s328
      %p332 = pneg %p326
      %p333 = scmp.eq.s32.totalorder %s29, 1
      %p334 = por %p332, %p333
      %p335 = scmp.ne.s32.totalorder %s327, %s330
      %p336 = scmp.eq.s32.totalorder %s29, 0
      %p337 = por %p335, %p336
      %p338 = scmp.ne.s32.totalorder %s327, %s330
      %p339 = scmp.eq.s32.totalorder %s34, 1
      %p340 = por %p338, %p339
      %p341 = scmp.ne.s32.totalorder %s330, %s331
      %p342 = scmp.eq.s32.totalorder %s34, 0
      %p343 = por %p341, %p342
      %p344 = scmp.ne.s32.totalorder %s330, %s331
      %p345 = scmp.eq.s32.totalorder %s35, 1
      %p346 = por %p344, %p345
      %p348 = scmp.ne.s32.totalorder %s331, %s347
      %p349 = scmp.eq.s32.totalorder %s35, 0
      %p350 = por %p348, %p349
      %s351 = ssub.s32 %s29, %s36
      %p352 = scmp.eq.s32.totalorder %s351, 0
      %s354 = sadd.s32 %s353, 1
      %s355 = scalar_select %p352, %s353, %s354
      %p358 = pneg %p352
      %p359 = scmp.eq.s32.totalorder %s29, 1
      %p360 = por %p358, %p359
      %p361 = scmp.ne.s32.totalorder %s353, %s356
      %p362 = scmp.eq.s32.totalorder %s29, 0
      %p363 = por %p361, %p362
      %p364 = scmp.ne.s32.totalorder %s353, %s356
      %p365 = scmp.eq.s32.totalorder %s34, 1
      %p366 = por %p364, %p365
      %p367 = scmp.ne.s32.totalorder %s356, %s357
      %p368 = scmp.eq.s32.totalorder %s34, 0
      %p369 = por %p367, %p368
      %p370 = scmp.ne.s32.totalorder %s356, %s357
      %p371 = scmp.eq.s32.totalorder %s35, 1
      %p372 = por %p370, %p371
      %p374 = scmp.ne.s32.totalorder %s357, %s373
      %p375 = scmp.eq.s32.totalorder %s35, 0
      %p376 = por %p374, %p375
      %p377 = scmp.le.s32.totalorder 1, %s29
      %p378 = scmp.lt.s32.totalorder %s29, 3
      %p379 = pnand %p377, %p378
      %p380 = pneg %p379
      // Predicated region
      $region9: #{diffpool_dec_forward.1} parent=5 // pred_check
        _
      $region10: #{diffpool_dec_forward.1} parent=5 // pred_check_branch
        %382 = sbr.rel (%p379) target = $region12
      $region11: #{diffpool_dec_forward.1} parent=5 // pred_region
        %s383 = ssub.s32 %s29, 1
        // Predicated region
        $region13: #{diffpool_dec_forward.1} parent=11 // pred_check
          %p384 = pneg %p102
        $region14: #{diffpool_dec_forward.1} parent=11 // pred_check_branch
          %386 = sbr.rel (%p384) target = $region16
        $region15: #{diffpool_dec_forward.1} parent=11 // pred_region
          _
        $region16: #{diffpool_dec_forward.1} parent=11 // pred_fallthru
          _
        // Predicated region
        $region17: #{diffpool_dec_forward.1} parent=11 // pred_check
          %p387 = pneg %p123
        $region18: #{diffpool_dec_forward.1} parent=11 // pred_check_branch
          %389 = sbr.rel (%p387) target = $region20
        $region19: #{diffpool_dec_forward.1} parent=11 // pred_region
          _
        $region20: #{diffpool_dec_forward.1} parent=11 // pred_fallthru
          _
        // Predicated region
        $region21: #{diffpool_dec_forward.1} parent=11 // pred_check
          %p390 = pneg %p144
        $region22: #{diffpool_dec_forward.1} parent=11 // pred_check_branch
          %392 = sbr.rel (%p390) target = $region24
        $region23: #{diffpool_dec_forward.1} parent=11 // pred_region
          _
        $region24: #{diffpool_dec_forward.1} parent=11 // pred_fallthru
          _
        // Predicated region
        $region25: #{diffpool_dec_forward.1} parent=11 // pred_check
          %p393 = pneg %p165
        $region26: #{diffpool_dec_forward.1} parent=11 // pred_check_branch
          %395 = sbr.rel (%p393) target = $region28
        $region27: #{diffpool_dec_forward.1} parent=11 // pred_region
          %s397 = ssub.s32 16, 16
          %398 = vsyncadd [#allocation5], %s397
          %s400 = sshll.u32 [#allocation6], 4
          %s401 = int_to_ptr.vmem [resolvable:$true] %s400
          %403 = dma.hbm_to_vmem [thread:$0]  %s5, 16, %s401, [#allocation5]
        $region28: #{diffpool_dec_forward.1} parent=11 // pred_fallthru
          _
        // Predicated region
        $region29: #{diffpool_dec_forward.1} parent=11 // pred_check
          %p404 = pneg %p186
        $region30: #{diffpool_dec_forward.1} parent=11 // pred_check_branch
          %406 = sbr.rel (%p404) target = $region32
        $region31: #{diffpool_dec_forward.1} parent=11 // pred_region
          _
        $region32: #{diffpool_dec_forward.1} parent=11 // pred_fallthru
          _
        // Predicated region
        $region33: #{diffpool_dec_forward.1} parent=11 // pred_check
          %p407 = pneg %p207
        $region34: #{diffpool_dec_forward.1} parent=11 // pred_check_branch
          %409 = sbr.rel (%p407) target = $region36
        $region35: #{diffpool_dec_forward.1} parent=11 // pred_region
          %s411 = ssub.s32 16, 16
          %412 = vsyncadd [#allocation8], %s411
          %s414 = sshll.u32 [#allocation7], 4
          %s415 = int_to_ptr.vmem [resolvable:$true] %s414
          %417 = dma.hbm_to_vmem [thread:$0]  %s7, 16, %s415, [#allocation8]
        $region36: #{diffpool_dec_forward.1} parent=11 // pred_fallthru
          _
        // Predicated region
        $region37: #{diffpool_dec_forward.1} parent=11 // pred_check
          %p418 = pneg %p228
        $region38: #{diffpool_dec_forward.1} parent=11 // pred_check_branch
          %420 = sbr.rel (%p418) target = $region40
        $region39: #{diffpool_dec_forward.1} parent=11 // pred_region
          %s422 = ssub.s32 4096, 4096
          %423 = vsyncadd [#allocation8], %s422
          %s424 = sshll.u32 [#allocation9], 4
          %s425 = int_to_ptr.vmem [resolvable:$true] %s424
          %430 = dma.hbm_to_vmem [thread:$0]  %s8, 4096, %s425, [#allocation8], 512, 512, 32
        $region40: #{diffpool_dec_forward.1} parent=11 // pred_fallthru
          _
        // Predicated region
        $region41: #{diffpool_dec_forward.1} parent=11 // pred_check
          %p431 = pneg %p249
        $region42: #{diffpool_dec_forward.1} parent=11 // pred_check_branch
          %433 = sbr.rel (%p431) target = $region44
        $region43: #{diffpool_dec_forward.1} parent=11 // pred_region
          %s435 = ssub.s32 64, 64
          %436 = vsyncadd [#allocation11], %s435
          %s438 = sshll.u32 [#allocation10], 4
          %s439 = int_to_ptr.vmem [resolvable:$true] %s438
          %441 = dma.hbm_to_vmem [thread:$0]  %s9, 64, %s439, [#allocation11]
        $region44: #{diffpool_dec_forward.1} parent=11 // pred_fallthru
          _
        // Predicated region
        $region45: #{diffpool_dec_forward.1} parent=11 // pred_check
          %p442 = pneg %p270
        $region46: #{diffpool_dec_forward.1} parent=11 // pred_check_branch
          %444 = sbr.rel (%p442) target = $region48
        $region47: #{diffpool_dec_forward.1} parent=11 // pred_region
          _
        $region48: #{diffpool_dec_forward.1} parent=11 // pred_fallthru
          _
        // Predicated region
        $region49: #{diffpool_dec_forward.1} parent=11 // pred_check
          %p445 = pneg %p291
        $region50: #{diffpool_dec_forward.1} parent=11 // pred_check_branch
          %447 = sbr.rel (%p445) target = $region52
        $region51: #{diffpool_dec_forward.1} parent=11 // pred_region
          %s449 = ssub.s32 16, 16
          %450 = vsyncadd [#allocation11], %s449
          %s452 = sshll.u32 [#allocation12], 4
          %s453 = int_to_ptr.vmem [resolvable:$true] %s452
          %455 = dma.hbm_to_vmem [thread:$0]  %s11, 16, %s453, [#allocation11]
        $region52: #{diffpool_dec_forward.1} parent=11 // pred_fallthru
          _
      $region12: #{diffpool_dec_forward.1} parent=5 // pred_fallthru
        _
      %p456 = scmp.lt.s32.totalorder %s29, 2
      // Predicated region
      $region53: #{diffpool_dec_forward.1} parent=5 // pred_check
        %p457 = pneg %p456
      $region54: #{diffpool_dec_forward.1} parent=5 // pred_check_branch
        %459 = sbr.rel (%p457) target = $region56
      $region55: #{diffpool_dec_forward.1} parent=5 // pred_region
        // Predicated region
        $region57: #{diffpool_dec_forward.1} parent=55 // pred_check
          %p460 = pneg %p49
        $region58: #{diffpool_dec_forward.1} parent=55 // pred_check_branch
          %462 = sbr.rel (%p460) target = $region60
        $region59: #{diffpool_dec_forward.1} parent=55 // pred_region
          %s463 = sand.u32 %s39, 1
          %s464 = scalar_lea.sflag [#allocation3], %s463
          %s465 = sand.u32 %s39, 1
          %s466 = smul.addr %s465, 16
          %s467 = scalar_lea.vmem [#allocation2], %s466
          %s469 = ssub.s32 256, 256
          %470 = vsyncadd %s464, %s469
          %s471 = smul.addr %s29, 2
          %s472 = smul.addr %s471, 128
          %s473 = scalar_lea.hbm %s0, %s472
          %s474 = sshll.u32 %s467, 4
          %s475 = int_to_ptr.vmem [resolvable:$true] %s474
          %480 = dma.hbm_to_vmem [thread:$0]  %s473, 256, %s475, %s464, 128, 128, 8
        $region60: #{diffpool_dec_forward.1} parent=55 // pred_fallthru
          _
        // Predicated region
        $region61: #{diffpool_dec_forward.1} parent=55 // pred_check
          %p481 = pneg %p75
        $region62: #{diffpool_dec_forward.1} parent=55 // pred_check_branch
          %483 = sbr.rel (%p481) target = $region64
        $region63: #{diffpool_dec_forward.1} parent=55 // pred_region
          %s484 = sand.u32 %s29, 1
          %s485 = scalar_lea.sflag [#allocation5], %s484
          %s486 = sand.u32 %s65, 1
          %s487 = smul.addr %s486, 16
          %s488 = scalar_lea.vmem [#allocation4], %s487
          %s490 = ssub.s32 256, 256
          %491 = vsyncadd %s485, %s490
          %s492 = smul.addr %s29, 2
          %s493 = smul.addr %s492, 128
          %s494 = scalar_lea.hbm %s1, %s493
          %s495 = sshll.u32 %s488, 4
          %s496 = int_to_ptr.vmem [resolvable:$true] %s495
          %501 = dma.hbm_to_vmem [thread:$0]  %s494, 256, %s496, %s485, 128, 128, 8
        $region64: #{diffpool_dec_forward.1} parent=55 // pred_fallthru
          _
      $region56: #{diffpool_dec_forward.1} parent=5 // pred_fallthru
        _
      %p502 = scmp.le.s32.totalorder 1, %s29
      %p503 = scmp.lt.s32.totalorder %s29, 3
      %p504 = pnand %p502, %p503
      %p505 = pneg %p504
      // Predicated region
      $region65: #{diffpool_dec_forward.1} parent=5 // pred_check
        _
      $region66: #{diffpool_dec_forward.1} parent=5 // pred_check_branch
        %507 = sbr.rel (%p504) target = $region68
      $region67: #{diffpool_dec_forward.1} parent=5 // pred_region
        %s508 = ssub.s32 %s29, 1
        %s509 = sand.u32 %s42, 1
        %s510 = scalar_lea.sflag [#allocation3], %s509
        %s511 = sand.u32 %s42, 1
        %s512 = smul.addr %s511, 16
        %s513 = scalar_lea.vmem [#allocation2], %s512
        // Predicated region
        $region69: #{diffpool_dec_forward.1} parent=67 // pred_check
          %p514 = pneg %p55
        $region70: #{diffpool_dec_forward.1} parent=67 // pred_check_branch
          %516 = sbr.rel (%p514) target = $region72
        $region71: #{diffpool_dec_forward.1} parent=67 // pred_region
          %517 = dma.done %s510, 256
        $region72: #{diffpool_dec_forward.1} parent=67 // pred_fallthru
          _
        %s518 = sand.u32 %s34, 1
        %s519 = scalar_lea.sflag [#allocation5], %s518
        %s520 = sand.u32 %s68, 1
        %s521 = smul.addr %s520, 16
        %s522 = scalar_lea.vmem [#allocation4], %s521
        // Predicated region
        $region73: #{diffpool_dec_forward.1} parent=67 // pred_check
          %p523 = pneg %p81
        $region74: #{diffpool_dec_forward.1} parent=67 // pred_check_branch
          %525 = sbr.rel (%p523) target = $region76
        $region75: #{diffpool_dec_forward.1} parent=67 // pred_region
          %526 = dma.done %s519, 256
        $region76: #{diffpool_dec_forward.1} parent=67 // pred_fallthru
          _
        // Predicated region
        $region77: #{diffpool_dec_forward.1} parent=67 // pred_check
          %p527 = pneg %p165
        $region78: #{diffpool_dec_forward.1} parent=67 // pred_check_branch
          %529 = sbr.rel (%p527) target = $region80
        $region79: #{diffpool_dec_forward.1} parent=67 // pred_region
          %530 = dma.done [#allocation5], 16
        $region80: #{diffpool_dec_forward.1} parent=67 // pred_fallthru
          _
        // Predicated region
        $region81: #{diffpool_dec_forward.1} parent=67 // pred_check
          %p531 = pneg %p207
        $region82: #{diffpool_dec_forward.1} parent=67 // pred_check_branch
          %533 = sbr.rel (%p531) target = $region84
        $region83: #{diffpool_dec_forward.1} parent=67 // pred_region
          %534 = dma.done [#allocation8], 16
        $region84: #{diffpool_dec_forward.1} parent=67 // pred_fallthru
          _
        // Predicated region
        $region85: #{diffpool_dec_forward.1} parent=67 // pred_check
          %p535 = pneg %p228
        $region86: #{diffpool_dec_forward.1} parent=67 // pred_check_branch
          %537 = sbr.rel (%p535) target = $region88
        $region87: #{diffpool_dec_forward.1} parent=67 // pred_region
          %538 = dma.done [#allocation8], 4096
        $region88: #{diffpool_dec_forward.1} parent=67 // pred_fallthru
          _
        // Predicated region
        $region89: #{diffpool_dec_forward.1} parent=67 // pred_check
          %p539 = pneg %p249
        $region90: #{diffpool_dec_forward.1} parent=67 // pred_check_branch
          %541 = sbr.rel (%p539) target = $region92
        $region91: #{diffpool_dec_forward.1} parent=67 // pred_region
          %542 = dma.done [#allocation11], 64
        $region92: #{diffpool_dec_forward.1} parent=67 // pred_fallthru
          _
        // Predicated region
        $region93: #{diffpool_dec_forward.1} parent=67 // pred_check
          %p543 = pneg %p291
        $region94: #{diffpool_dec_forward.1} parent=67 // pred_check_branch
          %545 = sbr.rel (%p543) target = $region96
        $region95: #{diffpool_dec_forward.1} parent=67 // pred_region
          %546 = dma.done [#allocation11], 16
        $region96: #{diffpool_dec_forward.1} parent=67 // pred_fallthru
          _
        %s547 = sand.u32 %s42, 1
        %s548 = scalar_lea.sflag [#allocation3], %s547
        %s549 = sand.u32 %s42, 1
        %s550 = smul.addr %s549, 16
        %s551 = scalar_lea.vmem [#allocation2], %s550
        %p552 = pneg %p55
        %p553 = pneg %p52
        %s554 = sand.u32 %s34, 1
        %s555 = scalar_lea.sflag [#allocation5], %s554
        %s556 = sand.u32 %s68, 1
        %s557 = smul.addr %s556, 16
        %s558 = scalar_lea.vmem [#allocation4], %s557
        %p559 = pneg %p81
        %p560 = pneg %p78
        %p561 = pneg %p102
        %p562 = pneg %p99
        %p563 = pneg %p123
        %p564 = pneg %p120
        %p565 = pneg %p144
        %p566 = pneg %p141
        %p567 = pneg %p165
        %p568 = pneg %p162
        %p569 = pneg %p186
        %p570 = pneg %p183
        %p571 = pneg %p207
        %p572 = pneg %p204
        %p573 = pneg %p228
        %p574 = pneg %p225
        %p575 = pneg %p249
        %p576 = pneg %p246
        %p577 = pneg %p270
        %p578 = pneg %p267
        %p579 = pneg %p291
        %p580 = pneg %p288
        %p581 = pneg %p317
        %p582 = pneg %p314
        %p583 = scmp.lt.s32.totalorder %s34, 1
        %s584 = scalar_select %p583, %s34, 1
        %s585 = smul.addr %s584, 12
        %s586 = smul.addr %s585, 8
        %s587 = scalar_lea.vmem %s12, %s586
        %p588 = pneg %p343
        %p589 = pneg %p340
        %p590 = scmp.lt.s32.totalorder %s34, 1
        %s591 = scalar_select %p590, %s34, 1
        %s592 = smul.addr %s591, 252
        %s593 = smul.addr %s592, 8
        %s594 = scalar_lea.vmem %s13, %s593
        %p595 = pneg %p369
        %p596 = pneg %p366
        %p597 = scmp.lt.s32.totalorder %s34, 1
        %s598 = scalar_select %p597, %s34, 1
        %s599 = scalar_lea.vmem %s14, %s598
        %p600 = scmp.lt.s32.totalorder %s34, 1
        %s601 = scalar_select %p600, %s34, 1
        %s602 = smul.addr %s601, 12
        %s603 = smul.addr %s602, 8
        %s604 = scalar_lea.vmem %s12, %s603
        %p605 = scmp.lt.s32.totalorder %s34, 1
        %s606 = scalar_select %p605, %s34, 1
        %s607 = smul.addr %s606, 252
        %s608 = smul.addr %s607, 8
        %s609 = scalar_lea.vmem %s13, %s608
        %p610 = scmp.lt.s32.totalorder %s34, 1
        %s611 = scalar_select %p610, %s34, 1
        %s612 = scalar_lea.vmem %s14, %s611
        %v613 = vld [vmem:[%s513] sm:$0xff]
        %v614 = vld [vmem:[%s513 + $0x8] sm:$0xff]
        %v615 = vld [vmem:[%s522] sm:$0xff]
        %v616 = vld [vmem:[%s522 + $0x8] sm:$0xff]
        %v617 = vlaneseq
        %v618 = vshrl.u32 %v617, 7
        %v619 = vadd.s32 %v618, 8
        %v620 = vlaneseq
        %v621 = vand.u32 %v620, 127
        %vm622 = vcmp.eq.s32.totalorder %v618, %v621
        %vm623 = vcmp.eq.s32.totalorder %v619, %v621
        %v624 = vsel %vm622, 1.0, %v615
        %v625 = vsel %vm623, 1.0, %v616
        %v626 = vld [vmem:[%s2] sm:$0xff]
        %v627 = vld [vmem:[%s2 + $0x8] sm:$0xff]
        %v628 = vld [vmem:[%s2 + $0x10] sm:$0xff]
        %v629 = vld [vmem:[%s2 + $0x18] sm:$0xff]
        %v630 = vld [vmem:[%s2 + $0x20] sm:$0xff]
        %v631 = vld [vmem:[%s2 + $0x28] sm:$0xff]
        %v632 = vld [vmem:[%s2 + $0x30] sm:$0xff]
        %v633 = vld [vmem:[%s2 + $0x38] sm:$0xff]
        %v634 = vld [vmem:[%s3] sm:$0x1]
        %v635 = vld [vmem:[%s4] sm:$0xff]
        %v636 = vld [vmem:[%s4 + $0x8] sm:$0xff]
        %v637 = vld [vmem:[%s4 + $0x10] sm:$0xff]
        %v638 = vld [vmem:[%s4 + $0x18] sm:$0xff]
        %v639 = vld [vmem:[%s4 + $0x20] sm:$0xff]
        %v640 = vld [vmem:[%s4 + $0x28] sm:$0xff]
        %v641 = vld [vmem:[%s4 + $0x30] sm:$0xff]
        %v642 = vld [vmem:[%s4 + $0x38] sm:$0xff]
        %v643 = vld [vmem:[#allocation6] sm:$0x1]
        %vm644 = vcmask 523264
        %v646 = vsel %vm644, %v613, 0
        %v649 = vsel %vm644, %v614, 0
        %651 = vmatprep.subr.mxu0 0.0
        %652 = vmatpush1.msra.mxu0 0.0
        %653 = vmatprep.subr.mxu0 0.0
        %654 = vmatpush1.msra.mxu0 0.0
        %655 = vmatprep.subr.mxu0 0.0
        %656 = vmatpush1.msra.mxu0 0.0
        %657 = vmatprep.subr.mxu0 0.0
        %658 = vmatpush1.msra.mxu0 0.0
        %659 = vmatprep.subr.mxu0 0.0
        %660 = vmatpush1.msra.mxu0 0.0
        %661 = vmatprep.subr.mxu0 0.0
        %662 = vmatpush1.msra.mxu0 0.0
        %663 = vmatprep.subr.mxu0 0.0
        %664 = vmatpush1.msra.mxu0 0.0
        %665 = vmatprep.subr.mxu0 0.0
        %666 = vmatpush1.msra.mxu0 0.0
        %667 = vmatprep.subr.mxu0 0.0
        %668 = vmatpush1.msra.mxu0 %v633
        %669 = vmatprep.subr.mxu0 0.0
        %670 = vmatpush1.msra.mxu0 %v632
        %671 = vmatprep.subr.mxu0 0.0
        %672 = vmatpush1.msra.mxu0 %v631
        %673 = vmatprep.subr.mxu0 0.0
        %674 = vmatpush1.msra.mxu0 %v630
        %675 = vmatprep.subr.mxu0 0.0
        %676 = vmatpush1.msra.mxu0 %v629
        %677 = vmatprep.subr.mxu0 0.0
        %678 = vmatpush1.msra.mxu0 %v628
        %679 = vmatprep.subr.mxu0 0.0
        %680 = vmatpush1.msra.mxu0 %v627
        %681 = vmatprep.subr.mxu0 0.0
        %682 = vmatpush1.msra.mxu0 %v626
        %683 = vmatprep.subr.mxu0 0.0
        %684 = vmatpush2.msra.mxu0 0.0
        %685 = vmatprep.subr.mxu0 0.0
        %686 = vmatpush2.msra.mxu0 0.0
        %687 = vmatprep.subr.mxu0 0.0
        %688 = vmatpush2.msra.mxu0 0.0
        %689 = vmatprep.subr.mxu0 0.0
        %690 = vmatpush2.msra.mxu0 0.0
        %691 = vmatprep.subr.mxu0 0.0
        %692 = vmatpush2.msra.mxu0 0.0
        %693 = vmatprep.subr.mxu0 0.0
        %694 = vmatpush2.msra.mxu0 0.0
        %695 = vmatprep.subr.mxu0 0.0
        %696 = vmatpush2.msra.mxu0 0.0
        %697 = vmatprep.subr.mxu0 0.0
        %698 = vmatpush2.msra.mxu0 0.0
        %699 = vmatprep.subr.mxu0 0.0
        %700 = vmatpush2.msra.mxu0 0.0
        %701 = vmatprep.subr.mxu0 0.0
        %702 = vmatpush2.msra.mxu0 0.0
        %703 = vmatprep.subr.mxu0 0.0
        %704 = vmatpush2.msra.mxu0 0.0
        %705 = vmatprep.subr.mxu0 0.0
        %706 = vmatpush2.msra.mxu0 0.0
        %707 = vmatprep.subr.mxu0 0.0
        %708 = vmatpush2.msra.mxu0 0.0
        %709 = vmatprep.subr.mxu0 0.0
        %710 = vmatpush2.msra.mxu0 0.0
        %711 = vmatprep.subr.mxu0 0.0
        %712 = vmatpush2.msra.mxu0 0.0
        %713 = vmatprep.subr.mxu0 0.0
        %714 = vmatpush2.msra.mxu0 0.0
        %715 = vmatprep.mubr.f32.mxu0 0.0
        %716 = vmatmul.mubr.f32.gmra.mxu0 %v646
        %v717 = vpop.f32.mrf.mxu0
        %v718 = vadd.f32 0.0, %v717
        %v719 = vpop.f32.mrf.mxu0
        %720 = vmatprep.mubr.f32.mxu0 0.0
        %721 = vmatmul.mubr.f32.gmra.mxu0 %v649
        %v722 = vpop.f32.mrf.mxu0
        %v723 = vadd.f32 0.0, %v722
        %v724 = vpop.f32.mrf.mxu0
        %725 = vdwg.mxu0
        %v727 = vlaneseq
        %v728 = vshrl.u32 %v727, 7
        %v729 = vsub.s32 0, %v728
        %v730 = vrot.slane %v634, %v729
        %vm732 = vcmask 130048
        %v734 = vsel %vm732, %v624, 0
        %v737 = vsel %vm732, %v625, 0
        %739 = vmatprep.subr.mxu0 0.0
        %740 = vmatpush1.msra.mxu0 0.0
        %741 = vmatprep.subr.mxu0 0.0
        %742 = vmatpush1.msra.mxu0 0.0
        %743 = vmatprep.subr.mxu0 0.0
        %744 = vmatpush1.msra.mxu0 0.0
        %745 = vmatprep.subr.mxu0 0.0
        %746 = vmatpush1.msra.mxu0 0.0
        %747 = vmatprep.subr.mxu0 0.0
        %748 = vmatpush1.msra.mxu0 0.0
        %749 = vmatprep.subr.mxu0 0.0
        %750 = vmatpush1.msra.mxu0 0.0
        %751 = vmatprep.subr.mxu0 0.0
        %752 = vmatpush1.msra.mxu0 0.0
        %753 = vmatprep.subr.mxu0 0.0
        %754 = vmatpush1.msra.mxu0 0.0
        %755 = vmatprep.subr.mxu0 0.0
        %756 = vmatpush1.msra.mxu0 0.0
        %757 = vmatprep.subr.mxu0 0.0
        %758 = vmatpush1.msra.mxu0 0.0
        %759 = vmatprep.subr.mxu0 0.0
        %760 = vmatpush1.msra.mxu0 0.0
        %761 = vmatprep.subr.mxu0 0.0
        %762 = vmatpush1.msra.mxu0 0.0
        %763 = vmatprep.subr.mxu0 0.0
        %764 = vmatpush1.msra.mxu0 0.0
        %765 = vmatprep.subr.mxu0 0.0
        %766 = vmatpush1.msra.mxu0 0.0
        %767 = vmatprep.subr.mxu0 0.0
        %768 = vmatpush1.msra.mxu0 %v723
        %769 = vmatprep.subr.mxu0 0.0
        %770 = vmatpush1.msra.mxu0 %v718
        %771 = vmatprep.subr.mxu0 0.0
        %772 = vmatpush2.msra.mxu0 0.0
        %773 = vmatprep.subr.mxu0 0.0
        %774 = vmatpush2.msra.mxu0 0.0
        %775 = vmatprep.subr.mxu0 0.0
        %776 = vmatpush2.msra.mxu0 0.0
        %777 = vmatprep.subr.mxu0 0.0
        %778 = vmatpush2.msra.mxu0 0.0
        %779 = vmatprep.subr.mxu0 0.0
        %780 = vmatpush2.msra.mxu0 0.0
        %781 = vmatprep.subr.mxu0 0.0
        %782 = vmatpush2.msra.mxu0 0.0
        %783 = vmatprep.subr.mxu0 0.0
        %784 = vmatpush2.msra.mxu0 0.0
        %785 = vmatprep.subr.mxu0 0.0
        %786 = vmatpush2.msra.mxu0 0.0
        %787 = vmatprep.subr.mxu0 0.0
        %788 = vmatpush2.msra.mxu0 0.0
        %789 = vmatprep.subr.mxu0 0.0
        %790 = vmatpush2.msra.mxu0 0.0
        %791 = vmatprep.subr.mxu0 0.0
        %792 = vmatpush2.msra.mxu0 0.0
        %793 = vmatprep.subr.mxu0 0.0
        %794 = vmatpush2.msra.mxu0 0.0
        %795 = vmatprep.subr.mxu0 0.0
        %796 = vmatpush2.msra.mxu0 0.0
        %797 = vmatprep.subr.mxu0 0.0
        %798 = vmatpush2.msra.mxu0 0.0
        %799 = vmatprep.subr.mxu0 0.0
        %800 = vmatpush2.msra.mxu0 0.0
        %801 = vmatprep.subr.mxu0 0.0
        %802 = vmatpush2.msra.mxu0 0.0
        %803 = vmatprep.mubr.f32.mxu0 0.0
        %804 = vmatmul.mubr.f32.gmra.mxu0 %v734
        %v805 = vpop.f32.mrf.mxu0
        %v806 = vadd.f32 %v730, %v805
        %v807 = vpop.f32.mrf.mxu0
        %808 = vmatprep.mubr.f32.mxu0 0.0
        %809 = vmatmul.mubr.f32.gmra.mxu0 %v737
        %v810 = vpop.f32.mrf.mxu0
        %v811 = vadd.f32 %v730, %v810
        %v812 = vpop.f32.mrf.mxu0
        %813 = vdwg.mxu0
        %v814 = vmax.f32 %v806, 0.0
        %v815 = vmax.f32 %v811, 0.0
        %v817 = vsel %vm644, %v814, 0
        %v820 = vsel %vm644, %v815, 0
        %822 = vmatprep.subr.mxu0 0.0
        %823 = vmatpush1.msra.mxu0 0.0
        %824 = vmatprep.subr.mxu0 0.0
        %825 = vmatpush1.msra.mxu0 0.0
        %826 = vmatprep.subr.mxu0 0.0
        %827 = vmatpush1.msra.mxu0 0.0
        %828 = vmatprep.subr.mxu0 0.0
        %829 = vmatpush1.msra.mxu0 0.0
        %830 = vmatprep.subr.mxu0 0.0
        %831 = vmatpush1.msra.mxu0 0.0
        %832 = vmatprep.subr.mxu0 0.0
        %833 = vmatpush1.msra.mxu0 0.0
        %834 = vmatprep.subr.mxu0 0.0
        %835 = vmatpush1.msra.mxu0 0.0
        %836 = vmatprep.subr.mxu0 0.0
        %837 = vmatpush1.msra.mxu0 0.0
        %838 = vmatprep.subr.mxu0 0.0
        %839 = vmatpush1.msra.mxu0 %v642
        %840 = vmatprep.subr.mxu0 0.0
        %841 = vmatpush1.msra.mxu0 %v641
        %842 = vmatprep.subr.mxu0 0.0
        %843 = vmatpush1.msra.mxu0 %v640
        %844 = vmatprep.subr.mxu0 0.0
        %845 = vmatpush1.msra.mxu0 %v639
        %846 = vmatprep.subr.mxu0 0.0
        %847 = vmatpush1.msra.mxu0 %v638
        %848 = vmatprep.subr.mxu0 0.0
        %849 = vmatpush1.msra.mxu0 %v637
        %850 = vmatprep.subr.mxu0 0.0
        %851 = vmatpush1.msra.mxu0 %v636
        %852 = vmatprep.subr.mxu0 0.0
        %853 = vmatpush1.msra.mxu0 %v635
        %854 = vmatprep.subr.mxu0 0.0
        %855 = vmatpush2.msra.mxu0 0.0
        %856 = vmatprep.subr.mxu0 0.0
        %857 = vmatpush2.msra.mxu0 0.0
        %858 = vmatprep.subr.mxu0 0.0
        %859 = vmatpush2.msra.mxu0 0.0
        %860 = vmatprep.subr.mxu0 0.0
        %861 = vmatpush2.msra.mxu0 0.0
        %862 = vmatprep.subr.mxu0 0.0
        %863 = vmatpush2.msra.mxu0 0.0
        %864 = vmatprep.subr.mxu0 0.0
        %865 = vmatpush2.msra.mxu0 0.0
        %866 = vmatprep.subr.mxu0 0.0
        %867 = vmatpush2.msra.mxu0 0.0
        %868 = vmatprep.subr.mxu0 0.0
        %869 = vmatpush2.msra.mxu0 0.0
        %870 = vmatprep.subr.mxu0 0.0
        %871 = vmatpush2.msra.mxu0 0.0
        %872 = vmatprep.subr.mxu0 0.0
        %873 = vmatpush2.msra.mxu0 0.0
        %874 = vmatprep.subr.mxu0 0.0
        %875 = vmatpush2.msra.mxu0 0.0
        %876 = vmatprep.subr.mxu0 0.0
        %877 = vmatpush2.msra.mxu0 0.0
        %878 = vmatprep.subr.mxu0 0.0
        %879 = vmatpush2.msra.mxu0 0.0
        %880 = vmatprep.subr.mxu0 0.0
        %881 = vmatpush2.msra.mxu0 0.0
        %882 = vmatprep.subr.mxu0 0.0
        %883 = vmatpush2.msra.mxu0 0.0
        %884 = vmatprep.subr.mxu0 0.0
        %885 = vmatpush2.msra.mxu0 0.0
        %886 = vmatprep.mubr.f32.mxu0 0.0
        %887 = vmatmul.mubr.f32.gmra.mxu0 %v817
        %v888 = vpop.f32.mrf.mxu0
        %v889 = vadd.f32 0.0, %v888
        %v890 = vpop.f32.mrf.mxu0
        %891 = vmatprep.mubr.f32.mxu0 0.0
        %892 = vmatmul.mubr.f32.gmra.mxu0 %v820
        %v893 = vpop.f32.mrf.mxu0
        %v894 = vadd.f32 0.0, %v893
        %v895 = vpop.f32.mrf.mxu0
        %896 = vdwg.mxu0
        %v898 = vlaneseq
        %v899 = vshrl.u32 %v898, 7
        %v900 = vsub.s32 0, %v899
        %v901 = vrot.slane %v643, %v900
        %903 = vmatprep.subr.mxu0 0.0
        %904 = vmatpush1.msra.mxu0 0.0
        %905 = vmatprep.subr.mxu0 0.0
        %906 = vmatpush1.msra.mxu0 0.0
        %907 = vmatprep.subr.mxu0 0.0
        %908 = vmatpush1.msra.mxu0 0.0
        %909 = vmatprep.subr.mxu0 0.0
        %910 = vmatpush1.msra.mxu0 0.0
        %911 = vmatprep.subr.mxu0 0.0
        %912 = vmatpush1.msra.mxu0 0.0
        %913 = vmatprep.subr.mxu0 0.0
        %914 = vmatpush1.msra.mxu0 0.0
        %915 = vmatprep.subr.mxu0 0.0
        %916 = vmatpush1.msra.mxu0 0.0
        %917 = vmatprep.subr.mxu0 0.0
        %918 = vmatpush1.msra.mxu0 0.0
        %919 = vmatprep.subr.mxu0 0.0
        %920 = vmatpush1.msra.mxu0 0.0
        %921 = vmatprep.subr.mxu0 0.0
        %922 = vmatpush1.msra.mxu0 0.0
        %923 = vmatprep.subr.mxu0 0.0
        %924 = vmatpush1.msra.mxu0 0.0
        %925 = vmatprep.subr.mxu0 0.0
        %926 = vmatpush1.msra.mxu0 0.0
        %927 = vmatprep.subr.mxu0 0.0
        %928 = vmatpush1.msra.mxu0 0.0
        %929 = vmatprep.subr.mxu0 0.0
        %930 = vmatpush1.msra.mxu0 0.0
        %931 = vmatprep.subr.mxu0 0.0
        %932 = vmatpush1.msra.mxu0 %v894
        %933 = vmatprep.subr.mxu0 0.0
        %934 = vmatpush1.msra.mxu0 %v889
        %935 = vmatprep.subr.mxu0 0.0
        %936 = vmatpush2.msra.mxu0 0.0
        %937 = vmatprep.subr.mxu0 0.0
        %938 = vmatpush2.msra.mxu0 0.0
        %939 = vmatprep.subr.mxu0 0.0
        %940 = vmatpush2.msra.mxu0 0.0
        %941 = vmatprep.subr.mxu0 0.0
        %942 = vmatpush2.msra.mxu0 0.0
        %943 = vmatprep.subr.mxu0 0.0
        %944 = vmatpush2.msra.mxu0 0.0
        %945 = vmatprep.subr.mxu0 0.0
        %946 = vmatpush2.msra.mxu0 0.0
        %947 = vmatprep.subr.mxu0 0.0
        %948 = vmatpush2.msra.mxu0 0.0
        %949 = vmatprep.subr.mxu0 0.0
        %950 = vmatpush2.msra.mxu0 0.0
        %951 = vmatprep.subr.mxu0 0.0
        %952 = vmatpush2.msra.mxu0 0.0
        %953 = vmatprep.subr.mxu0 0.0
        %954 = vmatpush2.msra.mxu0 0.0
        %955 = vmatprep.subr.mxu0 0.0
        %956 = vmatpush2.msra.mxu0 0.0
        %957 = vmatprep.subr.mxu0 0.0
        %958 = vmatpush2.msra.mxu0 0.0
        %959 = vmatprep.subr.mxu0 0.0
        %960 = vmatpush2.msra.mxu0 0.0
        %961 = vmatprep.subr.mxu0 0.0
        %962 = vmatpush2.msra.mxu0 0.0
        %963 = vmatprep.subr.mxu0 0.0
        %964 = vmatpush2.msra.mxu0 0.0
        %965 = vmatprep.subr.mxu0 0.0
        %966 = vmatpush2.msra.mxu0 0.0
        %967 = vmatprep.mubr.f32.mxu0 0.0
        %968 = vmatmul.mubr.f32.gmra.mxu0 %v734
        %v969 = vpop.f32.mrf.mxu0
        %v970 = vadd.f32 %v901, %v969
        %v971 = vpop.f32.mrf.mxu0
        %972 = vmatprep.mubr.f32.mxu0 0.0
        %973 = vmatmul.mubr.f32.gmra.mxu0 %v737
        %v974 = vpop.f32.mrf.mxu0
        %v975 = vadd.f32 %v901, %v974
        %v976 = vpop.f32.mrf.mxu0
        %977 = vdwg.mxu0
        %v978 = vmax.f32 %v970, 0.0
        %v979 = vmax.f32 %v975, 0.0
        %vm980 = vcmask 15360
        %v981 = vsel %vm980, %v978, -inf
        %982 = vmax.xlane.f32.xlu0 %v981
        %v983 = vpop.xlane.xlu0 %982
        %v984 = vsel %vm980, %v979, -inf
        %985 = vmax.xlane.f32.xlu0 %v984
        %v986 = vpop.xlane.xlu0 %985
        %v987 = vsub.f32 %v978, %v983
        %v988 = vsub.f32 %v979, %v986
        %v989 = vmul.f32 %v987, 1.442695
        %v990 = vpow.pop %v989
        %v991 = vmul.f32 %v988, 1.442695
        %v992 = vpow.pop %v991
        %v993 = vsel %vm980, %v990, 0.0
        %994 = vadd.xlane.f32.xlu0 %v993
        %v995 = vpop.xlane.xlu0 %994
        %v996 = vsel %vm980, %v992, 0.0
        %997 = vadd.xlane.f32.xlu0 %v996
        %v998 = vpop.xlane.xlu0 %997
        %v999 = vrcp.pop %v995
        %v1000 = vmul.f32 1.0, %v999
        %v1001 = vrcp.pop %v998
        %v1002 = vmul.f32 1.0, %v1001
        %v1003 = vmul.f32 %v990, %v1000
        %v1004 = vmul.f32 %v992, %v1002
        %s1005 = scalar_lea.vmem %s2, 64
        %v1006 = vld [vmem:[%s1005] sm:$0xff]
        %v1007 = vld [vmem:[%s1005 + $0x8] sm:$0xff]
        %v1008 = vld [vmem:[%s1005 + $0x10] sm:$0xff]
        %v1009 = vld [vmem:[%s1005 + $0x18] sm:$0xff]
        %v1010 = vld [vmem:[%s1005 + $0x20] sm:$0xff]
        %v1011 = vld [vmem:[%s1005 + $0x28] sm:$0xff]
        %v1012 = vld [vmem:[%s1005 + $0x30] sm:$0xff]
        %v1013 = vld [vmem:[%s1005 + $0x38] sm:$0xff]
        %s1014 = scalar_lea.vmem %s3, 1
        %v1015 = vld [vmem:[%s1014] sm:$0x1]
        %s1016 = scalar_lea.vmem %s2, 128
        %v1017 = vld [vmem:[%s1016] sm:$0xff]
        %v1018 = vld [vmem:[%s1016 + $0x8] sm:$0xff]
        %v1019 = vld [vmem:[%s1016 + $0x10] sm:$0xff]
        %v1020 = vld [vmem:[%s1016 + $0x18] sm:$0xff]
        %v1021 = vld [vmem:[%s1016 + $0x20] sm:$0xff]
        %v1022 = vld [vmem:[%s1016 + $0x28] sm:$0xff]
        %v1023 = vld [vmem:[%s1016 + $0x30] sm:$0xff]
        %v1024 = vld [vmem:[%s1016 + $0x38] sm:$0xff]
        %s1025 = scalar_lea.vmem %s3, 2
        %v1026 = vld [vmem:[%s1025] sm:$0x1]
        %1027 = vmatprep.subr.mxu0 0.0
        %1028 = vmatpush1.msra.mxu0 0.0
        %1029 = vmatprep.subr.mxu0 0.0
        %1030 = vmatpush1.msra.mxu0 0.0
        %1031 = vmatprep.subr.mxu0 0.0
        %1032 = vmatpush1.msra.mxu0 0.0
        %1033 = vmatprep.subr.mxu0 0.0
        %1034 = vmatpush1.msra.mxu0 0.0
        %1035 = vmatprep.subr.mxu0 0.0
        %1036 = vmatpush1.msra.mxu0 0.0
        %1037 = vmatprep.subr.mxu0 0.0
        %1038 = vmatpush1.msra.mxu0 0.0
        %1039 = vmatprep.subr.mxu0 0.0
        %1040 = vmatpush1.msra.mxu0 0.0
        %1041 = vmatprep.subr.mxu0 0.0
        %1042 = vmatpush1.msra.mxu0 0.0
        %1043 = vmatprep.subr.mxu0 0.0
        %1044 = vmatpush1.msra.mxu0 %v1013
        %1045 = vmatprep.subr.mxu0 0.0
        %1046 = vmatpush1.msra.mxu0 %v1012
        %1047 = vmatprep.subr.mxu0 0.0
        %1048 = vmatpush1.msra.mxu0 %v1011
        %1049 = vmatprep.subr.mxu0 0.0
        %1050 = vmatpush1.msra.mxu0 %v1010
        %1051 = vmatprep.subr.mxu0 0.0
        %1052 = vmatpush1.msra.mxu0 %v1009
        %1053 = vmatprep.subr.mxu0 0.0
        %1054 = vmatpush1.msra.mxu0 %v1008
        %1055 = vmatprep.subr.mxu0 0.0
        %1056 = vmatpush1.msra.mxu0 %v1007
        %1057 = vmatprep.subr.mxu0 0.0
        %1058 = vmatpush1.msra.mxu0 %v1006
        %1059 = vmatprep.subr.mxu0 0.0
        %1060 = vmatpush2.msra.mxu0 0.0
        %1061 = vmatprep.subr.mxu0 0.0
        %1062 = vmatpush2.msra.mxu0 0.0
        %1063 = vmatprep.subr.mxu0 0.0
        %1064 = vmatpush2.msra.mxu0 0.0
        %1065 = vmatprep.subr.mxu0 0.0
        %1066 = vmatpush2.msra.mxu0 0.0
        %1067 = vmatprep.subr.mxu0 0.0
        %1068 = vmatpush2.msra.mxu0 0.0
        %1069 = vmatprep.subr.mxu0 0.0
        %1070 = vmatpush2.msra.mxu0 0.0
        %1071 = vmatprep.subr.mxu0 0.0
        %1072 = vmatpush2.msra.mxu0 0.0
        %1073 = vmatprep.subr.mxu0 0.0
        %1074 = vmatpush2.msra.mxu0 0.0
        %1075 = vmatprep.subr.mxu0 0.0
        %1076 = vmatpush2.msra.mxu0 0.0
        %1077 = vmatprep.subr.mxu0 0.0
        %1078 = vmatpush2.msra.mxu0 0.0
        %1079 = vmatprep.subr.mxu0 0.0
        %1080 = vmatpush2.msra.mxu0 0.0
        %1081 = vmatprep.subr.mxu0 0.0
        %1082 = vmatpush2.msra.mxu0 0.0
        %1083 = vmatprep.subr.mxu0 0.0
        %1084 = vmatpush2.msra.mxu0 0.0
        %1085 = vmatprep.subr.mxu0 0.0
        %1086 = vmatpush2.msra.mxu0 0.0
        %1087 = vmatprep.subr.mxu0 0.0
        %1088 = vmatpush2.msra.mxu0 0.0
        %1089 = vmatprep.subr.mxu0 0.0
        %1090 = vmatpush2.msra.mxu0 0.0
        %1091 = vmatprep.mubr.f32.mxu0 0.0
        %1092 = vmatmul.mubr.f32.gmra.mxu0 %v646
        %v1093 = vpop.f32.mrf.mxu0
        %v1094 = vadd.f32 0.0, %v1093
        %v1095 = vpop.f32.mrf.mxu0
        %1096 = vmatprep.mubr.f32.mxu0 0.0
        %1097 = vmatmul.mubr.f32.gmra.mxu0 %v649
        %v1098 = vpop.f32.mrf.mxu0
        %v1099 = vadd.f32 0.0, %v1098
        %v1100 = vpop.f32.mrf.mxu0
        %1101 = vdwg.mxu0
        %v1103 = vlaneseq
        %v1104 = vshrl.u32 %v1103, 7
        %v1105 = vsub.s32 0, %v1104
        %v1106 = vrot.slane %v1015, %v1105
        %1108 = vmatprep.subr.mxu0 0.0
        %1109 = vmatpush1.msra.mxu0 0.0
        %1110 = vmatprep.subr.mxu0 0.0
        %1111 = vmatpush1.msra.mxu0 0.0
        %1112 = vmatprep.subr.mxu0 0.0
        %1113 = vmatpush1.msra.mxu0 0.0
        %1114 = vmatprep.subr.mxu0 0.0
        %1115 = vmatpush1.msra.mxu0 0.0
        %1116 = vmatprep.subr.mxu0 0.0
        %1117 = vmatpush1.msra.mxu0 0.0
        %1118 = vmatprep.subr.mxu0 0.0
        %1119 = vmatpush1.msra.mxu0 0.0
        %1120 = vmatprep.subr.mxu0 0.0
        %1121 = vmatpush1.msra.mxu0 0.0
        %1122 = vmatprep.subr.mxu0 0.0
        %1123 = vmatpush1.msra.mxu0 0.0
        %1124 = vmatprep.subr.mxu0 0.0
        %1125 = vmatpush1.msra.mxu0 0.0
        %1126 = vmatprep.subr.mxu0 0.0
        %1127 = vmatpush1.msra.mxu0 0.0
        %1128 = vmatprep.subr.mxu0 0.0
        %1129 = vmatpush1.msra.mxu0 0.0
        %1130 = vmatprep.subr.mxu0 0.0
        %1131 = vmatpush1.msra.mxu0 0.0
        %1132 = vmatprep.subr.mxu0 0.0
        %1133 = vmatpush1.msra.mxu0 0.0
        %1134 = vmatprep.subr.mxu0 0.0
        %1135 = vmatpush1.msra.mxu0 0.0
        %1136 = vmatprep.subr.mxu0 0.0
        %1137 = vmatpush1.msra.mxu0 %v1099
        %1138 = vmatprep.subr.mxu0 0.0
        %1139 = vmatpush1.msra.mxu0 %v1094
        %1140 = vmatprep.subr.mxu0 0.0
        %1141 = vmatpush2.msra.mxu0 0.0
        %1142 = vmatprep.subr.mxu0 0.0
        %1143 = vmatpush2.msra.mxu0 0.0
        %1144 = vmatprep.subr.mxu0 0.0
        %1145 = vmatpush2.msra.mxu0 0.0
        %1146 = vmatprep.subr.mxu0 0.0
        %1147 = vmatpush2.msra.mxu0 0.0
        %1148 = vmatprep.subr.mxu0 0.0
        %1149 = vmatpush2.msra.mxu0 0.0
        %1150 = vmatprep.subr.mxu0 0.0
        %1151 = vmatpush2.msra.mxu0 0.0
        %1152 = vmatprep.subr.mxu0 0.0
        %1153 = vmatpush2.msra.mxu0 0.0
        %1154 = vmatprep.subr.mxu0 0.0
        %1155 = vmatpush2.msra.mxu0 0.0
        %1156 = vmatprep.subr.mxu0 0.0
        %1157 = vmatpush2.msra.mxu0 0.0
        %1158 = vmatprep.subr.mxu0 0.0
        %1159 = vmatpush2.msra.mxu0 0.0
        %1160 = vmatprep.subr.mxu0 0.0
        %1161 = vmatpush2.msra.mxu0 0.0
        %1162 = vmatprep.subr.mxu0 0.0
        %1163 = vmatpush2.msra.mxu0 0.0
        %1164 = vmatprep.subr.mxu0 0.0
        %1165 = vmatpush2.msra.mxu0 0.0
        %1166 = vmatprep.subr.mxu0 0.0
        %1167 = vmatpush2.msra.mxu0 0.0
        %1168 = vmatprep.subr.mxu0 0.0
        %1169 = vmatpush2.msra.mxu0 0.0
        %1170 = vmatprep.subr.mxu0 0.0
        %1171 = vmatpush2.msra.mxu0 0.0
        %1172 = vmatprep.mubr.f32.mxu0 0.0
        %1173 = vmatmul.mubr.f32.gmra.mxu0 %v734
        %v1174 = vpop.f32.mrf.mxu0
        %v1175 = vadd.f32 %v1106, %v1174
        %v1176 = vpop.f32.mrf.mxu0
        %1177 = vmatprep.mubr.f32.mxu0 0.0
        %1178 = vmatmul.mubr.f32.gmra.mxu0 %v737
        %v1179 = vpop.f32.mrf.mxu0
        %v1180 = vadd.f32 %v1106, %v1179
        %v1181 = vpop.f32.mrf.mxu0
        %1182 = vdwg.mxu0
        %v1183 = vmax.f32 %v1175, 0.0
        %v1184 = vmax.f32 %v1180, 0.0
        %v1186 = vsel %vm644, %v1183, 0
        %v1189 = vsel %vm644, %v1184, 0
        %1191 = vmatprep.subr.mxu0 0.0
        %1192 = vmatpush1.msra.mxu0 0.0
        %1193 = vmatprep.subr.mxu0 0.0
        %1194 = vmatpush1.msra.mxu0 0.0
        %1195 = vmatprep.subr.mxu0 0.0
        %1196 = vmatpush1.msra.mxu0 0.0
        %1197 = vmatprep.subr.mxu0 0.0
        %1198 = vmatpush1.msra.mxu0 0.0
        %1199 = vmatprep.subr.mxu0 0.0
        %1200 = vmatpush1.msra.mxu0 0.0
        %1201 = vmatprep.subr.mxu0 0.0
        %1202 = vmatpush1.msra.mxu0 0.0
        %1203 = vmatprep.subr.mxu0 0.0
        %1204 = vmatpush1.msra.mxu0 0.0
        %1205 = vmatprep.subr.mxu0 0.0
        %1206 = vmatpush1.msra.mxu0 0.0
        %1207 = vmatprep.subr.mxu0 0.0
        %1208 = vmatpush1.msra.mxu0 %v1024
        %1209 = vmatprep.subr.mxu0 0.0
        %1210 = vmatpush1.msra.mxu0 %v1023
        %1211 = vmatprep.subr.mxu0 0.0
        %1212 = vmatpush1.msra.mxu0 %v1022
        %1213 = vmatprep.subr.mxu0 0.0
        %1214 = vmatpush1.msra.mxu0 %v1021
        %1215 = vmatprep.subr.mxu0 0.0
        %1216 = vmatpush1.msra.mxu0 %v1020
        %1217 = vmatprep.subr.mxu0 0.0
        %1218 = vmatpush1.msra.mxu0 %v1019
        %1219 = vmatprep.subr.mxu0 0.0
        %1220 = vmatpush1.msra.mxu0 %v1018
        %1221 = vmatprep.subr.mxu0 0.0
        %1222 = vmatpush1.msra.mxu0 %v1017
        %1223 = vmatprep.subr.mxu0 0.0
        %1224 = vmatpush2.msra.mxu0 0.0
        %1225 = vmatprep.subr.mxu0 0.0
        %1226 = vmatpush2.msra.mxu0 0.0
        %1227 = vmatprep.subr.mxu0 0.0
        %1228 = vmatpush2.msra.mxu0 0.0
        %1229 = vmatprep.subr.mxu0 0.0
        %1230 = vmatpush2.msra.mxu0 0.0
        %1231 = vmatprep.subr.mxu0 0.0
        %1232 = vmatpush2.msra.mxu0 0.0
        %1233 = vmatprep.subr.mxu0 0.0
        %1234 = vmatpush2.msra.mxu0 0.0
        %1235 = vmatprep.subr.mxu0 0.0
        %1236 = vmatpush2.msra.mxu0 0.0
        %1237 = vmatprep.subr.mxu0 0.0
        %1238 = vmatpush2.msra.mxu0 0.0
        %1239 = vmatprep.subr.mxu0 0.0
        %1240 = vmatpush2.msra.mxu0 0.0
        %1241 = vmatprep.subr.mxu0 0.0
        %1242 = vmatpush2.msra.mxu0 0.0
        %1243 = vmatprep.subr.mxu0 0.0
        %1244 = vmatpush2.msra.mxu0 0.0
        %1245 = vmatprep.subr.mxu0 0.0
        %1246 = vmatpush2.msra.mxu0 0.0
        %1247 = vmatprep.subr.mxu0 0.0
        %1248 = vmatpush2.msra.mxu0 0.0
        %1249 = vmatprep.subr.mxu0 0.0
        %1250 = vmatpush2.msra.mxu0 0.0
        %1251 = vmatprep.subr.mxu0 0.0
        %1252 = vmatpush2.msra.mxu0 0.0
        %1253 = vmatprep.subr.mxu0 0.0
        %1254 = vmatpush2.msra.mxu0 0.0
        %1255 = vmatprep.mubr.f32.mxu0 0.0
        %1256 = vmatmul.mubr.f32.gmra.mxu0 %v1186
        %v1257 = vpop.f32.mrf.mxu0
        %v1258 = vadd.f32 0.0, %v1257
        %v1259 = vpop.f32.mrf.mxu0
        %1260 = vmatprep.mubr.f32.mxu0 0.0
        %1261 = vmatmul.mubr.f32.gmra.mxu0 %v1189
        %v1262 = vpop.f32.mrf.mxu0
        %v1263 = vadd.f32 0.0, %v1262
        %v1264 = vpop.f32.mrf.mxu0
        %1265 = vdwg.mxu0
        %v1267 = vlaneseq
        %v1268 = vshrl.u32 %v1267, 7
        %v1269 = vsub.s32 0, %v1268
        %v1270 = vrot.slane %v1026, %v1269
        %1272 = vmatprep.subr.mxu0 0.0
        %1273 = vmatpush1.msra.mxu0 0.0
        %1274 = vmatprep.subr.mxu0 0.0
        %1275 = vmatpush1.msra.mxu0 0.0
        %1276 = vmatprep.subr.mxu0 0.0
        %1277 = vmatpush1.msra.mxu0 0.0
        %1278 = vmatprep.subr.mxu0 0.0
        %1279 = vmatpush1.msra.mxu0 0.0
        %1280 = vmatprep.subr.mxu0 0.0
        %1281 = vmatpush1.msra.mxu0 0.0
        %1282 = vmatprep.subr.mxu0 0.0
        %1283 = vmatpush1.msra.mxu0 0.0
        %1284 = vmatprep.subr.mxu0 0.0
        %1285 = vmatpush1.msra.mxu0 0.0
        %1286 = vmatprep.subr.mxu0 0.0
        %1287 = vmatpush1.msra.mxu0 0.0
        %1288 = vmatprep.subr.mxu0 0.0
        %1289 = vmatpush1.msra.mxu0 0.0
        %1290 = vmatprep.subr.mxu0 0.0
        %1291 = vmatpush1.msra.mxu0 0.0
        %1292 = vmatprep.subr.mxu0 0.0
        %1293 = vmatpush1.msra.mxu0 0.0
        %1294 = vmatprep.subr.mxu0 0.0
        %1295 = vmatpush1.msra.mxu0 0.0
        %1296 = vmatprep.subr.mxu0 0.0
        %1297 = vmatpush1.msra.mxu0 0.0
        %1298 = vmatprep.subr.mxu0 0.0
        %1299 = vmatpush1.msra.mxu0 0.0
        %1300 = vmatprep.subr.mxu0 0.0
        %1301 = vmatpush1.msra.mxu0 %v1263
        %1302 = vmatprep.subr.mxu0 0.0
        %1303 = vmatpush1.msra.mxu0 %v1258
        %1304 = vmatprep.subr.mxu0 0.0
        %1305 = vmatpush2.msra.mxu0 0.0
        %1306 = vmatprep.subr.mxu0 0.0
        %1307 = vmatpush2.msra.mxu0 0.0
        %1308 = vmatprep.subr.mxu0 0.0
        %1309 = vmatpush2.msra.mxu0 0.0
        %1310 = vmatprep.subr.mxu0 0.0
        %1311 = vmatpush2.msra.mxu0 0.0
        %1312 = vmatprep.subr.mxu0 0.0
        %1313 = vmatpush2.msra.mxu0 0.0
        %1314 = vmatprep.subr.mxu0 0.0
        %1315 = vmatpush2.msra.mxu0 0.0
        %1316 = vmatprep.subr.mxu0 0.0
        %1317 = vmatpush2.msra.mxu0 0.0
        %1318 = vmatprep.subr.mxu0 0.0
        %1319 = vmatpush2.msra.mxu0 0.0
        %1320 = vmatprep.subr.mxu0 0.0
        %1321 = vmatpush2.msra.mxu0 0.0
        %1322 = vmatprep.subr.mxu0 0.0
        %1323 = vmatpush2.msra.mxu0 0.0
        %1324 = vmatprep.subr.mxu0 0.0
        %1325 = vmatpush2.msra.mxu0 0.0
        %1326 = vmatprep.subr.mxu0 0.0
        %1327 = vmatpush2.msra.mxu0 0.0
        %1328 = vmatprep.subr.mxu0 0.0
        %1329 = vmatpush2.msra.mxu0 0.0
        %1330 = vmatprep.subr.mxu0 0.0
        %1331 = vmatpush2.msra.mxu0 0.0
        %1332 = vmatprep.subr.mxu0 0.0
        %1333 = vmatpush2.msra.mxu0 0.0
        %1334 = vmatprep.subr.mxu0 0.0
        %1335 = vmatpush2.msra.mxu0 0.0
        %1336 = vmatprep.mubr.f32.mxu0 0.0
        %1337 = vmatmul.mubr.f32.gmra.mxu0 %v734
        %v1338 = vpop.f32.mrf.mxu0
        %v1339 = vadd.f32 %v1270, %v1338
        %v1340 = vpop.f32.mrf.mxu0
        %1341 = vmatprep.mubr.f32.mxu0 0.0
        %1342 = vmatmul.mubr.f32.gmra.mxu0 %v737
        %v1343 = vpop.f32.mrf.mxu0
        %v1344 = vadd.f32 %v1270, %v1343
        %v1345 = vpop.f32.mrf.mxu0
        %1346 = vdwg.mxu0
        %v1347 = vmax.f32 %v1339, 0.0
        %v1348 = vmax.f32 %v1344, 0.0
        %v1350 = vsel %vm980, %v1003, 0
        %v1353 = vsel %vm980, %v1004, 0
        %1355 = vmatprep.subr.mxu0 0.0
        %1356 = vmatpush1.xpose.msra.mxu0 0.0
        %1357 = vmatprep.subr.mxu0 0.0
        %1358 = vmatpush1.xpose.msra.mxu0 0.0
        %1359 = vmatprep.subr.mxu0 0.0
        %1360 = vmatpush1.xpose.msra.mxu0 0.0
        %1361 = vmatprep.subr.mxu0 0.0
        %1362 = vmatpush1.xpose.msra.mxu0 0.0
        %1363 = vmatprep.subr.mxu0 0.0
        %1364 = vmatpush1.xpose.msra.mxu0 0.0
        %1365 = vmatprep.subr.mxu0 0.0
        %1366 = vmatpush1.xpose.msra.mxu0 0.0
        %1367 = vmatprep.subr.mxu0 0.0
        %1368 = vmatpush1.xpose.msra.mxu0 0.0
        %1369 = vmatprep.subr.mxu0 0.0
        %1370 = vmatpush1.xpose.msra.mxu0 0.0
        %1371 = vmatprep.subr.mxu0 0.0
        %1372 = vmatpush1.xpose.msra.mxu0 0.0
        %1373 = vmatprep.subr.mxu0 0.0
        %1374 = vmatpush1.xpose.msra.mxu0 0.0
        %1375 = vmatprep.subr.mxu0 0.0
        %1376 = vmatpush1.xpose.msra.mxu0 0.0
        %1377 = vmatprep.subr.mxu0 0.0
        %1378 = vmatpush1.xpose.msra.mxu0 0.0
        %1379 = vmatprep.subr.mxu0 0.0
        %1380 = vmatpush1.xpose.msra.mxu0 0.0
        %1381 = vmatprep.subr.mxu0 0.0
        %1382 = vmatpush1.xpose.msra.mxu0 0.0
        %1383 = vmatprep.subr.mxu0 0.0
        %1384 = vmatpush1.xpose.msra.mxu0 %v1353
        %1385 = vmatprep.subr.mxu0 0.0
        %1386 = vmatpush1.xpose.msra.mxu0 %v1350
        %1387 = vmatprep.subr.mxu0 0.0
        %1388 = vmatpush2.xpose.msra.mxu0 0.0
        %1389 = vmatprep.subr.mxu0 0.0
        %1390 = vmatpush2.xpose.msra.mxu0 0.0
        %1391 = vmatprep.subr.mxu0 0.0
        %1392 = vmatpush2.xpose.msra.mxu0 0.0
        %1393 = vmatprep.subr.mxu0 0.0
        %1394 = vmatpush2.xpose.msra.mxu0 0.0
        %1395 = vmatprep.subr.mxu0 0.0
        %1396 = vmatpush2.xpose.msra.mxu0 0.0
        %1397 = vmatprep.subr.mxu0 0.0
        %1398 = vmatpush2.xpose.msra.mxu0 0.0
        %1399 = vmatprep.subr.mxu0 0.0
        %1400 = vmatpush2.xpose.msra.mxu0 0.0
        %1401 = vmatprep.subr.mxu0 0.0
        %1402 = vmatpush2.xpose.msra.mxu0 0.0
        %1403 = vmatprep.subr.mxu0 0.0
        %1404 = vmatpush2.xpose.msra.mxu0 0.0
        %1405 = vmatprep.subr.mxu0 0.0
        %1406 = vmatpush2.xpose.msra.mxu0 0.0
        %1407 = vmatprep.subr.mxu0 0.0
        %1408 = vmatpush2.xpose.msra.mxu0 0.0
        %1409 = vmatprep.subr.mxu0 0.0
        %1410 = vmatpush2.xpose.msra.mxu0 0.0
        %1411 = vmatprep.subr.mxu0 0.0
        %1412 = vmatpush2.xpose.msra.mxu0 0.0
        %1413 = vmatprep.subr.mxu0 0.0
        %1414 = vmatpush2.xpose.msra.mxu0 0.0
        %1415 = vmatprep.subr.mxu0 0.0
        %1416 = vmatpush2.xpose.msra.mxu0 0.0
        %1417 = vmatprep.subr.mxu0 0.0
        %1418 = vmatpush2.xpose.msra.mxu0 0.0
        %1419 = vmatprep.mubr.f32.mxu0 0.0
        %1420 = vmatmul.mubr.f32.gmra.mxu0 %v1350
        %v1421 = vpop.f32.mrf.mxu0
        %v1422 = vadd.f32 0.0, %v1421
        %v1423 = vpop.f32.mrf.mxu0
        %1424 = vmatprep.mubr.f32.mxu0 0.0
        %1425 = vmatmul.mubr.f32.gmra.mxu0 %v1353
        %v1426 = vpop.f32.mrf.mxu0
        %v1427 = vadd.f32 0.0, %v1426
        %v1428 = vpop.f32.mrf.mxu0
        %1429 = vdwg.mxu0
        %v1430 = vsub.f32 %v615, %v1422
        %v1431 = vsub.f32 %v616, %v1427
        %v1432 = vmul.f32 %v1430, %v1430
        %v1433 = vmul.f32 %v1431, %v1431
        %v1434 = vsel %vm732, %v1432, 0.0
        %v1435 = vsel %vm732, %v1433, 0.0
        %v1436 = vadd.f32 %v1434, %v1435
        %1437 = vadd.xlane.f32.xlu0 %v1436
        %v1438 = vpop.xlane.xlu0 %1437
        %v1439 = vrot.slane %v1438, 4
        %v1440 = vadd.f32 %v1438, %v1439
        %v1441 = vrot.slane %v1440, 2
        %v1442 = vadd.f32 %v1440, %v1441
        %v1443 = vrot.slane %v1442, 1
        %v1444 = vadd.f32 %v1442, %v1443
        %s1445 = vtos %v1444
        %v1446 = vsub.f32 0.0, %v1003
        %v1447 = vsub.f32 0.0, %v1004
        %v1448 = vadd.f32 %v1003, 1e-15
        %v1449 = vadd.f32 %v1004, 1e-15
        %v1450 = vlog2.pop %v1448
        %v1451 = vmul.f32 %v1450, 0.6931472
        %v1452 = vlog2.pop %v1449
        %v1453 = vmul.f32 %v1452, 0.6931472
        %v1454 = vmul.f32 %v1446, %v1451
        %v1455 = vmul.f32 %v1447, %v1453
        %v1456 = vsel %vm980, %v1454, 0.0
        %v1457 = vsel %vm980, %v1455, 0.0
        %v1458 = vadd.f32 %v1456, %v1457
        %1459 = vadd.xlane.f32.xlu0 %v1458
        %v1460 = vpop.xlane.xlu0 %1459
        %v1461 = vrot.slane %v1460, 4
        %v1462 = vadd.f32 %v1460, %v1461
        %v1463 = vrot.slane %v1462, 2
        %v1464 = vadd.f32 %v1462, %v1463
        %v1465 = vrot.slane %v1464, 1
        %v1466 = vadd.f32 %v1464, %v1465
        %s1467 = vtos %v1466
        %1468 = vxpose.xlu0.b32.start [1/16] %v1003, 128
        %1469 = vxpose.xlu0.b32.cont [2/16] %v1004, 128
        %1470 = vxpose.xlu0.b32.cont [3/16] 0.0, 128
        %1471 = vxpose.xlu0.b32.cont [4/16] 0.0, 128
        %1472 = vxpose.xlu0.b32.cont [5/16] 0.0, 128
        %1473 = vxpose.xlu0.b32.cont [6/16] 0.0, 128
        %1474 = vxpose.xlu0.b32.cont [7/16] 0.0, 128
        %1475 = vxpose.xlu0.b32.cont [8/16] 0.0, 128
        %1476 = vxpose.xlu0.b32.cont [9/16] 0.0, 128
        %1477 = vxpose.xlu0.b32.cont [10/16] 0.0, 128
        %1478 = vxpose.xlu0.b32.cont [11/16] 0.0, 128
        %1479 = vxpose.xlu0.b32.cont [12/16] 0.0, 128
        %1480 = vxpose.xlu0.b32.cont [13/16] 0.0, 128
        %1481 = vxpose.xlu0.b32.cont [14/16] 0.0, 128
        %1482 = vxpose.xlu0.b32.cont [15/16] 0.0, 128
        %1483 = vxpose.xlu0.b32.end [16/16] 0.0, 128
        %v1484 = vpop.trf.xlu0
        %v1485 = vpop.trf.xlu0
        %v1486 = vpop.trf.xlu0
        %v1487 = vpop.trf.xlu0
        %v1488 = vpop.trf.xlu0
        %v1489 = vpop.trf.xlu0
        %v1490 = vpop.trf.xlu0
        %v1491 = vpop.trf.xlu0
        %v1492 = vpop.trf.xlu0
        %v1493 = vpop.trf.xlu0
        %v1494 = vpop.trf.xlu0
        %v1495 = vpop.trf.xlu0
        %v1496 = vpop.trf.xlu0
        %v1497 = vpop.trf.xlu0
        %v1498 = vpop.trf.xlu0
        %v1499 = vpop.trf.xlu0
        %v1501 = vsel %vm732, %v1484, 0
        %1503 = vmatprep.subr.mxu0 0.0
        %1504 = vmatpush1.msra.mxu0 0.0
        %1505 = vmatprep.subr.mxu0 0.0
        %1506 = vmatpush1.msra.mxu0 0.0
        %1507 = vmatprep.subr.mxu0 0.0
        %1508 = vmatpush1.msra.mxu0 0.0
        %1509 = vmatprep.subr.mxu0 0.0
        %1510 = vmatpush1.msra.mxu0 0.0
        %1511 = vmatprep.subr.mxu0 0.0
        %1512 = vmatpush1.msra.mxu0 0.0
        %1513 = vmatprep.subr.mxu0 0.0
        %1514 = vmatpush1.msra.mxu0 0.0
        %1515 = vmatprep.subr.mxu0 0.0
        %1516 = vmatpush1.msra.mxu0 0.0
        %1517 = vmatprep.subr.mxu0 0.0
        %1518 = vmatpush1.msra.mxu0 0.0
        %1519 = vmatprep.subr.mxu0 0.0
        %1520 = vmatpush1.msra.mxu0 0.0
        %1521 = vmatprep.subr.mxu0 0.0
        %1522 = vmatpush1.msra.mxu0 0.0
        %1523 = vmatprep.subr.mxu0 0.0
        %1524 = vmatpush1.msra.mxu0 0.0
        %1525 = vmatprep.subr.mxu0 0.0
        %1526 = vmatpush1.msra.mxu0 0.0
        %1527 = vmatprep.subr.mxu0 0.0
        %1528 = vmatpush1.msra.mxu0 0.0
        %1529 = vmatprep.subr.mxu0 0.0
        %1530 = vmatpush1.msra.mxu0 0.0
        %1531 = vmatprep.subr.mxu0 0.0
        %1532 = vmatpush1.msra.mxu0 %v1348
        %1533 = vmatprep.subr.mxu0 0.0
        %1534 = vmatpush1.msra.mxu0 %v1347
        %1535 = vmatprep.subr.mxu0 0.0
        %1536 = vmatpush2.msra.mxu0 0.0
        %1537 = vmatprep.subr.mxu0 0.0
        %1538 = vmatpush2.msra.mxu0 0.0
        %1539 = vmatprep.subr.mxu0 0.0
        %1540 = vmatpush2.msra.mxu0 0.0
        %1541 = vmatprep.subr.mxu0 0.0
        %1542 = vmatpush2.msra.mxu0 0.0
        %1543 = vmatprep.subr.mxu0 0.0
        %1544 = vmatpush2.msra.mxu0 0.0
        %1545 = vmatprep.subr.mxu0 0.0
        %1546 = vmatpush2.msra.mxu0 0.0
        %1547 = vmatprep.subr.mxu0 0.0
        %1548 = vmatpush2.msra.mxu0 0.0
        %1549 = vmatprep.subr.mxu0 0.0
        %1550 = vmatpush2.msra.mxu0 0.0
        %1551 = vmatprep.subr.mxu0 0.0
        %1552 = vmatpush2.msra.mxu0 0.0
        %1553 = vmatprep.subr.mxu0 0.0
        %1554 = vmatpush2.msra.mxu0 0.0
        %1555 = vmatprep.subr.mxu0 0.0
        %1556 = vmatpush2.msra.mxu0 0.0
        %1557 = vmatprep.subr.mxu0 0.0
        %1558 = vmatpush2.msra.mxu0 0.0
        %1559 = vmatprep.subr.mxu0 0.0
        %1560 = vmatpush2.msra.mxu0 0.0
        %1561 = vmatprep.subr.mxu0 0.0
        %1562 = vmatpush2.msra.mxu0 0.0
        %1563 = vmatprep.subr.mxu0 0.0
        %1564 = vmatpush2.msra.mxu0 0.0
        %1565 = vmatprep.subr.mxu0 0.0
        %1566 = vmatpush2.msra.mxu0 0.0
        %1567 = vmatprep.mubr.f32.mxu0 0.0
        %1568 = vmatmul.mubr.f32.gmra.mxu0 %v1501
        %v1569 = vpop.f32.mrf.mxu0
        %v1570 = vadd.f32 0.0, %v1569
        %v1571 = vpop.f32.mrf.mxu0
        %1572 = vdwg.mxu0
        %1573 = vmatprep.subr.mxu0 0.0
        %1574 = vmatpush1.msra.mxu0 0.0
        %1575 = vmatprep.subr.mxu0 0.0
        %1576 = vmatpush1.msra.mxu0 0.0
        %1577 = vmatprep.subr.mxu0 0.0
        %1578 = vmatpush1.msra.mxu0 0.0
        %1579 = vmatprep.subr.mxu0 0.0
        %1580 = vmatpush1.msra.mxu0 0.0
        %1581 = vmatprep.subr.mxu0 0.0
        %1582 = vmatpush1.msra.mxu0 0.0
        %1583 = vmatprep.subr.mxu0 0.0
        %1584 = vmatpush1.msra.mxu0 0.0
        %1585 = vmatprep.subr.mxu0 0.0
        %1586 = vmatpush1.msra.mxu0 0.0
        %1587 = vmatprep.subr.mxu0 0.0
        %1588 = vmatpush1.msra.mxu0 0.0
        %1589 = vmatprep.subr.mxu0 0.0
        %1590 = vmatpush1.msra.mxu0 0.0
        %1591 = vmatprep.subr.mxu0 0.0
        %1592 = vmatpush1.msra.mxu0 0.0
        %1593 = vmatprep.subr.mxu0 0.0
        %1594 = vmatpush1.msra.mxu0 0.0
        %1595 = vmatprep.subr.mxu0 0.0
        %1596 = vmatpush1.msra.mxu0 0.0
        %1597 = vmatprep.subr.mxu0 0.0
        %1598 = vmatpush1.msra.mxu0 0.0
        %1599 = vmatprep.subr.mxu0 0.0
        %1600 = vmatpush1.msra.mxu0 0.0
        %1601 = vmatprep.subr.mxu0 0.0
        %1602 = vmatpush1.msra.mxu0 %v616
        %1603 = vmatprep.subr.mxu0 0.0
        %1604 = vmatpush1.msra.mxu0 %v615
        %1605 = vmatprep.subr.mxu0 0.0
        %1606 = vmatpush2.msra.mxu0 0.0
        %1607 = vmatprep.subr.mxu0 0.0
        %1608 = vmatpush2.msra.mxu0 0.0
        %1609 = vmatprep.subr.mxu0 0.0
        %1610 = vmatpush2.msra.mxu0 0.0
        %1611 = vmatprep.subr.mxu0 0.0
        %1612 = vmatpush2.msra.mxu0 0.0
        %1613 = vmatprep.subr.mxu0 0.0
        %1614 = vmatpush2.msra.mxu0 0.0
        %1615 = vmatprep.subr.mxu0 0.0
        %1616 = vmatpush2.msra.mxu0 0.0
        %1617 = vmatprep.subr.mxu0 0.0
        %1618 = vmatpush2.msra.mxu0 0.0
        %1619 = vmatprep.subr.mxu0 0.0
        %1620 = vmatpush2.msra.mxu0 0.0
        %1621 = vmatprep.subr.mxu0 0.0
        %1622 = vmatpush2.msra.mxu0 0.0
        %1623 = vmatprep.subr.mxu0 0.0
        %1624 = vmatpush2.msra.mxu0 0.0
        %1625 = vmatprep.subr.mxu0 0.0
        %1626 = vmatpush2.msra.mxu0 0.0
        %1627 = vmatprep.subr.mxu0 0.0
        %1628 = vmatpush2.msra.mxu0 0.0
        %1629 = vmatprep.subr.mxu0 0.0
        %1630 = vmatpush2.msra.mxu0 0.0
        %1631 = vmatprep.subr.mxu0 0.0
        %1632 = vmatpush2.msra.mxu0 0.0
        %1633 = vmatprep.subr.mxu0 0.0
        %1634 = vmatpush2.msra.mxu0 0.0
        %1635 = vmatprep.subr.mxu0 0.0
        %1636 = vmatpush2.msra.mxu0 0.0
        %1637 = vmatprep.mubr.f32.mxu0 0.0
        %1638 = vmatmul.mubr.f32.gmra.mxu0 %v1501
        %v1639 = vpop.f32.mrf.mxu0
        %v1640 = vadd.f32 0.0, %v1639
        %v1641 = vpop.f32.mrf.mxu0
        %1642 = vdwg.mxu0
        %v1644 = vsel %vm732, %v1640, 0
        %1646 = vmatprep.subr.mxu0 0.0
        %1647 = vmatpush1.msra.mxu0 0.0
        %1648 = vmatprep.subr.mxu0 0.0
        %1649 = vmatpush1.msra.mxu0 0.0
        %1650 = vmatprep.subr.mxu0 0.0
        %1651 = vmatpush1.msra.mxu0 0.0
        %1652 = vmatprep.subr.mxu0 0.0
        %1653 = vmatpush1.msra.mxu0 0.0
        %1654 = vmatprep.subr.mxu0 0.0
        %1655 = vmatpush1.msra.mxu0 0.0
        %1656 = vmatprep.subr.mxu0 0.0
        %1657 = vmatpush1.msra.mxu0 0.0
        %1658 = vmatprep.subr.mxu0 0.0
        %1659 = vmatpush1.msra.mxu0 0.0
        %1660 = vmatprep.subr.mxu0 0.0
        %1661 = vmatpush1.msra.mxu0 0.0
        %1662 = vmatprep.subr.mxu0 0.0
        %1663 = vmatpush1.msra.mxu0 0.0
        %1664 = vmatprep.subr.mxu0 0.0
        %1665 = vmatpush1.msra.mxu0 0.0
        %1666 = vmatprep.subr.mxu0 0.0
        %1667 = vmatpush1.msra.mxu0 0.0
        %1668 = vmatprep.subr.mxu0 0.0
        %1669 = vmatpush1.msra.mxu0 0.0
        %1670 = vmatprep.subr.mxu0 0.0
        %1671 = vmatpush1.msra.mxu0 0.0
        %1672 = vmatprep.subr.mxu0 0.0
        %1673 = vmatpush1.msra.mxu0 0.0
        %1674 = vmatprep.subr.mxu0 0.0
        %1675 = vmatpush1.msra.mxu0 %v1004
        %1676 = vmatprep.subr.mxu0 0.0
        %1677 = vmatpush1.msra.mxu0 %v1003
        %1678 = vmatprep.subr.mxu0 0.0
        %1679 = vmatpush2.msra.mxu0 0.0
        %1680 = vmatprep.subr.mxu0 0.0
        %1681 = vmatpush2.msra.mxu0 0.0
        %1682 = vmatprep.subr.mxu0 0.0
        %1683 = vmatpush2.msra.mxu0 0.0
        %1684 = vmatprep.subr.mxu0 0.0
        %1685 = vmatpush2.msra.mxu0 0.0
        %1686 = vmatprep.subr.mxu0 0.0
        %1687 = vmatpush2.msra.mxu0 0.0
        %1688 = vmatprep.subr.mxu0 0.0
        %1689 = vmatpush2.msra.mxu0 0.0
        %1690 = vmatprep.subr.mxu0 0.0
        %1691 = vmatpush2.msra.mxu0 0.0
        %1692 = vmatprep.subr.mxu0 0.0
        %1693 = vmatpush2.msra.mxu0 0.0
        %1694 = vmatprep.subr.mxu0 0.0
        %1695 = vmatpush2.msra.mxu0 0.0
        %1696 = vmatprep.subr.mxu0 0.0
        %1697 = vmatpush2.msra.mxu0 0.0
        %1698 = vmatprep.subr.mxu0 0.0
        %1699 = vmatpush2.msra.mxu0 0.0
        %1700 = vmatprep.subr.mxu0 0.0
        %1701 = vmatpush2.msra.mxu0 0.0
        %1702 = vmatprep.subr.mxu0 0.0
        %1703 = vmatpush2.msra.mxu0 0.0
        %1704 = vmatprep.subr.mxu0 0.0
        %1705 = vmatpush2.msra.mxu0 0.0
        %1706 = vmatprep.subr.mxu0 0.0
        %1707 = vmatpush2.msra.mxu0 0.0
        %1708 = vmatprep.subr.mxu0 0.0
        %1709 = vmatpush2.msra.mxu0 0.0
        %1710 = vmatprep.mubr.f32.mxu0 0.0
        %1711 = vmatmul.mubr.f32.gmra.mxu0 %v1644
        %v1712 = vpop.f32.mrf.mxu0
        %v1713 = vadd.f32 0.0, %v1712
        %v1714 = vpop.f32.mrf.mxu0
        %1715 = vdwg.mxu0
        %v1716 = vsel %vm622, 1.0, %v1713
        %s1717 = scalar_lea.vmem %s2, 192
        %v1718 = vld [vmem:[%s1717] sm:$0xff]
        %v1719 = vld [vmem:[%s1717 + $0x8] sm:$0xff]
        %v1720 = vld [vmem:[%s1717 + $0x10] sm:$0xff]
        %v1721 = vld [vmem:[%s1717 + $0x18] sm:$0xff]
        %v1722 = vld [vmem:[%s1717 + $0x20] sm:$0xff]
        %v1723 = vld [vmem:[%s1717 + $0x28] sm:$0xff]
        %v1724 = vld [vmem:[%s1717 + $0x30] sm:$0xff]
        %v1725 = vld [vmem:[%s1717 + $0x38] sm:$0xff]
        %s1726 = scalar_lea.vmem %s3, 3
        %v1727 = vld [vmem:[%s1726] sm:$0x1]
        %v1728 = vld [vmem:[%s6] sm:$0xff]
        %v1729 = vld [vmem:[%s6 + $0x8] sm:$0xff]
        %v1730 = vld [vmem:[%s6 + $0x10] sm:$0xff]
        %v1731 = vld [vmem:[%s6 + $0x18] sm:$0xff]
        %v1732 = vld [vmem:[%s6 + $0x20] sm:$0xff]
        %v1733 = vld [vmem:[%s6 + $0x28] sm:$0xff]
        %v1734 = vld [vmem:[%s6 + $0x30] sm:$0xff]
        %v1735 = vld [vmem:[%s6 + $0x38] sm:$0xff]
        %v1736 = vld [vmem:[#allocation7] sm:$0x1]
        %v1738 = vsel %vm644, %v1570, 0
        %1740 = vmatprep.subr.mxu0 0.0
        %1741 = vmatpush1.msra.mxu0 0.0
        %1742 = vmatprep.subr.mxu0 0.0
        %1743 = vmatpush1.msra.mxu0 0.0
        %1744 = vmatprep.subr.mxu0 0.0
        %1745 = vmatpush1.msra.mxu0 0.0
        %1746 = vmatprep.subr.mxu0 0.0
        %1747 = vmatpush1.msra.mxu0 0.0
        %1748 = vmatprep.subr.mxu0 0.0
        %1749 = vmatpush1.msra.mxu0 0.0
        %1750 = vmatprep.subr.mxu0 0.0
        %1751 = vmatpush1.msra.mxu0 0.0
        %1752 = vmatprep.subr.mxu0 0.0
        %1753 = vmatpush1.msra.mxu0 0.0
        %1754 = vmatprep.subr.mxu0 0.0
        %1755 = vmatpush1.msra.mxu0 0.0
        %1756 = vmatprep.subr.mxu0 0.0
        %1757 = vmatpush1.msra.mxu0 %v1725
        %1758 = vmatprep.subr.mxu0 0.0
        %1759 = vmatpush1.msra.mxu0 %v1724
        %1760 = vmatprep.subr.mxu0 0.0
        %1761 = vmatpush1.msra.mxu0 %v1723
        %1762 = vmatprep.subr.mxu0 0.0
        %1763 = vmatpush1.msra.mxu0 %v1722
        %1764 = vmatprep.subr.mxu0 0.0
        %1765 = vmatpush1.msra.mxu0 %v1721
        %1766 = vmatprep.subr.mxu0 0.0
        %1767 = vmatpush1.msra.mxu0 %v1720
        %1768 = vmatprep.subr.mxu0 0.0
        %1769 = vmatpush1.msra.mxu0 %v1719
        %1770 = vmatprep.subr.mxu0 0.0
        %1771 = vmatpush1.msra.mxu0 %v1718
        %1772 = vmatprep.subr.mxu0 0.0
        %1773 = vmatpush2.msra.mxu0 0.0
        %1774 = vmatprep.subr.mxu0 0.0
        %1775 = vmatpush2.msra.mxu0 0.0
        %1776 = vmatprep.subr.mxu0 0.0
        %1777 = vmatpush2.msra.mxu0 0.0
        %1778 = vmatprep.subr.mxu0 0.0
        %1779 = vmatpush2.msra.mxu0 0.0
        %1780 = vmatprep.subr.mxu0 0.0
        %1781 = vmatpush2.msra.mxu0 0.0
        %1782 = vmatprep.subr.mxu0 0.0
        %1783 = vmatpush2.msra.mxu0 0.0
        %1784 = vmatprep.subr.mxu0 0.0
        %1785 = vmatpush2.msra.mxu0 0.0
        %1786 = vmatprep.subr.mxu0 0.0
        %1787 = vmatpush2.msra.mxu0 0.0
        %1788 = vmatprep.subr.mxu0 0.0
        %1789 = vmatpush2.msra.mxu0 0.0
        %1790 = vmatprep.subr.mxu0 0.0
        %1791 = vmatpush2.msra.mxu0 0.0
        %1792 = vmatprep.subr.mxu0 0.0
        %1793 = vmatpush2.msra.mxu0 0.0
        %1794 = vmatprep.subr.mxu0 0.0
        %1795 = vmatpush2.msra.mxu0 0.0
        %1796 = vmatprep.subr.mxu0 0.0
        %1797 = vmatpush2.msra.mxu0 0.0
        %1798 = vmatprep.subr.mxu0 0.0
        %1799 = vmatpush2.msra.mxu0 0.0
        %1800 = vmatprep.subr.mxu0 0.0
        %1801 = vmatpush2.msra.mxu0 0.0
        %1802 = vmatprep.subr.mxu0 0.0
        %1803 = vmatpush2.msra.mxu0 0.0
        %1804 = vmatprep.mubr.f32.mxu0 0.0
        %1805 = vmatmul.mubr.f32.gmra.mxu0 %v1738
        %v1806 = vpop.f32.mrf.mxu0
        %v1807 = vadd.f32 0.0, %v1806
        %v1808 = vpop.f32.mrf.mxu0
        %1809 = vdwg.mxu0
        %v1811 = vlaneseq
        %v1812 = vshrl.u32 %v1811, 7
        %v1813 = vsub.s32 0, %v1812
        %v1814 = vrot.slane %v1727, %v1813
        %v1817 = vsel %vm980, %v1716, 0
        %vm1819 = vcmask 1041408
        %v1821 = vsel %vm1819, %v1807, 0
        %1823 = vmatprep.subr.mxu0 0.0
        %1824 = vmatpush1.msra.mxu0 0.0
        %1825 = vmatprep.subr.mxu0 0.0
        %1826 = vmatpush1.msra.mxu0 0.0
        %1827 = vmatprep.subr.mxu0 0.0
        %1828 = vmatpush1.msra.mxu0 0.0
        %1829 = vmatprep.subr.mxu0 0.0
        %1830 = vmatpush1.msra.mxu0 0.0
        %1831 = vmatprep.subr.mxu0 0.0
        %1832 = vmatpush1.msra.mxu0 0.0
        %1833 = vmatprep.subr.mxu0 0.0
        %1834 = vmatpush1.msra.mxu0 0.0
        %1835 = vmatprep.subr.mxu0 0.0
        %1836 = vmatpush1.msra.mxu0 0.0
        %1837 = vmatprep.subr.mxu0 0.0
        %1838 = vmatpush1.msra.mxu0 0.0
        %1839 = vmatprep.subr.mxu0 0.0
        %1840 = vmatpush1.msra.mxu0 0.0
        %1841 = vmatprep.subr.mxu0 0.0
        %1842 = vmatpush1.msra.mxu0 0.0
        %1843 = vmatprep.subr.mxu0 0.0
        %1844 = vmatpush1.msra.mxu0 0.0
        %1845 = vmatprep.subr.mxu0 0.0
        %1846 = vmatpush1.msra.mxu0 0.0
        %1847 = vmatprep.subr.mxu0 0.0
        %1848 = vmatpush1.msra.mxu0 0.0
        %1849 = vmatprep.subr.mxu0 0.0
        %1850 = vmatpush1.msra.mxu0 0.0
        %1851 = vmatprep.subr.mxu0 0.0
        %1852 = vmatpush1.msra.mxu0 0.0
        %1853 = vmatprep.subr.mxu0 0.0
        %1854 = vmatpush1.msra.mxu0 %v1821
        %1855 = vmatprep.subr.mxu0 0.0
        %1856 = vmatpush2.msra.mxu0 0.0
        %1857 = vmatprep.subr.mxu0 0.0
        %1858 = vmatpush2.msra.mxu0 0.0
        %1859 = vmatprep.subr.mxu0 0.0
        %1860 = vmatpush2.msra.mxu0 0.0
        %1861 = vmatprep.subr.mxu0 0.0
        %1862 = vmatpush2.msra.mxu0 0.0
        %1863 = vmatprep.subr.mxu0 0.0
        %1864 = vmatpush2.msra.mxu0 0.0
        %1865 = vmatprep.subr.mxu0 0.0
        %1866 = vmatpush2.msra.mxu0 0.0
        %1867 = vmatprep.subr.mxu0 0.0
        %1868 = vmatpush2.msra.mxu0 0.0
        %1869 = vmatprep.subr.mxu0 0.0
        %1870 = vmatpush2.msra.mxu0 0.0
        %1871 = vmatprep.subr.mxu0 0.0
        %1872 = vmatpush2.msra.mxu0 0.0
        %1873 = vmatprep.subr.mxu0 0.0
        %1874 = vmatpush2.msra.mxu0 0.0
        %1875 = vmatprep.subr.mxu0 0.0
        %1876 = vmatpush2.msra.mxu0 0.0
        %1877 = vmatprep.subr.mxu0 0.0
        %1878 = vmatpush2.msra.mxu0 0.0
        %1879 = vmatprep.subr.mxu0 0.0
        %1880 = vmatpush2.msra.mxu0 0.0
        %1881 = vmatprep.subr.mxu0 0.0
        %1882 = vmatpush2.msra.mxu0 0.0
        %1883 = vmatprep.subr.mxu0 0.0
        %1884 = vmatpush2.msra.mxu0 0.0
        %1885 = vmatprep.subr.mxu0 0.0
        %1886 = vmatpush2.msra.mxu0 0.0
        %1887 = vmatprep.mubr.f32.mxu0 0.0
        %1888 = vmatmul.mubr.f32.gmra.mxu0 %v1817
        %v1889 = vpop.f32.mrf.mxu0
        %v1890 = vadd.f32 %v1814, %v1889
        %v1891 = vpop.f32.mrf.mxu0
        %1892 = vdwg.mxu0
        %v1893 = vmax.f32 %v1890, 0.0
        %v1895 = vsel %vm644, %v1893, 0
        %1897 = vmatprep.subr.mxu0 0.0
        %1898 = vmatpush1.msra.mxu0 0.0
        %1899 = vmatprep.subr.mxu0 0.0
        %1900 = vmatpush1.msra.mxu0 0.0
        %1901 = vmatprep.subr.mxu0 0.0
        %1902 = vmatpush1.msra.mxu0 0.0
        %1903 = vmatprep.subr.mxu0 0.0
        %1904 = vmatpush1.msra.mxu0 0.0
        %1905 = vmatprep.subr.mxu0 0.0
        %1906 = vmatpush1.msra.mxu0 0.0
        %1907 = vmatprep.subr.mxu0 0.0
        %1908 = vmatpush1.msra.mxu0 0.0
        %1909 = vmatprep.subr.mxu0 0.0
        %1910 = vmatpush1.msra.mxu0 0.0
        %1911 = vmatprep.subr.mxu0 0.0
        %1912 = vmatpush1.msra.mxu0 0.0
        %1913 = vmatprep.subr.mxu0 0.0
        %1914 = vmatpush1.msra.mxu0 %v1735
        %1915 = vmatprep.subr.mxu0 0.0
        %1916 = vmatpush1.msra.mxu0 %v1734
        %1917 = vmatprep.subr.mxu0 0.0
        %1918 = vmatpush1.msra.mxu0 %v1733
        %1919 = vmatprep.subr.mxu0 0.0
        %1920 = vmatpush1.msra.mxu0 %v1732
        %1921 = vmatprep.subr.mxu0 0.0
        %1922 = vmatpush1.msra.mxu0 %v1731
        %1923 = vmatprep.subr.mxu0 0.0
        %1924 = vmatpush1.msra.mxu0 %v1730
        %1925 = vmatprep.subr.mxu0 0.0
        %1926 = vmatpush1.msra.mxu0 %v1729
        %1927 = vmatprep.subr.mxu0 0.0
        %1928 = vmatpush1.msra.mxu0 %v1728
        %1929 = vmatprep.subr.mxu0 0.0
        %1930 = vmatpush2.msra.mxu0 0.0
        %1931 = vmatprep.subr.mxu0 0.0
        %1932 = vmatpush2.msra.mxu0 0.0
        %1933 = vmatprep.subr.mxu0 0.0
        %1934 = vmatpush2.msra.mxu0 0.0
        %1935 = vmatprep.subr.mxu0 0.0
        %1936 = vmatpush2.msra.mxu0 0.0
        %1937 = vmatprep.subr.mxu0 0.0
        %1938 = vmatpush2.msra.mxu0 0.0
        %1939 = vmatprep.subr.mxu0 0.0
        %1940 = vmatpush2.msra.mxu0 0.0
        %1941 = vmatprep.subr.mxu0 0.0
        %1942 = vmatpush2.msra.mxu0 0.0
        %1943 = vmatprep.subr.mxu0 0.0
        %1944 = vmatpush2.msra.mxu0 0.0
        %1945 = vmatprep.subr.mxu0 0.0
        %1946 = vmatpush2.msra.mxu0 0.0
        %1947 = vmatprep.subr.mxu0 0.0
        %1948 = vmatpush2.msra.mxu0 0.0
        %1949 = vmatprep.subr.mxu0 0.0
        %1950 = vmatpush2.msra.mxu0 0.0
        %1951 = vmatprep.subr.mxu0 0.0
        %1952 = vmatpush2.msra.mxu0 0.0
        %1953 = vmatprep.subr.mxu0 0.0
        %1954 = vmatpush2.msra.mxu0 0.0
        %1955 = vmatprep.subr.mxu0 0.0
        %1956 = vmatpush2.msra.mxu0 0.0
        %1957 = vmatprep.subr.mxu0 0.0
        %1958 = vmatpush2.msra.mxu0 0.0
        %1959 = vmatprep.subr.mxu0 0.0
        %1960 = vmatpush2.msra.mxu0 0.0
        %1961 = vmatprep.mubr.f32.mxu0 0.0
        %1962 = vmatmul.mubr.f32.gmra.mxu0 %v1895
        %v1963 = vpop.f32.mrf.mxu0
        %v1964 = vadd.f32 0.0, %v1963
        %v1965 = vpop.f32.mrf.mxu0
        %1966 = vdwg.mxu0
        %v1968 = vlaneseq
        %v1969 = vshrl.u32 %v1968, 7
        %v1970 = vsub.s32 0, %v1969
        %v1971 = vrot.slane %v1736, %v1970
        %v1974 = vsel %vm1819, %v1964, 0
        %1976 = vmatprep.subr.mxu0 0.0
        %1977 = vmatpush1.msra.mxu0 0.0
        %1978 = vmatprep.subr.mxu0 0.0
        %1979 = vmatpush1.msra.mxu0 0.0
        %1980 = vmatprep.subr.mxu0 0.0
        %1981 = vmatpush1.msra.mxu0 0.0
        %1982 = vmatprep.subr.mxu0 0.0
        %1983 = vmatpush1.msra.mxu0 0.0
        %1984 = vmatprep.subr.mxu0 0.0
        %1985 = vmatpush1.msra.mxu0 0.0
        %1986 = vmatprep.subr.mxu0 0.0
        %1987 = vmatpush1.msra.mxu0 0.0
        %1988 = vmatprep.subr.mxu0 0.0
        %1989 = vmatpush1.msra.mxu0 0.0
        %1990 = vmatprep.subr.mxu0 0.0
        %1991 = vmatpush1.msra.mxu0 0.0
        %1992 = vmatprep.subr.mxu0 0.0
        %1993 = vmatpush1.msra.mxu0 0.0
        %1994 = vmatprep.subr.mxu0 0.0
        %1995 = vmatpush1.msra.mxu0 0.0
        %1996 = vmatprep.subr.mxu0 0.0
        %1997 = vmatpush1.msra.mxu0 0.0
        %1998 = vmatprep.subr.mxu0 0.0
        %1999 = vmatpush1.msra.mxu0 0.0
        %2000 = vmatprep.subr.mxu0 0.0
        %2001 = vmatpush1.msra.mxu0 0.0
        %2002 = vmatprep.subr.mxu0 0.0
        %2003 = vmatpush1.msra.mxu0 0.0
        %2004 = vmatprep.subr.mxu0 0.0
        %2005 = vmatpush1.msra.mxu0 0.0
        %2006 = vmatprep.subr.mxu0 0.0
        %2007 = vmatpush1.msra.mxu0 %v1974
        %2008 = vmatprep.subr.mxu0 0.0
        %2009 = vmatpush2.msra.mxu0 0.0
        %2010 = vmatprep.subr.mxu0 0.0
        %2011 = vmatpush2.msra.mxu0 0.0
        %2012 = vmatprep.subr.mxu0 0.0
        %2013 = vmatpush2.msra.mxu0 0.0
        %2014 = vmatprep.subr.mxu0 0.0
        %2015 = vmatpush2.msra.mxu0 0.0
        %2016 = vmatprep.subr.mxu0 0.0
        %2017 = vmatpush2.msra.mxu0 0.0
        %2018 = vmatprep.subr.mxu0 0.0
        %2019 = vmatpush2.msra.mxu0 0.0
        %2020 = vmatprep.subr.mxu0 0.0
        %2021 = vmatpush2.msra.mxu0 0.0
        %2022 = vmatprep.subr.mxu0 0.0
        %2023 = vmatpush2.msra.mxu0 0.0
        %2024 = vmatprep.subr.mxu0 0.0
        %2025 = vmatpush2.msra.mxu0 0.0
        %2026 = vmatprep.subr.mxu0 0.0
        %2027 = vmatpush2.msra.mxu0 0.0
        %2028 = vmatprep.subr.mxu0 0.0
        %2029 = vmatpush2.msra.mxu0 0.0
        %2030 = vmatprep.subr.mxu0 0.0
        %2031 = vmatpush2.msra.mxu0 0.0
        %2032 = vmatprep.subr.mxu0 0.0
        %2033 = vmatpush2.msra.mxu0 0.0
        %2034 = vmatprep.subr.mxu0 0.0
        %2035 = vmatpush2.msra.mxu0 0.0
        %2036 = vmatprep.subr.mxu0 0.0
        %2037 = vmatpush2.msra.mxu0 0.0
        %2038 = vmatprep.subr.mxu0 0.0
        %2039 = vmatpush2.msra.mxu0 0.0
        %2040 = vmatprep.mubr.f32.mxu0 0.0
        %2041 = vmatmul.mubr.f32.gmra.mxu0 %v1817
        %v2042 = vpop.f32.mrf.mxu0
        %v2043 = vadd.f32 %v1971, %v2042
        %v2044 = vpop.f32.mrf.mxu0
        %2045 = vdwg.mxu0
        %v2046 = vmax.f32 %v2043, 0.0
        %vm2047 = vcmask 33792
        %v2048 = vsel %vm2047, %v2046, -inf
        %2049 = vmax.xlane.f32.xlu0 %v2048
        %v2050 = vpop.xlane.xlu0 %2049
        %v2051 = vsub.f32 %v2046, %v2050
        %v2052 = vmul.f32 %v2051, 1.442695
        %v2053 = vpow.pop %v2052
        %v2054 = vsel %vm2047, %v2053, 0.0
        %2055 = vadd.xlane.f32.xlu0 %v2054
        %v2056 = vpop.xlane.xlu0 %2055
        %v2057 = vrcp.pop %v2056
        %v2058 = vmul.f32 1.0, %v2057
        %v2059 = vmul.f32 %v2053, %v2058
        %s2060 = scalar_lea.vmem %s2, 256
        %v2061 = vld [vmem:[%s2060] sm:$0xff]
        %v2062 = vld [vmem:[%s2060 + $0x8] sm:$0xff]
        %v2063 = vld [vmem:[%s2060 + $0x10] sm:$0xff]
        %v2064 = vld [vmem:[%s2060 + $0x18] sm:$0xff]
        %v2065 = vld [vmem:[%s2060 + $0x20] sm:$0xff]
        %v2066 = vld [vmem:[%s2060 + $0x28] sm:$0xff]
        %v2067 = vld [vmem:[%s2060 + $0x30] sm:$0xff]
        %v2068 = vld [vmem:[%s2060 + $0x38] sm:$0xff]
        %s2069 = scalar_lea.vmem %s3, 4
        %v2070 = vld [vmem:[%s2069] sm:$0x1]
        %s2071 = scalar_lea.vmem %s2, 320
        %v2072 = vld [vmem:[%s2071] sm:$0xff]
        %v2073 = vld [vmem:[%s2071 + $0x8] sm:$0xff]
        %v2074 = vld [vmem:[%s2071 + $0x10] sm:$0xff]
        %v2075 = vld [vmem:[%s2071 + $0x18] sm:$0xff]
        %v2076 = vld [vmem:[%s2071 + $0x20] sm:$0xff]
        %v2077 = vld [vmem:[%s2071 + $0x28] sm:$0xff]
        %v2078 = vld [vmem:[%s2071 + $0x30] sm:$0xff]
        %v2079 = vld [vmem:[%s2071 + $0x38] sm:$0xff]
        %s2080 = scalar_lea.vmem %s3, 5
        %v2081 = vld [vmem:[%s2080] sm:$0x1]
        %2082 = vmatprep.subr.mxu0 0.0
        %2083 = vmatpush1.msra.mxu0 0.0
        %2084 = vmatprep.subr.mxu0 0.0
        %2085 = vmatpush1.msra.mxu0 0.0
        %2086 = vmatprep.subr.mxu0 0.0
        %2087 = vmatpush1.msra.mxu0 0.0
        %2088 = vmatprep.subr.mxu0 0.0
        %2089 = vmatpush1.msra.mxu0 0.0
        %2090 = vmatprep.subr.mxu0 0.0
        %2091 = vmatpush1.msra.mxu0 0.0
        %2092 = vmatprep.subr.mxu0 0.0
        %2093 = vmatpush1.msra.mxu0 0.0
        %2094 = vmatprep.subr.mxu0 0.0
        %2095 = vmatpush1.msra.mxu0 0.0
        %2096 = vmatprep.subr.mxu0 0.0
        %2097 = vmatpush1.msra.mxu0 0.0
        %2098 = vmatprep.subr.mxu0 0.0
        %2099 = vmatpush1.msra.mxu0 %v2068
        %2100 = vmatprep.subr.mxu0 0.0
        %2101 = vmatpush1.msra.mxu0 %v2067
        %2102 = vmatprep.subr.mxu0 0.0
        %2103 = vmatpush1.msra.mxu0 %v2066
        %2104 = vmatprep.subr.mxu0 0.0
        %2105 = vmatpush1.msra.mxu0 %v2065
        %2106 = vmatprep.subr.mxu0 0.0
        %2107 = vmatpush1.msra.mxu0 %v2064
        %2108 = vmatprep.subr.mxu0 0.0
        %2109 = vmatpush1.msra.mxu0 %v2063
        %2110 = vmatprep.subr.mxu0 0.0
        %2111 = vmatpush1.msra.mxu0 %v2062
        %2112 = vmatprep.subr.mxu0 0.0
        %2113 = vmatpush1.msra.mxu0 %v2061
        %2114 = vmatprep.subr.mxu0 0.0
        %2115 = vmatpush2.msra.mxu0 0.0
        %2116 = vmatprep.subr.mxu0 0.0
        %2117 = vmatpush2.msra.mxu0 0.0
        %2118 = vmatprep.subr.mxu0 0.0
        %2119 = vmatpush2.msra.mxu0 0.0
        %2120 = vmatprep.subr.mxu0 0.0
        %2121 = vmatpush2.msra.mxu0 0.0
        %2122 = vmatprep.subr.mxu0 0.0
        %2123 = vmatpush2.msra.mxu0 0.0
        %2124 = vmatprep.subr.mxu0 0.0
        %2125 = vmatpush2.msra.mxu0 0.0
        %2126 = vmatprep.subr.mxu0 0.0
        %2127 = vmatpush2.msra.mxu0 0.0
        %2128 = vmatprep.subr.mxu0 0.0
        %2129 = vmatpush2.msra.mxu0 0.0
        %2130 = vmatprep.subr.mxu0 0.0
        %2131 = vmatpush2.msra.mxu0 0.0
        %2132 = vmatprep.subr.mxu0 0.0
        %2133 = vmatpush2.msra.mxu0 0.0
        %2134 = vmatprep.subr.mxu0 0.0
        %2135 = vmatpush2.msra.mxu0 0.0
        %2136 = vmatprep.subr.mxu0 0.0
        %2137 = vmatpush2.msra.mxu0 0.0
        %2138 = vmatprep.subr.mxu0 0.0
        %2139 = vmatpush2.msra.mxu0 0.0
        %2140 = vmatprep.subr.mxu0 0.0
        %2141 = vmatpush2.msra.mxu0 0.0
        %2142 = vmatprep.subr.mxu0 0.0
        %2143 = vmatpush2.msra.mxu0 0.0
        %2144 = vmatprep.subr.mxu0 0.0
        %2145 = vmatpush2.msra.mxu0 0.0
        %2146 = vmatprep.mubr.f32.mxu0 0.0
        %2147 = vmatmul.mubr.f32.gmra.mxu0 %v1738
        %v2148 = vpop.f32.mrf.mxu0
        %v2149 = vadd.f32 0.0, %v2148
        %v2150 = vpop.f32.mrf.mxu0
        %2151 = vdwg.mxu0
        %v2153 = vlaneseq
        %v2154 = vshrl.u32 %v2153, 7
        %v2155 = vsub.s32 0, %v2154
        %v2156 = vrot.slane %v2070, %v2155
        %v2159 = vsel %vm1819, %v2149, 0
        %2161 = vmatprep.subr.mxu0 0.0
        %2162 = vmatpush1.msra.mxu0 0.0
        %2163 = vmatprep.subr.mxu0 0.0
        %2164 = vmatpush1.msra.mxu0 0.0
        %2165 = vmatprep.subr.mxu0 0.0
        %2166 = vmatpush1.msra.mxu0 0.0
        %2167 = vmatprep.subr.mxu0 0.0
        %2168 = vmatpush1.msra.mxu0 0.0
        %2169 = vmatprep.subr.mxu0 0.0
        %2170 = vmatpush1.msra.mxu0 0.0
        %2171 = vmatprep.subr.mxu0 0.0
        %2172 = vmatpush1.msra.mxu0 0.0
        %2173 = vmatprep.subr.mxu0 0.0
        %2174 = vmatpush1.msra.mxu0 0.0
        %2175 = vmatprep.subr.mxu0 0.0
        %2176 = vmatpush1.msra.mxu0 0.0
        %2177 = vmatprep.subr.mxu0 0.0
        %2178 = vmatpush1.msra.mxu0 0.0
        %2179 = vmatprep.subr.mxu0 0.0
        %2180 = vmatpush1.msra.mxu0 0.0
        %2181 = vmatprep.subr.mxu0 0.0
        %2182 = vmatpush1.msra.mxu0 0.0
        %2183 = vmatprep.subr.mxu0 0.0
        %2184 = vmatpush1.msra.mxu0 0.0
        %2185 = vmatprep.subr.mxu0 0.0
        %2186 = vmatpush1.msra.mxu0 0.0
        %2187 = vmatprep.subr.mxu0 0.0
        %2188 = vmatpush1.msra.mxu0 0.0
        %2189 = vmatprep.subr.mxu0 0.0
        %2190 = vmatpush1.msra.mxu0 0.0
        %2191 = vmatprep.subr.mxu0 0.0
        %2192 = vmatpush1.msra.mxu0 %v2159
        %2193 = vmatprep.subr.mxu0 0.0
        %2194 = vmatpush2.msra.mxu0 0.0
        %2195 = vmatprep.subr.mxu0 0.0
        %2196 = vmatpush2.msra.mxu0 0.0
        %2197 = vmatprep.subr.mxu0 0.0
        %2198 = vmatpush2.msra.mxu0 0.0
        %2199 = vmatprep.subr.mxu0 0.0
        %2200 = vmatpush2.msra.mxu0 0.0
        %2201 = vmatprep.subr.mxu0 0.0
        %2202 = vmatpush2.msra.mxu0 0.0
        %2203 = vmatprep.subr.mxu0 0.0
        %2204 = vmatpush2.msra.mxu0 0.0
        %2205 = vmatprep.subr.mxu0 0.0
        %2206 = vmatpush2.msra.mxu0 0.0
        %2207 = vmatprep.subr.mxu0 0.0
        %2208 = vmatpush2.msra.mxu0 0.0
        %2209 = vmatprep.subr.mxu0 0.0
        %2210 = vmatpush2.msra.mxu0 0.0
        %2211 = vmatprep.subr.mxu0 0.0
        %2212 = vmatpush2.msra.mxu0 0.0
        %2213 = vmatprep.subr.mxu0 0.0
        %2214 = vmatpush2.msra.mxu0 0.0
        %2215 = vmatprep.subr.mxu0 0.0
        %2216 = vmatpush2.msra.mxu0 0.0
        %2217 = vmatprep.subr.mxu0 0.0
        %2218 = vmatpush2.msra.mxu0 0.0
        %2219 = vmatprep.subr.mxu0 0.0
        %2220 = vmatpush2.msra.mxu0 0.0
        %2221 = vmatprep.subr.mxu0 0.0
        %2222 = vmatpush2.msra.mxu0 0.0
        %2223 = vmatprep.subr.mxu0 0.0
        %2224 = vmatpush2.msra.mxu0 0.0
        %2225 = vmatprep.mubr.f32.mxu0 0.0
        %2226 = vmatmul.mubr.f32.gmra.mxu0 %v1817
        %v2227 = vpop.f32.mrf.mxu0
        %v2228 = vadd.f32 %v2156, %v2227
        %v2229 = vpop.f32.mrf.mxu0
        %2230 = vdwg.mxu0
        %v2231 = vmax.f32 %v2228, 0.0
        %v2233 = vsel %vm644, %v2231, 0
        %2235 = vmatprep.subr.mxu0 0.0
        %2236 = vmatpush1.msra.mxu0 0.0
        %2237 = vmatprep.subr.mxu0 0.0
        %2238 = vmatpush1.msra.mxu0 0.0
        %2239 = vmatprep.subr.mxu0 0.0
        %2240 = vmatpush1.msra.mxu0 0.0
        %2241 = vmatprep.subr.mxu0 0.0
        %2242 = vmatpush1.msra.mxu0 0.0
        %2243 = vmatprep.subr.mxu0 0.0
        %2244 = vmatpush1.msra.mxu0 0.0
        %2245 = vmatprep.subr.mxu0 0.0
        %2246 = vmatpush1.msra.mxu0 0.0
        %2247 = vmatprep.subr.mxu0 0.0
        %2248 = vmatpush1.msra.mxu0 0.0
        %2249 = vmatprep.subr.mxu0 0.0
        %2250 = vmatpush1.msra.mxu0 0.0
        %2251 = vmatprep.subr.mxu0 0.0
        %2252 = vmatpush1.msra.mxu0 %v2079
        %2253 = vmatprep.subr.mxu0 0.0
        %2254 = vmatpush1.msra.mxu0 %v2078
        %2255 = vmatprep.subr.mxu0 0.0
        %2256 = vmatpush1.msra.mxu0 %v2077
        %2257 = vmatprep.subr.mxu0 0.0
        %2258 = vmatpush1.msra.mxu0 %v2076
        %2259 = vmatprep.subr.mxu0 0.0
        %2260 = vmatpush1.msra.mxu0 %v2075
        %2261 = vmatprep.subr.mxu0 0.0
        %2262 = vmatpush1.msra.mxu0 %v2074
        %2263 = vmatprep.subr.mxu0 0.0
        %2264 = vmatpush1.msra.mxu0 %v2073
        %2265 = vmatprep.subr.mxu0 0.0
        %2266 = vmatpush1.msra.mxu0 %v2072
        %2267 = vmatprep.subr.mxu0 0.0
        %2268 = vmatpush2.msra.mxu0 0.0
        %2269 = vmatprep.subr.mxu0 0.0
        %2270 = vmatpush2.msra.mxu0 0.0
        %2271 = vmatprep.subr.mxu0 0.0
        %2272 = vmatpush2.msra.mxu0 0.0
        %2273 = vmatprep.subr.mxu0 0.0
        %2274 = vmatpush2.msra.mxu0 0.0
        %2275 = vmatprep.subr.mxu0 0.0
        %2276 = vmatpush2.msra.mxu0 0.0
        %2277 = vmatprep.subr.mxu0 0.0
        %2278 = vmatpush2.msra.mxu0 0.0
        %2279 = vmatprep.subr.mxu0 0.0
        %2280 = vmatpush2.msra.mxu0 0.0
        %2281 = vmatprep.subr.mxu0 0.0
        %2282 = vmatpush2.msra.mxu0 0.0
        %2283 = vmatprep.subr.mxu0 0.0
        %2284 = vmatpush2.msra.mxu0 0.0
        %2285 = vmatprep.subr.mxu0 0.0
        %2286 = vmatpush2.msra.mxu0 0.0
        %2287 = vmatprep.subr.mxu0 0.0
        %2288 = vmatpush2.msra.mxu0 0.0
        %2289 = vmatprep.subr.mxu0 0.0
        %2290 = vmatpush2.msra.mxu0 0.0
        %2291 = vmatprep.subr.mxu0 0.0
        %2292 = vmatpush2.msra.mxu0 0.0
        %2293 = vmatprep.subr.mxu0 0.0
        %2294 = vmatpush2.msra.mxu0 0.0
        %2295 = vmatprep.subr.mxu0 0.0
        %2296 = vmatpush2.msra.mxu0 0.0
        %2297 = vmatprep.subr.mxu0 0.0
        %2298 = vmatpush2.msra.mxu0 0.0
        %2299 = vmatprep.mubr.f32.mxu0 0.0
        %2300 = vmatmul.mubr.f32.gmra.mxu0 %v2233
        %v2301 = vpop.f32.mrf.mxu0
        %v2302 = vadd.f32 0.0, %v2301
        %v2303 = vpop.f32.mrf.mxu0
        %2304 = vdwg.mxu0
        %v2306 = vlaneseq
        %v2307 = vshrl.u32 %v2306, 7
        %v2308 = vsub.s32 0, %v2307
        %v2309 = vrot.slane %v2081, %v2308
        %v2312 = vsel %vm1819, %v2302, 0
        %2314 = vmatprep.subr.mxu0 0.0
        %2315 = vmatpush1.msra.mxu0 0.0
        %2316 = vmatprep.subr.mxu0 0.0
        %2317 = vmatpush1.msra.mxu0 0.0
        %2318 = vmatprep.subr.mxu0 0.0
        %2319 = vmatpush1.msra.mxu0 0.0
        %2320 = vmatprep.subr.mxu0 0.0
        %2321 = vmatpush1.msra.mxu0 0.0
        %2322 = vmatprep.subr.mxu0 0.0
        %2323 = vmatpush1.msra.mxu0 0.0
        %2324 = vmatprep.subr.mxu0 0.0
        %2325 = vmatpush1.msra.mxu0 0.0
        %2326 = vmatprep.subr.mxu0 0.0
        %2327 = vmatpush1.msra.mxu0 0.0
        %2328 = vmatprep.subr.mxu0 0.0
        %2329 = vmatpush1.msra.mxu0 0.0
        %2330 = vmatprep.subr.mxu0 0.0
        %2331 = vmatpush1.msra.mxu0 0.0
        %2332 = vmatprep.subr.mxu0 0.0
        %2333 = vmatpush1.msra.mxu0 0.0
        %2334 = vmatprep.subr.mxu0 0.0
        %2335 = vmatpush1.msra.mxu0 0.0
        %2336 = vmatprep.subr.mxu0 0.0
        %2337 = vmatpush1.msra.mxu0 0.0
        %2338 = vmatprep.subr.mxu0 0.0
        %2339 = vmatpush1.msra.mxu0 0.0
        %2340 = vmatprep.subr.mxu0 0.0
        %2341 = vmatpush1.msra.mxu0 0.0
        %2342 = vmatprep.subr.mxu0 0.0
        %2343 = vmatpush1.msra.mxu0 0.0
        %2344 = vmatprep.subr.mxu0 0.0
        %2345 = vmatpush1.msra.mxu0 %v2312
        %2346 = vmatprep.subr.mxu0 0.0
        %2347 = vmatpush2.msra.mxu0 0.0
        %2348 = vmatprep.subr.mxu0 0.0
        %2349 = vmatpush2.msra.mxu0 0.0
        %2350 = vmatprep.subr.mxu0 0.0
        %2351 = vmatpush2.msra.mxu0 0.0
        %2352 = vmatprep.subr.mxu0 0.0
        %2353 = vmatpush2.msra.mxu0 0.0
        %2354 = vmatprep.subr.mxu0 0.0
        %2355 = vmatpush2.msra.mxu0 0.0
        %2356 = vmatprep.subr.mxu0 0.0
        %2357 = vmatpush2.msra.mxu0 0.0
        %2358 = vmatprep.subr.mxu0 0.0
        %2359 = vmatpush2.msra.mxu0 0.0
        %2360 = vmatprep.subr.mxu0 0.0
        %2361 = vmatpush2.msra.mxu0 0.0
        %2362 = vmatprep.subr.mxu0 0.0
        %2363 = vmatpush2.msra.mxu0 0.0
        %2364 = vmatprep.subr.mxu0 0.0
        %2365 = vmatpush2.msra.mxu0 0.0
        %2366 = vmatprep.subr.mxu0 0.0
        %2367 = vmatpush2.msra.mxu0 0.0
        %2368 = vmatprep.subr.mxu0 0.0
        %2369 = vmatpush2.msra.mxu0 0.0
        %2370 = vmatprep.subr.mxu0 0.0
        %2371 = vmatpush2.msra.mxu0 0.0
        %2372 = vmatprep.subr.mxu0 0.0
        %2373 = vmatpush2.msra.mxu0 0.0
        %2374 = vmatprep.subr.mxu0 0.0
        %2375 = vmatpush2.msra.mxu0 0.0
        %2376 = vmatprep.subr.mxu0 0.0
        %2377 = vmatpush2.msra.mxu0 0.0
        %2378 = vmatprep.mubr.f32.mxu0 0.0
        %2379 = vmatmul.mubr.f32.gmra.mxu0 %v1817
        %v2380 = vpop.f32.mrf.mxu0
        %v2381 = vadd.f32 %v2309, %v2380
        %v2382 = vpop.f32.mrf.mxu0
        %2383 = vdwg.mxu0
        %v2384 = vmax.f32 %v2381, 0.0
        %vm2385 = vcmask 39936
        %v2387 = vsel %vm2385, %v2059, 0
        %2389 = vmatprep.subr.mxu0 0.0
        %2390 = vmatpush1.xpose.msra.mxu0 0.0
        %2391 = vmatprep.subr.mxu0 0.0
        %2392 = vmatpush1.xpose.msra.mxu0 0.0
        %2393 = vmatprep.subr.mxu0 0.0
        %2394 = vmatpush1.xpose.msra.mxu0 0.0
        %2395 = vmatprep.subr.mxu0 0.0
        %2396 = vmatpush1.xpose.msra.mxu0 0.0
        %2397 = vmatprep.subr.mxu0 0.0
        %2398 = vmatpush1.xpose.msra.mxu0 0.0
        %2399 = vmatprep.subr.mxu0 0.0
        %2400 = vmatpush1.xpose.msra.mxu0 0.0
        %2401 = vmatprep.subr.mxu0 0.0
        %2402 = vmatpush1.xpose.msra.mxu0 0.0
        %2403 = vmatprep.subr.mxu0 0.0
        %2404 = vmatpush1.xpose.msra.mxu0 0.0
        %2405 = vmatprep.subr.mxu0 0.0
        %2406 = vmatpush1.xpose.msra.mxu0 0.0
        %2407 = vmatprep.subr.mxu0 0.0
        %2408 = vmatpush1.xpose.msra.mxu0 0.0
        %2409 = vmatprep.subr.mxu0 0.0
        %2410 = vmatpush1.xpose.msra.mxu0 0.0
        %2411 = vmatprep.subr.mxu0 0.0
        %2412 = vmatpush1.xpose.msra.mxu0 0.0
        %2413 = vmatprep.subr.mxu0 0.0
        %2414 = vmatpush1.xpose.msra.mxu0 0.0
        %2415 = vmatprep.subr.mxu0 0.0
        %2416 = vmatpush1.xpose.msra.mxu0 0.0
        %2417 = vmatprep.subr.mxu0 0.0
        %2418 = vmatpush1.xpose.msra.mxu0 0.0
        %2419 = vmatprep.subr.mxu0 0.0
        %2420 = vmatpush1.xpose.msra.mxu0 %v2387
        %2421 = vmatprep.subr.mxu0 0.0
        %2422 = vmatpush2.xpose.msra.mxu0 0.0
        %2423 = vmatprep.subr.mxu0 0.0
        %2424 = vmatpush2.xpose.msra.mxu0 0.0
        %2425 = vmatprep.subr.mxu0 0.0
        %2426 = vmatpush2.xpose.msra.mxu0 0.0
        %2427 = vmatprep.subr.mxu0 0.0
        %2428 = vmatpush2.xpose.msra.mxu0 0.0
        %2429 = vmatprep.subr.mxu0 0.0
        %2430 = vmatpush2.xpose.msra.mxu0 0.0
        %2431 = vmatprep.subr.mxu0 0.0
        %2432 = vmatpush2.xpose.msra.mxu0 0.0
        %2433 = vmatprep.subr.mxu0 0.0
        %2434 = vmatpush2.xpose.msra.mxu0 0.0
        %2435 = vmatprep.subr.mxu0 0.0
        %2436 = vmatpush2.xpose.msra.mxu0 0.0
        %2437 = vmatprep.subr.mxu0 0.0
        %2438 = vmatpush2.xpose.msra.mxu0 0.0
        %2439 = vmatprep.subr.mxu0 0.0
        %2440 = vmatpush2.xpose.msra.mxu0 0.0
        %2441 = vmatprep.subr.mxu0 0.0
        %2442 = vmatpush2.xpose.msra.mxu0 0.0
        %2443 = vmatprep.subr.mxu0 0.0
        %2444 = vmatpush2.xpose.msra.mxu0 0.0
        %2445 = vmatprep.subr.mxu0 0.0
        %2446 = vmatpush2.xpose.msra.mxu0 0.0
        %2447 = vmatprep.subr.mxu0 0.0
        %2448 = vmatpush2.xpose.msra.mxu0 0.0
        %2449 = vmatprep.subr.mxu0 0.0
        %2450 = vmatpush2.xpose.msra.mxu0 0.0
        %2451 = vmatprep.subr.mxu0 0.0
        %2452 = vmatpush2.xpose.msra.mxu0 0.0
        %2453 = vmatprep.mubr.f32.mxu0 0.0
        %2454 = vmatmul.mubr.f32.gmra.mxu0 %v2387
        %v2455 = vpop.f32.mrf.mxu0
        %v2456 = vadd.f32 0.0, %v2455
        %v2457 = vpop.f32.mrf.mxu0
        %2458 = vdwg.mxu0
        %v2459 = vsub.f32 %v1713, %v2456
        %v2460 = vmul.f32 %v2459, %v2459
        %vm2461 = vcmask 9216
        %v2462 = vsel %vm2461, %v2460, 0.0
        %2463 = vadd.xlane.f32.xlu0 %v2462
        %v2464 = vpop.xlane.xlu0 %2463
        %v2465 = vrot.slane %v2464, 4
        %v2466 = vadd.f32 %v2464, %v2465
        %v2467 = vrot.slane %v2466, 2
        %v2468 = vadd.f32 %v2466, %v2467
        %v2469 = vrot.slane %v2468, 1
        %v2470 = vadd.f32 %v2468, %v2469
        %s2471 = vtos %v2470
        %v2472 = vsub.f32 0.0, %v2059
        %v2473 = vadd.f32 %v2059, 1e-15
        %v2474 = vlog2.pop %v2473
        %v2475 = vmul.f32 %v2474, 0.6931472
        %v2476 = vmul.f32 %v2472, %v2475
        %v2477 = vsel %vm2047, %v2476, 0.0
        %2478 = vadd.xlane.f32.xlu0 %v2477
        %v2479 = vpop.xlane.xlu0 %2478
        %v2480 = vrot.slane %v2479, 4
        %v2481 = vadd.f32 %v2479, %v2480
        %v2482 = vrot.slane %v2481, 2
        %v2483 = vadd.f32 %v2481, %v2482
        %v2484 = vrot.slane %v2483, 1
        %v2485 = vadd.f32 %v2483, %v2484
        %s2486 = vtos %v2485
        %2487 = vxpose.xlu0.b32.start [1/16] %v2059, 128
        %2488 = vxpose.xlu0.b32.cont [2/16] 0.0, 128
        %2489 = vxpose.xlu0.b32.cont [3/16] 0.0, 128
        %2490 = vxpose.xlu0.b32.cont [4/16] 0.0, 128
        %2491 = vxpose.xlu0.b32.cont [5/16] 0.0, 128
        %2492 = vxpose.xlu0.b32.cont [6/16] 0.0, 128
        %2493 = vxpose.xlu0.b32.cont [7/16] 0.0, 128
        %2494 = vxpose.xlu0.b32.cont [8/16] 0.0, 128
        %2495 = vxpose.xlu0.b32.cont [9/16] 0.0, 128
        %2496 = vxpose.xlu0.b32.cont [10/16] 0.0, 128
        %2497 = vxpose.xlu0.b32.cont [11/16] 0.0, 128
        %2498 = vxpose.xlu0.b32.cont [12/16] 0.0, 128
        %2499 = vxpose.xlu0.b32.cont [13/16] 0.0, 128
        %2500 = vxpose.xlu0.b32.cont [14/16] 0.0, 128
        %2501 = vxpose.xlu0.b32.cont [15/16] 0.0, 128
        %2502 = vxpose.xlu0.b32.end [16/16] 0.0, 128
        %v2503 = vpop.trf.xlu0
        %v2504 = vpop.trf.xlu0
        %v2505 = vpop.trf.xlu0
        %v2506 = vpop.trf.xlu0
        %v2507 = vpop.trf.xlu0
        %v2508 = vpop.trf.xlu0
        %v2509 = vpop.trf.xlu0
        %v2510 = vpop.trf.xlu0
        %v2511 = vpop.trf.xlu0
        %v2512 = vpop.trf.xlu0
        %v2513 = vpop.trf.xlu0
        %v2514 = vpop.trf.xlu0
        %v2515 = vpop.trf.xlu0
        %v2516 = vpop.trf.xlu0
        %v2517 = vpop.trf.xlu0
        %v2518 = vpop.trf.xlu0
        %v2520 = vsel %vm980, %v2503, 0
        %v2523 = vsel %vm1819, %v2384, 0
        %2525 = vmatprep.subr.mxu0 0.0
        %2526 = vmatpush1.msra.mxu0 0.0
        %2527 = vmatprep.subr.mxu0 0.0
        %2528 = vmatpush1.msra.mxu0 0.0
        %2529 = vmatprep.subr.mxu0 0.0
        %2530 = vmatpush1.msra.mxu0 0.0
        %2531 = vmatprep.subr.mxu0 0.0
        %2532 = vmatpush1.msra.mxu0 0.0
        %2533 = vmatprep.subr.mxu0 0.0
        %2534 = vmatpush1.msra.mxu0 0.0
        %2535 = vmatprep.subr.mxu0 0.0
        %2536 = vmatpush1.msra.mxu0 0.0
        %2537 = vmatprep.subr.mxu0 0.0
        %2538 = vmatpush1.msra.mxu0 0.0
        %2539 = vmatprep.subr.mxu0 0.0
        %2540 = vmatpush1.msra.mxu0 0.0
        %2541 = vmatprep.subr.mxu0 0.0
        %2542 = vmatpush1.msra.mxu0 0.0
        %2543 = vmatprep.subr.mxu0 0.0
        %2544 = vmatpush1.msra.mxu0 0.0
        %2545 = vmatprep.subr.mxu0 0.0
        %2546 = vmatpush1.msra.mxu0 0.0
        %2547 = vmatprep.subr.mxu0 0.0
        %2548 = vmatpush1.msra.mxu0 0.0
        %2549 = vmatprep.subr.mxu0 0.0
        %2550 = vmatpush1.msra.mxu0 0.0
        %2551 = vmatprep.subr.mxu0 0.0
        %2552 = vmatpush1.msra.mxu0 0.0
        %2553 = vmatprep.subr.mxu0 0.0
        %2554 = vmatpush1.msra.mxu0 0.0
        %2555 = vmatprep.subr.mxu0 0.0
        %2556 = vmatpush1.msra.mxu0 %v2523
        %2557 = vmatprep.subr.mxu0 0.0
        %2558 = vmatpush2.msra.mxu0 0.0
        %2559 = vmatprep.subr.mxu0 0.0
        %2560 = vmatpush2.msra.mxu0 0.0
        %2561 = vmatprep.subr.mxu0 0.0
        %2562 = vmatpush2.msra.mxu0 0.0
        %2563 = vmatprep.subr.mxu0 0.0
        %2564 = vmatpush2.msra.mxu0 0.0
        %2565 = vmatprep.subr.mxu0 0.0
        %2566 = vmatpush2.msra.mxu0 0.0
        %2567 = vmatprep.subr.mxu0 0.0
        %2568 = vmatpush2.msra.mxu0 0.0
        %2569 = vmatprep.subr.mxu0 0.0
        %2570 = vmatpush2.msra.mxu0 0.0
        %2571 = vmatprep.subr.mxu0 0.0
        %2572 = vmatpush2.msra.mxu0 0.0
        %2573 = vmatprep.subr.mxu0 0.0
        %2574 = vmatpush2.msra.mxu0 0.0
        %2575 = vmatprep.subr.mxu0 0.0
        %2576 = vmatpush2.msra.mxu0 0.0
        %2577 = vmatprep.subr.mxu0 0.0
        %2578 = vmatpush2.msra.mxu0 0.0
        %2579 = vmatprep.subr.mxu0 0.0
        %2580 = vmatpush2.msra.mxu0 0.0
        %2581 = vmatprep.subr.mxu0 0.0
        %2582 = vmatpush2.msra.mxu0 0.0
        %2583 = vmatprep.subr.mxu0 0.0
        %2584 = vmatpush2.msra.mxu0 0.0
        %2585 = vmatprep.subr.mxu0 0.0
        %2586 = vmatpush2.msra.mxu0 0.0
        %2587 = vmatprep.subr.mxu0 0.0
        %2588 = vmatpush2.msra.mxu0 0.0
        %2589 = vmatprep.mubr.f32.mxu0 0.0
        %2590 = vmatmul.mubr.f32.gmra.mxu0 %v2520
        %v2591 = vpop.f32.mrf.mxu0
        %v2592 = vadd.f32 0.0, %v2591
        %v2593 = vpop.f32.mrf.mxu0
        %2594 = vdwg.mxu0
        %v2596 = vsel %vm1819, %v1713, 0
        %2598 = vmatprep.subr.mxu0 0.0
        %2599 = vmatpush1.msra.mxu0 0.0
        %2600 = vmatprep.subr.mxu0 0.0
        %2601 = vmatpush1.msra.mxu0 0.0
        %2602 = vmatprep.subr.mxu0 0.0
        %2603 = vmatpush1.msra.mxu0 0.0
        %2604 = vmatprep.subr.mxu0 0.0
        %2605 = vmatpush1.msra.mxu0 0.0
        %2606 = vmatprep.subr.mxu0 0.0
        %2607 = vmatpush1.msra.mxu0 0.0
        %2608 = vmatprep.subr.mxu0 0.0
        %2609 = vmatpush1.msra.mxu0 0.0
        %2610 = vmatprep.subr.mxu0 0.0
        %2611 = vmatpush1.msra.mxu0 0.0
        %2612 = vmatprep.subr.mxu0 0.0
        %2613 = vmatpush1.msra.mxu0 0.0
        %2614 = vmatprep.subr.mxu0 0.0
        %2615 = vmatpush1.msra.mxu0 0.0
        %2616 = vmatprep.subr.mxu0 0.0
        %2617 = vmatpush1.msra.mxu0 0.0
        %2618 = vmatprep.subr.mxu0 0.0
        %2619 = vmatpush1.msra.mxu0 0.0
        %2620 = vmatprep.subr.mxu0 0.0
        %2621 = vmatpush1.msra.mxu0 0.0
        %2622 = vmatprep.subr.mxu0 0.0
        %2623 = vmatpush1.msra.mxu0 0.0
        %2624 = vmatprep.subr.mxu0 0.0
        %2625 = vmatpush1.msra.mxu0 0.0
        %2626 = vmatprep.subr.mxu0 0.0
        %2627 = vmatpush1.msra.mxu0 0.0
        %2628 = vmatprep.subr.mxu0 0.0
        %2629 = vmatpush1.msra.mxu0 %v2596
        %2630 = vmatprep.subr.mxu0 0.0
        %2631 = vmatpush2.msra.mxu0 0.0
        %2632 = vmatprep.subr.mxu0 0.0
        %2633 = vmatpush2.msra.mxu0 0.0
        %2634 = vmatprep.subr.mxu0 0.0
        %2635 = vmatpush2.msra.mxu0 0.0
        %2636 = vmatprep.subr.mxu0 0.0
        %2637 = vmatpush2.msra.mxu0 0.0
        %2638 = vmatprep.subr.mxu0 0.0
        %2639 = vmatpush2.msra.mxu0 0.0
        %2640 = vmatprep.subr.mxu0 0.0
        %2641 = vmatpush2.msra.mxu0 0.0
        %2642 = vmatprep.subr.mxu0 0.0
        %2643 = vmatpush2.msra.mxu0 0.0
        %2644 = vmatprep.subr.mxu0 0.0
        %2645 = vmatpush2.msra.mxu0 0.0
        %2646 = vmatprep.subr.mxu0 0.0
        %2647 = vmatpush2.msra.mxu0 0.0
        %2648 = vmatprep.subr.mxu0 0.0
        %2649 = vmatpush2.msra.mxu0 0.0
        %2650 = vmatprep.subr.mxu0 0.0
        %2651 = vmatpush2.msra.mxu0 0.0
        %2652 = vmatprep.subr.mxu0 0.0
        %2653 = vmatpush2.msra.mxu0 0.0
        %2654 = vmatprep.subr.mxu0 0.0
        %2655 = vmatpush2.msra.mxu0 0.0
        %2656 = vmatprep.subr.mxu0 0.0
        %2657 = vmatpush2.msra.mxu0 0.0
        %2658 = vmatprep.subr.mxu0 0.0
        %2659 = vmatpush2.msra.mxu0 0.0
        %2660 = vmatprep.subr.mxu0 0.0
        %2661 = vmatpush2.msra.mxu0 0.0
        %2662 = vmatprep.mubr.f32.mxu0 0.0
        %2663 = vmatmul.mubr.f32.gmra.mxu0 %v2520
        %v2664 = vpop.f32.mrf.mxu0
        %v2665 = vadd.f32 0.0, %v2664
        %v2666 = vpop.f32.mrf.mxu0
        %2667 = vdwg.mxu0
        %v2669 = vsel %vm980, %v2665, 0
        %v2671 = vsel %vm1819, %v2059, 0
        %2673 = vmatprep.subr.mxu0 0.0
        %2674 = vmatpush1.msra.mxu0 0.0
        %2675 = vmatprep.subr.mxu0 0.0
        %2676 = vmatpush1.msra.mxu0 0.0
        %2677 = vmatprep.subr.mxu0 0.0
        %2678 = vmatpush1.msra.mxu0 0.0
        %2679 = vmatprep.subr.mxu0 0.0
        %2680 = vmatpush1.msra.mxu0 0.0
        %2681 = vmatprep.subr.mxu0 0.0
        %2682 = vmatpush1.msra.mxu0 0.0
        %2683 = vmatprep.subr.mxu0 0.0
        %2684 = vmatpush1.msra.mxu0 0.0
        %2685 = vmatprep.subr.mxu0 0.0
        %2686 = vmatpush1.msra.mxu0 0.0
        %2687 = vmatprep.subr.mxu0 0.0
        %2688 = vmatpush1.msra.mxu0 0.0
        %2689 = vmatprep.subr.mxu0 0.0
        %2690 = vmatpush1.msra.mxu0 0.0
        %2691 = vmatprep.subr.mxu0 0.0
        %2692 = vmatpush1.msra.mxu0 0.0
        %2693 = vmatprep.subr.mxu0 0.0
        %2694 = vmatpush1.msra.mxu0 0.0
        %2695 = vmatprep.subr.mxu0 0.0
        %2696 = vmatpush1.msra.mxu0 0.0
        %2697 = vmatprep.subr.mxu0 0.0
        %2698 = vmatpush1.msra.mxu0 0.0
        %2699 = vmatprep.subr.mxu0 0.0
        %2700 = vmatpush1.msra.mxu0 0.0
        %2701 = vmatprep.subr.mxu0 0.0
        %2702 = vmatpush1.msra.mxu0 0.0
        %2703 = vmatprep.subr.mxu0 0.0
        %2704 = vmatpush1.msra.mxu0 %v2671
        %2705 = vmatprep.subr.mxu0 0.0
        %2706 = vmatpush2.msra.mxu0 0.0
        %2707 = vmatprep.subr.mxu0 0.0
        %2708 = vmatpush2.msra.mxu0 0.0
        %2709 = vmatprep.subr.mxu0 0.0
        %2710 = vmatpush2.msra.mxu0 0.0
        %2711 = vmatprep.subr.mxu0 0.0
        %2712 = vmatpush2.msra.mxu0 0.0
        %2713 = vmatprep.subr.mxu0 0.0
        %2714 = vmatpush2.msra.mxu0 0.0
        %2715 = vmatprep.subr.mxu0 0.0
        %2716 = vmatpush2.msra.mxu0 0.0
        %2717 = vmatprep.subr.mxu0 0.0
        %2718 = vmatpush2.msra.mxu0 0.0
        %2719 = vmatprep.subr.mxu0 0.0
        %2720 = vmatpush2.msra.mxu0 0.0
        %2721 = vmatprep.subr.mxu0 0.0
        %2722 = vmatpush2.msra.mxu0 0.0
        %2723 = vmatprep.subr.mxu0 0.0
        %2724 = vmatpush2.msra.mxu0 0.0
        %2725 = vmatprep.subr.mxu0 0.0
        %2726 = vmatpush2.msra.mxu0 0.0
        %2727 = vmatprep.subr.mxu0 0.0
        %2728 = vmatpush2.msra.mxu0 0.0
        %2729 = vmatprep.subr.mxu0 0.0
        %2730 = vmatpush2.msra.mxu0 0.0
        %2731 = vmatprep.subr.mxu0 0.0
        %2732 = vmatpush2.msra.mxu0 0.0
        %2733 = vmatprep.subr.mxu0 0.0
        %2734 = vmatpush2.msra.mxu0 0.0
        %2735 = vmatprep.subr.mxu0 0.0
        %2736 = vmatpush2.msra.mxu0 0.0
        %2737 = vmatprep.mubr.f32.mxu0 0.0
        %2738 = vmatmul.mubr.f32.gmra.mxu0 %v2669
        %v2739 = vpop.f32.mrf.mxu0
        %v2740 = vadd.f32 0.0, %v2739
        %v2741 = vpop.f32.mrf.mxu0
        %2742 = vdwg.mxu0
        %v2743 = vsel %vm622, 1.0, %v2740
        %s2744 = scalar_lea.vmem %s2, 384
        %v2745 = vld [vmem:[%s2744] sm:$0xff]
        %v2746 = vld [vmem:[%s2744 + $0x8] sm:$0xff]
        %v2747 = vld [vmem:[%s2744 + $0x10] sm:$0xff]
        %v2748 = vld [vmem:[%s2744 + $0x18] sm:$0xff]
        %v2749 = vld [vmem:[%s2744 + $0x20] sm:$0xff]
        %v2750 = vld [vmem:[%s2744 + $0x28] sm:$0xff]
        %v2751 = vld [vmem:[%s2744 + $0x30] sm:$0xff]
        %v2752 = vld [vmem:[%s2744 + $0x38] sm:$0xff]
        %s2753 = scalar_lea.vmem %s3, 6
        %v2754 = vld [vmem:[%s2753] sm:$0x1]
        %v2755 = vld [vmem:[#allocation9] sm:$0xff]
        %v2756 = vld [vmem:[#allocation9 + $0x8] sm:$0xff]
        %v2757 = vld [vmem:[#allocation9 + $0x10] sm:$0xff]
        %v2758 = vld [vmem:[#allocation9 + $0x18] sm:$0xff]
        %v2759 = vld [vmem:[#allocation9 + $0x20] sm:$0xff]
        %v2760 = vld [vmem:[#allocation9 + $0x28] sm:$0xff]
        %v2761 = vld [vmem:[#allocation9 + $0x30] sm:$0xff]
        %v2762 = vld [vmem:[#allocation9 + $0x38] sm:$0xff]
        %v2763 = vld [vmem:[#allocation9 + $0x40] sm:$0xff]
        %v2764 = vld [vmem:[#allocation9 + $0x48] sm:$0xff]
        %v2765 = vld [vmem:[#allocation9 + $0x50] sm:$0xff]
        %v2766 = vld [vmem:[#allocation9 + $0x58] sm:$0xff]
        %v2767 = vld [vmem:[#allocation9 + $0x60] sm:$0xff]
        %v2768 = vld [vmem:[#allocation9 + $0x68] sm:$0xff]
        %v2769 = vld [vmem:[#allocation9 + $0x70] sm:$0xff]
        %v2770 = vld [vmem:[#allocation9 + $0x78] sm:$0xff]
        %v2771 = vld [vmem:[#allocation9 + $0x80] sm:$0xff]
        %v2772 = vld [vmem:[#allocation9 + $0x88] sm:$0xff]
        %v2773 = vld [vmem:[#allocation9 + $0x90] sm:$0xff]
        %v2774 = vld [vmem:[#allocation9 + $0x98] sm:$0xff]
        %v2775 = vld [vmem:[#allocation9 + $0xa0] sm:$0xff]
        %v2776 = vld [vmem:[#allocation9 + $0xa8] sm:$0xff]
        %v2777 = vld [vmem:[#allocation9 + $0xb0] sm:$0xff]
        %v2778 = vld [vmem:[#allocation9 + $0xb8] sm:$0xff]
        %v2779 = vld [vmem:[#allocation9 + $0xc0] sm:$0xff]
        %v2780 = vld [vmem:[#allocation9 + $0xc8] sm:$0xff]
        %v2781 = vld [vmem:[#allocation9 + $0xd0] sm:$0xff]
        %v2782 = vld [vmem:[#allocation9 + $0xd8] sm:$0xff]
        %v2783 = vld [vmem:[#allocation9 + $0xe0] sm:$0xff]
        %v2784 = vld [vmem:[#allocation9 + $0xe8] sm:$0xff]
        %v2785 = vld [vmem:[#allocation9 + $0xf0] sm:$0xff]
        %v2786 = vld [vmem:[#allocation9 + $0xf8] sm:$0xff]
        %v2787 = vld [vmem:[#allocation10] sm:$0xf]
        %v2789 = vsel %vm644, %v2592, 0
        %2791 = vmatprep.subr.mxu0 0.0
        %2792 = vmatpush1.msra.mxu0 0.0
        %2793 = vmatprep.subr.mxu0 0.0
        %2794 = vmatpush1.msra.mxu0 0.0
        %2795 = vmatprep.subr.mxu0 0.0
        %2796 = vmatpush1.msra.mxu0 0.0
        %2797 = vmatprep.subr.mxu0 0.0
        %2798 = vmatpush1.msra.mxu0 0.0
        %2799 = vmatprep.subr.mxu0 0.0
        %2800 = vmatpush1.msra.mxu0 0.0
        %2801 = vmatprep.subr.mxu0 0.0
        %2802 = vmatpush1.msra.mxu0 0.0
        %2803 = vmatprep.subr.mxu0 0.0
        %2804 = vmatpush1.msra.mxu0 0.0
        %2805 = vmatprep.subr.mxu0 0.0
        %2806 = vmatpush1.msra.mxu0 0.0
        %2807 = vmatprep.subr.mxu0 0.0
        %2808 = vmatpush1.msra.mxu0 %v2752
        %2809 = vmatprep.subr.mxu0 0.0
        %2810 = vmatpush1.msra.mxu0 %v2751
        %2811 = vmatprep.subr.mxu0 0.0
        %2812 = vmatpush1.msra.mxu0 %v2750
        %2813 = vmatprep.subr.mxu0 0.0
        %2814 = vmatpush1.msra.mxu0 %v2749
        %2815 = vmatprep.subr.mxu0 0.0
        %2816 = vmatpush1.msra.mxu0 %v2748
        %2817 = vmatprep.subr.mxu0 0.0
        %2818 = vmatpush1.msra.mxu0 %v2747
        %2819 = vmatprep.subr.mxu0 0.0
        %2820 = vmatpush1.msra.mxu0 %v2746
        %2821 = vmatprep.subr.mxu0 0.0
        %2822 = vmatpush1.msra.mxu0 %v2745
        %2823 = vmatprep.subr.mxu0 0.0
        %2824 = vmatpush2.msra.mxu0 0.0
        %2825 = vmatprep.subr.mxu0 0.0
        %2826 = vmatpush2.msra.mxu0 0.0
        %2827 = vmatprep.subr.mxu0 0.0
        %2828 = vmatpush2.msra.mxu0 0.0
        %2829 = vmatprep.subr.mxu0 0.0
        %2830 = vmatpush2.msra.mxu0 0.0
        %2831 = vmatprep.subr.mxu0 0.0
        %2832 = vmatpush2.msra.mxu0 0.0
        %2833 = vmatprep.subr.mxu0 0.0
        %2834 = vmatpush2.msra.mxu0 0.0
        %2835 = vmatprep.subr.mxu0 0.0
        %2836 = vmatpush2.msra.mxu0 0.0
        %2837 = vmatprep.subr.mxu0 0.0
        %2838 = vmatpush2.msra.mxu0 0.0
        %2839 = vmatprep.subr.mxu0 0.0
        %2840 = vmatpush2.msra.mxu0 0.0
        %2841 = vmatprep.subr.mxu0 0.0
        %2842 = vmatpush2.msra.mxu0 0.0
        %2843 = vmatprep.subr.mxu0 0.0
        %2844 = vmatpush2.msra.mxu0 0.0
        %2845 = vmatprep.subr.mxu0 0.0
        %2846 = vmatpush2.msra.mxu0 0.0
        %2847 = vmatprep.subr.mxu0 0.0
        %2848 = vmatpush2.msra.mxu0 0.0
        %2849 = vmatprep.subr.mxu0 0.0
        %2850 = vmatpush2.msra.mxu0 0.0
        %2851 = vmatprep.subr.mxu0 0.0
        %2852 = vmatpush2.msra.mxu0 0.0
        %2853 = vmatprep.subr.mxu0 0.0
        %2854 = vmatpush2.msra.mxu0 0.0
        %2855 = vmatprep.mubr.f32.mxu0 0.0
        %2856 = vmatmul.mubr.f32.gmra.mxu0 %v2789
        %v2857 = vpop.f32.mrf.mxu0
        %v2858 = vadd.f32 0.0, %v2857
        %v2859 = vpop.f32.mrf.mxu0
        %2860 = vdwg.mxu0
        %v2862 = vlaneseq
        %v2863 = vshrl.u32 %v2862, 7
        %v2864 = vsub.s32 0, %v2863
        %v2865 = vrot.slane %v2754, %v2864
        %v2868 = vsel %vm2385, %v2743, 0
        %vm2870 = vcmask 1044480
        %v2872 = vsel %vm2870, %v2858, 0
        %2874 = vmatprep.subr.mxu0 0.0
        %2875 = vmatpush1.msra.mxu0 0.0
        %2876 = vmatprep.subr.mxu0 0.0
        %2877 = vmatpush1.msra.mxu0 0.0
        %2878 = vmatprep.subr.mxu0 0.0
        %2879 = vmatpush1.msra.mxu0 0.0
        %2880 = vmatprep.subr.mxu0 0.0
        %2881 = vmatpush1.msra.mxu0 0.0
        %2882 = vmatprep.subr.mxu0 0.0
        %2883 = vmatpush1.msra.mxu0 0.0
        %2884 = vmatprep.subr.mxu0 0.0
        %2885 = vmatpush1.msra.mxu0 0.0
        %2886 = vmatprep.subr.mxu0 0.0
        %2887 = vmatpush1.msra.mxu0 0.0
        %2888 = vmatprep.subr.mxu0 0.0
        %2889 = vmatpush1.msra.mxu0 0.0
        %2890 = vmatprep.subr.mxu0 0.0
        %2891 = vmatpush1.msra.mxu0 0.0
        %2892 = vmatprep.subr.mxu0 0.0
        %2893 = vmatpush1.msra.mxu0 0.0
        %2894 = vmatprep.subr.mxu0 0.0
        %2895 = vmatpush1.msra.mxu0 0.0
        %2896 = vmatprep.subr.mxu0 0.0
        %2897 = vmatpush1.msra.mxu0 0.0
        %2898 = vmatprep.subr.mxu0 0.0
        %2899 = vmatpush1.msra.mxu0 0.0
        %2900 = vmatprep.subr.mxu0 0.0
        %2901 = vmatpush1.msra.mxu0 0.0
        %2902 = vmatprep.subr.mxu0 0.0
        %2903 = vmatpush1.msra.mxu0 0.0
        %2904 = vmatprep.subr.mxu0 0.0
        %2905 = vmatpush1.msra.mxu0 %v2872
        %2906 = vmatprep.subr.mxu0 0.0
        %2907 = vmatpush2.msra.mxu0 0.0
        %2908 = vmatprep.subr.mxu0 0.0
        %2909 = vmatpush2.msra.mxu0 0.0
        %2910 = vmatprep.subr.mxu0 0.0
        %2911 = vmatpush2.msra.mxu0 0.0
        %2912 = vmatprep.subr.mxu0 0.0
        %2913 = vmatpush2.msra.mxu0 0.0
        %2914 = vmatprep.subr.mxu0 0.0
        %2915 = vmatpush2.msra.mxu0 0.0
        %2916 = vmatprep.subr.mxu0 0.0
        %2917 = vmatpush2.msra.mxu0 0.0
        %2918 = vmatprep.subr.mxu0 0.0
        %2919 = vmatpush2.msra.mxu0 0.0
        %2920 = vmatprep.subr.mxu0 0.0
        %2921 = vmatpush2.msra.mxu0 0.0
        %2922 = vmatprep.subr.mxu0 0.0
        %2923 = vmatpush2.msra.mxu0 0.0
        %2924 = vmatprep.subr.mxu0 0.0
        %2925 = vmatpush2.msra.mxu0 0.0
        %2926 = vmatprep.subr.mxu0 0.0
        %2927 = vmatpush2.msra.mxu0 0.0
        %2928 = vmatprep.subr.mxu0 0.0
        %2929 = vmatpush2.msra.mxu0 0.0
        %2930 = vmatprep.subr.mxu0 0.0
        %2931 = vmatpush2.msra.mxu0 0.0
        %2932 = vmatprep.subr.mxu0 0.0
        %2933 = vmatpush2.msra.mxu0 0.0
        %2934 = vmatprep.subr.mxu0 0.0
        %2935 = vmatpush2.msra.mxu0 0.0
        %2936 = vmatprep.subr.mxu0 0.0
        %2937 = vmatpush2.msra.mxu0 0.0
        %2938 = vmatprep.mubr.f32.mxu0 0.0
        %2939 = vmatmul.mubr.f32.gmra.mxu0 %v2868
        %v2940 = vpop.f32.mrf.mxu0
        %v2941 = vadd.f32 %v2865, %v2940
        %v2942 = vpop.f32.mrf.mxu0
        %2943 = vdwg.mxu0
        %v2944 = vmax.f32 %v2941, 0.0
        %v2946 = vsel %vm644, %v2944, 0
        %2948 = vmatprep.subr.mxu0 0.0
        %2949 = vmatpush1.msra.mxu0 0.0
        %2950 = vmatprep.subr.mxu0 0.0
        %2951 = vmatpush1.msra.mxu0 0.0
        %2952 = vmatprep.subr.mxu0 0.0
        %2953 = vmatpush1.msra.mxu0 0.0
        %2954 = vmatprep.subr.mxu0 0.0
        %2955 = vmatpush1.msra.mxu0 0.0
        %2956 = vmatprep.subr.mxu0 0.0
        %2957 = vmatpush1.msra.mxu0 0.0
        %2958 = vmatprep.subr.mxu0 0.0
        %2959 = vmatpush1.msra.mxu0 0.0
        %2960 = vmatprep.subr.mxu0 0.0
        %2961 = vmatpush1.msra.mxu0 0.0
        %2962 = vmatprep.subr.mxu0 0.0
        %2963 = vmatpush1.msra.mxu0 0.0
        %2964 = vmatprep.subr.mxu0 %v2784
        %2965 = vmatpush1.msra.mxu0 %v2783
        %2966 = vmatprep.subr.mxu0 %v2780
        %2967 = vmatpush1.msra.mxu0 %v2779
        %2968 = vmatprep.subr.mxu0 %v2776
        %2969 = vmatpush1.msra.mxu0 %v2775
        %2970 = vmatprep.subr.mxu0 %v2772
        %2971 = vmatpush1.msra.mxu0 %v2771
        %2972 = vmatprep.subr.mxu0 %v2768
        %2973 = vmatpush1.msra.mxu0 %v2767
        %2974 = vmatprep.subr.mxu0 %v2764
        %2975 = vmatpush1.msra.mxu0 %v2763
        %2976 = vmatprep.subr.mxu0 %v2760
        %2977 = vmatpush1.msra.mxu0 %v2759
        %2978 = vmatprep.subr.mxu0 %v2756
        %2979 = vmatpush1.msra.mxu0 %v2755
        %2980 = vmatprep.subr.mxu0 0.0
        %2981 = vmatpush2.msra.mxu0 0.0
        %2982 = vmatprep.subr.mxu0 0.0
        %2983 = vmatpush2.msra.mxu0 0.0
        %2984 = vmatprep.subr.mxu0 0.0
        %2985 = vmatpush2.msra.mxu0 0.0
        %2986 = vmatprep.subr.mxu0 0.0
        %2987 = vmatpush2.msra.mxu0 0.0
        %2988 = vmatprep.subr.mxu0 0.0
        %2989 = vmatpush2.msra.mxu0 0.0
        %2990 = vmatprep.subr.mxu0 0.0
        %2991 = vmatpush2.msra.mxu0 0.0
        %2992 = vmatprep.subr.mxu0 0.0
        %2993 = vmatpush2.msra.mxu0 0.0
        %2994 = vmatprep.subr.mxu0 0.0
        %2995 = vmatpush2.msra.mxu0 0.0
        %2996 = vmatprep.subr.mxu0 0.0
        %2997 = vmatpush2.msra.mxu0 0.0
        %2998 = vmatprep.subr.mxu0 0.0
        %2999 = vmatpush2.msra.mxu0 0.0
        %3000 = vmatprep.subr.mxu0 0.0
        %3001 = vmatpush2.msra.mxu0 0.0
        %3002 = vmatprep.subr.mxu0 0.0
        %3003 = vmatpush2.msra.mxu0 0.0
        %3004 = vmatprep.subr.mxu0 0.0
        %3005 = vmatpush2.msra.mxu0 0.0
        %3006 = vmatprep.subr.mxu0 0.0
        %3007 = vmatpush2.msra.mxu0 0.0
        %3008 = vmatprep.subr.mxu0 0.0
        %3009 = vmatpush2.msra.mxu0 0.0
        %3010 = vmatprep.subr.mxu0 0.0
        %3011 = vmatpush2.msra.mxu0 0.0
        %3012 = vmatprep.mubr.f32.mxu0 0.0
        %3013 = vmatmul.mubr.f32.gmra.mxu0 %v2946
        %v3014 = vpop.f32.mrf.mxu0
        %v3015 = vadd.f32 0.0, %v3014
        %v3016 = vpop.f32.mrf.mxu0
        %v3017 = vadd.f32 0.0, %v3016
        %3018 = vdwg.mxu0
        %3019 = vmatprep.subr.mxu0 0.0
        %3020 = vmatpush1.msra.mxu0 0.0
        %3021 = vmatprep.subr.mxu0 0.0
        %3022 = vmatpush1.msra.mxu0 0.0
        %3023 = vmatprep.subr.mxu0 0.0
        %3024 = vmatpush1.msra.mxu0 0.0
        %3025 = vmatprep.subr.mxu0 0.0
        %3026 = vmatpush1.msra.mxu0 0.0
        %3027 = vmatprep.subr.mxu0 0.0
        %3028 = vmatpush1.msra.mxu0 0.0
        %3029 = vmatprep.subr.mxu0 0.0
        %3030 = vmatpush1.msra.mxu0 0.0
        %3031 = vmatprep.subr.mxu0 0.0
        %3032 = vmatpush1.msra.mxu0 0.0
        %3033 = vmatprep.subr.mxu0 0.0
        %3034 = vmatpush1.msra.mxu0 0.0
        %3035 = vmatprep.subr.mxu0 %v2786
        %3036 = vmatpush1.msra.mxu0 %v2785
        %3037 = vmatprep.subr.mxu0 %v2782
        %3038 = vmatpush1.msra.mxu0 %v2781
        %3039 = vmatprep.subr.mxu0 %v2778
        %3040 = vmatpush1.msra.mxu0 %v2777
        %3041 = vmatprep.subr.mxu0 %v2774
        %3042 = vmatpush1.msra.mxu0 %v2773
        %3043 = vmatprep.subr.mxu0 %v2770
        %3044 = vmatpush1.msra.mxu0 %v2769
        %3045 = vmatprep.subr.mxu0 %v2766
        %3046 = vmatpush1.msra.mxu0 %v2765
        %3047 = vmatprep.subr.mxu0 %v2762
        %3048 = vmatpush1.msra.mxu0 %v2761
        %3049 = vmatprep.subr.mxu0 %v2758
        %3050 = vmatpush1.msra.mxu0 %v2757
        %3051 = vmatprep.subr.mxu0 0.0
        %3052 = vmatpush2.msra.mxu0 0.0
        %3053 = vmatprep.subr.mxu0 0.0
        %3054 = vmatpush2.msra.mxu0 0.0
        %3055 = vmatprep.subr.mxu0 0.0
        %3056 = vmatpush2.msra.mxu0 0.0
        %3057 = vmatprep.subr.mxu0 0.0
        %3058 = vmatpush2.msra.mxu0 0.0
        %3059 = vmatprep.subr.mxu0 0.0
        %3060 = vmatpush2.msra.mxu0 0.0
        %3061 = vmatprep.subr.mxu0 0.0
        %3062 = vmatpush2.msra.mxu0 0.0
        %3063 = vmatprep.subr.mxu0 0.0
        %3064 = vmatpush2.msra.mxu0 0.0
        %3065 = vmatprep.subr.mxu0 0.0
        %3066 = vmatpush2.msra.mxu0 0.0
        %3067 = vmatprep.subr.mxu0 0.0
        %3068 = vmatpush2.msra.mxu0 0.0
        %3069 = vmatprep.subr.mxu0 0.0
        %3070 = vmatpush2.msra.mxu0 0.0
        %3071 = vmatprep.subr.mxu0 0.0
        %3072 = vmatpush2.msra.mxu0 0.0
        %3073 = vmatprep.subr.mxu0 0.0
        %3074 = vmatpush2.msra.mxu0 0.0
        %3075 = vmatprep.subr.mxu0 0.0
        %3076 = vmatpush2.msra.mxu0 0.0
        %3077 = vmatprep.subr.mxu0 0.0
        %3078 = vmatpush2.msra.mxu0 0.0
        %3079 = vmatprep.subr.mxu0 0.0
        %3080 = vmatpush2.msra.mxu0 0.0
        %3081 = vmatprep.subr.mxu0 0.0
        %3082 = vmatpush2.msra.mxu0 0.0
        %3083 = vmatprep.mubr.f32.mxu0 0.0
        %3084 = vmatmul.mubr.f32.gmra.mxu0 %v2946
        %v3085 = vpop.f32.mrf.mxu0
        %v3086 = vadd.f32 0.0, %v3085
        %v3087 = vpop.f32.mrf.mxu0
        %v3088 = vadd.f32 0.0, %v3087
        %3089 = vdwg.mxu0
        %v3091 = vlaneseq
        %v3092 = vshrl.u32 %v3091, 7
        %v3093 = vsub.s32 0, %v3092
        %v3094 = vrot.slane %v2787, %v3093
        %v3095 = vlaneseq
        %v3096 = vshrl.u32 %v3095, 7
        %v3097 = vsub.s32 1, %v3096
        %v3098 = vrot.slane %v2787, %v3097
        %v3099 = vlaneseq
        %v3100 = vshrl.u32 %v3099, 7
        %v3101 = vsub.s32 2, %v3100
        %v3102 = vrot.slane %v2787, %v3101
        %v3103 = vlaneseq
        %v3104 = vshrl.u32 %v3103, 7
        %v3105 = vsub.s32 3, %v3104
        %v3106 = vrot.slane %v2787, %v3105
        %v3112 = vsel %vm2870, %v3015, 0
        %v3115 = vsel %vm2870, %v3017, 0
        %v3118 = vsel %vm2870, %v3086, 0
        %v3121 = vsel %vm2870, %v3088, 0
        %3123 = vmatprep.subr.mxu0 0.0
        %3124 = vmatpush1.msra.mxu0 0.0
        %3125 = vmatprep.subr.mxu0 0.0
        %3126 = vmatpush1.msra.mxu0 0.0
        %3127 = vmatprep.subr.mxu0 0.0
        %3128 = vmatpush1.msra.mxu0 0.0
        %3129 = vmatprep.subr.mxu0 0.0
        %3130 = vmatpush1.msra.mxu0 0.0
        %3131 = vmatprep.subr.mxu0 0.0
        %3132 = vmatpush1.msra.mxu0 0.0
        %3133 = vmatprep.subr.mxu0 0.0
        %3134 = vmatpush1.msra.mxu0 0.0
        %3135 = vmatprep.subr.mxu0 0.0
        %3136 = vmatpush1.msra.mxu0 0.0
        %3137 = vmatprep.subr.mxu0 0.0
        %3138 = vmatpush1.msra.mxu0 0.0
        %3139 = vmatprep.subr.mxu0 0.0
        %3140 = vmatpush1.msra.mxu0 0.0
        %3141 = vmatprep.subr.mxu0 0.0
        %3142 = vmatpush1.msra.mxu0 0.0
        %3143 = vmatprep.subr.mxu0 0.0
        %3144 = vmatpush1.msra.mxu0 0.0
        %3145 = vmatprep.subr.mxu0 0.0
        %3146 = vmatpush1.msra.mxu0 0.0
        %3147 = vmatprep.subr.mxu0 0.0
        %3148 = vmatpush1.msra.mxu0 0.0
        %3149 = vmatprep.subr.mxu0 0.0
        %3150 = vmatpush1.msra.mxu0 0.0
        %3151 = vmatprep.subr.mxu0 0.0
        %3152 = vmatpush1.msra.mxu0 0.0
        %3153 = vmatprep.subr.mxu0 %v3115
        %3154 = vmatpush1.msra.mxu0 %v3112
        %3155 = vmatprep.subr.mxu0 0.0
        %3156 = vmatpush2.msra.mxu0 0.0
        %3157 = vmatprep.subr.mxu0 0.0
        %3158 = vmatpush2.msra.mxu0 0.0
        %3159 = vmatprep.subr.mxu0 0.0
        %3160 = vmatpush2.msra.mxu0 0.0
        %3161 = vmatprep.subr.mxu0 0.0
        %3162 = vmatpush2.msra.mxu0 0.0
        %3163 = vmatprep.subr.mxu0 0.0
        %3164 = vmatpush2.msra.mxu0 0.0
        %3165 = vmatprep.subr.mxu0 0.0
        %3166 = vmatpush2.msra.mxu0 0.0
        %3167 = vmatprep.subr.mxu0 0.0
        %3168 = vmatpush2.msra.mxu0 0.0
        %3169 = vmatprep.subr.mxu0 0.0
        %3170 = vmatpush2.msra.mxu0 0.0
        %3171 = vmatprep.subr.mxu0 0.0
        %3172 = vmatpush2.msra.mxu0 0.0
        %3173 = vmatprep.subr.mxu0 0.0
        %3174 = vmatpush2.msra.mxu0 0.0
        %3175 = vmatprep.subr.mxu0 0.0
        %3176 = vmatpush2.msra.mxu0 0.0
        %3177 = vmatprep.subr.mxu0 0.0
        %3178 = vmatpush2.msra.mxu0 0.0
        %3179 = vmatprep.subr.mxu0 0.0
        %3180 = vmatpush2.msra.mxu0 0.0
        %3181 = vmatprep.subr.mxu0 0.0
        %3182 = vmatpush2.msra.mxu0 0.0
        %3183 = vmatprep.subr.mxu0 0.0
        %3184 = vmatpush2.msra.mxu0 0.0
        %3185 = vmatprep.subr.mxu0 0.0
        %3186 = vmatpush2.msra.mxu0 0.0
        %3187 = vmatprep.mubr.f32.mxu0 0.0
        %3188 = vmatmul.mubr.f32.gmra.mxu0 %v2868
        %v3189 = vpop.f32.mrf.mxu0
        %v3190 = vadd.f32 %v3094, %v3189
        %v3191 = vpop.f32.mrf.mxu0
        %v3192 = vadd.f32 %v3098, %v3191
        %3193 = vdwg.mxu0
        %3194 = vmatprep.subr.mxu0 0.0
        %3195 = vmatpush1.msra.mxu0 0.0
        %3196 = vmatprep.subr.mxu0 0.0
        %3197 = vmatpush1.msra.mxu0 0.0
        %3198 = vmatprep.subr.mxu0 0.0
        %3199 = vmatpush1.msra.mxu0 0.0
        %3200 = vmatprep.subr.mxu0 0.0
        %3201 = vmatpush1.msra.mxu0 0.0
        %3202 = vmatprep.subr.mxu0 0.0
        %3203 = vmatpush1.msra.mxu0 0.0
        %3204 = vmatprep.subr.mxu0 0.0
        %3205 = vmatpush1.msra.mxu0 0.0
        %3206 = vmatprep.subr.mxu0 0.0
        %3207 = vmatpush1.msra.mxu0 0.0
        %3208 = vmatprep.subr.mxu0 0.0
        %3209 = vmatpush1.msra.mxu0 0.0
        %3210 = vmatprep.subr.mxu0 0.0
        %3211 = vmatpush1.msra.mxu0 0.0
        %3212 = vmatprep.subr.mxu0 0.0
        %3213 = vmatpush1.msra.mxu0 0.0
        %3214 = vmatprep.subr.mxu0 0.0
        %3215 = vmatpush1.msra.mxu0 0.0
        %3216 = vmatprep.subr.mxu0 0.0
        %3217 = vmatpush1.msra.mxu0 0.0
        %3218 = vmatprep.subr.mxu0 0.0
        %3219 = vmatpush1.msra.mxu0 0.0
        %3220 = vmatprep.subr.mxu0 0.0
        %3221 = vmatpush1.msra.mxu0 0.0
        %3222 = vmatprep.subr.mxu0 0.0
        %3223 = vmatpush1.msra.mxu0 0.0
        %3224 = vmatprep.subr.mxu0 %v3121
        %3225 = vmatpush1.msra.mxu0 %v3118
        %3226 = vmatprep.subr.mxu0 0.0
        %3227 = vmatpush2.msra.mxu0 0.0
        %3228 = vmatprep.subr.mxu0 0.0
        %3229 = vmatpush2.msra.mxu0 0.0
        %3230 = vmatprep.subr.mxu0 0.0
        %3231 = vmatpush2.msra.mxu0 0.0
        %3232 = vmatprep.subr.mxu0 0.0
        %3233 = vmatpush2.msra.mxu0 0.0
        %3234 = vmatprep.subr.mxu0 0.0
        %3235 = vmatpush2.msra.mxu0 0.0
        %3236 = vmatprep.subr.mxu0 0.0
        %3237 = vmatpush2.msra.mxu0 0.0
        %3238 = vmatprep.subr.mxu0 0.0
        %3239 = vmatpush2.msra.mxu0 0.0
        %3240 = vmatprep.subr.mxu0 0.0
        %3241 = vmatpush2.msra.mxu0 0.0
        %3242 = vmatprep.subr.mxu0 0.0
        %3243 = vmatpush2.msra.mxu0 0.0
        %3244 = vmatprep.subr.mxu0 0.0
        %3245 = vmatpush2.msra.mxu0 0.0
        %3246 = vmatprep.subr.mxu0 0.0
        %3247 = vmatpush2.msra.mxu0 0.0
        %3248 = vmatprep.subr.mxu0 0.0
        %3249 = vmatpush2.msra.mxu0 0.0
        %3250 = vmatprep.subr.mxu0 0.0
        %3251 = vmatpush2.msra.mxu0 0.0
        %3252 = vmatprep.subr.mxu0 0.0
        %3253 = vmatpush2.msra.mxu0 0.0
        %3254 = vmatprep.subr.mxu0 0.0
        %3255 = vmatpush2.msra.mxu0 0.0
        %3256 = vmatprep.subr.mxu0 0.0
        %3257 = vmatpush2.msra.mxu0 0.0
        %3258 = vmatprep.mubr.f32.mxu0 0.0
        %3259 = vmatmul.mubr.f32.gmra.mxu0 %v2868
        %v3260 = vpop.f32.mrf.mxu0
        %v3261 = vadd.f32 %v3102, %v3260
        %v3262 = vpop.f32.mrf.mxu0
        %v3263 = vadd.f32 %v3106, %v3262
        %3264 = vdwg.mxu0
        %v3265 = vmax.f32 %v3190, 0.0
        %v3266 = vmax.f32 %v3192, 0.0
        %v3267 = vmax.f32 %v3261, 0.0
        %v3268 = vmax.f32 %v3263, 0.0
        %v3269 = vsel %vm2870, %v3265, -inf
        %v3270 = vsel %vm2870, %v3266, -inf
        %v3271 = vsel %vm2870, %v3267, -inf
        %vm3272 = vcmask 946176
        %v3273 = vsel %vm3272, %v3268, -inf
        %v3274 = vmax.f32 %v3269, %v3270
        %v3275 = vmax.f32 %v3271, %v3273
        %v3276 = vmax.f32 %v3274, %v3275
        %3277 = vmax.xlane.f32.xlu0 %v3276
        %v3278 = vpop.xlane.xlu0 %3277
        %v3279 = vsub.f32 %v3265, %v3278
        %v3280 = vsub.f32 %v3266, %v3278
        %v3281 = vsub.f32 %v3267, %v3278
        %v3282 = vsub.f32 %v3268, %v3278
        %v3283 = vmul.f32 %v3279, 1.442695
        %v3284 = vpow.pop %v3283
        %v3285 = vmul.f32 %v3280, 1.442695
        %v3286 = vpow.pop %v3285
        %v3287 = vmul.f32 %v3281, 1.442695
        %v3288 = vpow.pop %v3287
        %v3289 = vmul.f32 %v3282, 1.442695
        %v3290 = vpow.pop %v3289
        %v3291 = vsel %vm2870, %v3284, 0.0
        %v3292 = vsel %vm2870, %v3286, 0.0
        %v3293 = vadd.f32 %v3291, %v3292
        %v3294 = vsel %vm2870, %v3288, 0.0
        %v3295 = vadd.f32 %v3293, %v3294
        %v3296 = vsel %vm3272, %v3290, 0.0
        %v3297 = vadd.f32 %v3295, %v3296
        %3298 = vadd.xlane.f32.xlu0 %v3297
        %v3299 = vpop.xlane.xlu0 %3298
        %v3300 = vrcp.pop %v3299
        %v3301 = vmul.f32 1.0, %v3300
        %v3302 = vmul.f32 %v3284, %v3301
        %v3303 = vmul.f32 %v3286, %v3301
        %v3304 = vmul.f32 %v3288, %v3301
        %v3305 = vmul.f32 %v3290, %v3301
        %s3306 = scalar_lea.vmem %s2, 448
        %v3307 = vld [vmem:[%s3306] sm:$0xff]
        %v3308 = vld [vmem:[%s3306 + $0x8] sm:$0xff]
        %v3309 = vld [vmem:[%s3306 + $0x10] sm:$0xff]
        %v3310 = vld [vmem:[%s3306 + $0x18] sm:$0xff]
        %v3311 = vld [vmem:[%s3306 + $0x20] sm:$0xff]
        %v3312 = vld [vmem:[%s3306 + $0x28] sm:$0xff]
        %v3313 = vld [vmem:[%s3306 + $0x30] sm:$0xff]
        %v3314 = vld [vmem:[%s3306 + $0x38] sm:$0xff]
        %s3315 = scalar_lea.vmem %s3, 7
        %v3316 = vld [vmem:[%s3315] sm:$0x1]
        %v3317 = vld [vmem:[%s10] sm:$0xff]
        %v3318 = vld [vmem:[%s10 + $0x8] sm:$0xff]
        %v3319 = vld [vmem:[%s10 + $0x10] sm:$0xff]
        %v3320 = vld [vmem:[%s10 + $0x18] sm:$0xff]
        %v3321 = vld [vmem:[%s10 + $0x20] sm:$0xff]
        %v3322 = vld [vmem:[%s10 + $0x28] sm:$0xff]
        %v3323 = vld [vmem:[%s10 + $0x30] sm:$0xff]
        %v3324 = vld [vmem:[%s10 + $0x38] sm:$0xff]
        %v3325 = vld [vmem:[#allocation12] sm:$0x1]
        %3326 = vmatprep.subr.mxu0 0.0
        %3327 = vmatpush1.msra.mxu0 0.0
        %3328 = vmatprep.subr.mxu0 0.0
        %3329 = vmatpush1.msra.mxu0 0.0
        %3330 = vmatprep.subr.mxu0 0.0
        %3331 = vmatpush1.msra.mxu0 0.0
        %3332 = vmatprep.subr.mxu0 0.0
        %3333 = vmatpush1.msra.mxu0 0.0
        %3334 = vmatprep.subr.mxu0 0.0
        %3335 = vmatpush1.msra.mxu0 0.0
        %3336 = vmatprep.subr.mxu0 0.0
        %3337 = vmatpush1.msra.mxu0 0.0
        %3338 = vmatprep.subr.mxu0 0.0
        %3339 = vmatpush1.msra.mxu0 0.0
        %3340 = vmatprep.subr.mxu0 0.0
        %3341 = vmatpush1.msra.mxu0 0.0
        %3342 = vmatprep.subr.mxu0 0.0
        %3343 = vmatpush1.msra.mxu0 %v3314
        %3344 = vmatprep.subr.mxu0 0.0
        %3345 = vmatpush1.msra.mxu0 %v3313
        %3346 = vmatprep.subr.mxu0 0.0
        %3347 = vmatpush1.msra.mxu0 %v3312
        %3348 = vmatprep.subr.mxu0 0.0
        %3349 = vmatpush1.msra.mxu0 %v3311
        %3350 = vmatprep.subr.mxu0 0.0
        %3351 = vmatpush1.msra.mxu0 %v3310
        %3352 = vmatprep.subr.mxu0 0.0
        %3353 = vmatpush1.msra.mxu0 %v3309
        %3354 = vmatprep.subr.mxu0 0.0
        %3355 = vmatpush1.msra.mxu0 %v3308
        %3356 = vmatprep.subr.mxu0 0.0
        %3357 = vmatpush1.msra.mxu0 %v3307
        %3358 = vmatprep.subr.mxu0 0.0
        %3359 = vmatpush2.msra.mxu0 0.0
        %3360 = vmatprep.subr.mxu0 0.0
        %3361 = vmatpush2.msra.mxu0 0.0
        %3362 = vmatprep.subr.mxu0 0.0
        %3363 = vmatpush2.msra.mxu0 0.0
        %3364 = vmatprep.subr.mxu0 0.0
        %3365 = vmatpush2.msra.mxu0 0.0
        %3366 = vmatprep.subr.mxu0 0.0
        %3367 = vmatpush2.msra.mxu0 0.0
        %3368 = vmatprep.subr.mxu0 0.0
        %3369 = vmatpush2.msra.mxu0 0.0
        %3370 = vmatprep.subr.mxu0 0.0
        %3371 = vmatpush2.msra.mxu0 0.0
        %3372 = vmatprep.subr.mxu0 0.0
        %3373 = vmatpush2.msra.mxu0 0.0
        %3374 = vmatprep.subr.mxu0 0.0
        %3375 = vmatpush2.msra.mxu0 0.0
        %3376 = vmatprep.subr.mxu0 0.0
        %3377 = vmatpush2.msra.mxu0 0.0
        %3378 = vmatprep.subr.mxu0 0.0
        %3379 = vmatpush2.msra.mxu0 0.0
        %3380 = vmatprep.subr.mxu0 0.0
        %3381 = vmatpush2.msra.mxu0 0.0
        %3382 = vmatprep.subr.mxu0 0.0
        %3383 = vmatpush2.msra.mxu0 0.0
        %3384 = vmatprep.subr.mxu0 0.0
        %3385 = vmatpush2.msra.mxu0 0.0
        %3386 = vmatprep.subr.mxu0 0.0
        %3387 = vmatpush2.msra.mxu0 0.0
        %3388 = vmatprep.subr.mxu0 0.0
        %3389 = vmatpush2.msra.mxu0 0.0
        %3390 = vmatprep.mubr.f32.mxu0 0.0
        %3391 = vmatmul.mubr.f32.gmra.mxu0 %v2789
        %v3392 = vpop.f32.mrf.mxu0
        %v3393 = vadd.f32 0.0, %v3392
        %v3394 = vpop.f32.mrf.mxu0
        %3395 = vdwg.mxu0
        %v3397 = vlaneseq
        %v3398 = vshrl.u32 %v3397, 7
        %v3399 = vsub.s32 0, %v3398
        %v3400 = vrot.slane %v3316, %v3399
        %v3403 = vsel %vm2870, %v3393, 0
        %3405 = vmatprep.subr.mxu0 0.0
        %3406 = vmatpush1.msra.mxu0 0.0
        %3407 = vmatprep.subr.mxu0 0.0
        %3408 = vmatpush1.msra.mxu0 0.0
        %3409 = vmatprep.subr.mxu0 0.0
        %3410 = vmatpush1.msra.mxu0 0.0
        %3411 = vmatprep.subr.mxu0 0.0
        %3412 = vmatpush1.msra.mxu0 0.0
        %3413 = vmatprep.subr.mxu0 0.0
        %3414 = vmatpush1.msra.mxu0 0.0
        %3415 = vmatprep.subr.mxu0 0.0
        %3416 = vmatpush1.msra.mxu0 0.0
        %3417 = vmatprep.subr.mxu0 0.0
        %3418 = vmatpush1.msra.mxu0 0.0
        %3419 = vmatprep.subr.mxu0 0.0
        %3420 = vmatpush1.msra.mxu0 0.0
        %3421 = vmatprep.subr.mxu0 0.0
        %3422 = vmatpush1.msra.mxu0 0.0
        %3423 = vmatprep.subr.mxu0 0.0
        %3424 = vmatpush1.msra.mxu0 0.0
        %3425 = vmatprep.subr.mxu0 0.0
        %3426 = vmatpush1.msra.mxu0 0.0
        %3427 = vmatprep.subr.mxu0 0.0
        %3428 = vmatpush1.msra.mxu0 0.0
        %3429 = vmatprep.subr.mxu0 0.0
        %3430 = vmatpush1.msra.mxu0 0.0
        %3431 = vmatprep.subr.mxu0 0.0
        %3432 = vmatpush1.msra.mxu0 0.0
        %3433 = vmatprep.subr.mxu0 0.0
        %3434 = vmatpush1.msra.mxu0 0.0
        %3435 = vmatprep.subr.mxu0 0.0
        %3436 = vmatpush1.msra.mxu0 %v3403
        %3437 = vmatprep.subr.mxu0 0.0
        %3438 = vmatpush2.msra.mxu0 0.0
        %3439 = vmatprep.subr.mxu0 0.0
        %3440 = vmatpush2.msra.mxu0 0.0
        %3441 = vmatprep.subr.mxu0 0.0
        %3442 = vmatpush2.msra.mxu0 0.0
        %3443 = vmatprep.subr.mxu0 0.0
        %3444 = vmatpush2.msra.mxu0 0.0
        %3445 = vmatprep.subr.mxu0 0.0
        %3446 = vmatpush2.msra.mxu0 0.0
        %3447 = vmatprep.subr.mxu0 0.0
        %3448 = vmatpush2.msra.mxu0 0.0
        %3449 = vmatprep.subr.mxu0 0.0
        %3450 = vmatpush2.msra.mxu0 0.0
        %3451 = vmatprep.subr.mxu0 0.0
        %3452 = vmatpush2.msra.mxu0 0.0
        %3453 = vmatprep.subr.mxu0 0.0
        %3454 = vmatpush2.msra.mxu0 0.0
        %3455 = vmatprep.subr.mxu0 0.0
        %3456 = vmatpush2.msra.mxu0 0.0
        %3457 = vmatprep.subr.mxu0 0.0
        %3458 = vmatpush2.msra.mxu0 0.0
        %3459 = vmatprep.subr.mxu0 0.0
        %3460 = vmatpush2.msra.mxu0 0.0
        %3461 = vmatprep.subr.mxu0 0.0
        %3462 = vmatpush2.msra.mxu0 0.0
        %3463 = vmatprep.subr.mxu0 0.0
        %3464 = vmatpush2.msra.mxu0 0.0
        %3465 = vmatprep.subr.mxu0 0.0
        %3466 = vmatpush2.msra.mxu0 0.0
        %3467 = vmatprep.subr.mxu0 0.0
        %3468 = vmatpush2.msra.mxu0 0.0
        %3469 = vmatprep.mubr.f32.mxu0 0.0
        %3470 = vmatmul.mubr.f32.gmra.mxu0 %v2868
        %v3471 = vpop.f32.mrf.mxu0
        %v3472 = vadd.f32 %v3400, %v3471
        %v3473 = vpop.f32.mrf.mxu0
        %3474 = vdwg.mxu0
        %v3475 = vmax.f32 %v3472, 0.0
        %v3477 = vsel %vm644, %v3475, 0
        %3479 = vmatprep.subr.mxu0 0.0
        %3480 = vmatpush1.msra.mxu0 0.0
        %3481 = vmatprep.subr.mxu0 0.0
        %3482 = vmatpush1.msra.mxu0 0.0
        %3483 = vmatprep.subr.mxu0 0.0
        %3484 = vmatpush1.msra.mxu0 0.0
        %3485 = vmatprep.subr.mxu0 0.0
        %3486 = vmatpush1.msra.mxu0 0.0
        %3487 = vmatprep.subr.mxu0 0.0
        %3488 = vmatpush1.msra.mxu0 0.0
        %3489 = vmatprep.subr.mxu0 0.0
        %3490 = vmatpush1.msra.mxu0 0.0
        %3491 = vmatprep.subr.mxu0 0.0
        %3492 = vmatpush1.msra.mxu0 0.0
        %3493 = vmatprep.subr.mxu0 0.0
        %3494 = vmatpush1.msra.mxu0 0.0
        %3495 = vmatprep.subr.mxu0 0.0
        %3496 = vmatpush1.msra.mxu0 %v3324
        %3497 = vmatprep.subr.mxu0 0.0
        %3498 = vmatpush1.msra.mxu0 %v3323
        %3499 = vmatprep.subr.mxu0 0.0
        %3500 = vmatpush1.msra.mxu0 %v3322
        %3501 = vmatprep.subr.mxu0 0.0
        %3502 = vmatpush1.msra.mxu0 %v3321
        %3503 = vmatprep.subr.mxu0 0.0
        %3504 = vmatpush1.msra.mxu0 %v3320
        %3505 = vmatprep.subr.mxu0 0.0
        %3506 = vmatpush1.msra.mxu0 %v3319
        %3507 = vmatprep.subr.mxu0 0.0
        %3508 = vmatpush1.msra.mxu0 %v3318
        %3509 = vmatprep.subr.mxu0 0.0
        %3510 = vmatpush1.msra.mxu0 %v3317
        %3511 = vmatprep.subr.mxu0 0.0
        %3512 = vmatpush2.msra.mxu0 0.0
        %3513 = vmatprep.subr.mxu0 0.0
        %3514 = vmatpush2.msra.mxu0 0.0
        %3515 = vmatprep.subr.mxu0 0.0
        %3516 = vmatpush2.msra.mxu0 0.0
        %3517 = vmatprep.subr.mxu0 0.0
        %3518 = vmatpush2.msra.mxu0 0.0
        %3519 = vmatprep.subr.mxu0 0.0
        %3520 = vmatpush2.msra.mxu0 0.0
        %3521 = vmatprep.subr.mxu0 0.0
        %3522 = vmatpush2.msra.mxu0 0.0
        %3523 = vmatprep.subr.mxu0 0.0
        %3524 = vmatpush2.msra.mxu0 0.0
        %3525 = vmatprep.subr.mxu0 0.0
        %3526 = vmatpush2.msra.mxu0 0.0
        %3527 = vmatprep.subr.mxu0 0.0
        %3528 = vmatpush2.msra.mxu0 0.0
        %3529 = vmatprep.subr.mxu0 0.0
        %3530 = vmatpush2.msra.mxu0 0.0
        %3531 = vmatprep.subr.mxu0 0.0
        %3532 = vmatpush2.msra.mxu0 0.0
        %3533 = vmatprep.subr.mxu0 0.0
        %3534 = vmatpush2.msra.mxu0 0.0
        %3535 = vmatprep.subr.mxu0 0.0
        %3536 = vmatpush2.msra.mxu0 0.0
        %3537 = vmatprep.subr.mxu0 0.0
        %3538 = vmatpush2.msra.mxu0 0.0
        %3539 = vmatprep.subr.mxu0 0.0
        %3540 = vmatpush2.msra.mxu0 0.0
        %3541 = vmatprep.subr.mxu0 0.0
        %3542 = vmatpush2.msra.mxu0 0.0
        %3543 = vmatprep.mubr.f32.mxu0 0.0
        %3544 = vmatmul.mubr.f32.gmra.mxu0 %v3477
        %v3545 = vpop.f32.mrf.mxu0
        %v3546 = vadd.f32 0.0, %v3545
        %v3547 = vpop.f32.mrf.mxu0
        %3548 = vdwg.mxu0
        %v3550 = vlaneseq
        %v3551 = vshrl.u32 %v3550, 7
        %v3552 = vsub.s32 0, %v3551
        %v3553 = vrot.slane %v3325, %v3552
        %v3556 = vsel %vm2870, %v3546, 0
        %3558 = vmatprep.subr.mxu0 0.0
        %3559 = vmatpush1.msra.mxu0 0.0
        %3560 = vmatprep.subr.mxu0 0.0
        %3561 = vmatpush1.msra.mxu0 0.0
        %3562 = vmatprep.subr.mxu0 0.0
        %3563 = vmatpush1.msra.mxu0 0.0
        %3564 = vmatprep.subr.mxu0 0.0
        %3565 = vmatpush1.msra.mxu0 0.0
        %3566 = vmatprep.subr.mxu0 0.0
        %3567 = vmatpush1.msra.mxu0 0.0
        %3568 = vmatprep.subr.mxu0 0.0
        %3569 = vmatpush1.msra.mxu0 0.0
        %3570 = vmatprep.subr.mxu0 0.0
        %3571 = vmatpush1.msra.mxu0 0.0
        %3572 = vmatprep.subr.mxu0 0.0
        %3573 = vmatpush1.msra.mxu0 0.0
        %3574 = vmatprep.subr.mxu0 0.0
        %3575 = vmatpush1.msra.mxu0 0.0
        %3576 = vmatprep.subr.mxu0 0.0
        %3577 = vmatpush1.msra.mxu0 0.0
        %3578 = vmatprep.subr.mxu0 0.0
        %3579 = vmatpush1.msra.mxu0 0.0
        %3580 = vmatprep.subr.mxu0 0.0
        %3581 = vmatpush1.msra.mxu0 0.0
        %3582 = vmatprep.subr.mxu0 0.0
        %3583 = vmatpush1.msra.mxu0 0.0
        %3584 = vmatprep.subr.mxu0 0.0
        %3585 = vmatpush1.msra.mxu0 0.0
        %3586 = vmatprep.subr.mxu0 0.0
        %3587 = vmatpush1.msra.mxu0 0.0
        %3588 = vmatprep.subr.mxu0 0.0
        %3589 = vmatpush1.msra.mxu0 %v3556
        %3590 = vmatprep.subr.mxu0 0.0
        %3591 = vmatpush2.msra.mxu0 0.0
        %3592 = vmatprep.subr.mxu0 0.0
        %3593 = vmatpush2.msra.mxu0 0.0
        %3594 = vmatprep.subr.mxu0 0.0
        %3595 = vmatpush2.msra.mxu0 0.0
        %3596 = vmatprep.subr.mxu0 0.0
        %3597 = vmatpush2.msra.mxu0 0.0
        %3598 = vmatprep.subr.mxu0 0.0
        %3599 = vmatpush2.msra.mxu0 0.0
        %3600 = vmatprep.subr.mxu0 0.0
        %3601 = vmatpush2.msra.mxu0 0.0
        %3602 = vmatprep.subr.mxu0 0.0
        %3603 = vmatpush2.msra.mxu0 0.0
        %3604 = vmatprep.subr.mxu0 0.0
        %3605 = vmatpush2.msra.mxu0 0.0
        %3606 = vmatprep.subr.mxu0 0.0
        %3607 = vmatpush2.msra.mxu0 0.0
        %3608 = vmatprep.subr.mxu0 0.0
        %3609 = vmatpush2.msra.mxu0 0.0
        %3610 = vmatprep.subr.mxu0 0.0
        %3611 = vmatpush2.msra.mxu0 0.0
        %3612 = vmatprep.subr.mxu0 0.0
        %3613 = vmatpush2.msra.mxu0 0.0
        %3614 = vmatprep.subr.mxu0 0.0
        %3615 = vmatpush2.msra.mxu0 0.0
        %3616 = vmatprep.subr.mxu0 0.0
        %3617 = vmatpush2.msra.mxu0 0.0
        %3618 = vmatprep.subr.mxu0 0.0
        %3619 = vmatpush2.msra.mxu0 0.0
        %3620 = vmatprep.subr.mxu0 0.0
        %3621 = vmatpush2.msra.mxu0 0.0
        %3622 = vmatprep.mubr.f32.mxu0 0.0
        %3623 = vmatmul.mubr.f32.gmra.mxu0 %v2868
        %v3624 = vpop.f32.mrf.mxu0
        %v3625 = vadd.f32 %v3553, %v3624
        %v3626 = vpop.f32.mrf.mxu0
        %3627 = vdwg.mxu0
        %v3628 = vmax.f32 %v3625, 0.0
        %vm3629 = vcmask 949248
        %v3631 = vsel %vm3629, %v3305, 0
        %3633 = vmatprep.subr.mxu0 0.0
        %3634 = vmatpush1.xpose.msra.mxu0 0.0
        %3635 = vmatprep.subr.mxu0 0.0
        %3636 = vmatpush1.xpose.msra.mxu0 0.0
        %3637 = vmatprep.subr.mxu0 0.0
        %3638 = vmatpush1.xpose.msra.mxu0 0.0
        %3639 = vmatprep.subr.mxu0 0.0
        %3640 = vmatpush1.xpose.msra.mxu0 0.0
        %3641 = vmatprep.subr.mxu0 0.0
        %3642 = vmatpush1.xpose.msra.mxu0 0.0
        %3643 = vmatprep.subr.mxu0 0.0
        %3644 = vmatpush1.xpose.msra.mxu0 0.0
        %3645 = vmatprep.subr.mxu0 0.0
        %3646 = vmatpush1.xpose.msra.mxu0 0.0
        %3647 = vmatprep.subr.mxu0 0.0
        %3648 = vmatpush1.xpose.msra.mxu0 0.0
        %3649 = vmatprep.subr.mxu0 0.0
        %3650 = vmatpush1.xpose.msra.mxu0 0.0
        %3651 = vmatprep.subr.mxu0 0.0
        %3652 = vmatpush1.xpose.msra.mxu0 0.0
        %3653 = vmatprep.subr.mxu0 0.0
        %3654 = vmatpush1.xpose.msra.mxu0 0.0
        %3655 = vmatprep.subr.mxu0 0.0
        %3656 = vmatpush1.xpose.msra.mxu0 0.0
        %3657 = vmatprep.subr.mxu0 0.0
        %3658 = vmatpush1.xpose.msra.mxu0 0.0
        %3659 = vmatprep.subr.mxu0 0.0
        %3660 = vmatpush1.xpose.msra.mxu0 0.0
        %3661 = vmatprep.subr.mxu0 0.0
        %3662 = vmatpush1.xpose.msra.mxu0 0.0
        %3663 = vmatprep.subr.mxu0 %v3303
        %3664 = vmatpush1.xpose.msra.mxu0 %v3302
        %3665 = vmatprep.subr.mxu0 0.0
        %3666 = vmatpush2.xpose.msra.mxu0 0.0
        %3667 = vmatprep.subr.mxu0 0.0
        %3668 = vmatpush2.xpose.msra.mxu0 0.0
        %3669 = vmatprep.subr.mxu0 0.0
        %3670 = vmatpush2.xpose.msra.mxu0 0.0
        %3671 = vmatprep.subr.mxu0 0.0
        %3672 = vmatpush2.xpose.msra.mxu0 0.0
        %3673 = vmatprep.subr.mxu0 0.0
        %3674 = vmatpush2.xpose.msra.mxu0 0.0
        %3675 = vmatprep.subr.mxu0 0.0
        %3676 = vmatpush2.xpose.msra.mxu0 0.0
        %3677 = vmatprep.subr.mxu0 0.0
        %3678 = vmatpush2.xpose.msra.mxu0 0.0
        %3679 = vmatprep.subr.mxu0 0.0
        %3680 = vmatpush2.xpose.msra.mxu0 0.0
        %3681 = vmatprep.subr.mxu0 0.0
        %3682 = vmatpush2.xpose.msra.mxu0 0.0
        %3683 = vmatprep.subr.mxu0 0.0
        %3684 = vmatpush2.xpose.msra.mxu0 0.0
        %3685 = vmatprep.subr.mxu0 0.0
        %3686 = vmatpush2.xpose.msra.mxu0 0.0
        %3687 = vmatprep.subr.mxu0 0.0
        %3688 = vmatpush2.xpose.msra.mxu0 0.0
        %3689 = vmatprep.subr.mxu0 0.0
        %3690 = vmatpush2.xpose.msra.mxu0 0.0
        %3691 = vmatprep.subr.mxu0 0.0
        %3692 = vmatpush2.xpose.msra.mxu0 0.0
        %3693 = vmatprep.subr.mxu0 0.0
        %3694 = vmatpush2.xpose.msra.mxu0 0.0
        %3695 = vmatprep.subr.mxu0 0.0
        %3696 = vmatpush2.xpose.msra.mxu0 0.0
        %3697 = vmatprep.mubr.f32.mxu0 %v3303
        %3698 = vmatmul.mubr.f32.gmra.mxu0 %v3302
        %v3699 = vpop.f32.mrf.mxu0
        %v3700 = vadd.f32 0.0, %v3699
        %v3701 = vpop.f32.mrf.mxu0
        %3702 = vdwg.mxu0
        %3703 = vmatprep.subr.mxu0 0.0
        %3704 = vmatpush1.xpose.msra.mxu0 0.0
        %3705 = vmatprep.subr.mxu0 0.0
        %3706 = vmatpush1.xpose.msra.mxu0 0.0
        %3707 = vmatprep.subr.mxu0 0.0
        %3708 = vmatpush1.xpose.msra.mxu0 0.0
        %3709 = vmatprep.subr.mxu0 0.0
        %3710 = vmatpush1.xpose.msra.mxu0 0.0
        %3711 = vmatprep.subr.mxu0 0.0
        %3712 = vmatpush1.xpose.msra.mxu0 0.0
        %3713 = vmatprep.subr.mxu0 0.0
        %3714 = vmatpush1.xpose.msra.mxu0 0.0
        %3715 = vmatprep.subr.mxu0 0.0
        %3716 = vmatpush1.xpose.msra.mxu0 0.0
        %3717 = vmatprep.subr.mxu0 0.0
        %3718 = vmatpush1.xpose.msra.mxu0 0.0
        %3719 = vmatprep.subr.mxu0 0.0
        %3720 = vmatpush1.xpose.msra.mxu0 0.0
        %3721 = vmatprep.subr.mxu0 0.0
        %3722 = vmatpush1.xpose.msra.mxu0 0.0
        %3723 = vmatprep.subr.mxu0 0.0
        %3724 = vmatpush1.xpose.msra.mxu0 0.0
        %3725 = vmatprep.subr.mxu0 0.0
        %3726 = vmatpush1.xpose.msra.mxu0 0.0
        %3727 = vmatprep.subr.mxu0 0.0
        %3728 = vmatpush1.xpose.msra.mxu0 0.0
        %3729 = vmatprep.subr.mxu0 0.0
        %3730 = vmatpush1.xpose.msra.mxu0 0.0
        %3731 = vmatprep.subr.mxu0 0.0
        %3732 = vmatpush1.xpose.msra.mxu0 0.0
        %3733 = vmatprep.subr.mxu0 %v3631
        %3734 = vmatpush1.xpose.msra.mxu0 %v3304
        %3735 = vmatprep.subr.mxu0 0.0
        %3736 = vmatpush2.xpose.msra.mxu0 0.0
        %3737 = vmatprep.subr.mxu0 0.0
        %3738 = vmatpush2.xpose.msra.mxu0 0.0
        %3739 = vmatprep.subr.mxu0 0.0
        %3740 = vmatpush2.xpose.msra.mxu0 0.0
        %3741 = vmatprep.subr.mxu0 0.0
        %3742 = vmatpush2.xpose.msra.mxu0 0.0
        %3743 = vmatprep.subr.mxu0 0.0
        %3744 = vmatpush2.xpose.msra.mxu0 0.0
        %3745 = vmatprep.subr.mxu0 0.0
        %3746 = vmatpush2.xpose.msra.mxu0 0.0
        %3747 = vmatprep.subr.mxu0 0.0
        %3748 = vmatpush2.xpose.msra.mxu0 0.0
        %3749 = vmatprep.subr.mxu0 0.0
        %3750 = vmatpush2.xpose.msra.mxu0 0.0
        %3751 = vmatprep.subr.mxu0 0.0
        %3752 = vmatpush2.xpose.msra.mxu0 0.0
        %3753 = vmatprep.subr.mxu0 0.0
        %3754 = vmatpush2.xpose.msra.mxu0 0.0
        %3755 = vmatprep.subr.mxu0 0.0
        %3756 = vmatpush2.xpose.msra.mxu0 0.0
        %3757 = vmatprep.subr.mxu0 0.0
        %3758 = vmatpush2.xpose.msra.mxu0 0.0
        %3759 = vmatprep.subr.mxu0 0.0
        %3760 = vmatpush2.xpose.msra.mxu0 0.0
        %3761 = vmatprep.subr.mxu0 0.0
        %3762 = vmatpush2.xpose.msra.mxu0 0.0
        %3763 = vmatprep.subr.mxu0 0.0
        %3764 = vmatpush2.xpose.msra.mxu0 0.0
        %3765 = vmatprep.subr.mxu0 0.0
        %3766 = vmatpush2.xpose.msra.mxu0 0.0
        %3767 = vmatprep.mubr.f32.mxu0 %v3631
        %3768 = vmatmul.mubr.f32.gmra.mxu0 %v3304
        %v3769 = vpop.f32.mrf.mxu0
        %v3770 = vadd.f32 %v3700, %v3769
        %v3771 = vpop.f32.mrf.mxu0
        %3772 = vdwg.mxu0
        %v3773 = vsub.f32 %v2740, %v3770
        %v3774 = vmul.f32 %v3773, %v3773
        %vm3775 = vcmask 36864
        %v3776 = vsel %vm3775, %v3774, 0.0
        %3777 = vadd.xlane.f32.xlu0 %v3776
        %v3778 = vpop.xlane.xlu0 %3777
        %v3779 = vrot.slane %v3778, 4
        %v3780 = vadd.f32 %v3778, %v3779
        %v3781 = vrot.slane %v3780, 2
        %v3782 = vadd.f32 %v3780, %v3781
        %v3783 = vrot.slane %v3782, 1
        %v3784 = vadd.f32 %v3782, %v3783
        %s3785 = vtos %v3784
        %v3786 = vsub.f32 0.0, %v3302
        %v3787 = vsub.f32 0.0, %v3303
        %v3788 = vsub.f32 0.0, %v3304
        %v3789 = vsub.f32 0.0, %v3305
        %v3790 = vadd.f32 %v3302, 1e-15
        %v3791 = vadd.f32 %v3303, 1e-15
        %v3792 = vadd.f32 %v3304, 1e-15
        %v3793 = vadd.f32 %v3305, 1e-15
        %v3794 = vlog2.pop %v3790
        %v3795 = vmul.f32 %v3794, 0.6931472
        %v3796 = vlog2.pop %v3791
        %v3797 = vmul.f32 %v3796, 0.6931472
        %v3798 = vlog2.pop %v3792
        %v3799 = vmul.f32 %v3798, 0.6931472
        %v3800 = vlog2.pop %v3793
        %v3801 = vmul.f32 %v3800, 0.6931472
        %v3802 = vmul.f32 %v3786, %v3795
        %v3803 = vmul.f32 %v3787, %v3797
        %v3804 = vmul.f32 %v3788, %v3799
        %v3805 = vmul.f32 %v3789, %v3801
        %v3806 = vsel %vm2870, %v3802, 0.0
        %v3807 = vsel %vm2870, %v3803, 0.0
        %v3808 = vadd.f32 %v3806, %v3807
        %v3809 = vsel %vm2870, %v3804, 0.0
        %v3810 = vadd.f32 %v3808, %v3809
        %v3811 = vsel %vm3272, %v3805, 0.0
        %v3812 = vadd.f32 %v3810, %v3811
        %3813 = vadd.xlane.f32.xlu0 %v3812
        %v3814 = vpop.xlane.xlu0 %3813
        %v3815 = vrot.slane %v3814, 4
        %v3816 = vadd.f32 %v3814, %v3815
        %v3817 = vrot.slane %v3816, 2
        %v3818 = vadd.f32 %v3816, %v3817
        %v3819 = vrot.slane %v3818, 1
        %v3820 = vadd.f32 %v3818, %v3819
        %s3821 = vtos %v3820
        %3822 = vxpose.xlu0.b32.start [1/16] %v3628, 128
        %3823 = vxpose.xlu0.b32.cont [2/16] 0.0, 128
        %3824 = vxpose.xlu0.b32.cont [3/16] 0.0, 128
        %3825 = vxpose.xlu0.b32.cont [4/16] 0.0, 128
        %3826 = vxpose.xlu0.b32.cont [5/16] 0.0, 128
        %3827 = vxpose.xlu0.b32.cont [6/16] 0.0, 128
        %3828 = vxpose.xlu0.b32.cont [7/16] 0.0, 128
        %3829 = vxpose.xlu0.b32.cont [8/16] 0.0, 128
        %3830 = vxpose.xlu0.b32.cont [9/16] 0.0, 128
        %3831 = vxpose.xlu0.b32.cont [10/16] 0.0, 128
        %3832 = vxpose.xlu0.b32.cont [11/16] 0.0, 128
        %3833 = vxpose.xlu0.b32.cont [12/16] 0.0, 128
        %3834 = vxpose.xlu0.b32.cont [13/16] 0.0, 128
        %3835 = vxpose.xlu0.b32.cont [14/16] 0.0, 128
        %3836 = vxpose.xlu0.b32.cont [15/16] 0.0, 128
        %3837 = vxpose.xlu0.b32.end [16/16] 0.0, 128
        %v3838 = vpop.trf.xlu0
        %v3839 = vpop.trf.xlu0
        %v3840 = vpop.trf.xlu0
        %v3841 = vpop.trf.xlu0
        %v3842 = vpop.trf.xlu0
        %v3843 = vpop.trf.xlu0
        %v3844 = vpop.trf.xlu0
        %v3845 = vpop.trf.xlu0
        %v3846 = vpop.trf.xlu0
        %v3847 = vpop.trf.xlu0
        %v3848 = vpop.trf.xlu0
        %v3849 = vpop.trf.xlu0
        %v3850 = vpop.trf.xlu0
        %v3851 = vpop.trf.xlu0
        %v3852 = vpop.trf.xlu0
        %v3853 = vpop.trf.xlu0
        %v3855 = vsel %vm2385, %v3838, 0
        %v3858 = vsel %vm2385, %v3839, 0
        %v3861 = vsel %vm2385, %v3840, 0
        %v3864 = vsel %vm2870, %v3302, 0
        %v3867 = vsel %vm2870, %v3303, 0
        %v3870 = vsel %vm2870, %v3304, 0
        %v3872 = vsel %vm2870, %v3305, 0
        %3874 = vmatprep.subr.mxu0 0.0
        %3875 = vmatpush1.msra.mxu0 0.0
        %3876 = vmatprep.subr.mxu0 0.0
        %3877 = vmatpush1.msra.mxu0 0.0
        %3878 = vmatprep.subr.mxu0 0.0
        %3879 = vmatpush1.msra.mxu0 0.0
        %3880 = vmatprep.subr.mxu0 0.0
        %3881 = vmatpush1.msra.mxu0 0.0
        %3882 = vmatprep.subr.mxu0 0.0
        %3883 = vmatpush1.msra.mxu0 0.0
        %3884 = vmatprep.subr.mxu0 0.0
        %3885 = vmatpush1.msra.mxu0 0.0
        %3886 = vmatprep.subr.mxu0 0.0
        %3887 = vmatpush1.msra.mxu0 0.0
        %3888 = vmatprep.subr.mxu0 0.0
        %3889 = vmatpush1.msra.mxu0 0.0
        %3890 = vmatprep.subr.mxu0 0.0
        %3891 = vmatpush1.msra.mxu0 0.0
        %3892 = vmatprep.subr.mxu0 0.0
        %3893 = vmatpush1.msra.mxu0 0.0
        %3894 = vmatprep.subr.mxu0 0.0
        %3895 = vmatpush1.msra.mxu0 0.0
        %3896 = vmatprep.subr.mxu0 0.0
        %3897 = vmatpush1.msra.mxu0 0.0
        %3898 = vmatprep.subr.mxu0 0.0
        %3899 = vmatpush1.msra.mxu0 0.0
        %3900 = vmatprep.subr.mxu0 0.0
        %3901 = vmatpush1.msra.mxu0 0.0
        %3902 = vmatprep.subr.mxu0 0.0
        %3903 = vmatpush1.msra.mxu0 0.0
        %3904 = vmatprep.subr.mxu0 %v3867
        %3905 = vmatpush1.msra.mxu0 %v3864
        %3906 = vmatprep.subr.mxu0 0.0
        %3907 = vmatpush2.msra.mxu0 0.0
        %3908 = vmatprep.subr.mxu0 0.0
        %3909 = vmatpush2.msra.mxu0 0.0
        %3910 = vmatprep.subr.mxu0 0.0
        %3911 = vmatpush2.msra.mxu0 0.0
        %3912 = vmatprep.subr.mxu0 0.0
        %3913 = vmatpush2.msra.mxu0 0.0
        %3914 = vmatprep.subr.mxu0 0.0
        %3915 = vmatpush2.msra.mxu0 0.0
        %3916 = vmatprep.subr.mxu0 0.0
        %3917 = vmatpush2.msra.mxu0 0.0
        %3918 = vmatprep.subr.mxu0 0.0
        %3919 = vmatpush2.msra.mxu0 0.0
        %3920 = vmatprep.subr.mxu0 0.0
        %3921 = vmatpush2.msra.mxu0 0.0
        %3922 = vmatprep.subr.mxu0 0.0
        %3923 = vmatpush2.msra.mxu0 0.0
        %3924 = vmatprep.subr.mxu0 0.0
        %3925 = vmatpush2.msra.mxu0 0.0
        %3926 = vmatprep.subr.mxu0 0.0
        %3927 = vmatpush2.msra.mxu0 0.0
        %3928 = vmatprep.subr.mxu0 0.0
        %3929 = vmatpush2.msra.mxu0 0.0
        %3930 = vmatprep.subr.mxu0 0.0
        %3931 = vmatpush2.msra.mxu0 0.0
        %3932 = vmatprep.subr.mxu0 0.0
        %3933 = vmatpush2.msra.mxu0 0.0
        %3934 = vmatprep.subr.mxu0 0.0
        %3935 = vmatpush2.msra.mxu0 0.0
        %3936 = vmatprep.subr.mxu0 0.0
        %3937 = vmatpush2.msra.mxu0 0.0
        %3938 = vmatprep.mubr.f32.mxu0 0.0
        %3939 = vmatmul.mubr.f32.gmra.mxu0 %v3855
        %v3940 = vpop.f32.mrf.mxu0
        %v3941 = vadd.f32 0.0, %v3940
        %v3942 = vpop.f32.mrf.mxu0
        %v3943 = vadd.f32 0.0, %v3942
        %3944 = vmatprep.mubr.f32.mxu0 0.0
        %3945 = vmatmul.mubr.f32.gmra.mxu0 %v3858
        %v3946 = vpop.f32.mrf.mxu0
        %v3947 = vadd.f32 0.0, %v3946
        %v3948 = vpop.f32.mrf.mxu0
        %v3949 = vadd.f32 0.0, %v3948
        %3950 = vmatprep.mubr.f32.mxu0 0.0
        %3951 = vmatmul.mubr.f32.gmra.mxu0 %v3861
        %v3952 = vpop.f32.mrf.mxu0
        %v3953 = vadd.f32 0.0, %v3952
        %v3954 = vpop.f32.mrf.mxu0
        %v3955 = vadd.f32 0.0, %v3954
        %3956 = vdwg.mxu0
        %3957 = vmatprep.subr.mxu0 0.0
        %3958 = vmatpush1.msra.mxu0 0.0
        %3959 = vmatprep.subr.mxu0 0.0
        %3960 = vmatpush1.msra.mxu0 0.0
        %3961 = vmatprep.subr.mxu0 0.0
        %3962 = vmatpush1.msra.mxu0 0.0
        %3963 = vmatprep.subr.mxu0 0.0
        %3964 = vmatpush1.msra.mxu0 0.0
        %3965 = vmatprep.subr.mxu0 0.0
        %3966 = vmatpush1.msra.mxu0 0.0
        %3967 = vmatprep.subr.mxu0 0.0
        %3968 = vmatpush1.msra.mxu0 0.0
        %3969 = vmatprep.subr.mxu0 0.0
        %3970 = vmatpush1.msra.mxu0 0.0
        %3971 = vmatprep.subr.mxu0 0.0
        %3972 = vmatpush1.msra.mxu0 0.0
        %3973 = vmatprep.subr.mxu0 0.0
        %3974 = vmatpush1.msra.mxu0 0.0
        %3975 = vmatprep.subr.mxu0 0.0
        %3976 = vmatpush1.msra.mxu0 0.0
        %3977 = vmatprep.subr.mxu0 0.0
        %3978 = vmatpush1.msra.mxu0 0.0
        %3979 = vmatprep.subr.mxu0 0.0
        %3980 = vmatpush1.msra.mxu0 0.0
        %3981 = vmatprep.subr.mxu0 0.0
        %3982 = vmatpush1.msra.mxu0 0.0
        %3983 = vmatprep.subr.mxu0 0.0
        %3984 = vmatpush1.msra.mxu0 0.0
        %3985 = vmatprep.subr.mxu0 0.0
        %3986 = vmatpush1.msra.mxu0 0.0
        %3987 = vmatprep.subr.mxu0 %v3872
        %3988 = vmatpush1.msra.mxu0 %v3870
        %3989 = vmatprep.subr.mxu0 0.0
        %3990 = vmatpush2.msra.mxu0 0.0
        %3991 = vmatprep.subr.mxu0 0.0
        %3992 = vmatpush2.msra.mxu0 0.0
        %3993 = vmatprep.subr.mxu0 0.0
        %3994 = vmatpush2.msra.mxu0 0.0
        %3995 = vmatprep.subr.mxu0 0.0
        %3996 = vmatpush2.msra.mxu0 0.0
        %3997 = vmatprep.subr.mxu0 0.0
        %3998 = vmatpush2.msra.mxu0 0.0
        %3999 = vmatprep.subr.mxu0 0.0
        %4000 = vmatpush2.msra.mxu0 0.0
        %4001 = vmatprep.subr.mxu0 0.0
        %4002 = vmatpush2.msra.mxu0 0.0
        %4003 = vmatprep.subr.mxu0 0.0
        %4004 = vmatpush2.msra.mxu0 0.0
        %4005 = vmatprep.subr.mxu0 0.0
        %4006 = vmatpush2.msra.mxu0 0.0
        %4007 = vmatprep.subr.mxu0 0.0
        %4008 = vmatpush2.msra.mxu0 0.0
        %4009 = vmatprep.subr.mxu0 0.0
        %4010 = vmatpush2.msra.mxu0 0.0
        %4011 = vmatprep.subr.mxu0 0.0
        %4012 = vmatpush2.msra.mxu0 0.0
        %4013 = vmatprep.subr.mxu0 0.0
        %4014 = vmatpush2.msra.mxu0 0.0
        %4015 = vmatprep.subr.mxu0 0.0
        %4016 = vmatpush2.msra.mxu0 0.0
        %4017 = vmatprep.subr.mxu0 0.0
        %4018 = vmatpush2.msra.mxu0 0.0
        %4019 = vmatprep.subr.mxu0 0.0
        %4020 = vmatpush2.msra.mxu0 0.0
        %4021 = vmatprep.mubr.f32.mxu0 0.0
        %4022 = vmatmul.mubr.f32.gmra.mxu0 %v3855
        %v4023 = vpop.f32.mrf.mxu0
        %v4024 = vadd.f32 0.0, %v4023
        %v4025 = vpop.f32.mrf.mxu0
        %v4026 = vadd.f32 0.0, %v4025
        %4027 = vmatprep.mubr.f32.mxu0 0.0
        %4028 = vmatmul.mubr.f32.gmra.mxu0 %v3858
        %v4029 = vpop.f32.mrf.mxu0
        %v4030 = vadd.f32 0.0, %v4029
        %v4031 = vpop.f32.mrf.mxu0
        %v4032 = vadd.f32 0.0, %v4031
        %4033 = vmatprep.mubr.f32.mxu0 0.0
        %4034 = vmatmul.mubr.f32.gmra.mxu0 %v3861
        %v4035 = vpop.f32.mrf.mxu0
        %v4036 = vadd.f32 0.0, %v4035
        %v4037 = vpop.f32.mrf.mxu0
        %v4038 = vadd.f32 0.0, %v4037
        %4039 = vdwg.mxu0
        %4040 = vst [vmem:[%s604] sm:$0xff] %v3941
        %4041 = vst [vmem:[%s604 + $0x8] sm:$0xff] %v3943
        %4042 = vst [vmem:[%s604 + $0x10] sm:$0xff] %v4024
        %4043 = vst.msk [vmem:[%s604 + $0x18] sm:$0xff] %vm3629, %v4026
        %4044 = vst [vmem:[%s604 + $0x20] sm:$0xff] %v3947
        %4045 = vst [vmem:[%s604 + $0x28] sm:$0xff] %v3949
        %4046 = vst [vmem:[%s604 + $0x30] sm:$0xff] %v4030
        %4047 = vst.msk [vmem:[%s604 + $0x38] sm:$0xff] %vm3629, %v4032
        %4048 = vst [vmem:[%s604 + $0x40] sm:$0xf] %v3953
        %4049 = vst [vmem:[%s604 + $0x48] sm:$0xf] %v3955
        %4050 = vst [vmem:[%s604 + $0x50] sm:$0xf] %v4036
        %vm4051 = vcmask 945152
        %4052 = vst.msk [vmem:[%s604 + $0x58] sm:$0xf] %vm4051, %v4038
        %4053 = vxpose.xlu0.b32.start [1/16] %v3302, 128
        %4054 = vxpose.xlu0.b32.cont [2/16] 0.0, 128
        %4055 = vxpose.xlu0.b32.cont [3/16] 0.0, 128
        %4056 = vxpose.xlu0.b32.cont [4/16] 0.0, 128
        %4057 = vxpose.xlu0.b32.cont [5/16] 0.0, 128
        %4058 = vxpose.xlu0.b32.cont [6/16] 0.0, 128
        %4059 = vxpose.xlu0.b32.cont [7/16] 0.0, 128
        %4060 = vxpose.xlu0.b32.cont [8/16] 0.0, 128
        %4061 = vxpose.xlu0.b32.cont [9/16] 0.0, 128
        %4062 = vxpose.xlu0.b32.cont [10/16] 0.0, 128
        %4063 = vxpose.xlu0.b32.cont [11/16] 0.0, 128
        %4064 = vxpose.xlu0.b32.cont [12/16] 0.0, 128
        %4065 = vxpose.xlu0.b32.cont [13/16] 0.0, 128
        %4066 = vxpose.xlu0.b32.cont [14/16] 0.0, 128
        %4067 = vxpose.xlu0.b32.cont [15/16] 0.0, 128
        %4068 = vxpose.xlu0.b32.end [16/16] 0.0, 128
        %v4069 = vpop.trf.xlu0
        %v4070 = vpop.trf.xlu0
        %v4071 = vpop.trf.xlu0
        %v4072 = vpop.trf.xlu0
        %v4073 = vpop.trf.xlu0
        %v4074 = vpop.trf.xlu0
        %v4075 = vpop.trf.xlu0
        %v4076 = vpop.trf.xlu0
        %v4077 = vpop.trf.xlu0
        %v4078 = vpop.trf.xlu0
        %v4079 = vpop.trf.xlu0
        %v4080 = vpop.trf.xlu0
        %v4081 = vpop.trf.xlu0
        %v4082 = vpop.trf.xlu0
        %v4083 = vpop.trf.xlu0
        %v4084 = vpop.trf.xlu0
        %4085 = vxpose.xlu0.b32.start [1/16] %v3303, 128
        %4086 = vxpose.xlu0.b32.cont [2/16] 0.0, 128
        %4087 = vxpose.xlu0.b32.cont [3/16] 0.0, 128
        %4088 = vxpose.xlu0.b32.cont [4/16] 0.0, 128
        %4089 = vxpose.xlu0.b32.cont [5/16] 0.0, 128
        %4090 = vxpose.xlu0.b32.cont [6/16] 0.0, 128
        %4091 = vxpose.xlu0.b32.cont [7/16] 0.0, 128
        %4092 = vxpose.xlu0.b32.cont [8/16] 0.0, 128
        %4093 = vxpose.xlu0.b32.cont [9/16] 0.0, 128
        %4094 = vxpose.xlu0.b32.cont [10/16] 0.0, 128
        %4095 = vxpose.xlu0.b32.cont [11/16] 0.0, 128
        %4096 = vxpose.xlu0.b32.cont [12/16] 0.0, 128
        %4097 = vxpose.xlu0.b32.cont [13/16] 0.0, 128
        %4098 = vxpose.xlu0.b32.cont [14/16] 0.0, 128
        %4099 = vxpose.xlu0.b32.cont [15/16] 0.0, 128
        %4100 = vxpose.xlu0.b32.end [16/16] 0.0, 128
        %v4101 = vpop.trf.xlu0
        %v4102 = vpop.trf.xlu0
        %v4103 = vpop.trf.xlu0
        %v4104 = vpop.trf.xlu0
        %v4105 = vpop.trf.xlu0
        %v4106 = vpop.trf.xlu0
        %v4107 = vpop.trf.xlu0
        %v4108 = vpop.trf.xlu0
        %v4109 = vpop.trf.xlu0
        %v4110 = vpop.trf.xlu0
        %v4111 = vpop.trf.xlu0
        %v4112 = vpop.trf.xlu0
        %v4113 = vpop.trf.xlu0
        %v4114 = vpop.trf.xlu0
        %v4115 = vpop.trf.xlu0
        %v4116 = vpop.trf.xlu0
        %4117 = vxpose.xlu0.b32.start [1/16] %v3304, 128
        %4118 = vxpose.xlu0.b32.cont [2/16] 0.0, 128
        %4119 = vxpose.xlu0.b32.cont [3/16] 0.0, 128
        %4120 = vxpose.xlu0.b32.cont [4/16] 0.0, 128
        %4121 = vxpose.xlu0.b32.cont [5/16] 0.0, 128
        %4122 = vxpose.xlu0.b32.cont [6/16] 0.0, 128
        %4123 = vxpose.xlu0.b32.cont [7/16] 0.0, 128
        %4124 = vxpose.xlu0.b32.cont [8/16] 0.0, 128
        %4125 = vxpose.xlu0.b32.cont [9/16] 0.0, 128
        %4126 = vxpose.xlu0.b32.cont [10/16] 0.0, 128
        %4127 = vxpose.xlu0.b32.cont [11/16] 0.0, 128
        %4128 = vxpose.xlu0.b32.cont [12/16] 0.0, 128
        %4129 = vxpose.xlu0.b32.cont [13/16] 0.0, 128
        %4130 = vxpose.xlu0.b32.cont [14/16] 0.0, 128
        %4131 = vxpose.xlu0.b32.cont [15/16] 0.0, 128
        %4132 = vxpose.xlu0.b32.end [16/16] 0.0, 128
        %v4133 = vpop.trf.xlu0
        %v4134 = vpop.trf.xlu0
        %v4135 = vpop.trf.xlu0
        %v4136 = vpop.trf.xlu0
        %v4137 = vpop.trf.xlu0
        %v4138 = vpop.trf.xlu0
        %v4139 = vpop.trf.xlu0
        %v4140 = vpop.trf.xlu0
        %v4141 = vpop.trf.xlu0
        %v4142 = vpop.trf.xlu0
        %v4143 = vpop.trf.xlu0
        %v4144 = vpop.trf.xlu0
        %v4145 = vpop.trf.xlu0
        %v4146 = vpop.trf.xlu0
        %v4147 = vpop.trf.xlu0
        %v4148 = vpop.trf.xlu0
        %4149 = vxpose.xlu0.b32.start [1/16] %v3305, 128
        %4150 = vxpose.xlu0.b32.cont [2/16] 0.0, 128
        %4151 = vxpose.xlu0.b32.cont [3/16] 0.0, 128
        %4152 = vxpose.xlu0.b32.cont [4/16] 0.0, 128
        %4153 = vxpose.xlu0.b32.cont [5/16] 0.0, 128
        %4154 = vxpose.xlu0.b32.cont [6/16] 0.0, 128
        %4155 = vxpose.xlu0.b32.cont [7/16] 0.0, 128
        %4156 = vxpose.xlu0.b32.cont [8/16] 0.0, 128
        %4157 = vxpose.xlu0.b32.cont [9/16] 0.0, 128
        %4158 = vxpose.xlu0.b32.cont [10/16] 0.0, 128
        %4159 = vxpose.xlu0.b32.cont [11/16] 0.0, 128
        %4160 = vxpose.xlu0.b32.cont [12/16] 0.0, 128
        %4161 = vxpose.xlu0.b32.cont [13/16] 0.0, 128
        %4162 = vxpose.xlu0.b32.cont [14/16] 0.0, 128
        %4163 = vxpose.xlu0.b32.cont [15/16] 0.0, 128
        %4164 = vxpose.xlu0.b32.end [16/16] 0.0, 128
        %v4165 = vpop.trf.xlu0
        %v4166 = vpop.trf.xlu0
        %v4167 = vpop.trf.xlu0
        %v4168 = vpop.trf.xlu0
        %v4169 = vpop.trf.xlu0
        %v4170 = vpop.trf.xlu0
        %v4171 = vpop.trf.xlu0
        %v4172 = vpop.trf.xlu0
        %v4173 = vpop.trf.xlu0
        %v4174 = vpop.trf.xlu0
        %v4175 = vpop.trf.xlu0
        %v4176 = vpop.trf.xlu0
        %v4177 = vpop.trf.xlu0
        %v4178 = vpop.trf.xlu0
        %v4179 = vpop.trf.xlu0
        %v4180 = vpop.trf.xlu0
        %v4182 = vsel %vm2385, %v4069, 0
        %v4185 = vsel %vm2385, %v4070, 0
        %v4188 = vsel %vm2385, %v4071, 0
        %v4191 = vsel %vm2385, %v4072, 0
        %v4194 = vsel %vm2385, %v4073, 0
        %v4197 = vsel %vm2385, %v4074, 0
        %v4200 = vsel %vm2385, %v4075, 0
        %v4203 = vsel %vm2385, %v4076, 0
        %v4206 = vsel %vm2385, %v4077, 0
        %v4209 = vsel %vm2385, %v4078, 0
        %v4212 = vsel %vm2385, %v4079, 0
        %v4215 = vsel %vm2385, %v4080, 0
        %v4218 = vsel %vm2385, %v4081, 0
        %v4221 = vsel %vm2385, %v4082, 0
        %v4224 = vsel %vm2385, %v4083, 0
        %v4227 = vsel %vm2385, %v4084, 0
        %v4230 = vsel %vm2385, %v4101, 0
        %v4233 = vsel %vm2385, %v4102, 0
        %v4236 = vsel %vm2385, %v4103, 0
        %v4239 = vsel %vm2385, %v4104, 0
        %v4242 = vsel %vm2385, %v4105, 0
        %v4245 = vsel %vm2385, %v4106, 0
        %v4248 = vsel %vm2385, %v4107, 0
        %v4251 = vsel %vm2385, %v4108, 0
        %v4254 = vsel %vm2385, %v4109, 0
        %v4257 = vsel %vm2385, %v4110, 0
        %v4260 = vsel %vm2385, %v4111, 0
        %v4263 = vsel %vm2385, %v4112, 0
        %v4266 = vsel %vm2385, %v4113, 0
        %v4269 = vsel %vm2385, %v4114, 0
        %v4272 = vsel %vm2385, %v4115, 0
        %v4275 = vsel %vm2385, %v4116, 0
        %v4278 = vsel %vm2385, %v4133, 0
        %v4281 = vsel %vm2385, %v4134, 0
        %v4284 = vsel %vm2385, %v4135, 0
        %v4287 = vsel %vm2385, %v4136, 0
        %v4290 = vsel %vm2385, %v4137, 0
        %v4293 = vsel %vm2385, %v4138, 0
        %v4296 = vsel %vm2385, %v4139, 0
        %v4299 = vsel %vm2385, %v4140, 0
        %v4302 = vsel %vm2385, %v4141, 0
        %v4305 = vsel %vm2385, %v4142, 0
        %v4308 = vsel %vm2385, %v4143, 0
        %v4311 = vsel %vm2385, %v4144, 0
        %v4314 = vsel %vm2385, %v4145, 0
        %v4317 = vsel %vm2385, %v4146, 0
        %v4320 = vsel %vm2385, %v4147, 0
        %v4323 = vsel %vm2385, %v4148, 0
        %v4326 = vsel %vm2385, %v4165, 0
        %v4329 = vsel %vm2385, %v4166, 0
        %v4332 = vsel %vm2385, %v4167, 0
        %v4335 = vsel %vm2385, %v4168, 0
        %v4338 = vsel %vm2385, %v4169, 0
        %v4341 = vsel %vm2385, %v4170, 0
        %v4344 = vsel %vm2385, %v4171, 0
        %v4347 = vsel %vm2385, %v4172, 0
        %v4350 = vsel %vm2385, %v4173, 0
        %v4353 = vsel %vm2385, %v4174, 0
        %v4356 = vsel %vm2385, %v4175, 0
        %v4359 = vsel %vm2385, %v4176, 0
        %v4362 = vsel %vm2385, %v4177, 0
        %v4365 = vsel %vm2385, %v4178, 0
        %v4368 = vsel %vm2385, %v4179, 0
        %v4371 = vsel %vm2870, %v2740, 0
        %4373 = vmatprep.subr.mxu0 0.0
        %4374 = vmatpush1.msra.mxu0 0.0
        %4375 = vmatprep.subr.mxu0 0.0
        %4376 = vmatpush1.msra.mxu0 0.0
        %4377 = vmatprep.subr.mxu0 0.0
        %4378 = vmatpush1.msra.mxu0 0.0
        %4379 = vmatprep.subr.mxu0 0.0
        %4380 = vmatpush1.msra.mxu0 0.0
        %4381 = vmatprep.subr.mxu0 0.0
        %4382 = vmatpush1.msra.mxu0 0.0
        %4383 = vmatprep.subr.mxu0 0.0
        %4384 = vmatpush1.msra.mxu0 0.0
        %4385 = vmatprep.subr.mxu0 0.0
        %4386 = vmatpush1.msra.mxu0 0.0
        %4387 = vmatprep.subr.mxu0 0.0
        %4388 = vmatpush1.msra.mxu0 0.0
        %4389 = vmatprep.subr.mxu0 0.0
        %4390 = vmatpush1.msra.mxu0 0.0
        %4391 = vmatprep.subr.mxu0 0.0
        %4392 = vmatpush1.msra.mxu0 0.0
        %4393 = vmatprep.subr.mxu0 0.0
        %4394 = vmatpush1.msra.mxu0 0.0
        %4395 = vmatprep.subr.mxu0 0.0
        %4396 = vmatpush1.msra.mxu0 0.0
        %4397 = vmatprep.subr.mxu0 0.0
        %4398 = vmatpush1.msra.mxu0 0.0
        %4399 = vmatprep.subr.mxu0 0.0
        %4400 = vmatpush1.msra.mxu0 0.0
        %4401 = vmatprep.subr.mxu0 0.0
        %4402 = vmatpush1.msra.mxu0 0.0
        %4403 = vmatprep.subr.mxu0 0.0
        %4404 = vmatpush1.msra.mxu0 %v4371
        %4405 = vmatprep.subr.mxu0 0.0
        %4406 = vmatpush2.msra.mxu0 0.0
        %4407 = vmatprep.subr.mxu0 0.0
        %4408 = vmatpush2.msra.mxu0 0.0
        %4409 = vmatprep.subr.mxu0 0.0
        %4410 = vmatpush2.msra.mxu0 0.0
        %4411 = vmatprep.subr.mxu0 0.0
        %4412 = vmatpush2.msra.mxu0 0.0
        %4413 = vmatprep.subr.mxu0 0.0
        %4414 = vmatpush2.msra.mxu0 0.0
        %4415 = vmatprep.subr.mxu0 0.0
        %4416 = vmatpush2.msra.mxu0 0.0
        %4417 = vmatprep.subr.mxu0 0.0
        %4418 = vmatpush2.msra.mxu0 0.0
        %4419 = vmatprep.subr.mxu0 0.0
        %4420 = vmatpush2.msra.mxu0 0.0
        %4421 = vmatprep.subr.mxu0 0.0
        %4422 = vmatpush2.msra.mxu0 0.0
        %4423 = vmatprep.subr.mxu0 0.0
        %4424 = vmatpush2.msra.mxu0 0.0
        %4425 = vmatprep.subr.mxu0 0.0
        %4426 = vmatpush2.msra.mxu0 0.0
        %4427 = vmatprep.subr.mxu0 0.0
        %4428 = vmatpush2.msra.mxu0 0.0
        %4429 = vmatprep.subr.mxu0 0.0
        %4430 = vmatpush2.msra.mxu0 0.0
        %4431 = vmatprep.subr.mxu0 0.0
        %4432 = vmatpush2.msra.mxu0 0.0
        %4433 = vmatprep.subr.mxu0 0.0
        %4434 = vmatpush2.msra.mxu0 0.0
        %4435 = vmatprep.subr.mxu0 0.0
        %4436 = vmatpush2.msra.mxu0 0.0
        %4437 = vmatprep.mubr.f32.mxu0 0.0
        %4438 = vmatmul.mubr.f32.gmra.mxu0 %v4182
        %v4439 = vpop.f32.mrf.mxu0
        %v4440 = vadd.f32 0.0, %v4439
        %v4441 = vpop.f32.mrf.mxu0
        %4442 = vmatprep.mubr.f32.mxu0 0.0
        %4443 = vmatmul.mubr.f32.gmra.mxu0 %v4185
        %v4444 = vpop.f32.mrf.mxu0
        %v4445 = vadd.f32 0.0, %v4444
        %v4446 = vpop.f32.mrf.mxu0
        %4447 = vmatprep.mubr.f32.mxu0 0.0
        %4448 = vmatmul.mubr.f32.gmra.mxu0 %v4188
        %v4449 = vpop.f32.mrf.mxu0
        %v4450 = vadd.f32 0.0, %v4449
        %v4451 = vpop.f32.mrf.mxu0
        %4452 = vmatprep.mubr.f32.mxu0 0.0
        %4453 = vmatmul.mubr.f32.gmra.mxu0 %v4191
        %v4454 = vpop.f32.mrf.mxu0
        %v4455 = vadd.f32 0.0, %v4454
        %v4456 = vpop.f32.mrf.mxu0
        %4457 = vmatprep.mubr.f32.mxu0 0.0
        %4458 = vmatmul.mubr.f32.gmra.mxu0 %v4194
        %v4459 = vpop.f32.mrf.mxu0
        %v4460 = vadd.f32 0.0, %v4459
        %v4461 = vpop.f32.mrf.mxu0
        %4462 = vmatprep.mubr.f32.mxu0 0.0
        %4463 = vmatmul.mubr.f32.gmra.mxu0 %v4197
        %v4464 = vpop.f32.mrf.mxu0
        %v4465 = vadd.f32 0.0, %v4464
        %v4466 = vpop.f32.mrf.mxu0
        %4467 = vmatprep.mubr.f32.mxu0 0.0
        %4468 = vmatmul.mubr.f32.gmra.mxu0 %v4200
        %v4469 = vpop.f32.mrf.mxu0
        %v4470 = vadd.f32 0.0, %v4469
        %v4471 = vpop.f32.mrf.mxu0
        %4472 = vmatprep.mubr.f32.mxu0 0.0
        %4473 = vmatmul.mubr.f32.gmra.mxu0 %v4203
        %v4474 = vpop.f32.mrf.mxu0
        %v4475 = vadd.f32 0.0, %v4474
        %v4476 = vpop.f32.mrf.mxu0
        %4477 = vmatprep.mubr.f32.mxu0 0.0
        %4478 = vmatmul.mubr.f32.gmra.mxu0 %v4206
        %v4479 = vpop.f32.mrf.mxu0
        %v4480 = vadd.f32 0.0, %v4479
        %v4481 = vpop.f32.mrf.mxu0
        %4482 = vmatprep.mubr.f32.mxu0 0.0
        %4483 = vmatmul.mubr.f32.gmra.mxu0 %v4209
        %v4484 = vpop.f32.mrf.mxu0
        %v4485 = vadd.f32 0.0, %v4484
        %v4486 = vpop.f32.mrf.mxu0
        %4487 = vmatprep.mubr.f32.mxu0 0.0
        %4488 = vmatmul.mubr.f32.gmra.mxu0 %v4212
        %v4489 = vpop.f32.mrf.mxu0
        %v4490 = vadd.f32 0.0, %v4489
        %v4491 = vpop.f32.mrf.mxu0
        %4492 = vmatprep.mubr.f32.mxu0 0.0
        %4493 = vmatmul.mubr.f32.gmra.mxu0 %v4215
        %v4494 = vpop.f32.mrf.mxu0
        %v4495 = vadd.f32 0.0, %v4494
        %v4496 = vpop.f32.mrf.mxu0
        %4497 = vmatprep.mubr.f32.mxu0 0.0
        %4498 = vmatmul.mubr.f32.gmra.mxu0 %v4218
        %v4499 = vpop.f32.mrf.mxu0
        %v4500 = vadd.f32 0.0, %v4499
        %v4501 = vpop.f32.mrf.mxu0
        %4502 = vmatprep.mubr.f32.mxu0 0.0
        %4503 = vmatmul.mubr.f32.gmra.mxu0 %v4221
        %v4504 = vpop.f32.mrf.mxu0
        %v4505 = vadd.f32 0.0, %v4504
        %v4506 = vpop.f32.mrf.mxu0
        %4507 = vmatprep.mubr.f32.mxu0 0.0
        %4508 = vmatmul.mubr.f32.gmra.mxu0 %v4224
        %v4509 = vpop.f32.mrf.mxu0
        %v4510 = vadd.f32 0.0, %v4509
        %v4511 = vpop.f32.mrf.mxu0
        %4512 = vmatprep.mubr.f32.mxu0 0.0
        %4513 = vmatmul.mubr.f32.gmra.mxu0 %v4227
        %v4514 = vpop.f32.mrf.mxu0
        %v4515 = vadd.f32 0.0, %v4514
        %v4516 = vpop.f32.mrf.mxu0
        %4517 = vmatprep.mubr.f32.mxu0 0.0
        %4518 = vmatmul.mubr.f32.gmra.mxu0 %v4230
        %v4519 = vpop.f32.mrf.mxu0
        %v4520 = vadd.f32 0.0, %v4519
        %v4521 = vpop.f32.mrf.mxu0
        %4522 = vmatprep.mubr.f32.mxu0 0.0
        %4523 = vmatmul.mubr.f32.gmra.mxu0 %v4233
        %v4524 = vpop.f32.mrf.mxu0
        %v4525 = vadd.f32 0.0, %v4524
        %v4526 = vpop.f32.mrf.mxu0
        %4527 = vmatprep.mubr.f32.mxu0 0.0
        %4528 = vmatmul.mubr.f32.gmra.mxu0 %v4236
        %v4529 = vpop.f32.mrf.mxu0
        %v4530 = vadd.f32 0.0, %v4529
        %v4531 = vpop.f32.mrf.mxu0
        %4532 = vmatprep.mubr.f32.mxu0 0.0
        %4533 = vmatmul.mubr.f32.gmra.mxu0 %v4239
        %v4534 = vpop.f32.mrf.mxu0
        %v4535 = vadd.f32 0.0, %v4534
        %v4536 = vpop.f32.mrf.mxu0
        %4537 = vmatprep.mubr.f32.mxu0 0.0
        %4538 = vmatmul.mubr.f32.gmra.mxu0 %v4242
        %v4539 = vpop.f32.mrf.mxu0
        %v4540 = vadd.f32 0.0, %v4539
        %v4541 = vpop.f32.mrf.mxu0
        %4542 = vmatprep.mubr.f32.mxu0 0.0
        %4543 = vmatmul.mubr.f32.gmra.mxu0 %v4245
        %v4544 = vpop.f32.mrf.mxu0
        %v4545 = vadd.f32 0.0, %v4544
        %v4546 = vpop.f32.mrf.mxu0
        %4547 = vmatprep.mubr.f32.mxu0 0.0
        %4548 = vmatmul.mubr.f32.gmra.mxu0 %v4248
        %v4549 = vpop.f32.mrf.mxu0
        %v4550 = vadd.f32 0.0, %v4549
        %v4551 = vpop.f32.mrf.mxu0
        %4552 = vmatprep.mubr.f32.mxu0 0.0
        %4553 = vmatmul.mubr.f32.gmra.mxu0 %v4251
        %v4554 = vpop.f32.mrf.mxu0
        %v4555 = vadd.f32 0.0, %v4554
        %v4556 = vpop.f32.mrf.mxu0
        %4557 = vmatprep.mubr.f32.mxu0 0.0
        %4558 = vmatmul.mubr.f32.gmra.mxu0 %v4254
        %v4559 = vpop.f32.mrf.mxu0
        %v4560 = vadd.f32 0.0, %v4559
        %v4561 = vpop.f32.mrf.mxu0
        %4562 = vmatprep.mubr.f32.mxu0 0.0
        %4563 = vmatmul.mubr.f32.gmra.mxu0 %v4257
        %v4564 = vpop.f32.mrf.mxu0
        %v4565 = vadd.f32 0.0, %v4564
        %v4566 = vpop.f32.mrf.mxu0
        %4567 = vmatprep.mubr.f32.mxu0 0.0
        %4568 = vmatmul.mubr.f32.gmra.mxu0 %v4260
        %v4569 = vpop.f32.mrf.mxu0
        %v4570 = vadd.f32 0.0, %v4569
        %v4571 = vpop.f32.mrf.mxu0
        %4572 = vmatprep.mubr.f32.mxu0 0.0
        %4573 = vmatmul.mubr.f32.gmra.mxu0 %v4263
        %v4574 = vpop.f32.mrf.mxu0
        %v4575 = vadd.f32 0.0, %v4574
        %v4576 = vpop.f32.mrf.mxu0
        %4577 = vmatprep.mubr.f32.mxu0 0.0
        %4578 = vmatmul.mubr.f32.gmra.mxu0 %v4266
        %v4579 = vpop.f32.mrf.mxu0
        %v4580 = vadd.f32 0.0, %v4579
        %v4581 = vpop.f32.mrf.mxu0
        %4582 = vmatprep.mubr.f32.mxu0 0.0
        %4583 = vmatmul.mubr.f32.gmra.mxu0 %v4269
        %v4584 = vpop.f32.mrf.mxu0
        %v4585 = vadd.f32 0.0, %v4584
        %v4586 = vpop.f32.mrf.mxu0
        %4587 = vmatprep.mubr.f32.mxu0 0.0
        %4588 = vmatmul.mubr.f32.gmra.mxu0 %v4272
        %v4589 = vpop.f32.mrf.mxu0
        %v4590 = vadd.f32 0.0, %v4589
        %v4591 = vpop.f32.mrf.mxu0
        %4592 = vmatprep.mubr.f32.mxu0 0.0
        %4593 = vmatmul.mubr.f32.gmra.mxu0 %v4275
        %v4594 = vpop.f32.mrf.mxu0
        %v4595 = vadd.f32 0.0, %v4594
        %v4596 = vpop.f32.mrf.mxu0
        %4597 = vmatprep.mubr.f32.mxu0 0.0
        %4598 = vmatmul.mubr.f32.gmra.mxu0 %v4278
        %v4599 = vpop.f32.mrf.mxu0
        %v4600 = vadd.f32 0.0, %v4599
        %v4601 = vpop.f32.mrf.mxu0
        %4602 = vmatprep.mubr.f32.mxu0 0.0
        %4603 = vmatmul.mubr.f32.gmra.mxu0 %v4281
        %v4604 = vpop.f32.mrf.mxu0
        %v4605 = vadd.f32 0.0, %v4604
        %v4606 = vpop.f32.mrf.mxu0
        %4607 = vmatprep.mubr.f32.mxu0 0.0
        %4608 = vmatmul.mubr.f32.gmra.mxu0 %v4284
        %v4609 = vpop.f32.mrf.mxu0
        %v4610 = vadd.f32 0.0, %v4609
        %v4611 = vpop.f32.mrf.mxu0
        %4612 = vmatprep.mubr.f32.mxu0 0.0
        %4613 = vmatmul.mubr.f32.gmra.mxu0 %v4287
        %v4614 = vpop.f32.mrf.mxu0
        %v4615 = vadd.f32 0.0, %v4614
        %v4616 = vpop.f32.mrf.mxu0
        %4617 = vmatprep.mubr.f32.mxu0 0.0
        %4618 = vmatmul.mubr.f32.gmra.mxu0 %v4290
        %v4619 = vpop.f32.mrf.mxu0
        %v4620 = vadd.f32 0.0, %v4619
        %v4621 = vpop.f32.mrf.mxu0
        %4622 = vmatprep.mubr.f32.mxu0 0.0
        %4623 = vmatmul.mubr.f32.gmra.mxu0 %v4293
        %v4624 = vpop.f32.mrf.mxu0
        %v4625 = vadd.f32 0.0, %v4624
        %v4626 = vpop.f32.mrf.mxu0
        %4627 = vmatprep.mubr.f32.mxu0 0.0
        %4628 = vmatmul.mubr.f32.gmra.mxu0 %v4296
        %v4629 = vpop.f32.mrf.mxu0
        %v4630 = vadd.f32 0.0, %v4629
        %v4631 = vpop.f32.mrf.mxu0
        %4632 = vmatprep.mubr.f32.mxu0 0.0
        %4633 = vmatmul.mubr.f32.gmra.mxu0 %v4299
        %v4634 = vpop.f32.mrf.mxu0
        %v4635 = vadd.f32 0.0, %v4634
        %v4636 = vpop.f32.mrf.mxu0
        %4637 = vmatprep.mubr.f32.mxu0 0.0
        %4638 = vmatmul.mubr.f32.gmra.mxu0 %v4302
        %v4639 = vpop.f32.mrf.mxu0
        %v4640 = vadd.f32 0.0, %v4639
        %v4641 = vpop.f32.mrf.mxu0
        %4642 = vmatprep.mubr.f32.mxu0 0.0
        %4643 = vmatmul.mubr.f32.gmra.mxu0 %v4305
        %v4644 = vpop.f32.mrf.mxu0
        %v4645 = vadd.f32 0.0, %v4644
        %v4646 = vpop.f32.mrf.mxu0
        %4647 = vmatprep.mubr.f32.mxu0 0.0
        %4648 = vmatmul.mubr.f32.gmra.mxu0 %v4308
        %v4649 = vpop.f32.mrf.mxu0
        %v4650 = vadd.f32 0.0, %v4649
        %v4651 = vpop.f32.mrf.mxu0
        %4652 = vmatprep.mubr.f32.mxu0 0.0
        %4653 = vmatmul.mubr.f32.gmra.mxu0 %v4311
        %v4654 = vpop.f32.mrf.mxu0
        %v4655 = vadd.f32 0.0, %v4654
        %v4656 = vpop.f32.mrf.mxu0
        %4657 = vmatprep.mubr.f32.mxu0 0.0
        %4658 = vmatmul.mubr.f32.gmra.mxu0 %v4314
        %v4659 = vpop.f32.mrf.mxu0
        %v4660 = vadd.f32 0.0, %v4659
        %v4661 = vpop.f32.mrf.mxu0
        %4662 = vmatprep.mubr.f32.mxu0 0.0
        %4663 = vmatmul.mubr.f32.gmra.mxu0 %v4317
        %v4664 = vpop.f32.mrf.mxu0
        %v4665 = vadd.f32 0.0, %v4664
        %v4666 = vpop.f32.mrf.mxu0
        %4667 = vmatprep.mubr.f32.mxu0 0.0
        %4668 = vmatmul.mubr.f32.gmra.mxu0 %v4320
        %v4669 = vpop.f32.mrf.mxu0
        %v4670 = vadd.f32 0.0, %v4669
        %v4671 = vpop.f32.mrf.mxu0
        %4672 = vmatprep.mubr.f32.mxu0 0.0
        %4673 = vmatmul.mubr.f32.gmra.mxu0 %v4323
        %v4674 = vpop.f32.mrf.mxu0
        %v4675 = vadd.f32 0.0, %v4674
        %v4676 = vpop.f32.mrf.mxu0
        %4677 = vmatprep.mubr.f32.mxu0 0.0
        %4678 = vmatmul.mubr.f32.gmra.mxu0 %v4326
        %v4679 = vpop.f32.mrf.mxu0
        %v4680 = vadd.f32 0.0, %v4679
        %v4681 = vpop.f32.mrf.mxu0
        %4682 = vmatprep.mubr.f32.mxu0 0.0
        %4683 = vmatmul.mubr.f32.gmra.mxu0 %v4329
        %v4684 = vpop.f32.mrf.mxu0
        %v4685 = vadd.f32 0.0, %v4684
        %v4686 = vpop.f32.mrf.mxu0
        %4687 = vmatprep.mubr.f32.mxu0 0.0
        %4688 = vmatmul.mubr.f32.gmra.mxu0 %v4332
        %v4689 = vpop.f32.mrf.mxu0
        %v4690 = vadd.f32 0.0, %v4689
        %v4691 = vpop.f32.mrf.mxu0
        %4692 = vmatprep.mubr.f32.mxu0 0.0
        %4693 = vmatmul.mubr.f32.gmra.mxu0 %v4335
        %v4694 = vpop.f32.mrf.mxu0
        %v4695 = vadd.f32 0.0, %v4694
        %v4696 = vpop.f32.mrf.mxu0
        %4697 = vmatprep.mubr.f32.mxu0 0.0
        %4698 = vmatmul.mubr.f32.gmra.mxu0 %v4338
        %v4699 = vpop.f32.mrf.mxu0
        %v4700 = vadd.f32 0.0, %v4699
        %v4701 = vpop.f32.mrf.mxu0
        %4702 = vmatprep.mubr.f32.mxu0 0.0
        %4703 = vmatmul.mubr.f32.gmra.mxu0 %v4341
        %v4704 = vpop.f32.mrf.mxu0
        %v4705 = vadd.f32 0.0, %v4704
        %v4706 = vpop.f32.mrf.mxu0
        %4707 = vmatprep.mubr.f32.mxu0 0.0
        %4708 = vmatmul.mubr.f32.gmra.mxu0 %v4344
        %v4709 = vpop.f32.mrf.mxu0
        %v4710 = vadd.f32 0.0, %v4709
        %v4711 = vpop.f32.mrf.mxu0
        %4712 = vmatprep.mubr.f32.mxu0 0.0
        %4713 = vmatmul.mubr.f32.gmra.mxu0 %v4347
        %v4714 = vpop.f32.mrf.mxu0
        %v4715 = vadd.f32 0.0, %v4714
        %v4716 = vpop.f32.mrf.mxu0
        %4717 = vmatprep.mubr.f32.mxu0 0.0
        %4718 = vmatmul.mubr.f32.gmra.mxu0 %v4350
        %v4719 = vpop.f32.mrf.mxu0
        %v4720 = vadd.f32 0.0, %v4719
        %v4721 = vpop.f32.mrf.mxu0
        %4722 = vmatprep.mubr.f32.mxu0 0.0
        %4723 = vmatmul.mubr.f32.gmra.mxu0 %v4353
        %v4724 = vpop.f32.mrf.mxu0
        %v4725 = vadd.f32 0.0, %v4724
        %v4726 = vpop.f32.mrf.mxu0
        %4727 = vmatprep.mubr.f32.mxu0 0.0
        %4728 = vmatmul.mubr.f32.gmra.mxu0 %v4356
        %v4729 = vpop.f32.mrf.mxu0
        %v4730 = vadd.f32 0.0, %v4729
        %v4731 = vpop.f32.mrf.mxu0
        %4732 = vmatprep.mubr.f32.mxu0 0.0
        %4733 = vmatmul.mubr.f32.gmra.mxu0 %v4359
        %v4734 = vpop.f32.mrf.mxu0
        %v4735 = vadd.f32 0.0, %v4734
        %v4736 = vpop.f32.mrf.mxu0
        %4737 = vmatprep.mubr.f32.mxu0 0.0
        %4738 = vmatmul.mubr.f32.gmra.mxu0 %v4362
        %v4739 = vpop.f32.mrf.mxu0
        %v4740 = vadd.f32 0.0, %v4739
        %v4741 = vpop.f32.mrf.mxu0
        %4742 = vmatprep.mubr.f32.mxu0 0.0
        %4743 = vmatmul.mubr.f32.gmra.mxu0 %v4365
        %v4744 = vpop.f32.mrf.mxu0
        %v4745 = vadd.f32 0.0, %v4744
        %v4746 = vpop.f32.mrf.mxu0
        %4747 = vmatprep.mubr.f32.mxu0 0.0
        %4748 = vmatmul.mubr.f32.gmra.mxu0 %v4368
        %v4749 = vpop.f32.mrf.mxu0
        %v4750 = vadd.f32 0.0, %v4749
        %v4751 = vpop.f32.mrf.mxu0
        %4752 = vdwg.mxu0
        %v4754 = vsel %vm2385, %v4440, 0
        %v4757 = vsel %vm2385, %v4445, 0
        %v4760 = vsel %vm2385, %v4450, 0
        %v4763 = vsel %vm2385, %v4455, 0
        %v4766 = vsel %vm2385, %v4460, 0
        %v4769 = vsel %vm2385, %v4465, 0
        %v4772 = vsel %vm2385, %v4470, 0
        %v4775 = vsel %vm2385, %v4475, 0
        %v4778 = vsel %vm2385, %v4480, 0
        %v4781 = vsel %vm2385, %v4485, 0
        %v4784 = vsel %vm2385, %v4490, 0
        %v4787 = vsel %vm2385, %v4495, 0
        %v4790 = vsel %vm2385, %v4500, 0
        %v4793 = vsel %vm2385, %v4505, 0
        %v4796 = vsel %vm2385, %v4510, 0
        %v4799 = vsel %vm2385, %v4515, 0
        %v4802 = vsel %vm2385, %v4520, 0
        %v4805 = vsel %vm2385, %v4525, 0
        %v4808 = vsel %vm2385, %v4530, 0
        %v4811 = vsel %vm2385, %v4535, 0
        %v4814 = vsel %vm2385, %v4540, 0
        %v4817 = vsel %vm2385, %v4545, 0
        %v4820 = vsel %vm2385, %v4550, 0
        %v4823 = vsel %vm2385, %v4555, 0
        %v4826 = vsel %vm2385, %v4560, 0
        %v4829 = vsel %vm2385, %v4565, 0
        %v4832 = vsel %vm2385, %v4570, 0
        %v4835 = vsel %vm2385, %v4575, 0
        %v4838 = vsel %vm2385, %v4580, 0
        %v4841 = vsel %vm2385, %v4585, 0
        %v4844 = vsel %vm2385, %v4590, 0
        %v4847 = vsel %vm2385, %v4595, 0
        %v4850 = vsel %vm2385, %v4600, 0
        %v4853 = vsel %vm2385, %v4605, 0
        %v4856 = vsel %vm2385, %v4610, 0
        %v4859 = vsel %vm2385, %v4615, 0
        %v4862 = vsel %vm2385, %v4620, 0
        %v4865 = vsel %vm2385, %v4625, 0
        %v4868 = vsel %vm2385, %v4630, 0
        %v4871 = vsel %vm2385, %v4635, 0
        %v4874 = vsel %vm2385, %v4640, 0
        %v4877 = vsel %vm2385, %v4645, 0
        %v4880 = vsel %vm2385, %v4650, 0
        %v4883 = vsel %vm2385, %v4655, 0
        %v4886 = vsel %vm2385, %v4660, 0
        %v4889 = vsel %vm2385, %v4665, 0
        %v4892 = vsel %vm2385, %v4670, 0
        %v4895 = vsel %vm2385, %v4675, 0
        %v4898 = vsel %vm2385, %v4680, 0
        %v4901 = vsel %vm2385, %v4685, 0
        %v4904 = vsel %vm2385, %v4690, 0
        %v4907 = vsel %vm2385, %v4695, 0
        %v4910 = vsel %vm2385, %v4700, 0
        %v4913 = vsel %vm2385, %v4705, 0
        %v4916 = vsel %vm2385, %v4710, 0
        %v4919 = vsel %vm2385, %v4715, 0
        %v4922 = vsel %vm2385, %v4720, 0
        %v4925 = vsel %vm2385, %v4725, 0
        %v4928 = vsel %vm2385, %v4730, 0
        %v4931 = vsel %vm2385, %v4735, 0
        %v4934 = vsel %vm2385, %v4740, 0
        %v4937 = vsel %vm2385, %v4745, 0
        %v4940 = vsel %vm2385, %v4750, 0
        %4942 = vmatprep.subr.mxu0 0.0
        %4943 = vmatpush1.msra.mxu0 0.0
        %4944 = vmatprep.subr.mxu0 0.0
        %4945 = vmatpush1.msra.mxu0 0.0
        %4946 = vmatprep.subr.mxu0 0.0
        %4947 = vmatpush1.msra.mxu0 0.0
        %4948 = vmatprep.subr.mxu0 0.0
        %4949 = vmatpush1.msra.mxu0 0.0
        %4950 = vmatprep.subr.mxu0 0.0
        %4951 = vmatpush1.msra.mxu0 0.0
        %4952 = vmatprep.subr.mxu0 0.0
        %4953 = vmatpush1.msra.mxu0 0.0
        %4954 = vmatprep.subr.mxu0 0.0
        %4955 = vmatpush1.msra.mxu0 0.0
        %4956 = vmatprep.subr.mxu0 0.0
        %4957 = vmatpush1.msra.mxu0 0.0
        %4958 = vmatprep.subr.mxu0 0.0
        %4959 = vmatpush1.msra.mxu0 0.0
        %4960 = vmatprep.subr.mxu0 0.0
        %4961 = vmatpush1.msra.mxu0 0.0
        %4962 = vmatprep.subr.mxu0 0.0
        %4963 = vmatpush1.msra.mxu0 0.0
        %4964 = vmatprep.subr.mxu0 0.0
        %4965 = vmatpush1.msra.mxu0 0.0
        %4966 = vmatprep.subr.mxu0 0.0
        %4967 = vmatpush1.msra.mxu0 0.0
        %4968 = vmatprep.subr.mxu0 0.0
        %4969 = vmatpush1.msra.mxu0 0.0
        %4970 = vmatprep.subr.mxu0 0.0
        %4971 = vmatpush1.msra.mxu0 0.0
        %4972 = vmatprep.subr.mxu0 %v3867
        %4973 = vmatpush1.msra.mxu0 %v3864
        %4974 = vmatprep.subr.mxu0 0.0
        %4975 = vmatpush2.msra.mxu0 0.0
        %4976 = vmatprep.subr.mxu0 0.0
        %4977 = vmatpush2.msra.mxu0 0.0
        %4978 = vmatprep.subr.mxu0 0.0
        %4979 = vmatpush2.msra.mxu0 0.0
        %4980 = vmatprep.subr.mxu0 0.0
        %4981 = vmatpush2.msra.mxu0 0.0
        %4982 = vmatprep.subr.mxu0 0.0
        %4983 = vmatpush2.msra.mxu0 0.0
        %4984 = vmatprep.subr.mxu0 0.0
        %4985 = vmatpush2.msra.mxu0 0.0
        %4986 = vmatprep.subr.mxu0 0.0
        %4987 = vmatpush2.msra.mxu0 0.0
        %4988 = vmatprep.subr.mxu0 0.0
        %4989 = vmatpush2.msra.mxu0 0.0
        %4990 = vmatprep.subr.mxu0 0.0
        %4991 = vmatpush2.msra.mxu0 0.0
        %4992 = vmatprep.subr.mxu0 0.0
        %4993 = vmatpush2.msra.mxu0 0.0
        %4994 = vmatprep.subr.mxu0 0.0
        %4995 = vmatpush2.msra.mxu0 0.0
        %4996 = vmatprep.subr.mxu0 0.0
        %4997 = vmatpush2.msra.mxu0 0.0
        %4998 = vmatprep.subr.mxu0 0.0
        %4999 = vmatpush2.msra.mxu0 0.0
        %5000 = vmatprep.subr.mxu0 0.0
        %5001 = vmatpush2.msra.mxu0 0.0
        %5002 = vmatprep.subr.mxu0 0.0
        %5003 = vmatpush2.msra.mxu0 0.0
        %5004 = vmatprep.subr.mxu0 0.0
        %5005 = vmatpush2.msra.mxu0 0.0
        %5006 = vmatprep.mubr.f32.mxu0 0.0
        %5007 = vmatmul.mubr.f32.gmra.mxu0 %v4754
        %v5008 = vpop.f32.mrf.mxu0
        %v5009 = vadd.f32 0.0, %v5008
        %v5010 = vpop.f32.mrf.mxu0
        %v5011 = vadd.f32 0.0, %v5010
        %5012 = vmatprep.mubr.f32.mxu0 0.0
        %5013 = vmatmul.mubr.f32.gmra.mxu0 %v4757
        %v5014 = vpop.f32.mrf.mxu0
        %v5015 = vadd.f32 0.0, %v5014
        %v5016 = vpop.f32.mrf.mxu0
        %v5017 = vadd.f32 0.0, %v5016
        %5018 = vmatprep.mubr.f32.mxu0 0.0
        %5019 = vmatmul.mubr.f32.gmra.mxu0 %v4760
        %v5020 = vpop.f32.mrf.mxu0
        %v5021 = vadd.f32 0.0, %v5020
        %v5022 = vpop.f32.mrf.mxu0
        %v5023 = vadd.f32 0.0, %v5022
        %5024 = vmatprep.mubr.f32.mxu0 0.0
        %5025 = vmatmul.mubr.f32.gmra.mxu0 %v4763
        %v5026 = vpop.f32.mrf.mxu0
        %v5027 = vadd.f32 0.0, %v5026
        %v5028 = vpop.f32.mrf.mxu0
        %v5029 = vadd.f32 0.0, %v5028
        %5030 = vmatprep.mubr.f32.mxu0 0.0
        %5031 = vmatmul.mubr.f32.gmra.mxu0 %v4766
        %v5032 = vpop.f32.mrf.mxu0
        %v5033 = vadd.f32 0.0, %v5032
        %v5034 = vpop.f32.mrf.mxu0
        %v5035 = vadd.f32 0.0, %v5034
        %5036 = vmatprep.mubr.f32.mxu0 0.0
        %5037 = vmatmul.mubr.f32.gmra.mxu0 %v4769
        %v5038 = vpop.f32.mrf.mxu0
        %v5039 = vadd.f32 0.0, %v5038
        %v5040 = vpop.f32.mrf.mxu0
        %v5041 = vadd.f32 0.0, %v5040
        %5042 = vmatprep.mubr.f32.mxu0 0.0
        %5043 = vmatmul.mubr.f32.gmra.mxu0 %v4772
        %v5044 = vpop.f32.mrf.mxu0
        %v5045 = vadd.f32 0.0, %v5044
        %v5046 = vpop.f32.mrf.mxu0
        %v5047 = vadd.f32 0.0, %v5046
        %5048 = vmatprep.mubr.f32.mxu0 0.0
        %5049 = vmatmul.mubr.f32.gmra.mxu0 %v4775
        %v5050 = vpop.f32.mrf.mxu0
        %v5051 = vadd.f32 0.0, %v5050
        %v5052 = vpop.f32.mrf.mxu0
        %v5053 = vadd.f32 0.0, %v5052
        %5054 = vmatprep.mubr.f32.mxu0 0.0
        %5055 = vmatmul.mubr.f32.gmra.mxu0 %v4778
        %v5056 = vpop.f32.mrf.mxu0
        %v5057 = vadd.f32 0.0, %v5056
        %v5058 = vpop.f32.mrf.mxu0
        %v5059 = vadd.f32 0.0, %v5058
        %5060 = vmatprep.mubr.f32.mxu0 0.0
        %5061 = vmatmul.mubr.f32.gmra.mxu0 %v4781
        %v5062 = vpop.f32.mrf.mxu0
        %v5063 = vadd.f32 0.0, %v5062
        %v5064 = vpop.f32.mrf.mxu0
        %v5065 = vadd.f32 0.0, %v5064
        %5066 = vmatprep.mubr.f32.mxu0 0.0
        %5067 = vmatmul.mubr.f32.gmra.mxu0 %v4784
        %v5068 = vpop.f32.mrf.mxu0
        %v5069 = vadd.f32 0.0, %v5068
        %v5070 = vpop.f32.mrf.mxu0
        %v5071 = vadd.f32 0.0, %v5070
        %5072 = vmatprep.mubr.f32.mxu0 0.0
        %5073 = vmatmul.mubr.f32.gmra.mxu0 %v4787
        %v5074 = vpop.f32.mrf.mxu0
        %v5075 = vadd.f32 0.0, %v5074
        %v5076 = vpop.f32.mrf.mxu0
        %v5077 = vadd.f32 0.0, %v5076
        %5078 = vmatprep.mubr.f32.mxu0 0.0
        %5079 = vmatmul.mubr.f32.gmra.mxu0 %v4790
        %v5080 = vpop.f32.mrf.mxu0
        %v5081 = vadd.f32 0.0, %v5080
        %v5082 = vpop.f32.mrf.mxu0
        %v5083 = vadd.f32 0.0, %v5082
        %5084 = vmatprep.mubr.f32.mxu0 0.0
        %5085 = vmatmul.mubr.f32.gmra.mxu0 %v4793
        %v5086 = vpop.f32.mrf.mxu0
        %v5087 = vadd.f32 0.0, %v5086
        %v5088 = vpop.f32.mrf.mxu0
        %v5089 = vadd.f32 0.0, %v5088
        %5090 = vmatprep.mubr.f32.mxu0 0.0
        %5091 = vmatmul.mubr.f32.gmra.mxu0 %v4796
        %v5092 = vpop.f32.mrf.mxu0
        %v5093 = vadd.f32 0.0, %v5092
        %v5094 = vpop.f32.mrf.mxu0
        %v5095 = vadd.f32 0.0, %v5094
        %5096 = vmatprep.mubr.f32.mxu0 0.0
        %5097 = vmatmul.mubr.f32.gmra.mxu0 %v4799
        %v5098 = vpop.f32.mrf.mxu0
        %v5099 = vadd.f32 0.0, %v5098
        %v5100 = vpop.f32.mrf.mxu0
        %v5101 = vadd.f32 0.0, %v5100
        %5102 = vmatprep.mubr.f32.mxu0 0.0
        %5103 = vmatmul.mubr.f32.gmra.mxu0 %v4802
        %v5104 = vpop.f32.mrf.mxu0
        %v5105 = vadd.f32 0.0, %v5104
        %v5106 = vpop.f32.mrf.mxu0
        %v5107 = vadd.f32 0.0, %v5106
        %5108 = vmatprep.mubr.f32.mxu0 0.0
        %5109 = vmatmul.mubr.f32.gmra.mxu0 %v4805
        %v5110 = vpop.f32.mrf.mxu0
        %v5111 = vadd.f32 0.0, %v5110
        %v5112 = vpop.f32.mrf.mxu0
        %v5113 = vadd.f32 0.0, %v5112
        %5114 = vmatprep.mubr.f32.mxu0 0.0
        %5115 = vmatmul.mubr.f32.gmra.mxu0 %v4808
        %v5116 = vpop.f32.mrf.mxu0
        %v5117 = vadd.f32 0.0, %v5116
        %v5118 = vpop.f32.mrf.mxu0
        %v5119 = vadd.f32 0.0, %v5118
        %5120 = vmatprep.mubr.f32.mxu0 0.0
        %5121 = vmatmul.mubr.f32.gmra.mxu0 %v4811
        %v5122 = vpop.f32.mrf.mxu0
        %v5123 = vadd.f32 0.0, %v5122
        %v5124 = vpop.f32.mrf.mxu0
        %v5125 = vadd.f32 0.0, %v5124
        %5126 = vmatprep.mubr.f32.mxu0 0.0
        %5127 = vmatmul.mubr.f32.gmra.mxu0 %v4814
        %v5128 = vpop.f32.mrf.mxu0
        %v5129 = vadd.f32 0.0, %v5128
        %v5130 = vpop.f32.mrf.mxu0
        %v5131 = vadd.f32 0.0, %v5130
        %5132 = vmatprep.mubr.f32.mxu0 0.0
        %5133 = vmatmul.mubr.f32.gmra.mxu0 %v4817
        %v5134 = vpop.f32.mrf.mxu0
        %v5135 = vadd.f32 0.0, %v5134
        %v5136 = vpop.f32.mrf.mxu0
        %v5137 = vadd.f32 0.0, %v5136
        %5138 = vmatprep.mubr.f32.mxu0 0.0
        %5139 = vmatmul.mubr.f32.gmra.mxu0 %v4820
        %v5140 = vpop.f32.mrf.mxu0
        %v5141 = vadd.f32 0.0, %v5140
        %v5142 = vpop.f32.mrf.mxu0
        %v5143 = vadd.f32 0.0, %v5142
        %5144 = vmatprep.mubr.f32.mxu0 0.0
        %5145 = vmatmul.mubr.f32.gmra.mxu0 %v4823
        %v5146 = vpop.f32.mrf.mxu0
        %v5147 = vadd.f32 0.0, %v5146
        %v5148 = vpop.f32.mrf.mxu0
        %v5149 = vadd.f32 0.0, %v5148
        %5150 = vmatprep.mubr.f32.mxu0 0.0
        %5151 = vmatmul.mubr.f32.gmra.mxu0 %v4826
        %v5152 = vpop.f32.mrf.mxu0
        %v5153 = vadd.f32 0.0, %v5152
        %v5154 = vpop.f32.mrf.mxu0
        %v5155 = vadd.f32 0.0, %v5154
        %5156 = vmatprep.mubr.f32.mxu0 0.0
        %5157 = vmatmul.mubr.f32.gmra.mxu0 %v4829
        %v5158 = vpop.f32.mrf.mxu0
        %v5159 = vadd.f32 0.0, %v5158
        %v5160 = vpop.f32.mrf.mxu0
        %v5161 = vadd.f32 0.0, %v5160
        %5162 = vmatprep.mubr.f32.mxu0 0.0
        %5163 = vmatmul.mubr.f32.gmra.mxu0 %v4832
        %v5164 = vpop.f32.mrf.mxu0
        %v5165 = vadd.f32 0.0, %v5164
        %v5166 = vpop.f32.mrf.mxu0
        %v5167 = vadd.f32 0.0, %v5166
        %5168 = vmatprep.mubr.f32.mxu0 0.0
        %5169 = vmatmul.mubr.f32.gmra.mxu0 %v4835
        %v5170 = vpop.f32.mrf.mxu0
        %v5171 = vadd.f32 0.0, %v5170
        %v5172 = vpop.f32.mrf.mxu0
        %v5173 = vadd.f32 0.0, %v5172
        %5174 = vmatprep.mubr.f32.mxu0 0.0
        %5175 = vmatmul.mubr.f32.gmra.mxu0 %v4838
        %v5176 = vpop.f32.mrf.mxu0
        %v5177 = vadd.f32 0.0, %v5176
        %v5178 = vpop.f32.mrf.mxu0
        %v5179 = vadd.f32 0.0, %v5178
        %5180 = vmatprep.mubr.f32.mxu0 0.0
        %5181 = vmatmul.mubr.f32.gmra.mxu0 %v4841
        %v5182 = vpop.f32.mrf.mxu0
        %v5183 = vadd.f32 0.0, %v5182
        %v5184 = vpop.f32.mrf.mxu0
        %v5185 = vadd.f32 0.0, %v5184
        %5186 = vmatprep.mubr.f32.mxu0 0.0
        %5187 = vmatmul.mubr.f32.gmra.mxu0 %v4844
        %v5188 = vpop.f32.mrf.mxu0
        %v5189 = vadd.f32 0.0, %v5188
        %v5190 = vpop.f32.mrf.mxu0
        %v5191 = vadd.f32 0.0, %v5190
        %5192 = vmatprep.mubr.f32.mxu0 0.0
        %5193 = vmatmul.mubr.f32.gmra.mxu0 %v4847
        %v5194 = vpop.f32.mrf.mxu0
        %v5195 = vadd.f32 0.0, %v5194
        %v5196 = vpop.f32.mrf.mxu0
        %v5197 = vadd.f32 0.0, %v5196
        %5198 = vmatprep.mubr.f32.mxu0 0.0
        %5199 = vmatmul.mubr.f32.gmra.mxu0 %v4850
        %v5200 = vpop.f32.mrf.mxu0
        %v5201 = vadd.f32 0.0, %v5200
        %v5202 = vpop.f32.mrf.mxu0
        %v5203 = vadd.f32 0.0, %v5202
        %5204 = vmatprep.mubr.f32.mxu0 0.0
        %5205 = vmatmul.mubr.f32.gmra.mxu0 %v4853
        %v5206 = vpop.f32.mrf.mxu0
        %v5207 = vadd.f32 0.0, %v5206
        %v5208 = vpop.f32.mrf.mxu0
        %v5209 = vadd.f32 0.0, %v5208
        %5210 = vmatprep.mubr.f32.mxu0 0.0
        %5211 = vmatmul.mubr.f32.gmra.mxu0 %v4856
        %v5212 = vpop.f32.mrf.mxu0
        %v5213 = vadd.f32 0.0, %v5212
        %v5214 = vpop.f32.mrf.mxu0
        %v5215 = vadd.f32 0.0, %v5214
        %5216 = vmatprep.mubr.f32.mxu0 0.0
        %5217 = vmatmul.mubr.f32.gmra.mxu0 %v4859
        %v5218 = vpop.f32.mrf.mxu0
        %v5219 = vadd.f32 0.0, %v5218
        %v5220 = vpop.f32.mrf.mxu0
        %v5221 = vadd.f32 0.0, %v5220
        %5222 = vmatprep.mubr.f32.mxu0 0.0
        %5223 = vmatmul.mubr.f32.gmra.mxu0 %v4862
        %v5224 = vpop.f32.mrf.mxu0
        %v5225 = vadd.f32 0.0, %v5224
        %v5226 = vpop.f32.mrf.mxu0
        %v5227 = vadd.f32 0.0, %v5226
        %5228 = vmatprep.mubr.f32.mxu0 0.0
        %5229 = vmatmul.mubr.f32.gmra.mxu0 %v4865
        %v5230 = vpop.f32.mrf.mxu0
        %v5231 = vadd.f32 0.0, %v5230
        %v5232 = vpop.f32.mrf.mxu0
        %v5233 = vadd.f32 0.0, %v5232
        %5234 = vmatprep.mubr.f32.mxu0 0.0
        %5235 = vmatmul.mubr.f32.gmra.mxu0 %v4868
        %v5236 = vpop.f32.mrf.mxu0
        %v5237 = vadd.f32 0.0, %v5236
        %v5238 = vpop.f32.mrf.mxu0
        %v5239 = vadd.f32 0.0, %v5238
        %5240 = vmatprep.mubr.f32.mxu0 0.0
        %5241 = vmatmul.mubr.f32.gmra.mxu0 %v4871
        %v5242 = vpop.f32.mrf.mxu0
        %v5243 = vadd.f32 0.0, %v5242
        %v5244 = vpop.f32.mrf.mxu0
        %v5245 = vadd.f32 0.0, %v5244
        %5246 = vmatprep.mubr.f32.mxu0 0.0
        %5247 = vmatmul.mubr.f32.gmra.mxu0 %v4874
        %v5248 = vpop.f32.mrf.mxu0
        %v5249 = vadd.f32 0.0, %v5248
        %v5250 = vpop.f32.mrf.mxu0
        %v5251 = vadd.f32 0.0, %v5250
        %5252 = vmatprep.mubr.f32.mxu0 0.0
        %5253 = vmatmul.mubr.f32.gmra.mxu0 %v4877
        %v5254 = vpop.f32.mrf.mxu0
        %v5255 = vadd.f32 0.0, %v5254
        %v5256 = vpop.f32.mrf.mxu0
        %v5257 = vadd.f32 0.0, %v5256
        %5258 = vmatprep.mubr.f32.mxu0 0.0
        %5259 = vmatmul.mubr.f32.gmra.mxu0 %v4880
        %v5260 = vpop.f32.mrf.mxu0
        %v5261 = vadd.f32 0.0, %v5260
        %v5262 = vpop.f32.mrf.mxu0
        %v5263 = vadd.f32 0.0, %v5262
        %5264 = vmatprep.mubr.f32.mxu0 0.0
        %5265 = vmatmul.mubr.f32.gmra.mxu0 %v4883
        %v5266 = vpop.f32.mrf.mxu0
        %v5267 = vadd.f32 0.0, %v5266
        %v5268 = vpop.f32.mrf.mxu0
        %v5269 = vadd.f32 0.0, %v5268
        %5270 = vmatprep.mubr.f32.mxu0 0.0
        %5271 = vmatmul.mubr.f32.gmra.mxu0 %v4886
        %v5272 = vpop.f32.mrf.mxu0
        %v5273 = vadd.f32 0.0, %v5272
        %v5274 = vpop.f32.mrf.mxu0
        %v5275 = vadd.f32 0.0, %v5274
        %5276 = vmatprep.mubr.f32.mxu0 0.0
        %5277 = vmatmul.mubr.f32.gmra.mxu0 %v4889
        %v5278 = vpop.f32.mrf.mxu0
        %v5279 = vadd.f32 0.0, %v5278
        %v5280 = vpop.f32.mrf.mxu0
        %v5281 = vadd.f32 0.0, %v5280
        %5282 = vmatprep.mubr.f32.mxu0 0.0
        %5283 = vmatmul.mubr.f32.gmra.mxu0 %v4892
        %v5284 = vpop.f32.mrf.mxu0
        %v5285 = vadd.f32 0.0, %v5284
        %v5286 = vpop.f32.mrf.mxu0
        %v5287 = vadd.f32 0.0, %v5286
        %5288 = vmatprep.mubr.f32.mxu0 0.0
        %5289 = vmatmul.mubr.f32.gmra.mxu0 %v4895
        %v5290 = vpop.f32.mrf.mxu0
        %v5291 = vadd.f32 0.0, %v5290
        %v5292 = vpop.f32.mrf.mxu0
        %v5293 = vadd.f32 0.0, %v5292
        %5294 = vmatprep.mubr.f32.mxu0 0.0
        %5295 = vmatmul.mubr.f32.gmra.mxu0 %v4898
        %v5296 = vpop.f32.mrf.mxu0
        %v5297 = vadd.f32 0.0, %v5296
        %v5298 = vpop.f32.mrf.mxu0
        %v5299 = vadd.f32 0.0, %v5298
        %5300 = vmatprep.mubr.f32.mxu0 0.0
        %5301 = vmatmul.mubr.f32.gmra.mxu0 %v4901
        %v5302 = vpop.f32.mrf.mxu0
        %v5303 = vadd.f32 0.0, %v5302
        %v5304 = vpop.f32.mrf.mxu0
        %v5305 = vadd.f32 0.0, %v5304
        %5306 = vmatprep.mubr.f32.mxu0 0.0
        %5307 = vmatmul.mubr.f32.gmra.mxu0 %v4904
        %v5308 = vpop.f32.mrf.mxu0
        %v5309 = vadd.f32 0.0, %v5308
        %v5310 = vpop.f32.mrf.mxu0
        %v5311 = vadd.f32 0.0, %v5310
        %5312 = vmatprep.mubr.f32.mxu0 0.0
        %5313 = vmatmul.mubr.f32.gmra.mxu0 %v4907
        %v5314 = vpop.f32.mrf.mxu0
        %v5315 = vadd.f32 0.0, %v5314
        %v5316 = vpop.f32.mrf.mxu0
        %v5317 = vadd.f32 0.0, %v5316
        %5318 = vmatprep.mubr.f32.mxu0 0.0
        %5319 = vmatmul.mubr.f32.gmra.mxu0 %v4910
        %v5320 = vpop.f32.mrf.mxu0
        %v5321 = vadd.f32 0.0, %v5320
        %v5322 = vpop.f32.mrf.mxu0
        %v5323 = vadd.f32 0.0, %v5322
        %5324 = vmatprep.mubr.f32.mxu0 0.0
        %5325 = vmatmul.mubr.f32.gmra.mxu0 %v4913
        %v5326 = vpop.f32.mrf.mxu0
        %v5327 = vadd.f32 0.0, %v5326
        %v5328 = vpop.f32.mrf.mxu0
        %v5329 = vadd.f32 0.0, %v5328
        %5330 = vmatprep.mubr.f32.mxu0 0.0
        %5331 = vmatmul.mubr.f32.gmra.mxu0 %v4916
        %v5332 = vpop.f32.mrf.mxu0
        %v5333 = vadd.f32 0.0, %v5332
        %v5334 = vpop.f32.mrf.mxu0
        %v5335 = vadd.f32 0.0, %v5334
        %5336 = vmatprep.mubr.f32.mxu0 0.0
        %5337 = vmatmul.mubr.f32.gmra.mxu0 %v4919
        %v5338 = vpop.f32.mrf.mxu0
        %v5339 = vadd.f32 0.0, %v5338
        %v5340 = vpop.f32.mrf.mxu0
        %v5341 = vadd.f32 0.0, %v5340
        %5342 = vmatprep.mubr.f32.mxu0 0.0
        %5343 = vmatmul.mubr.f32.gmra.mxu0 %v4922
        %v5344 = vpop.f32.mrf.mxu0
        %v5345 = vadd.f32 0.0, %v5344
        %v5346 = vpop.f32.mrf.mxu0
        %v5347 = vadd.f32 0.0, %v5346
        %5348 = vmatprep.mubr.f32.mxu0 0.0
        %5349 = vmatmul.mubr.f32.gmra.mxu0 %v4925
        %v5350 = vpop.f32.mrf.mxu0
        %v5351 = vadd.f32 0.0, %v5350
        %v5352 = vpop.f32.mrf.mxu0
        %v5353 = vadd.f32 0.0, %v5352
        %5354 = vmatprep.mubr.f32.mxu0 0.0
        %5355 = vmatmul.mubr.f32.gmra.mxu0 %v4928
        %v5356 = vpop.f32.mrf.mxu0
        %v5357 = vadd.f32 0.0, %v5356
        %v5358 = vpop.f32.mrf.mxu0
        %v5359 = vadd.f32 0.0, %v5358
        %5360 = vmatprep.mubr.f32.mxu0 0.0
        %5361 = vmatmul.mubr.f32.gmra.mxu0 %v4931
        %v5362 = vpop.f32.mrf.mxu0
        %v5363 = vadd.f32 0.0, %v5362
        %v5364 = vpop.f32.mrf.mxu0
        %v5365 = vadd.f32 0.0, %v5364
        %5366 = vmatprep.mubr.f32.mxu0 0.0
        %5367 = vmatmul.mubr.f32.gmra.mxu0 %v4934
        %v5368 = vpop.f32.mrf.mxu0
        %v5369 = vadd.f32 0.0, %v5368
        %v5370 = vpop.f32.mrf.mxu0
        %v5371 = vadd.f32 0.0, %v5370
        %5372 = vmatprep.mubr.f32.mxu0 0.0
        %5373 = vmatmul.mubr.f32.gmra.mxu0 %v4937
        %v5374 = vpop.f32.mrf.mxu0
        %v5375 = vadd.f32 0.0, %v5374
        %v5376 = vpop.f32.mrf.mxu0
        %v5377 = vadd.f32 0.0, %v5376
        %5378 = vmatprep.mubr.f32.mxu0 0.0
        %5379 = vmatmul.mubr.f32.gmra.mxu0 %v4940
        %v5380 = vpop.f32.mrf.mxu0
        %v5381 = vadd.f32 0.0, %v5380
        %v5382 = vpop.f32.mrf.mxu0
        %v5383 = vadd.f32 0.0, %v5382
        %5384 = vdwg.mxu0
        %5385 = vmatprep.subr.mxu0 0.0
        %5386 = vmatpush1.msra.mxu0 0.0
        %5387 = vmatprep.subr.mxu0 0.0
        %5388 = vmatpush1.msra.mxu0 0.0
        %5389 = vmatprep.subr.mxu0 0.0
        %5390 = vmatpush1.msra.mxu0 0.0
        %5391 = vmatprep.subr.mxu0 0.0
        %5392 = vmatpush1.msra.mxu0 0.0
        %5393 = vmatprep.subr.mxu0 0.0
        %5394 = vmatpush1.msra.mxu0 0.0
        %5395 = vmatprep.subr.mxu0 0.0
        %5396 = vmatpush1.msra.mxu0 0.0
        %5397 = vmatprep.subr.mxu0 0.0
        %5398 = vmatpush1.msra.mxu0 0.0
        %5399 = vmatprep.subr.mxu0 0.0
        %5400 = vmatpush1.msra.mxu0 0.0
        %5401 = vmatprep.subr.mxu0 0.0
        %5402 = vmatpush1.msra.mxu0 0.0
        %5403 = vmatprep.subr.mxu0 0.0
        %5404 = vmatpush1.msra.mxu0 0.0
        %5405 = vmatprep.subr.mxu0 0.0
        %5406 = vmatpush1.msra.mxu0 0.0
        %5407 = vmatprep.subr.mxu0 0.0
        %5408 = vmatpush1.msra.mxu0 0.0
        %5409 = vmatprep.subr.mxu0 0.0
        %5410 = vmatpush1.msra.mxu0 0.0
        %5411 = vmatprep.subr.mxu0 0.0
        %5412 = vmatpush1.msra.mxu0 0.0
        %5413 = vmatprep.subr.mxu0 0.0
        %5414 = vmatpush1.msra.mxu0 0.0
        %5415 = vmatprep.subr.mxu0 %v3872
        %5416 = vmatpush1.msra.mxu0 %v3870
        %5417 = vmatprep.subr.mxu0 0.0
        %5418 = vmatpush2.msra.mxu0 0.0
        %5419 = vmatprep.subr.mxu0 0.0
        %5420 = vmatpush2.msra.mxu0 0.0
        %5421 = vmatprep.subr.mxu0 0.0
        %5422 = vmatpush2.msra.mxu0 0.0
        %5423 = vmatprep.subr.mxu0 0.0
        %5424 = vmatpush2.msra.mxu0 0.0
        %5425 = vmatprep.subr.mxu0 0.0
        %5426 = vmatpush2.msra.mxu0 0.0
        %5427 = vmatprep.subr.mxu0 0.0
        %5428 = vmatpush2.msra.mxu0 0.0
        %5429 = vmatprep.subr.mxu0 0.0
        %5430 = vmatpush2.msra.mxu0 0.0
        %5431 = vmatprep.subr.mxu0 0.0
        %5432 = vmatpush2.msra.mxu0 0.0
        %5433 = vmatprep.subr.mxu0 0.0
        %5434 = vmatpush2.msra.mxu0 0.0
        %5435 = vmatprep.subr.mxu0 0.0
        %5436 = vmatpush2.msra.mxu0 0.0
        %5437 = vmatprep.subr.mxu0 0.0
        %5438 = vmatpush2.msra.mxu0 0.0
        %5439 = vmatprep.subr.mxu0 0.0
        %5440 = vmatpush2.msra.mxu0 0.0
        %5441 = vmatprep.subr.mxu0 0.0
        %5442 = vmatpush2.msra.mxu0 0.0
        %5443 = vmatprep.subr.mxu0 0.0
        %5444 = vmatpush2.msra.mxu0 0.0
        %5445 = vmatprep.subr.mxu0 0.0
        %5446 = vmatpush2.msra.mxu0 0.0
        %5447 = vmatprep.subr.mxu0 0.0
        %5448 = vmatpush2.msra.mxu0 0.0
        %5449 = vmatprep.mubr.f32.mxu0 0.0
        %5450 = vmatmul.mubr.f32.gmra.mxu0 %v4754
        %v5451 = vpop.f32.mrf.mxu0
        %v5452 = vadd.f32 0.0, %v5451
        %v5453 = vpop.f32.mrf.mxu0
        %v5454 = vadd.f32 0.0, %v5453
        %5455 = vmatprep.mubr.f32.mxu0 0.0
        %5456 = vmatmul.mubr.f32.gmra.mxu0 %v4757
        %v5457 = vpop.f32.mrf.mxu0
        %v5458 = vadd.f32 0.0, %v5457
        %v5459 = vpop.f32.mrf.mxu0
        %v5460 = vadd.f32 0.0, %v5459
        %5461 = vmatprep.mubr.f32.mxu0 0.0
        %5462 = vmatmul.mubr.f32.gmra.mxu0 %v4760
        %v5463 = vpop.f32.mrf.mxu0
        %v5464 = vadd.f32 0.0, %v5463
        %v5465 = vpop.f32.mrf.mxu0
        %v5466 = vadd.f32 0.0, %v5465
        %5467 = vmatprep.mubr.f32.mxu0 0.0
        %5468 = vmatmul.mubr.f32.gmra.mxu0 %v4763
        %v5469 = vpop.f32.mrf.mxu0
        %v5470 = vadd.f32 0.0, %v5469
        %v5471 = vpop.f32.mrf.mxu0
        %v5472 = vadd.f32 0.0, %v5471
        %5473 = vmatprep.mubr.f32.mxu0 0.0
        %5474 = vmatmul.mubr.f32.gmra.mxu0 %v4766
        %v5475 = vpop.f32.mrf.mxu0
        %v5476 = vadd.f32 0.0, %v5475
        %v5477 = vpop.f32.mrf.mxu0
        %v5478 = vadd.f32 0.0, %v5477
        %5479 = vmatprep.mubr.f32.mxu0 0.0
        %5480 = vmatmul.mubr.f32.gmra.mxu0 %v4769
        %v5481 = vpop.f32.mrf.mxu0
        %v5482 = vadd.f32 0.0, %v5481
        %v5483 = vpop.f32.mrf.mxu0
        %v5484 = vadd.f32 0.0, %v5483
        %5485 = vmatprep.mubr.f32.mxu0 0.0
        %5486 = vmatmul.mubr.f32.gmra.mxu0 %v4772
        %v5487 = vpop.f32.mrf.mxu0
        %v5488 = vadd.f32 0.0, %v5487
        %v5489 = vpop.f32.mrf.mxu0
        %v5490 = vadd.f32 0.0, %v5489
        %5491 = vmatprep.mubr.f32.mxu0 0.0
        %5492 = vmatmul.mubr.f32.gmra.mxu0 %v4775
        %v5493 = vpop.f32.mrf.mxu0
        %v5494 = vadd.f32 0.0, %v5493
        %v5495 = vpop.f32.mrf.mxu0
        %v5496 = vadd.f32 0.0, %v5495
        %5497 = vmatprep.mubr.f32.mxu0 0.0
        %5498 = vmatmul.mubr.f32.gmra.mxu0 %v4778
        %v5499 = vpop.f32.mrf.mxu0
        %v5500 = vadd.f32 0.0, %v5499
        %v5501 = vpop.f32.mrf.mxu0
        %v5502 = vadd.f32 0.0, %v5501
        %5503 = vmatprep.mubr.f32.mxu0 0.0
        %5504 = vmatmul.mubr.f32.gmra.mxu0 %v4781
        %v5505 = vpop.f32.mrf.mxu0
        %v5506 = vadd.f32 0.0, %v5505
        %v5507 = vpop.f32.mrf.mxu0
        %v5508 = vadd.f32 0.0, %v5507
        %5509 = vmatprep.mubr.f32.mxu0 0.0
        %5510 = vmatmul.mubr.f32.gmra.mxu0 %v4784
        %v5511 = vpop.f32.mrf.mxu0
        %v5512 = vadd.f32 0.0, %v5511
        %v5513 = vpop.f32.mrf.mxu0
        %v5514 = vadd.f32 0.0, %v5513
        %5515 = vmatprep.mubr.f32.mxu0 0.0
        %5516 = vmatmul.mubr.f32.gmra.mxu0 %v4787
        %v5517 = vpop.f32.mrf.mxu0
        %v5518 = vadd.f32 0.0, %v5517
        %v5519 = vpop.f32.mrf.mxu0
        %v5520 = vadd.f32 0.0, %v5519
        %5521 = vmatprep.mubr.f32.mxu0 0.0
        %5522 = vmatmul.mubr.f32.gmra.mxu0 %v4790
        %v5523 = vpop.f32.mrf.mxu0
        %v5524 = vadd.f32 0.0, %v5523
        %v5525 = vpop.f32.mrf.mxu0
        %v5526 = vadd.f32 0.0, %v5525
        %5527 = vmatprep.mubr.f32.mxu0 0.0
        %5528 = vmatmul.mubr.f32.gmra.mxu0 %v4793
        %v5529 = vpop.f32.mrf.mxu0
        %v5530 = vadd.f32 0.0, %v5529
        %v5531 = vpop.f32.mrf.mxu0
        %v5532 = vadd.f32 0.0, %v5531
        %5533 = vmatprep.mubr.f32.mxu0 0.0
        %5534 = vmatmul.mubr.f32.gmra.mxu0 %v4796
        %v5535 = vpop.f32.mrf.mxu0
        %v5536 = vadd.f32 0.0, %v5535
        %v5537 = vpop.f32.mrf.mxu0
        %v5538 = vadd.f32 0.0, %v5537
        %5539 = vmatprep.mubr.f32.mxu0 0.0
        %5540 = vmatmul.mubr.f32.gmra.mxu0 %v4799
        %v5541 = vpop.f32.mrf.mxu0
        %v5542 = vadd.f32 0.0, %v5541
        %v5543 = vpop.f32.mrf.mxu0
        %v5544 = vadd.f32 0.0, %v5543
        %5545 = vmatprep.mubr.f32.mxu0 0.0
        %5546 = vmatmul.mubr.f32.gmra.mxu0 %v4802
        %v5547 = vpop.f32.mrf.mxu0
        %v5548 = vadd.f32 0.0, %v5547
        %v5549 = vpop.f32.mrf.mxu0
        %v5550 = vadd.f32 0.0, %v5549
        %5551 = vmatprep.mubr.f32.mxu0 0.0
        %5552 = vmatmul.mubr.f32.gmra.mxu0 %v4805
        %v5553 = vpop.f32.mrf.mxu0
        %v5554 = vadd.f32 0.0, %v5553
        %v5555 = vpop.f32.mrf.mxu0
        %v5556 = vadd.f32 0.0, %v5555
        %5557 = vmatprep.mubr.f32.mxu0 0.0
        %5558 = vmatmul.mubr.f32.gmra.mxu0 %v4808
        %v5559 = vpop.f32.mrf.mxu0
        %v5560 = vadd.f32 0.0, %v5559
        %v5561 = vpop.f32.mrf.mxu0
        %v5562 = vadd.f32 0.0, %v5561
        %5563 = vmatprep.mubr.f32.mxu0 0.0
        %5564 = vmatmul.mubr.f32.gmra.mxu0 %v4811
        %v5565 = vpop.f32.mrf.mxu0
        %v5566 = vadd.f32 0.0, %v5565
        %v5567 = vpop.f32.mrf.mxu0
        %v5568 = vadd.f32 0.0, %v5567
        %5569 = vmatprep.mubr.f32.mxu0 0.0
        %5570 = vmatmul.mubr.f32.gmra.mxu0 %v4814
        %v5571 = vpop.f32.mrf.mxu0
        %v5572 = vadd.f32 0.0, %v5571
        %v5573 = vpop.f32.mrf.mxu0
        %v5574 = vadd.f32 0.0, %v5573
        %5575 = vmatprep.mubr.f32.mxu0 0.0
        %5576 = vmatmul.mubr.f32.gmra.mxu0 %v4817
        %v5577 = vpop.f32.mrf.mxu0
        %v5578 = vadd.f32 0.0, %v5577
        %v5579 = vpop.f32.mrf.mxu0
        %v5580 = vadd.f32 0.0, %v5579
        %5581 = vmatprep.mubr.f32.mxu0 0.0
        %5582 = vmatmul.mubr.f32.gmra.mxu0 %v4820
        %v5583 = vpop.f32.mrf.mxu0
        %v5584 = vadd.f32 0.0, %v5583
        %v5585 = vpop.f32.mrf.mxu0
        %v5586 = vadd.f32 0.0, %v5585
        %5587 = vmatprep.mubr.f32.mxu0 0.0
        %5588 = vmatmul.mubr.f32.gmra.mxu0 %v4823
        %v5589 = vpop.f32.mrf.mxu0
        %v5590 = vadd.f32 0.0, %v5589
        %v5591 = vpop.f32.mrf.mxu0
        %v5592 = vadd.f32 0.0, %v5591
        %5593 = vmatprep.mubr.f32.mxu0 0.0
        %5594 = vmatmul.mubr.f32.gmra.mxu0 %v4826
        %v5595 = vpop.f32.mrf.mxu0
        %v5596 = vadd.f32 0.0, %v5595
        %v5597 = vpop.f32.mrf.mxu0
        %v5598 = vadd.f32 0.0, %v5597
        %5599 = vmatprep.mubr.f32.mxu0 0.0
        %5600 = vmatmul.mubr.f32.gmra.mxu0 %v4829
        %v5601 = vpop.f32.mrf.mxu0
        %v5602 = vadd.f32 0.0, %v5601
        %v5603 = vpop.f32.mrf.mxu0
        %v5604 = vadd.f32 0.0, %v5603
        %5605 = vmatprep.mubr.f32.mxu0 0.0
        %5606 = vmatmul.mubr.f32.gmra.mxu0 %v4832
        %v5607 = vpop.f32.mrf.mxu0
        %v5608 = vadd.f32 0.0, %v5607
        %v5609 = vpop.f32.mrf.mxu0
        %v5610 = vadd.f32 0.0, %v5609
        %5611 = vmatprep.mubr.f32.mxu0 0.0
        %5612 = vmatmul.mubr.f32.gmra.mxu0 %v4835
        %v5613 = vpop.f32.mrf.mxu0
        %v5614 = vadd.f32 0.0, %v5613
        %v5615 = vpop.f32.mrf.mxu0
        %v5616 = vadd.f32 0.0, %v5615
        %5617 = vmatprep.mubr.f32.mxu0 0.0
        %5618 = vmatmul.mubr.f32.gmra.mxu0 %v4838
        %v5619 = vpop.f32.mrf.mxu0
        %v5620 = vadd.f32 0.0, %v5619
        %v5621 = vpop.f32.mrf.mxu0
        %v5622 = vadd.f32 0.0, %v5621
        %5623 = vmatprep.mubr.f32.mxu0 0.0
        %5624 = vmatmul.mubr.f32.gmra.mxu0 %v4841
        %v5625 = vpop.f32.mrf.mxu0
        %v5626 = vadd.f32 0.0, %v5625
        %v5627 = vpop.f32.mrf.mxu0
        %v5628 = vadd.f32 0.0, %v5627
        %5629 = vmatprep.mubr.f32.mxu0 0.0
        %5630 = vmatmul.mubr.f32.gmra.mxu0 %v4844
        %v5631 = vpop.f32.mrf.mxu0
        %v5632 = vadd.f32 0.0, %v5631
        %v5633 = vpop.f32.mrf.mxu0
        %v5634 = vadd.f32 0.0, %v5633
        %5635 = vmatprep.mubr.f32.mxu0 0.0
        %5636 = vmatmul.mubr.f32.gmra.mxu0 %v4847
        %v5637 = vpop.f32.mrf.mxu0
        %v5638 = vadd.f32 0.0, %v5637
        %v5639 = vpop.f32.mrf.mxu0
        %v5640 = vadd.f32 0.0, %v5639
        %5641 = vmatprep.mubr.f32.mxu0 0.0
        %5642 = vmatmul.mubr.f32.gmra.mxu0 %v4850
        %v5643 = vpop.f32.mrf.mxu0
        %v5644 = vadd.f32 0.0, %v5643
        %v5645 = vpop.f32.mrf.mxu0
        %v5646 = vadd.f32 0.0, %v5645
        %5647 = vmatprep.mubr.f32.mxu0 0.0
        %5648 = vmatmul.mubr.f32.gmra.mxu0 %v4853
        %v5649 = vpop.f32.mrf.mxu0
        %v5650 = vadd.f32 0.0, %v5649
        %v5651 = vpop.f32.mrf.mxu0
        %v5652 = vadd.f32 0.0, %v5651
        %5653 = vmatprep.mubr.f32.mxu0 0.0
        %5654 = vmatmul.mubr.f32.gmra.mxu0 %v4856
        %v5655 = vpop.f32.mrf.mxu0
        %v5656 = vadd.f32 0.0, %v5655
        %v5657 = vpop.f32.mrf.mxu0
        %v5658 = vadd.f32 0.0, %v5657
        %5659 = vmatprep.mubr.f32.mxu0 0.0
        %5660 = vmatmul.mubr.f32.gmra.mxu0 %v4859
        %v5661 = vpop.f32.mrf.mxu0
        %v5662 = vadd.f32 0.0, %v5661
        %v5663 = vpop.f32.mrf.mxu0
        %v5664 = vadd.f32 0.0, %v5663
        %5665 = vmatprep.mubr.f32.mxu0 0.0
        %5666 = vmatmul.mubr.f32.gmra.mxu0 %v4862
        %v5667 = vpop.f32.mrf.mxu0
        %v5668 = vadd.f32 0.0, %v5667
        %v5669 = vpop.f32.mrf.mxu0
        %v5670 = vadd.f32 0.0, %v5669
        %5671 = vmatprep.mubr.f32.mxu0 0.0
        %5672 = vmatmul.mubr.f32.gmra.mxu0 %v4865
        %v5673 = vpop.f32.mrf.mxu0
        %v5674 = vadd.f32 0.0, %v5673
        %v5675 = vpop.f32.mrf.mxu0
        %v5676 = vadd.f32 0.0, %v5675
        %5677 = vmatprep.mubr.f32.mxu0 0.0
        %5678 = vmatmul.mubr.f32.gmra.mxu0 %v4868
        %v5679 = vpop.f32.mrf.mxu0
        %v5680 = vadd.f32 0.0, %v5679
        %v5681 = vpop.f32.mrf.mxu0
        %v5682 = vadd.f32 0.0, %v5681
        %5683 = vmatprep.mubr.f32.mxu0 0.0
        %5684 = vmatmul.mubr.f32.gmra.mxu0 %v4871
        %v5685 = vpop.f32.mrf.mxu0
        %v5686 = vadd.f32 0.0, %v5685
        %v5687 = vpop.f32.mrf.mxu0
        %v5688 = vadd.f32 0.0, %v5687
        %5689 = vmatprep.mubr.f32.mxu0 0.0
        %5690 = vmatmul.mubr.f32.gmra.mxu0 %v4874
        %v5691 = vpop.f32.mrf.mxu0
        %v5692 = vadd.f32 0.0, %v5691
        %v5693 = vpop.f32.mrf.mxu0
        %v5694 = vadd.f32 0.0, %v5693
        %5695 = vmatprep.mubr.f32.mxu0 0.0
        %5696 = vmatmul.mubr.f32.gmra.mxu0 %v4877
        %v5697 = vpop.f32.mrf.mxu0
        %v5698 = vadd.f32 0.0, %v5697
        %v5699 = vpop.f32.mrf.mxu0
        %v5700 = vadd.f32 0.0, %v5699
        %5701 = vmatprep.mubr.f32.mxu0 0.0
        %5702 = vmatmul.mubr.f32.gmra.mxu0 %v4880
        %v5703 = vpop.f32.mrf.mxu0
        %v5704 = vadd.f32 0.0, %v5703
        %v5705 = vpop.f32.mrf.mxu0
        %v5706 = vadd.f32 0.0, %v5705
        %5707 = vmatprep.mubr.f32.mxu0 0.0
        %5708 = vmatmul.mubr.f32.gmra.mxu0 %v4883
        %v5709 = vpop.f32.mrf.mxu0
        %v5710 = vadd.f32 0.0, %v5709
        %v5711 = vpop.f32.mrf.mxu0
        %v5712 = vadd.f32 0.0, %v5711
        %5713 = vmatprep.mubr.f32.mxu0 0.0
        %5714 = vmatmul.mubr.f32.gmra.mxu0 %v4886
        %v5715 = vpop.f32.mrf.mxu0
        %v5716 = vadd.f32 0.0, %v5715
        %v5717 = vpop.f32.mrf.mxu0
        %v5718 = vadd.f32 0.0, %v5717
        %5719 = vmatprep.mubr.f32.mxu0 0.0
        %5720 = vmatmul.mubr.f32.gmra.mxu0 %v4889
        %v5721 = vpop.f32.mrf.mxu0
        %v5722 = vadd.f32 0.0, %v5721
        %v5723 = vpop.f32.mrf.mxu0
        %v5724 = vadd.f32 0.0, %v5723
        %5725 = vmatprep.mubr.f32.mxu0 0.0
        %5726 = vmatmul.mubr.f32.gmra.mxu0 %v4892
        %v5727 = vpop.f32.mrf.mxu0
        %v5728 = vadd.f32 0.0, %v5727
        %v5729 = vpop.f32.mrf.mxu0
        %v5730 = vadd.f32 0.0, %v5729
        %5731 = vmatprep.mubr.f32.mxu0 0.0
        %5732 = vmatmul.mubr.f32.gmra.mxu0 %v4895
        %v5733 = vpop.f32.mrf.mxu0
        %v5734 = vadd.f32 0.0, %v5733
        %v5735 = vpop.f32.mrf.mxu0
        %v5736 = vadd.f32 0.0, %v5735
        %5737 = vmatprep.mubr.f32.mxu0 0.0
        %5738 = vmatmul.mubr.f32.gmra.mxu0 %v4898
        %v5739 = vpop.f32.mrf.mxu0
        %v5740 = vadd.f32 0.0, %v5739
        %v5741 = vpop.f32.mrf.mxu0
        %v5742 = vadd.f32 0.0, %v5741
        %5743 = vmatprep.mubr.f32.mxu0 0.0
        %5744 = vmatmul.mubr.f32.gmra.mxu0 %v4901
        %v5745 = vpop.f32.mrf.mxu0
        %v5746 = vadd.f32 0.0, %v5745
        %v5747 = vpop.f32.mrf.mxu0
        %v5748 = vadd.f32 0.0, %v5747
        %5749 = vmatprep.mubr.f32.mxu0 0.0
        %5750 = vmatmul.mubr.f32.gmra.mxu0 %v4904
        %v5751 = vpop.f32.mrf.mxu0
        %v5752 = vadd.f32 0.0, %v5751
        %v5753 = vpop.f32.mrf.mxu0
        %v5754 = vadd.f32 0.0, %v5753
        %5755 = vmatprep.mubr.f32.mxu0 0.0
        %5756 = vmatmul.mubr.f32.gmra.mxu0 %v4907
        %v5757 = vpop.f32.mrf.mxu0
        %v5758 = vadd.f32 0.0, %v5757
        %v5759 = vpop.f32.mrf.mxu0
        %v5760 = vadd.f32 0.0, %v5759
        %5761 = vmatprep.mubr.f32.mxu0 0.0
        %5762 = vmatmul.mubr.f32.gmra.mxu0 %v4910
        %v5763 = vpop.f32.mrf.mxu0
        %v5764 = vadd.f32 0.0, %v5763
        %v5765 = vpop.f32.mrf.mxu0
        %v5766 = vadd.f32 0.0, %v5765
        %5767 = vmatprep.mubr.f32.mxu0 0.0
        %5768 = vmatmul.mubr.f32.gmra.mxu0 %v4913
        %v5769 = vpop.f32.mrf.mxu0
        %v5770 = vadd.f32 0.0, %v5769
        %v5771 = vpop.f32.mrf.mxu0
        %v5772 = vadd.f32 0.0, %v5771
        %5773 = vmatprep.mubr.f32.mxu0 0.0
        %5774 = vmatmul.mubr.f32.gmra.mxu0 %v4916
        %v5775 = vpop.f32.mrf.mxu0
        %v5776 = vadd.f32 0.0, %v5775
        %v5777 = vpop.f32.mrf.mxu0
        %v5778 = vadd.f32 0.0, %v5777
        %5779 = vmatprep.mubr.f32.mxu0 0.0
        %5780 = vmatmul.mubr.f32.gmra.mxu0 %v4919
        %v5781 = vpop.f32.mrf.mxu0
        %v5782 = vadd.f32 0.0, %v5781
        %v5783 = vpop.f32.mrf.mxu0
        %v5784 = vadd.f32 0.0, %v5783
        %5785 = vmatprep.mubr.f32.mxu0 0.0
        %5786 = vmatmul.mubr.f32.gmra.mxu0 %v4922
        %v5787 = vpop.f32.mrf.mxu0
        %v5788 = vadd.f32 0.0, %v5787
        %v5789 = vpop.f32.mrf.mxu0
        %v5790 = vadd.f32 0.0, %v5789
        %5791 = vmatprep.mubr.f32.mxu0 0.0
        %5792 = vmatmul.mubr.f32.gmra.mxu0 %v4925
        %v5793 = vpop.f32.mrf.mxu0
        %v5794 = vadd.f32 0.0, %v5793
        %v5795 = vpop.f32.mrf.mxu0
        %v5796 = vadd.f32 0.0, %v5795
        %5797 = vmatprep.mubr.f32.mxu0 0.0
        %5798 = vmatmul.mubr.f32.gmra.mxu0 %v4928
        %v5799 = vpop.f32.mrf.mxu0
        %v5800 = vadd.f32 0.0, %v5799
        %v5801 = vpop.f32.mrf.mxu0
        %v5802 = vadd.f32 0.0, %v5801
        %5803 = vmatprep.mubr.f32.mxu0 0.0
        %5804 = vmatmul.mubr.f32.gmra.mxu0 %v4931
        %v5805 = vpop.f32.mrf.mxu0
        %v5806 = vadd.f32 0.0, %v5805
        %v5807 = vpop.f32.mrf.mxu0
        %v5808 = vadd.f32 0.0, %v5807
        %5809 = vmatprep.mubr.f32.mxu0 0.0
        %5810 = vmatmul.mubr.f32.gmra.mxu0 %v4934
        %v5811 = vpop.f32.mrf.mxu0
        %v5812 = vadd.f32 0.0, %v5811
        %v5813 = vpop.f32.mrf.mxu0
        %v5814 = vadd.f32 0.0, %v5813
        %5815 = vmatprep.mubr.f32.mxu0 0.0
        %5816 = vmatmul.mubr.f32.gmra.mxu0 %v4937
        %v5817 = vpop.f32.mrf.mxu0
        %v5818 = vadd.f32 0.0, %v5817
        %v5819 = vpop.f32.mrf.mxu0
        %v5820 = vadd.f32 0.0, %v5819
        %5821 = vmatprep.mubr.f32.mxu0 0.0
        %5822 = vmatmul.mubr.f32.gmra.mxu0 %v4940
        %v5823 = vpop.f32.mrf.mxu0
        %v5824 = vadd.f32 0.0, %v5823
        %v5825 = vpop.f32.mrf.mxu0
        %v5826 = vadd.f32 0.0, %v5825
        %5827 = vdwg.mxu0
        %5828 = vst [vmem:[%s609] sm:$0xff] %v5009
        %5829 = vst [vmem:[%s609 + $0x8] sm:$0xff] %v5011
        %5830 = vst [vmem:[%s609 + $0x10] sm:$0xff] %v5452
        %5831 = vst.msk [vmem:[%s609 + $0x18] sm:$0xff] %vm3629, %v5454
        %5832 = vst [vmem:[%s609 + $0x20] sm:$0xff] %v5015
        %5833 = vst [vmem:[%s609 + $0x28] sm:$0xff] %v5017
        %5834 = vst [vmem:[%s609 + $0x30] sm:$0xff] %v5458
        %5835 = vst.msk [vmem:[%s609 + $0x38] sm:$0xff] %vm3629, %v5460
        %5836 = vst [vmem:[%s609 + $0x40] sm:$0xff] %v5021
        %5837 = vst [vmem:[%s609 + $0x48] sm:$0xff] %v5023
        %5838 = vst [vmem:[%s609 + $0x50] sm:$0xff] %v5464
        %5839 = vst.msk [vmem:[%s609 + $0x58] sm:$0xff] %vm3629, %v5466
        %5840 = vst [vmem:[%s609 + $0x60] sm:$0xff] %v5027
        %5841 = vst [vmem:[%s609 + $0x68] sm:$0xff] %v5029
        %5842 = vst [vmem:[%s609 + $0x70] sm:$0xff] %v5470
        %5843 = vst.msk [vmem:[%s609 + $0x78] sm:$0xff] %vm3629, %v5472
        %5844 = vst [vmem:[%s609 + $0x80] sm:$0xff] %v5033
        %5845 = vst [vmem:[%s609 + $0x88] sm:$0xff] %v5035
        %5846 = vst [vmem:[%s609 + $0x90] sm:$0xff] %v5476
        %5847 = vst.msk [vmem:[%s609 + $0x98] sm:$0xff] %vm3629, %v5478
        %5848 = vst [vmem:[%s609 + $0xa0] sm:$0xff] %v5039
        %5849 = vst [vmem:[%s609 + $0xa8] sm:$0xff] %v5041
        %5850 = vst [vmem:[%s609 + $0xb0] sm:$0xff] %v5482
        %5851 = vst.msk [vmem:[%s609 + $0xb8] sm:$0xff] %vm3629, %v5484
        %5852 = vst [vmem:[%s609 + $0xc0] sm:$0xff] %v5045
        %5853 = vst [vmem:[%s609 + $0xc8] sm:$0xff] %v5047
        %5854 = vst [vmem:[%s609 + $0xd0] sm:$0xff] %v5488
        %5855 = vst.msk [vmem:[%s609 + $0xd8] sm:$0xff] %vm3629, %v5490
        %5856 = vst [vmem:[%s609 + $0xe0] sm:$0xff] %v5051
        %5857 = vst [vmem:[%s609 + $0xe8] sm:$0xff] %v5053
        %5858 = vst [vmem:[%s609 + $0xf0] sm:$0xff] %v5494
        %5859 = vst.msk [vmem:[%s609 + $0xf8] sm:$0xff] %vm3629, %v5496
        %5860 = vst [vmem:[%s609 + $0x100] sm:$0xff] %v5057
        %5861 = vst [vmem:[%s609 + $0x108] sm:$0xff] %v5059
        %5862 = vst [vmem:[%s609 + $0x110] sm:$0xff] %v5500
        %5863 = vst.msk [vmem:[%s609 + $0x118] sm:$0xff] %vm3629, %v5502
        %5864 = vst [vmem:[%s609 + $0x120] sm:$0xff] %v5063
        %5865 = vst [vmem:[%s609 + $0x128] sm:$0xff] %v5065
        %5866 = vst [vmem:[%s609 + $0x130] sm:$0xff] %v5506
        %5867 = vst.msk [vmem:[%s609 + $0x138] sm:$0xff] %vm3629, %v5508
        %5868 = vst [vmem:[%s609 + $0x140] sm:$0xff] %v5069
        %5869 = vst [vmem:[%s609 + $0x148] sm:$0xff] %v5071
        %5870 = vst [vmem:[%s609 + $0x150] sm:$0xff] %v5512
        %5871 = vst.msk [vmem:[%s609 + $0x158] sm:$0xff] %vm3629, %v5514
        %5872 = vst [vmem:[%s609 + $0x160] sm:$0xff] %v5075
        %5873 = vst [vmem:[%s609 + $0x168] sm:$0xff] %v5077
        %5874 = vst [vmem:[%s609 + $0x170] sm:$0xff] %v5518
        %5875 = vst.msk [vmem:[%s609 + $0x178] sm:$0xff] %vm3629, %v5520
        %5876 = vst [vmem:[%s609 + $0x180] sm:$0xff] %v5081
        %5877 = vst [vmem:[%s609 + $0x188] sm:$0xff] %v5083
        %5878 = vst [vmem:[%s609 + $0x190] sm:$0xff] %v5524
        %5879 = vst.msk [vmem:[%s609 + $0x198] sm:$0xff] %vm3629, %v5526
        %5880 = vst [vmem:[%s609 + $0x1a0] sm:$0xff] %v5087
        %5881 = vst [vmem:[%s609 + $0x1a8] sm:$0xff] %v5089
        %5882 = vst [vmem:[%s609 + $0x1b0] sm:$0xff] %v5530
        %5883 = vst.msk [vmem:[%s609 + $0x1b8] sm:$0xff] %vm3629, %v5532
        %5884 = vst [vmem:[%s609 + $0x1c0] sm:$0xff] %v5093
        %5885 = vst [vmem:[%s609 + $0x1c8] sm:$0xff] %v5095
        %5886 = vst [vmem:[%s609 + $0x1d0] sm:$0xff] %v5536
        %5887 = vst.msk [vmem:[%s609 + $0x1d8] sm:$0xff] %vm3629, %v5538
        %5888 = vst [vmem:[%s609 + $0x1e0] sm:$0xff] %v5099
        %5889 = vst [vmem:[%s609 + $0x1e8] sm:$0xff] %v5101
        %5890 = vst [vmem:[%s609 + $0x1f0] sm:$0xff] %v5542
        %5891 = vst.msk [vmem:[%s609 + $0x1f8] sm:$0xff] %vm3629, %v5544
        %5892 = vst [vmem:[%s609 + $0x200] sm:$0xff] %v5105
        %5893 = vst [vmem:[%s609 + $0x208] sm:$0xff] %v5107
        %5894 = vst [vmem:[%s609 + $0x210] sm:$0xff] %v5548
        %5895 = vst.msk [vmem:[%s609 + $0x218] sm:$0xff] %vm3629, %v5550
        %5896 = vst [vmem:[%s609 + $0x220] sm:$0xff] %v5111
        %5897 = vst [vmem:[%s609 + $0x228] sm:$0xff] %v5113
        %5898 = vst [vmem:[%s609 + $0x230] sm:$0xff] %v5554
        %5899 = vst.msk [vmem:[%s609 + $0x238] sm:$0xff] %vm3629, %v5556
        %5900 = vst [vmem:[%s609 + $0x240] sm:$0xff] %v5117
        %5901 = vst [vmem:[%s609 + $0x248] sm:$0xff] %v5119
        %5902 = vst [vmem:[%s609 + $0x250] sm:$0xff] %v5560
        %5903 = vst.msk [vmem:[%s609 + $0x258] sm:$0xff] %vm3629, %v5562
        %5904 = vst [vmem:[%s609 + $0x260] sm:$0xff] %v5123
        %5905 = vst [vmem:[%s609 + $0x268] sm:$0xff] %v5125
        %5906 = vst [vmem:[%s609 + $0x270] sm:$0xff] %v5566
        %5907 = vst.msk [vmem:[%s609 + $0x278] sm:$0xff] %vm3629, %v5568
        %5908 = vst [vmem:[%s609 + $0x280] sm:$0xff] %v5129
        %5909 = vst [vmem:[%s609 + $0x288] sm:$0xff] %v5131
        %5910 = vst [vmem:[%s609 + $0x290] sm:$0xff] %v5572
        %5911 = vst.msk [vmem:[%s609 + $0x298] sm:$0xff] %vm3629, %v5574
        %5912 = vst [vmem:[%s609 + $0x2a0] sm:$0xff] %v5135
        %5913 = vst [vmem:[%s609 + $0x2a8] sm:$0xff] %v5137
        %5914 = vst [vmem:[%s609 + $0x2b0] sm:$0xff] %v5578
        %5915 = vst.msk [vmem:[%s609 + $0x2b8] sm:$0xff] %vm3629, %v5580
        %5916 = vst [vmem:[%s609 + $0x2c0] sm:$0xff] %v5141
        %5917 = vst [vmem:[%s609 + $0x2c8] sm:$0xff] %v5143
        %5918 = vst [vmem:[%s609 + $0x2d0] sm:$0xff] %v5584
        %5919 = vst.msk [vmem:[%s609 + $0x2d8] sm:$0xff] %vm3629, %v5586
        %5920 = vst [vmem:[%s609 + $0x2e0] sm:$0xff] %v5147
        %5921 = vst [vmem:[%s609 + $0x2e8] sm:$0xff] %v5149
        %5922 = vst [vmem:[%s609 + $0x2f0] sm:$0xff] %v5590
        %5923 = vst.msk [vmem:[%s609 + $0x2f8] sm:$0xff] %vm3629, %v5592
        %5924 = vst [vmem:[%s609 + $0x300] sm:$0xff] %v5153
        %5925 = vst [vmem:[%s609 + $0x308] sm:$0xff] %v5155
        %5926 = vst [vmem:[%s609 + $0x310] sm:$0xff] %v5596
        %5927 = vst.msk [vmem:[%s609 + $0x318] sm:$0xff] %vm3629, %v5598
        %5928 = vst [vmem:[%s609 + $0x320] sm:$0xff] %v5159
        %5929 = vst [vmem:[%s609 + $0x328] sm:$0xff] %v5161
        %5930 = vst [vmem:[%s609 + $0x330] sm:$0xff] %v5602
        %5931 = vst.msk [vmem:[%s609 + $0x338] sm:$0xff] %vm3629, %v5604
        %5932 = vst [vmem:[%s609 + $0x340] sm:$0xff] %v5165
        %5933 = vst [vmem:[%s609 + $0x348] sm:$0xff] %v5167
        %5934 = vst [vmem:[%s609 + $0x350] sm:$0xff] %v5608
        %5935 = vst.msk [vmem:[%s609 + $0x358] sm:$0xff] %vm3629, %v5610
        %5936 = vst [vmem:[%s609 + $0x360] sm:$0xff] %v5171
        %5937 = vst [vmem:[%s609 + $0x368] sm:$0xff] %v5173
        %5938 = vst [vmem:[%s609 + $0x370] sm:$0xff] %v5614
        %5939 = vst.msk [vmem:[%s609 + $0x378] sm:$0xff] %vm3629, %v5616
        %5940 = vst [vmem:[%s609 + $0x380] sm:$0xff] %v5177
        %5941 = vst [vmem:[%s609 + $0x388] sm:$0xff] %v5179
        %5942 = vst [vmem:[%s609 + $0x390] sm:$0xff] %v5620
        %5943 = vst.msk [vmem:[%s609 + $0x398] sm:$0xff] %vm3629, %v5622
        %5944 = vst [vmem:[%s609 + $0x3a0] sm:$0xff] %v5183
        %5945 = vst [vmem:[%s609 + $0x3a8] sm:$0xff] %v5185
        %5946 = vst [vmem:[%s609 + $0x3b0] sm:$0xff] %v5626
        %5947 = vst.msk [vmem:[%s609 + $0x3b8] sm:$0xff] %vm3629, %v5628
        %5948 = vst [vmem:[%s609 + $0x3c0] sm:$0xff] %v5189
        %5949 = vst [vmem:[%s609 + $0x3c8] sm:$0xff] %v5191
        %5950 = vst [vmem:[%s609 + $0x3d0] sm:$0xff] %v5632
        %5951 = vst.msk [vmem:[%s609 + $0x3d8] sm:$0xff] %vm3629, %v5634
        %5952 = vst [vmem:[%s609 + $0x3e0] sm:$0xff] %v5195
        %5953 = vst [vmem:[%s609 + $0x3e8] sm:$0xff] %v5197
        %5954 = vst [vmem:[%s609 + $0x3f0] sm:$0xff] %v5638
        %5955 = vst.msk [vmem:[%s609 + $0x3f8] sm:$0xff] %vm3629, %v5640
        %5956 = vst [vmem:[%s609 + $0x400] sm:$0xff] %v5201
        %5957 = vst [vmem:[%s609 + $0x408] sm:$0xff] %v5203
        %5958 = vst [vmem:[%s609 + $0x410] sm:$0xff] %v5644
        %5959 = vst.msk [vmem:[%s609 + $0x418] sm:$0xff] %vm3629, %v5646
        %5960 = vst [vmem:[%s609 + $0x420] sm:$0xff] %v5207
        %5961 = vst [vmem:[%s609 + $0x428] sm:$0xff] %v5209
        %5962 = vst [vmem:[%s609 + $0x430] sm:$0xff] %v5650
        %5963 = vst.msk [vmem:[%s609 + $0x438] sm:$0xff] %vm3629, %v5652
        %5964 = vst [vmem:[%s609 + $0x440] sm:$0xff] %v5213
        %5965 = vst [vmem:[%s609 + $0x448] sm:$0xff] %v5215
        %5966 = vst [vmem:[%s609 + $0x450] sm:$0xff] %v5656
        %5967 = vst.msk [vmem:[%s609 + $0x458] sm:$0xff] %vm3629, %v5658
        %5968 = vst [vmem:[%s609 + $0x460] sm:$0xff] %v5219
        %5969 = vst [vmem:[%s609 + $0x468] sm:$0xff] %v5221
        %5970 = vst [vmem:[%s609 + $0x470] sm:$0xff] %v5662
        %5971 = vst.msk [vmem:[%s609 + $0x478] sm:$0xff] %vm3629, %v5664
        %5972 = vst [vmem:[%s609 + $0x480] sm:$0xff] %v5225
        %5973 = vst [vmem:[%s609 + $0x488] sm:$0xff] %v5227
        %5974 = vst [vmem:[%s609 + $0x490] sm:$0xff] %v5668
        %5975 = vst.msk [vmem:[%s609 + $0x498] sm:$0xff] %vm3629, %v5670
        %5976 = vst [vmem:[%s609 + $0x4a0] sm:$0xff] %v5231
        %5977 = vst [vmem:[%s609 + $0x4a8] sm:$0xff] %v5233
        %5978 = vst [vmem:[%s609 + $0x4b0] sm:$0xff] %v5674
        %5979 = vst.msk [vmem:[%s609 + $0x4b8] sm:$0xff] %vm3629, %v5676
        %5980 = vst [vmem:[%s609 + $0x4c0] sm:$0xff] %v5237
        %5981 = vst [vmem:[%s609 + $0x4c8] sm:$0xff] %v5239
        %5982 = vst [vmem:[%s609 + $0x4d0] sm:$0xff] %v5680
        %5983 = vst.msk [vmem:[%s609 + $0x4d8] sm:$0xff] %vm3629, %v5682
        %5984 = vst [vmem:[%s609 + $0x4e0] sm:$0xff] %v5243
        %5985 = vst [vmem:[%s609 + $0x4e8] sm:$0xff] %v5245
        %5986 = vst [vmem:[%s609 + $0x4f0] sm:$0xff] %v5686
        %5987 = vst.msk [vmem:[%s609 + $0x4f8] sm:$0xff] %vm3629, %v5688
        %5988 = vst [vmem:[%s609 + $0x500] sm:$0xff] %v5249
        %5989 = vst [vmem:[%s609 + $0x508] sm:$0xff] %v5251
        %5990 = vst [vmem:[%s609 + $0x510] sm:$0xff] %v5692
        %5991 = vst.msk [vmem:[%s609 + $0x518] sm:$0xff] %vm3629, %v5694
        %5992 = vst [vmem:[%s609 + $0x520] sm:$0xff] %v5255
        %5993 = vst [vmem:[%s609 + $0x528] sm:$0xff] %v5257
        %5994 = vst [vmem:[%s609 + $0x530] sm:$0xff] %v5698
        %5995 = vst.msk [vmem:[%s609 + $0x538] sm:$0xff] %vm3629, %v5700
        %5996 = vst [vmem:[%s609 + $0x540] sm:$0xff] %v5261
        %5997 = vst [vmem:[%s609 + $0x548] sm:$0xff] %v5263
        %5998 = vst [vmem:[%s609 + $0x550] sm:$0xff] %v5704
        %5999 = vst.msk [vmem:[%s609 + $0x558] sm:$0xff] %vm3629, %v5706
        %6000 = vst [vmem:[%s609 + $0x560] sm:$0xff] %v5267
        %6001 = vst [vmem:[%s609 + $0x568] sm:$0xff] %v5269
        %6002 = vst [vmem:[%s609 + $0x570] sm:$0xff] %v5710
        %6003 = vst.msk [vmem:[%s609 + $0x578] sm:$0xff] %vm3629, %v5712
        %6004 = vst [vmem:[%s609 + $0x580] sm:$0xff] %v5273
        %6005 = vst [vmem:[%s609 + $0x588] sm:$0xff] %v5275
        %6006 = vst [vmem:[%s609 + $0x590] sm:$0xff] %v5716
        %6007 = vst.msk [vmem:[%s609 + $0x598] sm:$0xff] %vm3629, %v5718
        %6008 = vst [vmem:[%s609 + $0x5a0] sm:$0xff] %v5279
        %6009 = vst [vmem:[%s609 + $0x5a8] sm:$0xff] %v5281
        %6010 = vst [vmem:[%s609 + $0x5b0] sm:$0xff] %v5722
        %6011 = vst.msk [vmem:[%s609 + $0x5b8] sm:$0xff] %vm3629, %v5724
        %6012 = vst [vmem:[%s609 + $0x5c0] sm:$0xff] %v5285
        %6013 = vst [vmem:[%s609 + $0x5c8] sm:$0xff] %v5287
        %6014 = vst [vmem:[%s609 + $0x5d0] sm:$0xff] %v5728
        %6015 = vst.msk [vmem:[%s609 + $0x5d8] sm:$0xff] %vm3629, %v5730
        %6016 = vst [vmem:[%s609 + $0x5e0] sm:$0xff] %v5291
        %6017 = vst [vmem:[%s609 + $0x5e8] sm:$0xff] %v5293
        %6018 = vst [vmem:[%s609 + $0x5f0] sm:$0xff] %v5734
        %6019 = vst.msk [vmem:[%s609 + $0x5f8] sm:$0xff] %vm3629, %v5736
        %6020 = vst [vmem:[%s609 + $0x600] sm:$0xff] %v5297
        %6021 = vst [vmem:[%s609 + $0x608] sm:$0xff] %v5299
        %6022 = vst [vmem:[%s609 + $0x610] sm:$0xff] %v5740
        %6023 = vst.msk [vmem:[%s609 + $0x618] sm:$0xff] %vm3629, %v5742
        %6024 = vst [vmem:[%s609 + $0x620] sm:$0xff] %v5303
        %6025 = vst [vmem:[%s609 + $0x628] sm:$0xff] %v5305
        %6026 = vst [vmem:[%s609 + $0x630] sm:$0xff] %v5746
        %6027 = vst.msk [vmem:[%s609 + $0x638] sm:$0xff] %vm3629, %v5748
        %6028 = vst [vmem:[%s609 + $0x640] sm:$0xff] %v5309
        %6029 = vst [vmem:[%s609 + $0x648] sm:$0xff] %v5311
        %6030 = vst [vmem:[%s609 + $0x650] sm:$0xff] %v5752
        %6031 = vst.msk [vmem:[%s609 + $0x658] sm:$0xff] %vm3629, %v5754
        %6032 = vst [vmem:[%s609 + $0x660] sm:$0xff] %v5315
        %6033 = vst [vmem:[%s609 + $0x668] sm:$0xff] %v5317
        %6034 = vst [vmem:[%s609 + $0x670] sm:$0xff] %v5758
        %6035 = vst.msk [vmem:[%s609 + $0x678] sm:$0xff] %vm3629, %v5760
        %6036 = vst [vmem:[%s609 + $0x680] sm:$0xff] %v5321
        %6037 = vst [vmem:[%s609 + $0x688] sm:$0xff] %v5323
        %6038 = vst [vmem:[%s609 + $0x690] sm:$0xff] %v5764
        %6039 = vst.msk [vmem:[%s609 + $0x698] sm:$0xff] %vm3629, %v5766
        %6040 = vst [vmem:[%s609 + $0x6a0] sm:$0xff] %v5327
        %6041 = vst [vmem:[%s609 + $0x6a8] sm:$0xff] %v5329
        %6042 = vst [vmem:[%s609 + $0x6b0] sm:$0xff] %v5770
        %6043 = vst.msk [vmem:[%s609 + $0x6b8] sm:$0xff] %vm3629, %v5772
        %6044 = vst [vmem:[%s609 + $0x6c0] sm:$0xff] %v5333
        %6045 = vst [vmem:[%s609 + $0x6c8] sm:$0xff] %v5335
        %6046 = vst [vmem:[%s609 + $0x6d0] sm:$0xff] %v5776
        %6047 = vst.msk [vmem:[%s609 + $0x6d8] sm:$0xff] %vm3629, %v5778
        %6048 = vst [vmem:[%s609 + $0x6e0] sm:$0xff] %v5339
        %6049 = vst [vmem:[%s609 + $0x6e8] sm:$0xff] %v5341
        %6050 = vst [vmem:[%s609 + $0x6f0] sm:$0xff] %v5782
        %6051 = vst.msk [vmem:[%s609 + $0x6f8] sm:$0xff] %vm3629, %v5784
        %6052 = vst [vmem:[%s609 + $0x700] sm:$0xff] %v5345
        %6053 = vst [vmem:[%s609 + $0x708] sm:$0xff] %v5347
        %6054 = vst [vmem:[%s609 + $0x710] sm:$0xff] %v5788
        %6055 = vst.msk [vmem:[%s609 + $0x718] sm:$0xff] %vm3629, %v5790
        %6056 = vst [vmem:[%s609 + $0x720] sm:$0xff] %v5351
        %6057 = vst [vmem:[%s609 + $0x728] sm:$0xff] %v5353
        %6058 = vst [vmem:[%s609 + $0x730] sm:$0xff] %v5794
        %6059 = vst.msk [vmem:[%s609 + $0x738] sm:$0xff] %vm3629, %v5796
        %6060 = vst [vmem:[%s609 + $0x740] sm:$0xff] %v5357
        %6061 = vst [vmem:[%s609 + $0x748] sm:$0xff] %v5359
        %6062 = vst [vmem:[%s609 + $0x750] sm:$0xff] %v5800
        %6063 = vst.msk [vmem:[%s609 + $0x758] sm:$0xff] %vm3629, %v5802
        %6064 = vst [vmem:[%s609 + $0x760] sm:$0xff] %v5363
        %6065 = vst [vmem:[%s609 + $0x768] sm:$0xff] %v5365
        %6066 = vst [vmem:[%s609 + $0x770] sm:$0xff] %v5806
        %6067 = vst.msk [vmem:[%s609 + $0x778] sm:$0xff] %vm3629, %v5808
        %6068 = vst [vmem:[%s609 + $0x780] sm:$0xff] %v5369
        %6069 = vst [vmem:[%s609 + $0x788] sm:$0xff] %v5371
        %6070 = vst [vmem:[%s609 + $0x790] sm:$0xff] %v5812
        %6071 = vst.msk [vmem:[%s609 + $0x798] sm:$0xff] %vm3629, %v5814
        %6072 = vst [vmem:[%s609 + $0x7a0] sm:$0xff] %v5375
        %6073 = vst [vmem:[%s609 + $0x7a8] sm:$0xff] %v5377
        %6074 = vst [vmem:[%s609 + $0x7b0] sm:$0xff] %v5818
        %6075 = vst.msk [vmem:[%s609 + $0x7b8] sm:$0xff] %vm3629, %v5820
        %6076 = vst [vmem:[%s609 + $0x7c0] sm:$0xf] %v5381
        %6077 = vst [vmem:[%s609 + $0x7c8] sm:$0xf] %v5383
        %6078 = vst [vmem:[%s609 + $0x7d0] sm:$0xf] %v5824
        %6079 = vst.msk [vmem:[%s609 + $0x7d8] sm:$0xf] %vm4051, %v5826
        %vm6080 = vcmp.eq.s32.totalorder %v621, 0
        %v6081 = vstv %s1445
        %v6082 = vsel %vm6080, %v6081, 0.0
        %vm6083 = vcmp.eq.s32.totalorder %v621, 1
        %v6084 = vstv %s2471
        %v6085 = vsel %vm6083, %v6084, 0.0
        %v6086 = vadd.f32 %v6082, %v6085
        %vm6087 = vcmp.eq.s32.totalorder %v621, 2
        %v6088 = vstv %s3785
        %v6089 = vsel %vm6087, %v6088, 0.0
        %v6090 = vadd.f32 %v6086, %v6089
        %vm6091 = vcmp.eq.s32.totalorder %v621, 3
        %v6092 = vstv %s1467
        %v6093 = vsel %vm6091, %v6092, 0.0
        %v6094 = vadd.f32 %v6090, %v6093
        %vm6095 = vcmp.eq.s32.totalorder %v621, 4
        %v6096 = vstv %s2486
        %v6097 = vsel %vm6095, %v6096, 0.0
        %v6098 = vadd.f32 %v6094, %v6097
        %vm6099 = vcmp.eq.s32.totalorder %v621, 5
        %v6100 = vstv %s3821
        %v6101 = vsel %vm6099, %v6100, 0.0
        %v6102 = vadd.f32 %v6098, %v6101
        %vm6103 = vcmask 57344
        %6104 = vst.msk [vmem:[%s612] sm:$0x1] %vm6103, %v6102
        %p6105 = scmp.lt.s32.totalorder %s34, 1
        %s6106 = scalar_select %p6105, %s34, 1
        %s6107 = smul.addr %s6106, 12
        %s6108 = smul.addr %s6107, 8
        %s6109 = scalar_lea.vmem %s12, %s6108
        %p6110 = scmp.lt.s32.totalorder %s34, 1
        %s6111 = scalar_select %p6110, %s34, 1
        %s6112 = smul.addr %s6111, 252
        %s6113 = smul.addr %s6112, 8
        %s6114 = scalar_lea.vmem %s13, %s6113
        %p6115 = scmp.lt.s32.totalorder %s34, 1
        %s6116 = scalar_select %p6115, %s34, 1
        %s6117 = scalar_lea.vmem %s14, %s6116
        // Predicated region
        $region97: #{diffpool_dec_forward.1} parent=67 // pred_check
          %p6118 = pneg %p314
        $region98: #{diffpool_dec_forward.1} parent=67 // pred_check_branch
          %6120 = sbr.rel (%p6118) target = $region100
        $region99: #{diffpool_dec_forward.1} parent=67 // pred_region
          _
        $region100: #{diffpool_dec_forward.1} parent=67 // pred_fallthru
          _
        // Predicated region
        $region101: #{diffpool_dec_forward.1} parent=67 // pred_check
          %p6121 = pneg %p340
        $region102: #{diffpool_dec_forward.1} parent=67 // pred_check_branch
          %6123 = sbr.rel (%p6121) target = $region104
        $region103: #{diffpool_dec_forward.1} parent=67 // pred_region
          _
        $region104: #{diffpool_dec_forward.1} parent=67 // pred_fallthru
          _
        // Predicated region
        $region105: #{diffpool_dec_forward.1} parent=67 // pred_check
          %p6124 = pneg %p366
        $region106: #{diffpool_dec_forward.1} parent=67 // pred_check_branch
          %6126 = sbr.rel (%p6124) target = $region108
        $region107: #{diffpool_dec_forward.1} parent=67 // pred_region
          _
        $region108: #{diffpool_dec_forward.1} parent=67 // pred_fallthru
          _
      $region68: #{diffpool_dec_forward.1} parent=5 // pred_fallthru
        _
      %p6127 = scmp.le.s32.totalorder 2, %s29
      // Predicated region
      $region109: #{diffpool_dec_forward.1} parent=5 // pred_check
        %p6128 = pneg %p6127
      $region110: #{diffpool_dec_forward.1} parent=5 // pred_check_branch
        %6130 = sbr.rel (%p6128) target = $region112
      $region111: #{diffpool_dec_forward.1} parent=5 // pred_region
        %s6131 = ssub.s32 %s29, 2
        // Predicated region
        $region113: #{diffpool_dec_forward.1} parent=111 // pred_check
          %p6132 = pneg %p320
        $region114: #{diffpool_dec_forward.1} parent=111 // pred_check_branch
          %6134 = sbr.rel (%p6132) target = $region116
        $region115: #{diffpool_dec_forward.1} parent=111 // pred_region
          %p6135 = scmp.lt.s32.totalorder %s35, 1
          %s6136 = scalar_select %p6135, %s35, 1
          %s6137 = smul.addr %s6136, 12
          %s6138 = smul.addr %s6137, 8
          %s6139 = scalar_lea.vmem %s12, %s6138
        $region116: #{diffpool_dec_forward.1} parent=111 // pred_fallthru
          _
        // Predicated region
        $region117: #{diffpool_dec_forward.1} parent=111 // pred_check
          %p6140 = pneg %p346
        $region118: #{diffpool_dec_forward.1} parent=111 // pred_check_branch
          %6142 = sbr.rel (%p6140) target = $region120
        $region119: #{diffpool_dec_forward.1} parent=111 // pred_region
          %p6143 = scmp.lt.s32.totalorder %s35, 1
          %s6144 = scalar_select %p6143, %s35, 1
          %s6145 = smul.addr %s6144, 252
          %s6146 = smul.addr %s6145, 8
          %s6147 = scalar_lea.vmem %s13, %s6146
        $region120: #{diffpool_dec_forward.1} parent=111 // pred_fallthru
          _
        // Predicated region
        $region121: #{diffpool_dec_forward.1} parent=111 // pred_check
          %p6148 = pneg %p372
        $region122: #{diffpool_dec_forward.1} parent=111 // pred_check_branch
          %6150 = sbr.rel (%p6148) target = $region124
        $region123: #{diffpool_dec_forward.1} parent=111 // pred_region
          %p6151 = scmp.lt.s32.totalorder %s35, 1
          %s6152 = scalar_select %p6151, %s35, 1
          %s6153 = scalar_lea.vmem %s14, %s6152
        $region124: #{diffpool_dec_forward.1} parent=111 // pred_fallthru
          _
      $region112: #{diffpool_dec_forward.1} parent=5 // pred_fallthru
        _
    $region6: #{diffpool_dec_forward.1} parent=1 // loop_footer
      %s33 = sadd.s32 1, %s29
    $region7: #{diffpool_dec_forward.1} parent=1 // loop_footer_branch
      %28 = sbr.rel target = $region3
    $region8: #{diffpool_dec_forward.1} parent=1 // loop_exit
      _
    %6154 = vsyncpa [#allocation3], 1
    %s6155 = scalar_lea.sflag [#allocation3], 1
    %6156 = vsyncpa %s6155, 1
    %6157 = vsyncpa [#allocation5], 1
    %s6158 = scalar_lea.sflag [#allocation5], 1
    %6159 = vsyncpa %s6158, 1
    %6160 = vsyncpa [#allocation8], 1
    %6161 = vsyncpa [#allocation11], 1

</llo_original>
